<compile_context>
chip_gen: v7x
topology: tpu7x:2x2x1
jax: 0.10.0
libtpu: 0.0.40
codegen_flags: <defaults>
</compile_context>

<pallas_src>
import functools

import jax
import jax.numpy as jnp
from jax import lax
from jax.experimental import pallas as pl
from jax.experimental.pallas import tpu as pltpu

BN_EPS = 1e-5
_LANES = 128


def _round_up(x, m):
    return (x + m - 1) // m * m


def _vmem_capacity_bytes():
    try:
        return int(pltpu.get_tpu_info().vmem_capacity_bytes)
    except Exception:
        return 64 * 1024 * 1024  # conservative fallback (v7x per-core VMEM)


def _pick_tile_rows(H, footprint_fn, budget_bytes):
    """Largest divisor of H whose estimated per-step footprint fits the budget."""
    # TODO(synk): support H with awkward factors via a masked partial last tile
    # (pl.cdiv grid + in-kernel row-validity mask for the BN partial stats).
    best = 1
    for th in range(1, H + 1):
        if H % th == 0 and footprint_fn(th) <= budget_bytes:
            best = th
    return best


# ------- fused Conv3x3 (+ optional input BN/ReLU) + partial BN stats ---------
def _conv3x3_stats_kernel(scale_ref, shift_ref, xt_ref, xm_ref, xb_ref, w_ref,
                          y_ref, psum_ref, psq_ref, xpad_ref, patch_ref,
                          *, apply_input_bnrelu):
    # scale/shift : (1,1,1,Cin) folded BN of the previous layer, applied to the
    #               *input* (with ReLU) when apply_input_bnrelu=True.
    # xt/xm/xb    : halo row above / H-tile / halo row below (bf16).
    # w_ref       : (9*Cin, Cout) bf16, tap-major (ky,kx,cin) to match im2col.
    # y_ref       : (1,TH,W,Cout) bf16 conv output tile (pre-BN, no bias).
    # psum/psq    : (1,1,1,Cout) per-step partial sum / sum-of-squares (f32).
    # xpad_ref    : f32 VMEM scratch (TH+2, W+2, Cin), border-zero-padded slab.
    # patch_ref   : bf16 VMEM scratch (TH*W, 9*Cin) im2col patch matrix.
    th_i = pl.program_id(1)
    n_th = pl.num_programs(1)
    TH = xm_ref.shape[1]
    W = xm_ref.shape[2]
    Cin = xm_ref.shape[3]
    Cout = w_ref.shape[1]

    if apply_input_bnrelu:
        scale = scale_ref[0, 0, 0, :]
        shift = shift_ref[0, 0, 0, :]

        def act(v):
            return jnp.maximum(v.astype(jnp.float32) * scale + shift, 0.0)
    else:
        def act(v):
            return v.astype(jnp.float32)

    # --- assemble zero-padded slab; only the border strips are written -------
    zcol = jnp.zeros((TH + 2, 1, Cin), xpad_ref.dtype)
    xpad_ref[:, 0:1, :] = zcol                      # left  zero-pad column
    xpad_ref[:, W + 1:W + 2, :] = zcol              # right zero-pad column
    xpad_ref[1:TH + 1, 1:W + 1, :] = act(xm_ref[0])  # interior (fully rewritten)

    zrow = jnp.zeros((1, W, Cin), xpad_ref.dtype)

    @pl.when(th_i == 0)
    def _():
        xpad_ref[0:1, 1:W + 1, :] = zrow            # image top: zero padding

    @pl.when(th_i > 0)
    def _():
        xpad_ref[0:1, 1:W + 1, :] = act(xt_ref[0])  # halo row from tile above

    @pl.when(th_i == n_th - 1)
    def _():
        xpad_ref[TH + 1:TH + 2, 1:W + 1, :] = zrow  # image bottom: zero padding

    @pl.when(th_i < n_th - 1)
    def _():
        xpad_ref[TH + 1:TH + 2, 1:W + 1, :] = act(xb_ref[0])

    # --- im2col: one (TH*W, 9*Cin) bf16 patch, one K-deep MXU matmul ---------
    for ky in range(3):
        for kx in range(3):
            tap = ky * 3 + kx
            patch_ref[:, tap * Cin:(tap + 1) * Cin] = (
                xpad_ref[ky:ky + TH, kx:kx + W, :]
                .reshape(TH * W, Cin).astype(jnp.bfloat16))

    acc = jnp.dot(patch_ref[...], w_ref[...],
                  preferred_element_type=jnp.float32)

    y_ref[...] = acc.reshape(1, TH, W, Cout).astype(y_ref.dtype)
    # Per-channel partial statistics of the conv output (from the f32 acc).
    psum_ref[...] = jnp.sum(acc, axis=0).reshape(1, 1, 1, Cout)
    psq_ref[...] = jnp.sum(acc * acc, axis=0).reshape(1, 1, 1, Cout)


def conv3x3_with_stats(x, w2d, scale, shift, *, apply_input_bnrelu,
                       vmem_budget, vmem_limit):
    """x: (N,H,W,Cin) bf16 NHWC (channels padded to a 128 multiple).
    w2d: (9*Cin, Cout) bf16.  Returns (y bf16, partial_sum, partial_sumsq)."""
    N, H, W, Cin = x.shape
    Cout = w2d.shape[1]

    def est(th):
        b = 0
        b += 2 * th * W * Cin * 2            # x tile (bf16), double-buffered
        b += 2 * 2 * W * Cin * 2             # halo rows, double-buffered
        b += 2 * th * W * Cout * 2           # y tile (bf16), double-buffered
        b += 2 * 9 * Cin * Cout * 2          # weights (bf16), double-buffered
        b += (th + 2) * (W + 2) * Cin * 4    # xpad scratch (f32)
        b += th * W * 9 * Cin * 2            # im2col patch scratch (bf16)
        b += 2 * th * W * Cout * 4           # f32 acc + compiler temps
        return b

    TH = _pick_tile_rows(H, est, vmem_budget)
    n_th = H // TH

    kernel = functools.partial(_conv3x3_stats_kernel,
                               apply_input_bnrelu=apply_input_bnrelu)

    def row_above(n, t):
        return (n, jnp.maximum(t * TH - 1, 0), 0, 0)

    def row_below(n, t):
        return (n, jnp.minimum(t * TH + TH, H - 1), 0, 0)

    return pl.pallas_call(
        kernel,
        grid=(N, n_th),
        in_specs=[
            pl.BlockSpec((1, 1, 1, Cin), lambda n, t: (0, 0, 0, 0)),   # scale
            pl.BlockSpec((1, 1, 1, Cin), lambda n, t: (0, 0, 0, 0)),   # shift
            pl.BlockSpec((1, 1, W, Cin), row_above),                   # halo up
            pl.BlockSpec((1, TH, W, Cin), lambda n, t: (n, t, 0, 0)),  # tile
            pl.BlockSpec((1, 1, W, Cin), row_below),                   # halo dn
            pl.BlockSpec((9 * Cin, Cout), lambda n, t: (0, 0)),        # weights
        ],
        out_specs=[
            pl.BlockSpec((1, TH, W, Cout), lambda n, t: (n, t, 0, 0)),
            pl.BlockSpec((1, 1, 1, Cout), lambda n, t: (n, t, 0, 0)),
            pl.BlockSpec((1, 1, 1, Cout), lambda n, t: (n, t, 0, 0)),
        ],
        out_shape=(
            jax.ShapeDtypeStruct((N, H, W, Cout), jnp.bfloat16),
            jax.ShapeDtypeStruct((N, n_th, 1, Cout), jnp.float32),
            jax.ShapeDtypeStruct((N, n_th, 1, Cout), jnp.float32),
        ),
        scratch_shapes=[
            pltpu.VMEM((TH + 2, W + 2, Cin), jnp.float32),
            pltpu.VMEM((TH * W, 9 * Cin), jnp.bfloat16),
        ],
        compiler_params=pltpu.CompilerParams(
            dimension_semantics=("parallel", "parallel"),
            vmem_limit_bytes=vmem_limit),
    )(scale, shift, x, x, x, w2d)


# ---------------------------- final BN + ReLU apply --------------------------
def _bn_relu_apply_kernel(scale_ref, shift_ref, y_ref, o_ref):
    o_ref[...] = jnp.maximum(
        y_ref[...].astype(jnp.float32) * scale_ref[...] + shift_ref[...],
        0.0).astype(o_ref.dtype)


def bn_relu_apply(y, scale, shift, *, vmem_budget, vmem_limit):
    N, H, W, C = y.shape

    def est(th):
        return 2 * th * W * C * 2 + 2 * th * W * C * 4 + 4 * C * 4

    TH = _pick_tile_rows(H, est, vmem_budget)
    n_th = H // TH
    return pl.pallas_call(
        _bn_relu_apply_kernel,
        grid=(N, n_th),
        in_specs=[
            pl.BlockSpec((1, 1, 1, C), lambda n, t: (0, 0, 0, 0)),
            pl.BlockSpec((1, 1, 1, C), lambda n, t: (0, 0, 0, 0)),
            pl.BlockSpec((1, TH, W, C), lambda n, t: (n, t, 0, 0)),
        ],
        out_specs=pl.BlockSpec((1, TH, W, C), lambda n, t: (n, t, 0, 0)),
        out_shape=jax.ShapeDtypeStruct((N, H, W, C), jnp.float32),
        compiler_params=pltpu.CompilerParams(
            dimension_semantics=("parallel", "parallel"),
            vmem_limit_bytes=vmem_limit),
    )(scale, shift, y)


# --------------------------- BN stat folding (tiny) ---------------------------
def _bn_scale_shift(psum, psq, gamma, beta, count):
    # One-pass batch stats: mean and biased variance (PyTorch train mode).
    mu = psum.sum(axis=(0, 1, 2)) / count
    var = jnp.maximum(psq.sum(axis=(0, 1, 2)) / count - mu * mu, 0.0)
    scale = gamma * lax.rsqrt(var + BN_EPS)
    shift = beta - mu * scale
    C = scale.shape[0]
    return scale.reshape(1, 1, 1, C), shift.reshape(1, 1, 1, C)


# --------------------------------- DoubleConv ---------------------------------
def init_double_conv_params(key, in_ch, out_ch):
    k1, k2, k3, k4, k5, k6, k7, k8 = jax.random.split(key, 8)
    bound1 = (in_ch * 9) ** -0.5
    bound2 = (out_ch * 9) ** -0.5
    return {
        "w1": jax.random.uniform(k1, (3, 3, in_ch, out_ch), jnp.float32,
                                 -bound1, bound1),
        "b1": jax.random.uniform(k3, (out_ch,), jnp.float32, -bound1, bound1),
        "g1": 1.0 + 0.1 * jax.random.normal(k5, (out_ch,), jnp.float32),
        "beta1": 0.1 * jax.random.normal(k6, (out_ch,), jnp.float32),
        "w2": jax.random.uniform(k2, (3, 3, out_ch, out_ch), jnp.float32,
                                 -bound2, bound2),
        "b2": jax.random.uniform(k4, (out_ch,), jnp.float32, -bound2, bound2),
        "g2": 1.0 + 0.1 * jax.random.normal(k7, (out_ch,), jnp.float32),
        "beta2": 0.1 * jax.random.normal(k8, (out_ch,), jnp.float32),
    }


def double_conv_forward_nhwc(x_nhwc, params):
    """(Conv3x3 -> BN(train-mode stats) -> ReLU) x 2, NHWC in / NHWC out."""
    N, H, W, Cin = x_nhwc.shape
    out_ch = params["g1"].shape[0]
    Cp = _round_up(Cin, _LANES)
    Cop = _round_up(out_ch, _LANES)

    cap = _vmem_capacity_bytes()
    conv_budget = int(cap * 0.40)
    ew_budget = int(cap * 0.55)
    vmem_limit = min(int(cap * 0.75), 96 * 1024 * 1024)

    # Lane-dense channel padding; bf16 operands (padded channels stay zero).
    x = jnp.pad(x_nhwc.astype(jnp.bfloat16),
                ((0, 0), (0, 0), (0, 0), (0, Cp - Cin)))
    # HWIO -> (9*Cin, Cout); row-major (ky,kx,cin) matches the in-kernel
    # im2col tap order.
    w1 = jnp.pad(params["w1"].astype(jnp.float32),
                 ((0, 0), (0, 0), (0, Cp - Cin), (0, Cop - out_ch)))
    w1 = w1.reshape(9 * Cp, Cop).astype(jnp.bfloat16)
    w2 = jnp.pad(params["w2"].astype(jnp.float32),
                 ((0, 0), (0, 0), (0, Cop - out_ch), (0, Cop - out_ch)))
    w2 = w2.reshape(9 * Cop, Cop).astype(jnp.bfloat16)
    pad_c = (0, Cop - out_ch)
    g1 = jnp.pad(params["g1"].astype(jnp.float32), pad_c)
    bt1 = jnp.pad(params["beta1"].astype(jnp.float32), pad_c)
    g2 = jnp.pad(params["g2"].astype(jnp.float32), pad_c)
    bt2 = jnp.pad(params["beta2"].astype(jnp.float32), pad_c)

    ones = jnp.ones((1, 1, 1, Cp), jnp.float32)
    zeros = jnp.zeros((1, 1, 1, Cp), jnp.float32)
    count = float(N * H * W)

    # Conv1 + partial BN1 stats.  Conv bias omitted: a per-channel constant
    # added before train-mode BN cancels exactly in the mean subtraction.
    y1, s1, q1 = conv3x3_with_stats(x, w1, ones, zeros,
                                    apply_input_bnrelu=False,
                                    vmem_budget=conv_budget,
                                    vmem_limit=vmem_limit)
    scale1, shift1 = _bn_scale_shift(s1, q1, g1, bt1, count)

    # Conv2 with BN1 + ReLU fused into its input read, + partial BN2 stats.
    y2, s2, q2 = conv3x3_with_stats(y1, w2, scale1, shift1,
                                    apply_input_bnrelu=True,
                                    vmem_budget=conv_budget,
                                    vmem_limit=vmem_limit)
    scale2, shift2 = _bn_scale_shift(s2, q2, g2, bt2, count)

    # Final BN2 + ReLU (memory-bound elementwise pass, large tiles), then drop
    # the padded channels.
    out = bn_relu_apply(y2, scale2, shift2,
                        vmem_budget=ew_budget, vmem_limit=vmem_limit)
    return out[..., :out_ch]


@jax.jit
def double_conv_forward(x_nchw, params):
    # NCHW (PyTorch) <-> NHWC (kernel layout).
    x = jnp.transpose(x_nchw, (0, 2, 3, 1))
    y = double_conv_forward_nhwc(x, params)
    return jnp.transpose(y, (0, 3, 1, 2))


# ------------------------------ pure-JAX reference ----------------------------
def _ref_forward(x_nchw, params):
    x = jnp.transpose(x_nchw, (0, 2, 3, 1)).astype(jnp.float32)

    def conv(v, w, b):
        y = lax.conv_general_dilated(
            v, w, window_strides=(1, 1), padding="SAME",
            dimension_numbers=("NHWC", "HWIO", "NHWC"))
        return y + b[None, None, None, :]

    def bn_relu(y, g, beta):
        mu = y.mean(axis=(0, 1, 2), keepdims=True)
        var = jnp.square(y - mu).mean(axis=(0, 1, 2), keepdims=True)  # biased
        z = (y - mu) * lax.rsqrt(var + BN_EPS) * g + beta
        return jnp.maximum(z, 0.0)

    y = bn_relu(conv(x, params["w1"], params["b1"]),
                params["g1"], params["beta1"])
    y = bn_relu(conv(y, params["w2"], params["b2"]),
                params["g2"], params["beta2"])
    return jnp.transpose(y, (0, 3, 1, 2))


if __name__ == "__main__":
    key = jax.random.PRNGKey(0)
    kx_, kp = jax.random.split(key)

    N, IN_CH, OUT_CH, H, W = 2, 4, 8, 16, 16
    x = jax.random.normal(kx_, (N, IN_CH, H, W), jnp.float32)   # NCHW input
    params = init_double_conv_params(kp, IN_CH, OUT_CH)

    out = jax.block_until_ready(double_conv_forward(x, params))
    ref = _ref_forward(x, params)

    assert out.shape == (N, OUT_CH, H, W), out.shape
    max_err = float(jnp.max(jnp.abs(out - ref)))
    # bf16 MXU operands + bf16 intermediates vs. the f32 reference => relaxed
    # tolerance (outputs are O(1) after BN).
    assert max_err < 7.5e-2, max_err

    print("KERNEL_OK")
</pallas_src>

<mosaic_0001>
module attributes {stable_mosaic.version = 11 : i64} {
  func.func @_conv3x3_stats_kernel(%arg0: i32, %arg1: i32, %arg2: memref<1x1x1x128xf32, #tpu.memory_space<vmem>>, %arg3: memref<1x1x1x128xf32, #tpu.memory_space<vmem>>, %arg4: memref<1x1x16x128xbf16, #tpu.memory_space<vmem>>, %arg5: memref<1x16x16x128xbf16, #tpu.memory_space<vmem>>, %arg6: memref<1x1x16x128xbf16, #tpu.memory_space<vmem>>, %arg7: memref<1152x128xbf16, #tpu.memory_space<vmem>>, %arg8: memref<1x16x16x128xbf16, #tpu.memory_space<vmem>>, %arg9: memref<1x1x1x128xf32, #tpu.memory_space<vmem>>, %arg10: memref<1x1x1x128xf32, #tpu.memory_space<vmem>>, %arg11: memref<18x18x128xf32, #tpu.memory_space<vmem>>, %arg12: memref<256x1152xbf16, #tpu.memory_space<vmem>>) attributes {dimension_semantics = [#tpu.dimension_semantics<parallel>, #tpu.dimension_semantics<parallel>], iteration_bounds = array<i64: 2, 1>, scalar_prefetch = 0 : i64, scratch_operands = 2 : i64, tpu.core_type = #tpu.core_type<tc>, window_params = [{pipeline_mode = #tpu.pipeline_mode<synchronous>, transform_indices = @transform_0, window_bounds = array<i64: 1, 1, 1, 128>}, {pipeline_mode = #tpu.pipeline_mode<synchronous>, transform_indices = @transform_1, window_bounds = array<i64: 1, 1, 1, 128>}, {transform_indices = @transform_2, window_bounds = array<i64: 1, 1, 16, 128>}, {transform_indices = @transform_3, window_bounds = array<i64: 1, 16, 16, 128>}, {transform_indices = @transform_4, window_bounds = array<i64: 1, 1, 16, 128>}, {pipeline_mode = #tpu.pipeline_mode<synchronous>, transform_indices = @transform_5, window_bounds = array<i64: 1152, 128>}, {transform_indices = @transform_6, window_bounds = array<i64: 1, 16, 16, 128>}, {transform_indices = @transform_7, window_bounds = array<i64: 1, 1, 1, 128>}, {transform_indices = @transform_8, window_bounds = array<i64: 1, 1, 1, 128>}]} {
    %cst = arith.constant 0.000000e+00 : f32
    %0 = vector.broadcast %cst : f32 to vector<18x1x128xf32>
    %c0 = arith.constant 0 : index
    %c0_0 = arith.constant 0 : index
    %c0_1 = arith.constant 0 : index
    %1 = vector.load %arg11[%c0, %c0_0, %c0_1] : memref<18x18x128xf32, #tpu.memory_space<vmem>>, vector<18x1x128xf32>
    tpu.vector_store %arg11[%c0, %c0_0, %c0_1], %0 {strides = array<i32>} : memref<18x18x128xf32, #tpu.memory_space<vmem>>, vector<18x1x128xf32>,
    %c0_2 = arith.constant 0 : index
    %c17 = arith.constant 17 : index
    %c0_3 = arith.constant 0 : index
    %2 = vector.load %arg11[%c0_2, %c17, %c0_3] : memref<18x18x128xf32, #tpu.memory_space<vmem>>, vector<18x1x128xf32>
    tpu.vector_store %arg11[%c0_2, %c17, %c0_3], %0 {strides = array<i32>} : memref<18x18x128xf32, #tpu.memory_space<vmem>>, vector<18x1x128xf32>,
    %c0_4 = arith.constant 0 : index
    %c0_5 = arith.constant 0 : index
    %c0_6 = arith.constant 0 : index
    %c0_7 = arith.constant 0 : index
    %3 = vector.load %arg5[%c0_4, %c0_5, %c0_6, %c0_7] : memref<1x16x16x128xbf16, #tpu.memory_space<vmem>>, vector<1x16x16x128xbf16>
    %4 = vector.shape_cast %3 : vector<1x16x16x128xbf16> to vector<16x16x128xbf16>
    %5 = arith.extf %4 : vector<16x16x128xbf16> to vector<16x16x128xf32>
    %c1 = arith.constant 1 : index
    %c1_8 = arith.constant 1 : index
    %c0_9 = arith.constant 0 : index
    %6 = vector.load %arg11[%c1, %c1_8, %c0_9] : memref<18x18x128xf32, #tpu.memory_space<vmem>>, vector<16x16x128xf32>
    tpu.vector_store %arg11[%c1, %c1_8, %c0_9], %5 {strides = array<i32>} : memref<18x18x128xf32, #tpu.memory_space<vmem>>, vector<16x16x128xf32>,
    %cst_10 = arith.constant 0.000000e+00 : f32
    %7 = vector.broadcast %cst_10 : f32 to vector<1x16x128xf32>
    %c0_i32 = arith.constant 0 : i32
    %8 = arith.cmpi eq, %arg1, %c0_i32 : i32
    %9 = arith.extui %8 : i1 to i32
    %c0_i32_11 = arith.constant 0 : i32
    %10 = arith.cmpi ne, %9, %c0_i32_11 : i32
    scf.if %10 {
      %c0_73 = arith.constant 0 : index
      %c1_74 = arith.constant 1 : index
      %c0_75 = arith.constant 0 : index
      %69 = vector.load %arg11[%c0_73, %c1_74, %c0_75] : memref<18x18x128xf32, #tpu.memory_space<vmem>>, vector<1x16x128xf32>
      tpu.vector_store %arg11[%c0_73, %c1_74, %c0_75], %7 {strides = array<i32>} : memref<18x18x128xf32, #tpu.memory_space<vmem>>, vector<1x16x128xf32>,
    } else {
    }
    %c0_i32_12 = arith.constant 0 : i32
    %11 = arith.cmpi sgt, %arg1, %c0_i32_12 : i32
    %12 = arith.extui %11 : i1 to i32
    %c0_i32_13 = arith.constant 0 : i32
    %13 = arith.cmpi ne, %12, %c0_i32_13 : i32
    scf.if %13 {
      %c0_73 = arith.constant 0 : index
      %c0_74 = arith.constant 0 : index
      %c0_75 = arith.constant 0 : index
      %c0_76 = arith.constant 0 : index
      %69 = vector.load %arg4[%c0_73, %c0_74, %c0_75, %c0_76] : memref<1x1x16x128xbf16, #tpu.memory_space<vmem>>, vector<1x1x16x128xbf16>
      %70 = vector.shape_cast %69 : vector<1x1x16x128xbf16> to vector<1x16x128xbf16>
      %71 = arith.extf %70 : vector<1x16x128xbf16> to vector<1x16x128xf32>
      %c0_77 = arith.constant 0 : index
      %c1_78 = arith.constant 1 : index
      %c0_79 = arith.constant 0 : index
      %72 = vector.load %arg11[%c0_77, %c1_78, %c0_79] : memref<18x18x128xf32, #tpu.memory_space<vmem>>, vector<1x16x128xf32>
      tpu.vector_store %arg11[%c0_77, %c1_78, %c0_79], %71 {strides = array<i32>} : memref<18x18x128xf32, #tpu.memory_space<vmem>>, vector<1x16x128xf32>,
    } else {
    }
    %c0_i32_14 = arith.constant 0 : i32
    %14 = arith.cmpi eq, %arg1, %c0_i32_14 : i32
    %15 = arith.extui %14 : i1 to i32
    %c0_i32_15 = arith.constant 0 : i32
    %16 = arith.cmpi ne, %15, %c0_i32_15 : i32
    scf.if %16 {
      %c17_73 = arith.constant 17 : index
      %c1_74 = arith.constant 1 : index
      %c0_75 = arith.constant 0 : index
      %69 = vector.load %arg11[%c17_73, %c1_74, %c0_75] : memref<18x18x128xf32, #tpu.memory_space<vmem>>, vector<1x16x128xf32>
      tpu.vector_store %arg11[%c17_73, %c1_74, %c0_75], %7 {strides = array<i32>} : memref<18x18x128xf32, #tpu.memory_space<vmem>>, vector<1x16x128xf32>,
    } else {
    }
    %c0_i32_16 = arith.constant 0 : i32
    %17 = arith.cmpi slt, %arg1, %c0_i32_16 : i32
    %18 = arith.extui %17 : i1 to i32
    %c0_i32_17 = arith.constant 0 : i32
    %19 = arith.cmpi ne, %18, %c0_i32_17 : i32
    scf.if %19 {
      %c0_73 = arith.constant 0 : index
      %c0_74 = arith.constant 0 : index
      %c0_75 = arith.constant 0 : index
      %c0_76 = arith.constant 0 : index
      %69 = vector.load %arg6[%c0_73, %c0_74, %c0_75, %c0_76] : memref<1x1x16x128xbf16, #tpu.memory_space<vmem>>, vector<1x1x16x128xbf16>
      %70 = vector.shape_cast %69 : vector<1x1x16x128xbf16> to vector<1x16x128xbf16>
      %71 = arith.extf %70 : vector<1x16x128xbf16> to vector<1x16x128xf32>
      %c17_77 = arith.constant 17 : index
      %c1_78 = arith.constant 1 : index
      %c0_79 = arith.constant 0 : index
      %72 = vector.load %arg11[%c17_77, %c1_78, %c0_79] : memref<18x18x128xf32, #tpu.memory_space<vmem>>, vector<1x16x128xf32>
      tpu.vector_store %arg11[%c17_77, %c1_78, %c0_79], %71 {strides = array<i32>} : memref<18x18x128xf32, #tpu.memory_space<vmem>>, vector<1x16x128xf32>,
    } else {
    }
    %c0_18 = arith.constant 0 : index
    %c0_19 = arith.constant 0 : index
    %c0_20 = arith.constant 0 : index
    %20 = vector.load %arg11[%c0_18, %c0_19, %c0_20] : memref<18x18x128xf32, #tpu.memory_space<vmem>>, vector<16x16x128xf32>
    %21 = vector.shape_cast %20 : vector<16x16x128xf32> to vector<256x128xf32>
    %22 = arith.truncf %21 : vector<256x128xf32> to vector<256x128xbf16>
    %c0_21 = arith.constant 0 : index
    %c0_22 = arith.constant 0 : index
    %23 = vector.load %arg12[%c0_21, %c0_22] : memref<256x1152xbf16, #tpu.memory_space<vmem>>, vector<256x128xbf16>
    tpu.vector_store %arg12[%c0_21, %c0_22], %22 {strides = array<i32>} : memref<256x1152xbf16, #tpu.memory_space<vmem>>, vector<256x128xbf16>,
    %c0_23 = arith.constant 0 : index
    %c1_24 = arith.constant 1 : index
    %c0_25 = arith.constant 0 : index
    %24 = vector.load %arg11[%c0_23, %c1_24, %c0_25] : memref<18x18x128xf32, #tpu.memory_space<vmem>>, vector<16x16x128xf32>
    %25 = vector.shape_cast %24 : vector<16x16x128xf32> to vector<256x128xf32>
    %26 = arith.truncf %25 : vector<256x128xf32> to vector<256x128xbf16>
    %c0_26 = arith.constant 0 : index
    %c128 = arith.constant 128 : index
    %27 = vector.load %arg12[%c0_26, %c128] : memref<256x1152xbf16, #tpu.memory_space<vmem>>, vector<256x128xbf16>
    tpu.vector_store %arg12[%c0_26, %c128], %26 {strides = array<i32>} : memref<256x1152xbf16, #tpu.memory_space<vmem>>, vector<256x128xbf16>,
    %c0_27 = arith.constant 0 : index
    %c2 = arith.constant 2 : index
    %c0_28 = arith.constant 0 : index
    %28 = vector.load %arg11[%c0_27, %c2, %c0_28] : memref<18x18x128xf32, #tpu.memory_space<vmem>>, vector<16x16x128xf32>
    %29 = vector.shape_cast %28 : vector<16x16x128xf32> to vector<256x128xf32>
    %30 = arith.truncf %29 : vector<256x128xf32> to vector<256x128xbf16>
    %c0_29 = arith.constant 0 : index
    %c256 = arith.constant 256 : index
    %31 = vector.load %arg12[%c0_29, %c256] : memref<256x1152xbf16, #tpu.memory_space<vmem>>, vector<256x128xbf16>
    tpu.vector_store %arg12[%c0_29, %c256], %30 {strides = array<i32>} : memref<256x1152xbf16, #tpu.memory_space<vmem>>, vector<256x128xbf16>,
    %c1_30 = arith.constant 1 : index
    %c0_31 = arith.constant 0 : index
    %c0_32 = arith.constant 0 : index
    %32 = vector.load %arg11[%c1_30, %c0_31, %c0_32] : memref<18x18x128xf32, #tpu.memory_space<vmem>>, vector<16x16x128xf32>
    %33 = vector.shape_cast %32 : vector<16x16x128xf32> to vector<256x128xf32>
    %34 = arith.truncf %33 : vector<256x128xf32> to vector<256x128xbf16>
    %c0_33 = arith.constant 0 : index
    %c384 = arith.constant 384 : index
    %35 = vector.load %arg12[%c0_33, %c384] : memref<256x1152xbf16, #tpu.memory_space<vmem>>, vector<256x128xbf16>
    tpu.vector_store %arg12[%c0_33, %c384], %34 {strides = array<i32>} : memref<256x1152xbf16, #tpu.memory_space<vmem>>, vector<256x128xbf16>,
    %c1_34 = arith.constant 1 : index
    %c1_35 = arith.constant 1 : index
    %c0_36 = arith.constant 0 : index
    %36 = vector.load %arg11[%c1_34, %c1_35, %c0_36] : memref<18x18x128xf32, #tpu.memory_space<vmem>>, vector<16x16x128xf32>
    %37 = vector.shape_cast %36 : vector<16x16x128xf32> to vector<256x128xf32>
    %38 = arith.truncf %37 : vector<256x128xf32> to vector<256x128xbf16>
    %c0_37 = arith.constant 0 : index
    %c512 = arith.constant 512 : index
    %39 = vector.load %arg12[%c0_37, %c512] : memref<256x1152xbf16, #tpu.memory_space<vmem>>, vector<256x128xbf16>
    tpu.vector_store %arg12[%c0_37, %c512], %38 {strides = array<i32>} : memref<256x1152xbf16, #tpu.memory_space<vmem>>, vector<256x128xbf16>,
    %c1_38 = arith.constant 1 : index
    %c2_39 = arith.constant 2 : index
    %c0_40 = arith.constant 0 : index
    %40 = vector.load %arg11[%c1_38, %c2_39, %c0_40] : memref<18x18x128xf32, #tpu.memory_space<vmem>>, vector<16x16x128xf32>
    %41 = vector.shape_cast %40 : vector<16x16x128xf32> to vector<256x128xf32>
    %42 = arith.truncf %41 : vector<256x128xf32> to vector<256x128xbf16>
    %c0_41 = arith.constant 0 : index
    %c640 = arith.constant 640 : index
    %43 = vector.load %arg12[%c0_41, %c640] : memref<256x1152xbf16, #tpu.memory_space<vmem>>, vector<256x128xbf16>
    tpu.vector_store %arg12[%c0_41, %c640], %42 {strides = array<i32>} : memref<256x1152xbf16, #tpu.memory_space<vmem>>, vector<256x128xbf16>,
    %c2_42 = arith.constant 2 : index
    %c0_43 = arith.constant 0 : index
    %c0_44 = arith.constant 0 : index
    %44 = vector.load %arg11[%c2_42, %c0_43, %c0_44] : memref<18x18x128xf32, #tpu.memory_space<vmem>>, vector<16x16x128xf32>
    %45 = vector.shape_cast %44 : vector<16x16x128xf32> to vector<256x128xf32>
    %46 = arith.truncf %45 : vector<256x128xf32> to vector<256x128xbf16>
    %c0_45 = arith.constant 0 : index
    %c768 = arith.constant 768 : index
    %47 = vector.load %arg12[%c0_45, %c768] : memref<256x1152xbf16, #tpu.memory_space<vmem>>, vector<256x128xbf16>
    tpu.vector_store %arg12[%c0_45, %c768], %46 {strides = array<i32>} : memref<256x1152xbf16, #tpu.memory_space<vmem>>, vector<256x128xbf16>,
    %c2_46 = arith.constant 2 : index
    %c1_47 = arith.constant 1 : index
    %c0_48 = arith.constant 0 : index
    %48 = vector.load %arg11[%c2_46, %c1_47, %c0_48] : memref<18x18x128xf32, #tpu.memory_space<vmem>>, vector<16x16x128xf32>
    %49 = vector.shape_cast %48 : vector<16x16x128xf32> to vector<256x128xf32>
    %50 = arith.truncf %49 : vector<256x128xf32> to vector<256x128xbf16>
    %c0_49 = arith.constant 0 : index
    %c896 = arith.constant 896 : index
    %51 = vector.load %arg12[%c0_49, %c896] : memref<256x1152xbf16, #tpu.memory_space<vmem>>, vector<256x128xbf16>
    tpu.vector_store %arg12[%c0_49, %c896], %50 {strides = array<i32>} : memref<256x1152xbf16, #tpu.memory_space<vmem>>, vector<256x128xbf16>,
    %c2_50 = arith.constant 2 : index
    %c2_51 = arith.constant 2 : index
    %c0_52 = arith.constant 0 : index
    %52 = vector.load %arg11[%c2_50, %c2_51, %c0_52] : memref<18x18x128xf32, #tpu.memory_space<vmem>>, vector<16x16x128xf32>
    %53 = vector.shape_cast %52 : vector<16x16x128xf32> to vector<256x128xf32>
    %54 = arith.truncf %53 : vector<256x128xf32> to vector<256x128xbf16>
    %c0_53 = arith.constant 0 : index
    %c1024 = arith.constant 1024 : index
    %55 = vector.load %arg12[%c0_53, %c1024] : memref<256x1152xbf16, #tpu.memory_space<vmem>>, vector<256x128xbf16>
    tpu.vector_store %arg12[%c0_53, %c1024], %54 {strides = array<i32>} : memref<256x1152xbf16, #tpu.memory_space<vmem>>, vector<256x128xbf16>,
    %c0_54 = arith.constant 0 : index
    %c0_55 = arith.constant 0 : index
    %56 = vector.load %arg12[%c0_54, %c0_55] : memref<256x1152xbf16, #tpu.memory_space<vmem>>, vector<256x1152xbf16>
    %c0_56 = arith.constant 0 : index
    %c0_57 = arith.constant 0 : index
    %57 = vector.load %arg7[%c0_56, %c0_57] : memref<1152x128xbf16, #tpu.memory_space<vmem>>, vector<1152x128xbf16>
    %cst_58 = arith.constant dense<0.000000e+00> : vector<256x128xf32>
    %58 = tpu.matmul %56, %57, %cst_58 {dimension_numbers = #tpu.dot_dimension_numbers<[1], [0], [0], [1], [0, 0, 1, 1], [], []>} : vector<256x1152xbf16>, vector<1152x128xbf16>, vector<256x128xf32> -> vector<256x128xf32>
    %59 = vector.shape_cast %58 : vector<256x128xf32> to vector<1x16x16x128xf32>
    %60 = arith.truncf %59 : vector<1x16x16x128xf32> to vector<1x16x16x128xbf16>
    %c0_59 = arith.constant 0 : index
    %c0_60 = arith.constant 0 : index
    %c0_61 = arith.constant 0 : index
    %c0_62 = arith.constant 0 : index
    %61 = vector.load %arg8[%c0_59, %c0_60, %c0_61, %c0_62] : memref<1x16x16x128xbf16, #tpu.memory_space<vmem>>, vector<1x16x16x128xbf16>
    tpu.vector_store %arg8[%c0_59, %c0_60, %c0_61, %c0_62], %60 {strides = array<i32>} : memref<1x16x16x128xbf16, #tpu.memory_space<vmem>>, vector<1x16x16x128xbf16>,
    %cst_63 = arith.constant dense<0.000000e+00> : vector<128xf32>
    %62 = vector.multi_reduction <add>, %58, %cst_63 [0] : vector<256x128xf32> to vector<128xf32>
    %63 = vector.shape_cast %62 : vector<128xf32> to vector<1x1x1x128xf32>
    %c0_64 = arith.constant 0 : index
    %c0_65 = arith.constant 0 : index
    %c0_66 = arith.constant 0 : index
    %c0_67 = arith.constant 0 : index
    %64 = vector.load %arg9[%c0_64, %c0_65, %c0_66, %c0_67] : memref<1x1x1x128xf32, #tpu.memory_space<vmem>>, vector<1x1x1x128xf32>
    tpu.vector_store %arg9[%c0_64, %c0_65, %c0_66, %c0_67], %63 {strides = array<i32>} : memref<1x1x1x128xf32, #tpu.memory_space<vmem>>, vector<1x1x1x128xf32>,
    %65 = arith.mulf %58, %58 : vector<256x128xf32>
    %cst_68 = arith.constant dense<0.000000e+00> : vector<128xf32>
    %66 = vector.multi_reduction <add>, %65, %cst_68 [0] : vector<256x128xf32> to vector<128xf32>
    %67 = vector.shape_cast %66 : vector<128xf32> to vector<1x1x1x128xf32>
    %c0_69 = arith.constant 0 : index
    %c0_70 = arith.constant 0 : index
    %c0_71 = arith.constant 0 : index
    %c0_72 = arith.constant 0 : index
    %68 = vector.load %arg10[%c0_69, %c0_70, %c0_71, %c0_72] : memref<1x1x1x128xf32, #tpu.memory_space<vmem>>, vector<1x1x1x128xf32>
    tpu.vector_store %arg10[%c0_69, %c0_70, %c0_71, %c0_72], %67 {strides = array<i32>} : memref<1x1x1x128xf32, #tpu.memory_space<vmem>>, vector<1x1x1x128xf32>,
    return
  }
  func.func @transform_0(%arg0: i32, %arg1: i32) -> (i32, i32, i32, i32) {
    %c0_i32 = arith.constant 0 : i32
    %c0_i32_0 = arith.constant 0 : i32
    %c0_i32_1 = arith.constant 0 : i32
    %c0_i32_2 = arith.constant 0 : i32
    %c0_i32_3 = arith.constant 0 : i32
    return %c0_i32, %c0_i32_0, %c0_i32_1, %c0_i32_2 : i32, i32, i32, i32
  }
  func.func @transform_1(%arg0: i32, %arg1: i32) -> (i32, i32, i32, i32) {
    %c0_i32 = arith.constant 0 : i32
    %c0_i32_0 = arith.constant 0 : i32
    %c0_i32_1 = arith.constant 0 : i32
    %c0_i32_2 = arith.constant 0 : i32
    %c0_i32_3 = arith.constant 0 : i32
    return %c0_i32, %c0_i32_0, %c0_i32_1, %c0_i32_2 : i32, i32, i32, i32
  }
  func.func @transform_2(%arg0: i32, %arg1: i32) -> (i32, i32, i32, i32) {
    %c16_i32 = arith.constant 16 : i32
    %0 = arith.muli %arg1, %c16_i32 : i32
    %c1_i32 = arith.constant 1 : i32
    %1 = arith.subi %0, %c1_i32 : i32
    %c0_i32 = arith.constant 0 : i32
    %2 = arith.maxsi %1, %c0_i32 : i32
    %c0_i32_0 = arith.constant 0 : i32
    %c0_i32_1 = arith.constant 0 : i32
    %c0_i32_2 = arith.constant 0 : i32
    return %arg0, %2, %c0_i32_0, %c0_i32_1 : i32, i32, i32, i32
  }
  func.func @transform_3(%arg0: i32, %arg1: i32) -> (i32, i32, i32, i32) {
    %c0_i32 = arith.constant 0 : i32
    %c0_i32_0 = arith.constant 0 : i32
    %c0_i32_1 = arith.constant 0 : i32
    return %arg0, %arg1, %c0_i32, %c0_i32_0 : i32, i32, i32, i32
  }
  func.func @transform_4(%arg0: i32, %arg1: i32) -> (i32, i32, i32, i32) {
    %c16_i32 = arith.constant 16 : i32
    %0 = arith.muli %arg1, %c16_i32 : i32
    %c16_i32_0 = arith.constant 16 : i32
    %1 = arith.addi %0, %c16_i32_0 : i32
    %c15_i32 = arith.constant 15 : i32
    %2 = arith.minsi %1, %c15_i32 : i32
    %c0_i32 = arith.constant 0 : i32
    %c0_i32_1 = arith.constant 0 : i32
    %c0_i32_2 = arith.constant 0 : i32
    return %arg0, %2, %c0_i32, %c0_i32_1 : i32, i32, i32, i32
  }
  func.func @transform_5(%arg0: i32, %arg1: i32) -> (i32, i32) {
    %c0_i32 = arith.constant 0 : i32
    %c0_i32_0 = arith.constant 0 : i32
    %c0_i32_1 = arith.constant 0 : i32
    return %c0_i32, %c0_i32_0 : i32, i32
  }
  func.func @transform_6(%arg0: i32, %arg1: i32) -> (i32, i32, i32, i32) {
    %c0_i32 = arith.constant 0 : i32
    %c0_i32_0 = arith.constant 0 : i32
    %c0_i32_1 = arith.constant 0 : i32
    return %arg0, %arg1, %c0_i32, %c0_i32_0 : i32, i32, i32, i32
  }
  func.func @transform_7(%arg0: i32, %arg1: i32) -> (i32, i32, i32, i32) {
    %c0_i32 = arith.constant 0 : i32
    %c0_i32_0 = arith.constant 0 : i32
    %c0_i32_1 = arith.constant 0 : i32
    return %arg0, %arg1, %c0_i32, %c0_i32_0 : i32, i32, i32, i32
  }
  func.func @transform_8(%arg0: i32, %arg1: i32) -> (i32, i32, i32, i32) {
    %c0_i32 = arith.constant 0 : i32
    %c0_i32_0 = arith.constant 0 : i32
    %c0_i32_1 = arith.constant 0 : i32
    return %arg0, %arg1, %c0_i32, %c0_i32_0 : i32, i32, i32, i32
  }
}

module attributes {stable_mosaic.version = 11 : i64} {
  func.func @_conv3x3_stats_kernel(%arg0: i32, %arg1: i32, %arg2: memref<1x1x1x128xf32, #tpu.memory_space<vmem>>, %arg3: memref<1x1x1x128xf32, #tpu.memory_space<vmem>>, %arg4: memref<1x1x16x128xbf16, #tpu.memory_space<vmem>>, %arg5: memref<1x16x16x128xbf16, #tpu.memory_space<vmem>>, %arg6: memref<1x1x16x128xbf16, #tpu.memory_space<vmem>>, %arg7: memref<1152x128xbf16, #tpu.memory_space<vmem>>, %arg8: memref<1x16x16x128xbf16, #tpu.memory_space<vmem>>, %arg9: memref<1x1x1x128xf32, #tpu.memory_space<vmem>>, %arg10: memref<1x1x1x128xf32, #tpu.memory_space<vmem>>, %arg11: memref<18x18x128xf32, #tpu.memory_space<vmem>>, %arg12: memref<256x1152xbf16, #tpu.memory_space<vmem>>) attributes {dimension_semantics = [#tpu.dimension_semantics<parallel>, #tpu.dimension_semantics<parallel>], iteration_bounds = array<i64: 2, 1>, scalar_prefetch = 0 : i64, scratch_operands = 2 : i64, tpu.core_type = #tpu.core_type<tc>, window_params = [{pipeline_mode = #tpu.pipeline_mode<synchronous>, transform_indices = @transform_0, window_bounds = array<i64: 1, 1, 1, 128>}, {pipeline_mode = #tpu.pipeline_mode<synchronous>, transform_indices = @transform_1, window_bounds = array<i64: 1, 1, 1, 128>}, {transform_indices = @transform_2, window_bounds = array<i64: 1, 1, 16, 128>}, {transform_indices = @transform_3, window_bounds = array<i64: 1, 16, 16, 128>}, {transform_indices = @transform_4, window_bounds = array<i64: 1, 1, 16, 128>}, {pipeline_mode = #tpu.pipeline_mode<synchronous>, transform_indices = @transform_5, window_bounds = array<i64: 1152, 128>}, {transform_indices = @transform_6, window_bounds = array<i64: 1, 16, 16, 128>}, {transform_indices = @transform_7, window_bounds = array<i64: 1, 1, 1, 128>}, {transform_indices = @transform_8, window_bounds = array<i64: 1, 1, 1, 128>}]} {
    %c0 = arith.constant 0 : index
    %c0_0 = arith.constant 0 : index
    %c0_1 = arith.constant 0 : index
    %c0_2 = arith.constant 0 : index
    %0 = vector.load %arg2[%c0, %c0_0, %c0_1, %c0_2] : memref<1x1x1x128xf32, #tpu.memory_space<vmem>>, vector<1x1x1x128xf32>
    %1 = vector.shape_cast %0 : vector<1x1x1x128xf32> to vector<128xf32>
    %c0_3 = arith.constant 0 : index
    %c0_4 = arith.constant 0 : index
    %c0_5 = arith.constant 0 : index
    %c0_6 = arith.constant 0 : index
    %2 = vector.load %arg3[%c0_3, %c0_4, %c0_5, %c0_6] : memref<1x1x1x128xf32, #tpu.memory_space<vmem>>, vector<1x1x1x128xf32>
    %3 = vector.shape_cast %2 : vector<1x1x1x128xf32> to vector<128xf32>
    %cst = arith.constant 0.000000e+00 : f32
    %4 = vector.broadcast %cst : f32 to vector<18x1x128xf32>
    %c0_7 = arith.constant 0 : index
    %c0_8 = arith.constant 0 : index
    %c0_9 = arith.constant 0 : index
    %5 = vector.load %arg11[%c0_7, %c0_8, %c0_9] : memref<18x18x128xf32, #tpu.memory_space<vmem>>, vector<18x1x128xf32>
    tpu.vector_store %arg11[%c0_7, %c0_8, %c0_9], %4 {strides = array<i32>} : memref<18x18x128xf32, #tpu.memory_space<vmem>>, vector<18x1x128xf32>,
    %c0_10 = arith.constant 0 : index
    %c17 = arith.constant 17 : index
    %c0_11 = arith.constant 0 : index
    %6 = vector.load %arg11[%c0_10, %c17, %c0_11] : memref<18x18x128xf32, #tpu.memory_space<vmem>>, vector<18x1x128xf32>
    tpu.vector_store %arg11[%c0_10, %c17, %c0_11], %4 {strides = array<i32>} : memref<18x18x128xf32, #tpu.memory_space<vmem>>, vector<18x1x128xf32>,
    %c0_12 = arith.constant 0 : index
    %c0_13 = arith.constant 0 : index
    %c0_14 = arith.constant 0 : index
    %c0_15 = arith.constant 0 : index
    %7 = vector.load %arg5[%c0_12, %c0_13, %c0_14, %c0_15] : memref<1x16x16x128xbf16, #tpu.memory_space<vmem>>, vector<1x16x16x128xbf16>
    %8 = vector.shape_cast %7 : vector<1x16x16x128xbf16> to vector<16x16x128xbf16>
    %9 = arith.extf %8 : vector<16x16x128xbf16> to vector<16x16x128xf32>
    %10 = vector.shape_cast %1 : vector<128xf32> to vector<1x1x128xf32>
    %11 = vector.broadcast %10 : vector<1x1x128xf32> to vector<16x16x128xf32>
    %12 = arith.mulf %9, %11 : vector<16x16x128xf32>
    %13 = vector.shape_cast %3 : vector<128xf32> to vector<1x1x128xf32>
    %14 = vector.broadcast %13 : vector<1x1x128xf32> to vector<16x16x128xf32>
    %15 = arith.addf %12, %14 : vector<16x16x128xf32>
    %cst_16 = arith.constant 0.000000e+00 : f32
    %16 = vector.broadcast %cst_16 : f32 to vector<16x16x128xf32>
    %17 = arith.maximumf %15, %16 : vector<16x16x128xf32>
    %c1 = arith.constant 1 : index
    %c1_17 = arith.constant 1 : index
    %c0_18 = arith.constant 0 : index
    %18 = vector.load %arg11[%c1, %c1_17, %c0_18] : memref<18x18x128xf32, #tpu.memory_space<vmem>>, vector<16x16x128xf32>
    tpu.vector_store %arg11[%c1, %c1_17, %c0_18], %17 {strides = array<i32>} : memref<18x18x128xf32, #tpu.memory_space<vmem>>, vector<16x16x128xf32>,
    %cst_19 = arith.constant 0.000000e+00 : f32
    %19 = vector.broadcast %cst_19 : f32 to vector<1x16x128xf32>
    %c0_i32 = arith.constant 0 : i32
    %20 = arith.cmpi eq, %arg1, %c0_i32 : i32
    %21 = arith.extui %20 : i1 to i32
    %c0_i32_20 = arith.constant 0 : i32
    %22 = arith.cmpi ne, %21, %c0_i32_20 : i32
    scf.if %22 {
      %c0_82 = arith.constant 0 : index
      %c1_83 = arith.constant 1 : index
      %c0_84 = arith.constant 0 : index
      %81 = vector.load %arg11[%c0_82, %c1_83, %c0_84] : memref<18x18x128xf32, #tpu.memory_space<vmem>>, vector<1x16x128xf32>
      tpu.vector_store %arg11[%c0_82, %c1_83, %c0_84], %19 {strides = array<i32>} : memref<18x18x128xf32, #tpu.memory_space<vmem>>, vector<1x16x128xf32>,
    } else {
    }
    %c0_i32_21 = arith.constant 0 : i32
    %23 = arith.cmpi sgt, %arg1, %c0_i32_21 : i32
    %24 = arith.extui %23 : i1 to i32
    %c0_i32_22 = arith.constant 0 : i32
    %25 = arith.cmpi ne, %24, %c0_i32_22 : i32
    scf.if %25 {
      %c0_82 = arith.constant 0 : index
      %c0_83 = arith.constant 0 : index
      %c0_84 = arith.constant 0 : index
      %c0_85 = arith.constant 0 : index
      %81 = vector.load %arg4[%c0_82, %c0_83, %c0_84, %c0_85] : memref<1x1x16x128xbf16, #tpu.memory_space<vmem>>, vector<1x1x16x128xbf16>
      %82 = vector.shape_cast %81 : vector<1x1x16x128xbf16> to vector<1x16x128xbf16>
      %83 = arith.extf %82 : vector<1x16x128xbf16> to vector<1x16x128xf32>
      %84 = vector.shape_cast %1 : vector<128xf32> to vector<1x1x128xf32>
      %85 = vector.broadcast %84 : vector<1x1x128xf32> to vector<1x16x128xf32>
      %86 = arith.mulf %83, %85 : vector<1x16x128xf32>
      %87 = vector.shape_cast %3 : vector<128xf32> to vector<1x1x128xf32>
      %88 = vector.broadcast %87 : vector<1x1x128xf32> to vector<1x16x128xf32>
      %89 = arith.addf %86, %88 : vector<1x16x128xf32>
      %cst_86 = arith.constant 0.000000e+00 : f32
      %90 = vector.broadcast %cst_86 : f32 to vector<1x16x128xf32>
      %91 = arith.maximumf %89, %90 : vector<1x16x128xf32>
      %c0_87 = arith.constant 0 : index
      %c1_88 = arith.constant 1 : index
      %c0_89 = arith.constant 0 : index
      %92 = vector.load %arg11[%c0_87, %c1_88, %c0_89] : memref<18x18x128xf32, #tpu.memory_space<vmem>>, vector<1x16x128xf32>
      tpu.vector_store %arg11[%c0_87, %c1_88, %c0_89], %91 {strides = array<i32>} : memref<18x18x128xf32, #tpu.memory_space<vmem>>, vector<1x16x128xf32>,
    } else {
    }
    %c0_i32_23 = arith.constant 0 : i32
    %26 = arith.cmpi eq, %arg1, %c0_i32_23 : i32
    %27 = arith.extui %26 : i1 to i32
    %c0_i32_24 = arith.constant 0 : i32
    %28 = arith.cmpi ne, %27, %c0_i32_24 : i32
    scf.if %28 {
      %c17_82 = arith.constant 17 : index
      %c1_83 = arith.constant 1 : index
      %c0_84 = arith.constant 0 : index
      %81 = vector.load %arg11[%c17_82, %c1_83, %c0_84] : memref<18x18x128xf32, #tpu.memory_space<vmem>>, vector<1x16x128xf32>
      tpu.vector_store %arg11[%c17_82, %c1_83, %c0_84], %19 {strides = array<i32>} : memref<18x18x128xf32, #tpu.memory_space<vmem>>, vector<1x16x128xf32>,
    } else {
    }
    %c0_i32_25 = arith.constant 0 : i32
    %29 = arith.cmpi slt, %arg1, %c0_i32_25 : i32
    %30 = arith.extui %29 : i1 to i32
    %c0_i32_26 = arith.constant 0 : i32
    %31 = arith.cmpi ne, %30, %c0_i32_26 : i32
    scf.if %31 {
      %c0_82 = arith.constant 0 : index
      %c0_83 = arith.constant 0 : index
      %c0_84 = arith.constant 0 : index
      %c0_85 = arith.constant 0 : index
      %81 = vector.load %arg6[%c0_82, %c0_83, %c0_84, %c0_85] : memref<1x1x16x128xbf16, #tpu.memory_space<vmem>>, vector<1x1x16x128xbf16>
      %82 = vector.shape_cast %81 : vector<1x1x16x128xbf16> to vector<1x16x128xbf16>
      %83 = arith.extf %82 : vector<1x16x128xbf16> to vector<1x16x128xf32>
      %84 = vector.shape_cast %1 : vector<128xf32> to vector<1x1x128xf32>
      %85 = vector.broadcast %84 : vector<1x1x128xf32> to vector<1x16x128xf32>
      %86 = arith.mulf %83, %85 : vector<1x16x128xf32>
      %87 = vector.shape_cast %3 : vector<128xf32> to vector<1x1x128xf32>
      %88 = vector.broadcast %87 : vector<1x1x128xf32> to vector<1x16x128xf32>
      %89 = arith.addf %86, %88 : vector<1x16x128xf32>
      %cst_86 = arith.constant 0.000000e+00 : f32
      %90 = vector.broadcast %cst_86 : f32 to vector<1x16x128xf32>
      %91 = arith.maximumf %89, %90 : vector<1x16x128xf32>
      %c17_87 = arith.constant 17 : index
      %c1_88 = arith.constant 1 : index
      %c0_89 = arith.constant 0 : index
      %92 = vector.load %arg11[%c17_87, %c1_88, %c0_89] : memref<18x18x128xf32, #tpu.memory_space<vmem>>, vector<1x16x128xf32>
      tpu.vector_store %arg11[%c17_87, %c1_88, %c0_89], %91 {strides = array<i32>} : memref<18x18x128xf32, #tpu.memory_space<vmem>>, vector<1x16x128xf32>,
    } else {
    }
    %c0_27 = arith.constant 0 : index
    %c0_28 = arith.constant 0 : index
    %c0_29 = arith.constant 0 : index
    %32 = vector.load %arg11[%c0_27, %c0_28, %c0_29] : memref<18x18x128xf32, #tpu.memory_space<vmem>>, vector<16x16x128xf32>
    %33 = vector.shape_cast %32 : vector<16x16x128xf32> to vector<256x128xf32>
    %34 = arith.truncf %33 : vector<256x128xf32> to vector<256x128xbf16>
    %c0_30 = arith.constant 0 : index
    %c0_31 = arith.constant 0 : index
    %35 = vector.load %arg12[%c0_30, %c0_31] : memref<256x1152xbf16, #tpu.memory_space<vmem>>, vector<256x128xbf16>
    tpu.vector_store %arg12[%c0_30, %c0_31], %34 {strides = array<i32>} : memref<256x1152xbf16, #tpu.memory_space<vmem>>, vector<256x128xbf16>,
    %c0_32 = arith.constant 0 : index
    %c1_33 = arith.constant 1 : index
    %c0_34 = arith.constant 0 : index
    %36 = vector.load %arg11[%c0_32, %c1_33, %c0_34] : memref<18x18x128xf32, #tpu.memory_space<vmem>>, vector<16x16x128xf32>
    %37 = vector.shape_cast %36 : vector<16x16x128xf32> to vector<256x128xf32>
    %38 = arith.truncf %37 : vector<256x128xf32> to vector<256x128xbf16>
    %c0_35 = arith.constant 0 : index
    %c128 = arith.constant 128 : index
    %39 = vector.load %arg12[%c0_35, %c128] : memref<256x1152xbf16, #tpu.memory_space<vmem>>, vector<256x128xbf16>
    tpu.vector_store %arg12[%c0_35, %c128], %38 {strides = array<i32>} : memref<256x1152xbf16, #tpu.memory_space<vmem>>, vector<256x128xbf16>,
    %c0_36 = arith.constant 0 : index
    %c2 = arith.constant 2 : index
    %c0_37 = arith.constant 0 : index
    %40 = vector.load %arg11[%c0_36, %c2, %c0_37] : memref<18x18x128xf32, #tpu.memory_space<vmem>>, vector<16x16x128xf32>
    %41 = vector.shape_cast %40 : vector<16x16x128xf32> to vector<256x128xf32>
    %42 = arith.truncf %41 : vector<256x128xf32> to vector<256x128xbf16>
    %c0_38 = arith.constant 0 : index
    %c256 = arith.constant 256 : index
    %43 = vector.load %arg12[%c0_38, %c256] : memref<256x1152xbf16, #tpu.memory_space<vmem>>, vector<256x128xbf16>
    tpu.vector_store %arg12[%c0_38, %c256], %42 {strides = array<i32>} : memref<256x1152xbf16, #tpu.memory_space<vmem>>, vector<256x128xbf16>,
    %c1_39 = arith.constant 1 : index
    %c0_40 = arith.constant 0 : index
    %c0_41 = arith.constant 0 : index
    %44 = vector.load %arg11[%c1_39, %c0_40, %c0_41] : memref<18x18x128xf32, #tpu.memory_space<vmem>>, vector<16x16x128xf32>
    %45 = vector.shape_cast %44 : vector<16x16x128xf32> to vector<256x128xf32>
    %46 = arith.truncf %45 : vector<256x128xf32> to vector<256x128xbf16>
    %c0_42 = arith.constant 0 : index
    %c384 = arith.constant 384 : index
    %47 = vector.load %arg12[%c0_42, %c384] : memref<256x1152xbf16, #tpu.memory_space<vmem>>, vector<256x128xbf16>
    tpu.vector_store %arg12[%c0_42, %c384], %46 {strides = array<i32>} : memref<256x1152xbf16, #tpu.memory_space<vmem>>, vector<256x128xbf16>,
    %c1_43 = arith.constant 1 : index
    %c1_44 = arith.constant 1 : index
    %c0_45 = arith.constant 0 : index
    %48 = vector.load %arg11[%c1_43, %c1_44, %c0_45] : memref<18x18x128xf32, #tpu.memory_space<vmem>>, vector<16x16x128xf32>
    %49 = vector.shape_cast %48 : vector<16x16x128xf32> to vector<256x128xf32>
    %50 = arith.truncf %49 : vector<256x128xf32> to vector<256x128xbf16>
    %c0_46 = arith.constant 0 : index
    %c512 = arith.constant 512 : index
    %51 = vector.load %arg12[%c0_46, %c512] : memref<256x1152xbf16, #tpu.memory_space<vmem>>, vector<256x128xbf16>
    tpu.vector_store %arg12[%c0_46, %c512], %50 {strides = array<i32>} : memref<256x1152xbf16, #tpu.memory_space<vmem>>, vector<256x128xbf16>,
    %c1_47 = arith.constant 1 : index
    %c2_48 = arith.constant 2 : index
    %c0_49 = arith.constant 0 : index
    %52 = vector.load %arg11[%c1_47, %c2_48, %c0_49] : memref<18x18x128xf32, #tpu.memory_space<vmem>>, vector<16x16x128xf32>
    %53 = vector.shape_cast %52 : vector<16x16x128xf32> to vector<256x128xf32>
    %54 = arith.truncf %53 : vector<256x128xf32> to vector<256x128xbf16>
    %c0_50 = arith.constant 0 : index
    %c640 = arith.constant 640 : index
    %55 = vector.load %arg12[%c0_50, %c640] : memref<256x1152xbf16, #tpu.memory_space<vmem>>, vector<256x128xbf16>
    tpu.vector_store %arg12[%c0_50, %c640], %54 {strides = array<i32>} : memref<256x1152xbf16, #tpu.memory_space<vmem>>, vector<256x128xbf16>,
    %c2_51 = arith.constant 2 : index
    %c0_52 = arith.constant 0 : index
    %c0_53 = arith.constant 0 : index
    %56 = vector.load %arg11[%c2_51, %c0_52, %c0_53] : memref<18x18x128xf32, #tpu.memory_space<vmem>>, vector<16x16x128xf32>
    %57 = vector.shape_cast %56 : vector<16x16x128xf32> to vector<256x128xf32>
    %58 = arith.truncf %57 : vector<256x128xf32> to vector<256x128xbf16>
    %c0_54 = arith.constant 0 : index
    %c768 = arith.constant 768 : index
    %59 = vector.load %arg12[%c0_54, %c768] : memref<256x1152xbf16, #tpu.memory_space<vmem>>, vector<256x128xbf16>
    tpu.vector_store %arg12[%c0_54, %c768], %58 {strides = array<i32>} : memref<256x1152xbf16, #tpu.memory_space<vmem>>, vector<256x128xbf16>,
    %c2_55 = arith.constant 2 : index
    %c1_56 = arith.constant 1 : index
    %c0_57 = arith.constant 0 : index
    %60 = vector.load %arg11[%c2_55, %c1_56, %c0_57] : memref<18x18x128xf32, #tpu.memory_space<vmem>>, vector<16x16x128xf32>
    %61 = vector.shape_cast %60 : vector<16x16x128xf32> to vector<256x128xf32>
    %62 = arith.truncf %61 : vector<256x128xf32> to vector<256x128xbf16>
    %c0_58 = arith.constant 0 : index
    %c896 = arith.constant 896 : index
    %63 = vector.load %arg12[%c0_58, %c896] : memref<256x1152xbf16, #tpu.memory_space<vmem>>, vector<256x128xbf16>
    tpu.vector_store %arg12[%c0_58, %c896], %62 {strides = array<i32>} : memref<256x1152xbf16, #tpu.memory_space<vmem>>, vector<256x128xbf16>,
    %c2_59 = arith.constant 2 : index
    %c2_60 = arith.constant 2 : index
    %c0_61 = arith.constant 0 : index
    %64 = vector.load %arg11[%c2_59, %c2_60, %c0_61] : memref<18x18x128xf32, #tpu.memory_space<vmem>>, vector<16x16x128xf32>
    %65 = vector.shape_cast %64 : vector<16x16x128xf32> to vector<256x128xf32>
    %66 = arith.truncf %65 : vector<256x128xf32> to vector<256x128xbf16>
    %c0_62 = arith.constant 0 : index
    %c1024 = arith.constant 1024 : index
    %67 = vector.load %arg12[%c0_62, %c1024] : memref<256x1152xbf16, #tpu.memory_space<vmem>>, vector<256x128xbf16>
    tpu.vector_store %arg12[%c0_62, %c1024], %66 {strides = array<i32>} : memref<256x1152xbf16, #tpu.memory_space<vmem>>, vector<256x128xbf16>,
    %c0_63 = arith.constant 0 : index
    %c0_64 = arith.constant 0 : index
    %68 = vector.load %arg12[%c0_63, %c0_64] : memref<256x1152xbf16, #tpu.memory_space<vmem>>, vector<256x1152xbf16>
    %c0_65 = arith.constant 0 : index
    %c0_66 = arith.constant 0 : index
    %69 = vector.load %arg7[%c0_65, %c0_66] : memref<1152x128xbf16, #tpu.memory_space<vmem>>, vector<1152x128xbf16>
    %cst_67 = arith.constant dense<0.000000e+00> : vector<256x128xf32>
    %70 = tpu.matmul %68, %69, %cst_67 {dimension_numbers = #tpu.dot_dimension_numbers<[1], [0], [0], [1], [0, 0, 1, 1], [], []>} : vector<256x1152xbf16>, vector<1152x128xbf16>, vector<256x128xf32> -> vector<256x128xf32>
    %71 = vector.shape_cast %70 : vector<256x128xf32> to vector<1x16x16x128xf32>
    %72 = arith.truncf %71 : vector<1x16x16x128xf32> to vector<1x16x16x128xbf16>
    %c0_68 = arith.constant 0 : index
    %c0_69 = arith.constant 0 : index
    %c0_70 = arith.constant 0 : index
    %c0_71 = arith.constant 0 : index
    %73 = vector.load %arg8[%c0_68, %c0_69, %c0_70, %c0_71] : memref<1x16x16x128xbf16, #tpu.memory_space<vmem>>, vector<1x16x16x128xbf16>
    tpu.vector_store %arg8[%c0_68, %c0_69, %c0_70, %c0_71], %72 {strides = array<i32>} : memref<1x16x16x128xbf16, #tpu.memory_space<vmem>>, vector<1x16x16x128xbf16>,
    %cst_72 = arith.constant dense<0.000000e+00> : vector<128xf32>
    %74 = vector.multi_reduction <add>, %70, %cst_72 [0] : vector<256x128xf32> to vector<128xf32>
    %75 = vector.shape_cast %74 : vector<128xf32> to vector<1x1x1x128xf32>
    %c0_73 = arith.constant 0 : index
    %c0_74 = arith.constant 0 : index
    %c0_75 = arith.constant 0 : index
    %c0_76 = arith.constant 0 : index
    %76 = vector.load %arg9[%c0_73, %c0_74, %c0_75, %c0_76] : memref<1x1x1x128xf32, #tpu.memory_space<vmem>>, vector<1x1x1x128xf32>
    tpu.vector_store %arg9[%c0_73, %c0_74, %c0_75, %c0_76], %75 {strides = array<i32>} : memref<1x1x1x128xf32, #tpu.memory_space<vmem>>, vector<1x1x1x128xf32>,
    %77 = arith.mulf %70, %70 : vector<256x128xf32>
    %cst_77 = arith.constant dense<0.000000e+00> : vector<128xf32>
    %78 = vector.multi_reduction <add>, %77, %cst_77 [0] : vector<256x128xf32> to vector<128xf32>
    %79 = vector.shape_cast %78 : vector<128xf32> to vector<1x1x1x128xf32>
    %c0_78 = arith.constant 0 : index
    %c0_79 = arith.constant 0 : index
    %c0_80 = arith.constant 0 : index
    %c0_81 = arith.constant 0 : index
    %80 = vector.load %arg10[%c0_78, %c0_79, %c0_80, %c0_81] : memref<1x1x1x128xf32, #tpu.memory_space<vmem>>, vector<1x1x1x128xf32>
    tpu.vector_store %arg10[%c0_78, %c0_79, %c0_80, %c0_81], %79 {strides = array<i32>} : memref<1x1x1x128xf32, #tpu.memory_space<vmem>>, vector<1x1x1x128xf32>,
    return
  }
  func.func @transform_0(%arg0: i32, %arg1: i32) -> (i32, i32, i32, i32) {
    %c0_i32 = arith.constant 0 : i32
    %c0_i32_0 = arith.constant 0 : i32
    %c0_i32_1 = arith.constant 0 : i32
    %c0_i32_2 = arith.constant 0 : i32
    %c0_i32_3 = arith.constant 0 : i32
    return %c0_i32, %c0_i32_0, %c0_i32_1, %c0_i32_2 : i32, i32, i32, i32
  }
  func.func @transform_1(%arg0: i32, %arg1: i32) -> (i32, i32, i32, i32) {
    %c0_i32 = arith.constant 0 : i32
    %c0_i32_0 = arith.constant 0 : i32
    %c0_i32_1 = arith.constant 0 : i32
    %c0_i32_2 = arith.constant 0 : i32
    %c0_i32_3 = arith.constant 0 : i32
    return %c0_i32, %c0_i32_0, %c0_i32_1, %c0_i32_2 : i32, i32, i32, i32
  }
  func.func @transform_2(%arg0: i32, %arg1: i32) -> (i32, i32, i32, i32) {
    %c16_i32 = arith.constant 16 : i32
    %0 = arith.muli %arg1, %c16_i32 : i32
    %c1_i32 = arith.constant 1 : i32
    %1 = arith.subi %0, %c1_i32 : i32
    %c0_i32 = arith.constant 0 : i32
    %2 = arith.maxsi %1, %c0_i32 : i32
    %c0_i32_0 = arith.constant 0 : i32
    %c0_i32_1 = arith.constant 0 : i32
    %c0_i32_2 = arith.constant 0 : i32
    return %arg0, %2, %c0_i32_0, %c0_i32_1 : i32, i32, i32, i32
  }
  func.func @transform_3(%arg0: i32, %arg1: i32) -> (i32, i32, i32, i32) {
    %c0_i32 = arith.constant 0 : i32
    %c0_i32_0 = arith.constant 0 : i32
    %c0_i32_1 = arith.constant 0 : i32
    return %arg0, %arg1, %c0_i32, %c0_i32_0 : i32, i32, i32, i32
  }
  func.func @transform_4(%arg0: i32, %arg1: i32) -> (i32, i32, i32, i32) {
    %c16_i32 = arith.constant 16 : i32
    %0 = arith.muli %arg1, %c16_i32 : i32
    %c16_i32_0 = arith.constant 16 : i32
    %1 = arith.addi %0, %c16_i32_0 : i32
    %c15_i32 = arith.constant 15 : i32
    %2 = arith.minsi %1, %c15_i32 : i32
    %c0_i32 = arith.constant 0 : i32
    %c0_i32_1 = arith.constant 0 : i32
    %c0_i32_2 = arith.constant 0 : i32
    return %arg0, %2, %c0_i32, %c0_i32_1 : i32, i32, i32, i32
  }
  func.func @transform_5(%arg0: i32, %arg1: i32) -> (i32, i32) {
    %c0_i32 = arith.constant 0 : i32
    %c0_i32_0 = arith.constant 0 : i32
    %c0_i32_1 = arith.constant 0 : i32
    return %c0_i32, %c0_i32_0 : i32, i32
  }
  func.func @transform_6(%arg0: i32, %arg1: i32) -> (i32, i32, i32, i32) {
    %c0_i32 = arith.constant 0 : i32
    %c0_i32_0 = arith.constant 0 : i32
    %c0_i32_1 = arith.constant 0 : i32
    return %arg0, %arg1, %c0_i32, %c0_i32_0 : i32, i32, i32, i32
  }
  func.func @transform_7(%arg0: i32, %arg1: i32) -> (i32, i32, i32, i32) {
    %c0_i32 = arith.constant 0 : i32
    %c0_i32_0 = arith.constant 0 : i32
    %c0_i32_1 = arith.constant 0 : i32
    return %arg0, %arg1, %c0_i32, %c0_i32_0 : i32, i32, i32, i32
  }
  func.func @transform_8(%arg0: i32, %arg1: i32) -> (i32, i32, i32, i32) {
    %c0_i32 = arith.constant 0 : i32
    %c0_i32_0 = arith.constant 0 : i32
    %c0_i32_1 = arith.constant 0 : i32
    return %arg0, %arg1, %c0_i32, %c0_i32_0 : i32, i32, i32, i32
  }
}

module attributes {stable_mosaic.version = 11 : i64} {
  func.func @_bn_relu_apply_kernel(%arg0: i32, %arg1: i32, %arg2: memref<1x1x1x128xf32, #tpu.memory_space<vmem>>, %arg3: memref<1x1x1x128xf32, #tpu.memory_space<vmem>>, %arg4: memref<1x16x16x128xbf16, #tpu.memory_space<vmem>>, %arg5: memref<1x16x16x128xf32, #tpu.memory_space<vmem>>) attributes {dimension_semantics = [#tpu.dimension_semantics<parallel>, #tpu.dimension_semantics<parallel>], iteration_bounds = array<i64: 2, 1>, scalar_prefetch = 0 : i64, scratch_operands = 0 : i64, tpu.core_type = #tpu.core_type<tc>, window_params = [{pipeline_mode = #tpu.pipeline_mode<synchronous>, transform_indices = @transform_0, window_bounds = array<i64: 1, 1, 1, 128>}, {pipeline_mode = #tpu.pipeline_mode<synchronous>, transform_indices = @transform_1, window_bounds = array<i64: 1, 1, 1, 128>}, {transform_indices = @transform_2, window_bounds = array<i64: 1, 16, 16, 128>}, {transform_indices = @transform_3, window_bounds = array<i64: 1, 16, 16, 128>}]} {
    %c0 = arith.constant 0 : index
    %c0_0 = arith.constant 0 : index
    %c0_1 = arith.constant 0 : index
    %c0_2 = arith.constant 0 : index
    %0 = vector.load %arg4[%c0, %c0_0, %c0_1, %c0_2] : memref<1x16x16x128xbf16, #tpu.memory_space<vmem>>, vector<1x16x16x128xbf16>
    %1 = arith.extf %0 : vector<1x16x16x128xbf16> to vector<1x16x16x128xf32>
    %c0_3 = arith.constant 0 : index
    %c0_4 = arith.constant 0 : index
    %c0_5 = arith.constant 0 : index
    %c0_6 = arith.constant 0 : index
    %2 = vector.load %arg2[%c0_3, %c0_4, %c0_5, %c0_6] : memref<1x1x1x128xf32, #tpu.memory_space<vmem>>, vector<1x1x1x128xf32>
    %3 = vector.broadcast %2 : vector<1x1x1x128xf32> to vector<1x16x16x128xf32>
    %4 = arith.mulf %1, %3 : vector<1x16x16x128xf32>
    %c0_7 = arith.constant 0 : index
    %c0_8 = arith.constant 0 : index
    %c0_9 = arith.constant 0 : index
    %c0_10 = arith.constant 0 : index
    %5 = vector.load %arg3[%c0_7, %c0_8, %c0_9, %c0_10] : memref<1x1x1x128xf32, #tpu.memory_space<vmem>>, vector<1x1x1x128xf32>
    %6 = vector.broadcast %5 : vector<1x1x1x128xf32> to vector<1x16x16x128xf32>
    %7 = arith.addf %4, %6 : vector<1x16x16x128xf32>
    %cst = arith.constant 0.000000e+00 : f32
    %8 = vector.broadcast %cst : f32 to vector<1x16x16x128xf32>
    %9 = arith.maximumf %7, %8 : vector<1x16x16x128xf32>
    %c0_11 = arith.constant 0 : index
    %c0_12 = arith.constant 0 : index
    %c0_13 = arith.constant 0 : index
    %c0_14 = arith.constant 0 : index
    %10 = vector.load %arg5[%c0_11, %c0_12, %c0_13, %c0_14] : memref<1x16x16x128xf32, #tpu.memory_space<vmem>>, vector<1x16x16x128xf32>
    tpu.vector_store %arg5[%c0_11, %c0_12, %c0_13, %c0_14], %9 {strides = array<i32>} : memref<1x16x16x128xf32, #tpu.memory_space<vmem>>, vector<1x16x16x128xf32>,
    return
  }
  func.func @transform_0(%arg0: i32, %arg1: i32) -> (i32, i32, i32, i32) {
    %c0_i32 = arith.constant 0 : i32
    %c0_i32_0 = arith.constant 0 : i32
    %c0_i32_1 = arith.constant 0 : i32
    %c0_i32_2 = arith.constant 0 : i32
    %c0_i32_3 = arith.constant 0 : i32
    return %c0_i32, %c0_i32_0, %c0_i32_1, %c0_i32_2 : i32, i32, i32, i32
  }
  func.func @transform_1(%arg0: i32, %arg1: i32) -> (i32, i32, i32, i32) {
    %c0_i32 = arith.constant 0 : i32
    %c0_i32_0 = arith.constant 0 : i32
    %c0_i32_1 = arith.constant 0 : i32
    %c0_i32_2 = arith.constant 0 : i32
    %c0_i32_3 = arith.constant 0 : i32
    return %c0_i32, %c0_i32_0, %c0_i32_1, %c0_i32_2 : i32, i32, i32, i32
  }
  func.func @transform_2(%arg0: i32, %arg1: i32) -> (i32, i32, i32, i32) {
    %c0_i32 = arith.constant 0 : i32
    %c0_i32_0 = arith.constant 0 : i32
    %c0_i32_1 = arith.constant 0 : i32
    return %arg0, %arg1, %c0_i32, %c0_i32_0 : i32, i32, i32, i32
  }
  func.func @transform_3(%arg0: i32, %arg1: i32) -> (i32, i32, i32, i32) {
    %c0_i32 = arith.constant 0 : i32
    %c0_i32_0 = arith.constant 0 : i32
    %c0_i32_1 = arith.constant 0 : i32
    return %arg0, %arg1, %c0_i32, %c0_i32_0 : i32, i32, i32, i32
  }
}

</mosaic_0001>

<llo_original>
// kernel: double_conv_forward.5
$region0: #{double_conv_forward.5}
  #allocation0 [shape = 'u32[]', space=smem, size = 0x4, offset = 0x4, fixed_abs, tag = 'smem constant byte address 0x4 - core index']
  #allocation1 [shape = 'u32[144,128]{1,0:T(1,128)}', space=vmem, size = 0x12000, scoped, tag = 'internal scratch']
  %s0 = inlined_call_operand.vmem [shape: f32[1,1,1,128], index: 0, kind: input, shape index: {}]
  %s1 = inlined_call_operand.vmem [shape: f32[1,1,1,128], index: 1, kind: input, shape index: {}]
  %s2 = inlined_call_operand.vmem [shape: bf16[2,16,16,128], index: 2, kind: input, shape index: {}]
  %s3 = inlined_call_operand.vmem [shape: f32[2,16,16,128], index: 3, kind: output, shape index: {}]
  %s4 = sld [smem:[#allocation0]]
  $region45: #{double_conv_forward.5} parent=0
    _
  %s6 = ssub.s32 1, %s4
  %s7 = scalar_select 0, %s6, %s4
  loop: start=0, step=1, limit=4
  $region2: #{double_conv_forward.5} parent=0 // loop_pre_header
    _
  $region3: #{double_conv_forward.5} parent=0 // loop_header
    %s9 = sphi 0, %s13
    %p10 = scmp.ge.s32.totalorder %s9, 4
    %s16 = sphi 0, %s28
    %s17 = sphi 0, %s24
    %s18 = sphi 0, %s16
    %s19 = sphi 0, %s17
    %s20 = sphi 0, %s18
    %s21 = sphi 0, %s19
    %s29 = sphi 0, %s29
    %s31 = sphi 0, %s29
    %s32 = sphi 0, %s31
    %s46 = sphi 0, %s32
    %s50 = sphi 0, %s50
    %s52 = sphi 0, %s50
    %s53 = sphi 0, %s52
    %s67 = sphi 0, %s53
    %s75 = sphi 0, %s77
    %s78 = sphi 0, %s75
    %s79 = sphi 0, %s78
    %s95 = sphi 0, %s79
    %s103 = sphi 0, %s105
    %s106 = sphi 0, %s103
    %s107 = sphi 0, %s106
    %s123 = sphi 0, %s107
  $region4: #{double_conv_forward.5} parent=0 // loop_header_branch
    %12 = sbr.rel (%p10) target = $region8
  $region5: #{double_conv_forward.5} parent=0 // loop_body
    %s14 = ssub.s32 %s9, 1
    %s15 = ssub.s32 %s9, 2
    %s22 = sadd.s32 1, %s17
    %p23 = scmp.ge.s32.totalorder %s22, 1
    %s24 = scalar_select %p23, 0, %s22
    %s25 = sadd.s32 1, %s16
    %s26 = scalar_select %p23, %s25, %s16
    %p27 = scmp.ge.s32.totalorder %s26, 2
    %s28 = scalar_select %p27, 0, %s26
    %s30 = sadd.s32 %s29, 1
    %p33 = scmp.eq.s32.totalorder %s9, 1
    %p34 = scmp.ne.s32.totalorder %s29, %s31
    %p35 = scmp.eq.s32.totalorder %s9, 0
    %p36 = por %p34, %p35
    %p37 = scmp.ne.s32.totalorder %s29, %s31
    %p38 = scmp.eq.s32.totalorder %s14, 1
    %p39 = por %p37, %p38
    %p40 = scmp.ne.s32.totalorder %s31, %s32
    %p41 = scmp.eq.s32.totalorder %s14, 0
    %p42 = por %p40, %p41
    %p43 = scmp.ne.s32.totalorder %s31, %s32
    %p44 = scmp.eq.s32.totalorder %s15, 1
    %p45 = por %p43, %p44
    %p47 = scmp.ne.s32.totalorder %s32, %s46
    %p48 = scmp.eq.s32.totalorder %s15, 0
    %p49 = por %p47, %p48
    %s51 = sadd.s32 %s50, 1
    %p54 = scmp.eq.s32.totalorder %s9, 1
    %p55 = scmp.ne.s32.totalorder %s50, %s52
    %p56 = scmp.eq.s32.totalorder %s9, 0
    %p57 = por %p55, %p56
    %p58 = scmp.ne.s32.totalorder %s50, %s52
    %p59 = scmp.eq.s32.totalorder %s14, 1
    %p60 = por %p58, %p59
    %p61 = scmp.ne.s32.totalorder %s52, %s53
    %p62 = scmp.eq.s32.totalorder %s14, 0
    %p63 = por %p61, %p62
    %p64 = scmp.ne.s32.totalorder %s52, %s53
    %p65 = scmp.eq.s32.totalorder %s15, 1
    %p66 = por %p64, %p65
    %p68 = scmp.ne.s32.totalorder %s53, %s67
    %p69 = scmp.eq.s32.totalorder %s15, 0
    %p70 = por %p68, %p69
    %s71 = ssub.s32 %s16, %s28
    %s72 = ssub.s32 %s17, %s24
    %s73 = sor.u32 %s71, %s72
    %p74 = scmp.eq.s32.totalorder %s73, 0
    %s76 = sadd.s32 %s75, 1
    %s77 = scalar_select %p74, %s75, %s76
    %p80 = pneg %p74
    %p81 = scmp.eq.s32.totalorder %s9, 1
    %p82 = por %p80, %p81
    %p83 = scmp.ne.s32.totalorder %s75, %s78
    %p84 = scmp.eq.s32.totalorder %s9, 0
    %p85 = por %p83, %p84
    %p86 = scmp.ne.s32.totalorder %s75, %s78
    %p87 = scmp.eq.s32.totalorder %s14, 1
    %p88 = por %p86, %p87
    %p89 = scmp.ne.s32.totalorder %s78, %s79
    %p90 = scmp.eq.s32.totalorder %s14, 0
    %p91 = por %p89, %p90
    %p92 = scmp.ne.s32.totalorder %s78, %s79
    %p93 = scmp.eq.s32.totalorder %s15, 1
    %p94 = por %p92, %p93
    %p96 = scmp.ne.s32.totalorder %s79, %s95
    %p97 = scmp.eq.s32.totalorder %s15, 0
    %p98 = por %p96, %p97
    %s99 = ssub.s32 %s16, %s28
    %s100 = ssub.s32 %s17, %s24
    %s101 = sor.u32 %s99, %s100
    %p102 = scmp.eq.s32.totalorder %s101, 0
    %s104 = sadd.s32 %s103, 1
    %s105 = scalar_select %p102, %s103, %s104
    %p108 = pneg %p102
    %p109 = scmp.eq.s32.totalorder %s9, 1
    %p110 = por %p108, %p109
    %p111 = scmp.ne.s32.totalorder %s103, %s106
    %p112 = scmp.eq.s32.totalorder %s9, 0
    %p113 = por %p111, %p112
    %p114 = scmp.ne.s32.totalorder %s103, %s106
    %p115 = scmp.eq.s32.totalorder %s14, 1
    %p116 = por %p114, %p115
    %p117 = scmp.ne.s32.totalorder %s106, %s107
    %p118 = scmp.eq.s32.totalorder %s14, 0
    %p119 = por %p117, %p118
    %p120 = scmp.ne.s32.totalorder %s106, %s107
    %p121 = scmp.eq.s32.totalorder %s15, 1
    %p122 = por %p120, %p121
    %p124 = scmp.ne.s32.totalorder %s107, %s123
    %p125 = scmp.eq.s32.totalorder %s15, 0
    %p126 = por %p124, %p125
    %p127 = scmp.le.s32.totalorder 1, %s9
    %p128 = scmp.lt.s32.totalorder %s9, 3
    %p129 = pnand %p127, %p128
    %p130 = pneg %p129
    // Predicated region
    $region9: #{double_conv_forward.5} parent=5 // pred_check
      _
    $region10: #{double_conv_forward.5} parent=5 // pred_check_branch
      %132 = sbr.rel (%p129) target = $region12
    $region11: #{double_conv_forward.5} parent=5 // pred_region
      %s133 = ssub.s32 %s9, 1
      // Predicated region
      $region13: #{double_conv_forward.5} parent=11 // pred_check
        %p134 = pneg %p42
      $region14: #{double_conv_forward.5} parent=11 // pred_check_branch
        %136 = sbr.rel (%p134) target = $region16
      $region15: #{double_conv_forward.5} parent=11 // pred_region
        _
      $region16: #{double_conv_forward.5} parent=11 // pred_fallthru
        _
      // Predicated region
      $region17: #{double_conv_forward.5} parent=11 // pred_check
        %p137 = pneg %p63
      $region18: #{double_conv_forward.5} parent=11 // pred_check_branch
        %139 = sbr.rel (%p137) target = $region20
      $region19: #{double_conv_forward.5} parent=11 // pred_region
        _
      $region20: #{double_conv_forward.5} parent=11 // pred_fallthru
        _
    $region12: #{double_conv_forward.5} parent=5 // pred_fallthru
      _
    %p140 = scmp.lt.s32.totalorder %s9, 2
    // Predicated region
    $region21: #{double_conv_forward.5} parent=5 // pred_check
      %p141 = pneg %p140
    $region22: #{double_conv_forward.5} parent=5 // pred_check_branch
      %143 = sbr.rel (%p141) target = $region24
    $region23: #{double_conv_forward.5} parent=5 // pred_region
      // Predicated region
      $region25: #{double_conv_forward.5} parent=23 // pred_check
        %p144 = pneg %p85
      $region26: #{double_conv_forward.5} parent=23 // pred_check_branch
        %146 = sbr.rel (%p144) target = $region28
      $region27: #{double_conv_forward.5} parent=23 // pred_region
        %s147 = smul.u32 16, %s17
        %p148 = scmp.lt.s32.totalorder %s16, 1
        %s149 = scalar_select %p148, %s16, 1
        %p150 = scmp.lt.s32.totalorder %s147, 15
        %s151 = scalar_select %p150, %s147, 15
        %s152 = smul.addr %s151, 2
        %s153 = smul.addr %s149, 32
        %s154 = sadd.s32 %s152, %s153
        %s155 = smul.addr %s154, 4
        %s156 = scalar_lea.vmem %s2, %s155
        %s157 = smul.u32 16, %s17
      $region28: #{double_conv_forward.5} parent=23 // pred_fallthru
        _
    $region24: #{double_conv_forward.5} parent=5 // pred_fallthru
      _
    %p158 = scmp.le.s32.totalorder 1, %s9
    %p159 = scmp.lt.s32.totalorder %s9, 3
    %p160 = pnand %p158, %p159
    %p161 = pneg %p160
    // Predicated region
    $region29: #{double_conv_forward.5} parent=5 // pred_check
      _
    $region30: #{double_conv_forward.5} parent=5 // pred_check_branch
      %163 = sbr.rel (%p160) target = $region32
    $region31: #{double_conv_forward.5} parent=5 // pred_region
      %s164 = ssub.s32 %s9, 1
      %p165 = pneg %p42
      %p166 = pneg %p39
      %p167 = pneg %p63
      %p168 = pneg %p60
      %s169 = smul.u32 16, %s19
      %p170 = scmp.lt.s32.totalorder %s18, 1
      %s171 = scalar_select %p170, %s18, 1
      %p172 = scmp.lt.s32.totalorder %s169, 15
      %s173 = scalar_select %p172, %s169, 15
      %s174 = smul.addr %s173, 2
      %s175 = smul.addr %s171, 32
      %s176 = sadd.s32 %s174, %s175
      %s177 = smul.addr %s176, 4
      %s178 = scalar_lea.vmem %s2, %s177
      %p179 = pneg %p91
      %p180 = pneg %p88
      %p181 = pneg %p119
      %p182 = pneg %p116
      %s183 = smul.u32 16, %s19
      %p184 = scmp.lt.s32.totalorder %s18, 1
      %s185 = scalar_select %p184, %s18, 1
      %p186 = scmp.lt.s32.totalorder %s183, 15
      %s187 = scalar_select %p186, %s183, 15
      %s188 = smul.addr %s187, 2
      %s189 = smul.addr %s185, 32
      %s190 = sadd.s32 %s188, %s189
      %s191 = smul.addr %s190, 8
      %s192 = scalar_lea.vmem %s3, %s191
      %s193 = smul.u32 16, %s19
      %p194 = scmp.lt.s32.totalorder %s18, 1
      %s195 = scalar_select %p194, %s18, 1
      %p196 = scmp.lt.s32.totalorder %s193, 15
      %s197 = scalar_select %p196, %s193, 15
      %s198 = smul.addr %s197, 2
      %s199 = smul.addr %s195, 32
      %s200 = sadd.s32 %s198, %s199
      %s201 = smul.addr %s200, 4
      %s202 = scalar_lea.vmem %s2, %s201
      %s203 = smul.u32 16, %s19
      %s204 = smul.u32 16, %s19
      %p205 = scmp.lt.s32.totalorder %s18, 1
      %s206 = scalar_select %p205, %s18, 1
      %p207 = scmp.lt.s32.totalorder %s204, 15
      %s208 = scalar_select %p207, %s204, 15
      %s209 = smul.addr %s208, 2
      %s210 = smul.addr %s206, 32
      %s211 = sadd.s32 %s209, %s210
      %s212 = smul.addr %s211, 8
      %s213 = scalar_lea.vmem %s3, %s212
      %s214 = smul.u32 16, %s19
      %v215 = vld [vmem:[%s202] sm:$0xf]
      %v216 = vld [vmem:[%s202 + $0x4] sm:$0xf]
      %v217 = vld [vmem:[%s202 + $0x8] sm:$0xf]
      %v218 = vld [vmem:[%s202 + $0xc] sm:$0xf]
      %v219 = vld [vmem:[%s202 + $0x10] sm:$0xf]
      %v220 = vld [vmem:[%s202 + $0x14] sm:$0xf]
      %v221 = vld [vmem:[%s202 + $0x18] sm:$0xf]
      %v222 = vld [vmem:[%s202 + $0x1c] sm:$0xf]
      %v223 = vld [vmem:[%s202 + $0x20] sm:$0xf]
      %v224 = vld [vmem:[%s202 + $0x24] sm:$0xf]
      %v225 = vld [vmem:[%s202 + $0x28] sm:$0xf]
      %v226 = vld [vmem:[%s202 + $0x2c] sm:$0xf]
      %v227 = vld [vmem:[%s202 + $0x30] sm:$0xf]
      %v228 = vld [vmem:[%s202 + $0x34] sm:$0xf]
      %v229 = vld [vmem:[%s202 + $0x38] sm:$0xf]
      %v230 = vld [vmem:[%s202 + $0x3c] sm:$0xf]
      %v231 = vld [vmem:[%s202 + $0x40] sm:$0xf]
      %v232 = vld [vmem:[%s202 + $0x44] sm:$0xf]
      %v233 = vld [vmem:[%s202 + $0x48] sm:$0xf]
      %v234 = vld [vmem:[%s202 + $0x4c] sm:$0xf]
      %v235 = vld [vmem:[%s202 + $0x50] sm:$0xf]
      %v236 = vld [vmem:[%s202 + $0x54] sm:$0xf]
      %v237 = vld [vmem:[%s202 + $0x58] sm:$0xf]
      %v238 = vld [vmem:[%s202 + $0x5c] sm:$0xf]
      %v239 = vld [vmem:[%s202 + $0x60] sm:$0xf]
      %v240 = vld [vmem:[%s202 + $0x64] sm:$0xf]
      %v241 = vld [vmem:[%s202 + $0x68] sm:$0xf]
      %v242 = vld [vmem:[%s202 + $0x6c] sm:$0xf]
      %v243 = vld [vmem:[%s202 + $0x70] sm:$0xf]
      %v244 = vld [vmem:[%s202 + $0x74] sm:$0xf]
      %v245 = vld [vmem:[%s202 + $0x78] sm:$0xf]
      %v246 = vld [vmem:[%s202 + $0x7c] sm:$0xf]
      %v247 = vunpack.c.l.bf16 %v215
      %v248 = vunpack.c.l.bf16 %v216
      %v249 = vunpack.c.l.bf16 %v217
      %v250 = vunpack.c.l.bf16 %v218
      %v251 = vunpack.c.l.bf16 %v219
      %v252 = vunpack.c.l.bf16 %v220
      %v253 = vunpack.c.l.bf16 %v221
      %v254 = vunpack.c.l.bf16 %v222
      %v255 = vunpack.c.l.bf16 %v223
      %v256 = vunpack.c.l.bf16 %v224
      %v257 = vunpack.c.l.bf16 %v225
      %v258 = vunpack.c.l.bf16 %v226
      %v259 = vunpack.c.l.bf16 %v227
      %v260 = vunpack.c.l.bf16 %v228
      %v261 = vunpack.c.l.bf16 %v229
      %v262 = vunpack.c.l.bf16 %v230
      %v263 = vunpack.c.l.bf16 %v231
      %v264 = vunpack.c.l.bf16 %v232
      %v265 = vunpack.c.l.bf16 %v233
      %v266 = vunpack.c.l.bf16 %v234
      %v267 = vunpack.c.l.bf16 %v235
      %v268 = vunpack.c.l.bf16 %v236
      %v269 = vunpack.c.l.bf16 %v237
      %v270 = vunpack.c.l.bf16 %v238
      %v271 = vunpack.c.l.bf16 %v239
      %v272 = vunpack.c.l.bf16 %v240
      %v273 = vunpack.c.l.bf16 %v241
      %v274 = vunpack.c.l.bf16 %v242
      %v275 = vunpack.c.l.bf16 %v243
      %v276 = vunpack.c.l.bf16 %v244
      %v277 = vunpack.c.l.bf16 %v245
      %v278 = vunpack.c.l.bf16 %v246
      %v279 = vld [vmem:[%s0] sm:$0x1]
      %v281 = vlaneseq
      %v282 = vshrl.u32 %v281, 7
      %v283 = vsub.s32 0, %v282
      %v284 = vrot.slane %v279, %v283
      %v286 = vmul.f32 %v247, %v284
      %v287 = vmul.f32 %v248, %v284
      %v288 = vmul.f32 %v249, %v284
      %v289 = vmul.f32 %v250, %v284
      %v290 = vmul.f32 %v251, %v284
      %v291 = vmul.f32 %v252, %v284
      %v292 = vmul.f32 %v253, %v284
      %v293 = vmul.f32 %v254, %v284
      %v294 = vmul.f32 %v255, %v284
      %v295 = vmul.f32 %v256, %v284
      %v296 = vmul.f32 %v257, %v284
      %v297 = vmul.f32 %v258, %v284
      %v298 = vmul.f32 %v259, %v284
      %v299 = vmul.f32 %v260, %v284
      %v300 = vmul.f32 %v261, %v284
      %v301 = vmul.f32 %v262, %v284
      %v302 = vmul.f32 %v263, %v284
      %v303 = vmul.f32 %v264, %v284
      %v304 = vmul.f32 %v265, %v284
      %v305 = vmul.f32 %v266, %v284
      %v306 = vmul.f32 %v267, %v284
      %v307 = vmul.f32 %v268, %v284
      %v308 = vmul.f32 %v269, %v284
      %v309 = vmul.f32 %v270, %v284
      %v310 = vmul.f32 %v271, %v284
      %v311 = vmul.f32 %v272, %v284
      %v312 = vmul.f32 %v273, %v284
      %v313 = vmul.f32 %v274, %v284
      %v314 = vmul.f32 %v275, %v284
      %v315 = vmul.f32 %v276, %v284
      %v316 = vmul.f32 %v277, %v284
      %v317 = vmul.f32 %v278, %v284
      %v318 = vld [vmem:[%s1] sm:$0x1]
      %v320 = vlaneseq
      %v321 = vshrl.u32 %v320, 7
      %v322 = vsub.s32 0, %v321
      %v323 = vrot.slane %v318, %v322
      %v325 = vadd.f32 %v286, %v323
      %v326 = vadd.f32 %v287, %v323
      %v327 = vadd.f32 %v288, %v323
      %v328 = vadd.f32 %v289, %v323
      %v329 = vadd.f32 %v290, %v323
      %v330 = vadd.f32 %v291, %v323
      %v331 = vadd.f32 %v292, %v323
      %v332 = vadd.f32 %v293, %v323
      %v333 = vadd.f32 %v294, %v323
      %v334 = vadd.f32 %v295, %v323
      %v335 = vadd.f32 %v296, %v323
      %v336 = vadd.f32 %v297, %v323
      %v337 = vadd.f32 %v298, %v323
      %v338 = vadd.f32 %v299, %v323
      %v339 = vadd.f32 %v300, %v323
      %v340 = vadd.f32 %v301, %v323
      %v341 = vadd.f32 %v302, %v323
      %v342 = vadd.f32 %v303, %v323
      %v343 = vadd.f32 %v304, %v323
      %v344 = vadd.f32 %v305, %v323
      %v345 = vadd.f32 %v306, %v323
      %v346 = vadd.f32 %v307, %v323
      %v347 = vadd.f32 %v308, %v323
      %v348 = vadd.f32 %v309, %v323
      %v349 = vadd.f32 %v310, %v323
      %v350 = vadd.f32 %v311, %v323
      %v351 = vadd.f32 %v312, %v323
      %v352 = vadd.f32 %v313, %v323
      %v353 = vadd.f32 %v314, %v323
      %v354 = vadd.f32 %v315, %v323
      %v355 = vadd.f32 %v316, %v323
      %v356 = vadd.f32 %v317, %v323
      %v357 = vmax.f32 %v325, 0.0
      %v358 = vmax.f32 %v326, 0.0
      %v359 = vmax.f32 %v327, 0.0
      %v360 = vmax.f32 %v328, 0.0
      %v361 = vmax.f32 %v329, 0.0
      %v362 = vmax.f32 %v330, 0.0
      %v363 = vmax.f32 %v331, 0.0
      %v364 = vmax.f32 %v332, 0.0
      %v365 = vmax.f32 %v333, 0.0
      %v366 = vmax.f32 %v334, 0.0
      %v367 = vmax.f32 %v335, 0.0
      %v368 = vmax.f32 %v336, 0.0
      %v369 = vmax.f32 %v337, 0.0
      %v370 = vmax.f32 %v338, 0.0
      %v371 = vmax.f32 %v339, 0.0
      %v372 = vmax.f32 %v340, 0.0
      %v373 = vmax.f32 %v341, 0.0
      %v374 = vmax.f32 %v342, 0.0
      %v375 = vmax.f32 %v343, 0.0
      %v376 = vmax.f32 %v344, 0.0
      %v377 = vmax.f32 %v345, 0.0
      %v378 = vmax.f32 %v346, 0.0
      %v379 = vmax.f32 %v347, 0.0
      %v380 = vmax.f32 %v348, 0.0
      %v381 = vmax.f32 %v349, 0.0
      %v382 = vmax.f32 %v350, 0.0
      %v383 = vmax.f32 %v351, 0.0
      %v384 = vmax.f32 %v352, 0.0
      %v385 = vmax.f32 %v353, 0.0
      %v386 = vmax.f32 %v354, 0.0
      %v387 = vmax.f32 %v355, 0.0
      %v388 = vmax.f32 %v356, 0.0
      %389 = vst [vmem:[%s213] sm:$0xff] %v357
      %390 = vst [vmem:[%s213 + $0x8] sm:$0xff] %v358
      %391 = vst [vmem:[%s213 + $0x10] sm:$0xff] %v359
      %392 = vst [vmem:[%s213 + $0x18] sm:$0xff] %v360
      %393 = vst [vmem:[%s213 + $0x20] sm:$0xff] %v361
      %394 = vst [vmem:[%s213 + $0x28] sm:$0xff] %v362
      %395 = vst [vmem:[%s213 + $0x30] sm:$0xff] %v363
      %396 = vst [vmem:[%s213 + $0x38] sm:$0xff] %v364
      %397 = vst [vmem:[%s213 + $0x40] sm:$0xff] %v365
      %398 = vst [vmem:[%s213 + $0x48] sm:$0xff] %v366
      %399 = vst [vmem:[%s213 + $0x50] sm:$0xff] %v367
      %400 = vst [vmem:[%s213 + $0x58] sm:$0xff] %v368
      %401 = vst [vmem:[%s213 + $0x60] sm:$0xff] %v369
      %402 = vst [vmem:[%s213 + $0x68] sm:$0xff] %v370
      %403 = vst [vmem:[%s213 + $0x70] sm:$0xff] %v371
      %404 = vst [vmem:[%s213 + $0x78] sm:$0xff] %v372
      %405 = vst [vmem:[%s213 + $0x80] sm:$0xff] %v373
      %406 = vst [vmem:[%s213 + $0x88] sm:$0xff] %v374
      %407 = vst [vmem:[%s213 + $0x90] sm:$0xff] %v375
      %408 = vst [vmem:[%s213 + $0x98] sm:$0xff] %v376
      %409 = vst [vmem:[%s213 + $0xa0] sm:$0xff] %v377
      %410 = vst [vmem:[%s213 + $0xa8] sm:$0xff] %v378
      %411 = vst [vmem:[%s213 + $0xb0] sm:$0xff] %v379
      %412 = vst [vmem:[%s213 + $0xb8] sm:$0xff] %v380
      %413 = vst [vmem:[%s213 + $0xc0] sm:$0xff] %v381
      %414 = vst [vmem:[%s213 + $0xc8] sm:$0xff] %v382
      %415 = vst [vmem:[%s213 + $0xd0] sm:$0xff] %v383
      %416 = vst [vmem:[%s213 + $0xd8] sm:$0xff] %v384
      %417 = vst [vmem:[%s213 + $0xe0] sm:$0xff] %v385
      %418 = vst [vmem:[%s213 + $0xe8] sm:$0xff] %v386
      %419 = vst [vmem:[%s213 + $0xf0] sm:$0xff] %v387
      %420 = vst [vmem:[%s213 + $0xf8] sm:$0xff] %v388
      %s421 = smul.u32 16, %s19
      %p422 = scmp.lt.s32.totalorder %s18, 1
      %s423 = scalar_select %p422, %s18, 1
      %p424 = scmp.lt.s32.totalorder %s421, 15
      %s425 = scalar_select %p424, %s421, 15
      %s426 = smul.addr %s425, 2
      %s427 = smul.addr %s423, 32
      %s428 = sadd.s32 %s426, %s427
      %s429 = smul.addr %s428, 8
      %s430 = scalar_lea.vmem %s3, %s429
      // Predicated region
      $region33: #{double_conv_forward.5} parent=31 // pred_check
        %p431 = pneg %p116
      $region34: #{double_conv_forward.5} parent=31 // pred_check_branch
        %433 = sbr.rel (%p431) target = $region36
      $region35: #{double_conv_forward.5} parent=31 // pred_region
        %s434 = smul.u32 16, %s19
      $region36: #{double_conv_forward.5} parent=31 // pred_fallthru
        _
    $region32: #{double_conv_forward.5} parent=5 // pred_fallthru
      _
    %p435 = scmp.le.s32.totalorder 2, %s9
    // Predicated region
    $region37: #{double_conv_forward.5} parent=5 // pred_check
      %p436 = pneg %p435
    $region38: #{double_conv_forward.5} parent=5 // pred_check_branch
      %438 = sbr.rel (%p436) target = $region40
    $region39: #{double_conv_forward.5} parent=5 // pred_region
      %s439 = ssub.s32 %s9, 2
      // Predicated region
      $region41: #{double_conv_forward.5} parent=39 // pred_check
        %p440 = pneg %p122
      $region42: #{double_conv_forward.5} parent=39 // pred_check_branch
        %442 = sbr.rel (%p440) target = $region44
      $region43: #{double_conv_forward.5} parent=39 // pred_region
        %s443 = smul.u32 16, %s21
        %p444 = scmp.lt.s32.totalorder %s20, 1
        %s445 = scalar_select %p444, %s20, 1
        %p446 = scmp.lt.s32.totalorder %s443, 15
        %s447 = scalar_select %p446, %s443, 15
        %s448 = smul.addr %s447, 2
        %s449 = smul.addr %s445, 32
        %s450 = sadd.s32 %s448, %s449
        %s451 = smul.addr %s450, 8
        %s452 = scalar_lea.vmem %s3, %s451
      $region44: #{double_conv_forward.5} parent=39 // pred_fallthru
        _
    $region40: #{double_conv_forward.5} parent=5 // pred_fallthru
      _
  $region6: #{double_conv_forward.5} parent=0 // loop_footer
    %s13 = sadd.s32 1, %s9
  $region7: #{double_conv_forward.5} parent=0 // loop_footer_branch
    %8 = sbr.rel target = $region3
  $region8: #{double_conv_forward.5} parent=0 // loop_exit
    _

// kernel: double_conv_forward.3
$region0: #{double_conv_forward.3}
  #allocation0 [shape = 'u32[]', space=smem, size = 0x4, offset = 0x4, fixed_abs, tag = 'smem constant byte address 0x4 - core index']
  #allocation1 [shape = 'u32[144,128]{1,0:T(1,128)}', space=vmem, size = 0x12000, scoped, tag = 'internal scratch']
  #allocation2 [shape = 'f32[18,18,128]{2,1,0:T(8,128)}', space=vmem, size = 0x36000, scoped, tag = 'scratch operand']
  #allocation3 [shape = 'bf16[256,1152]{1,0:T(16,128)(2,1)}', space=vmem, size = 0x90000, scoped, tag = 'scratch operand']
  %s0 = inlined_call_operand.vmem [shape: f32[1,1,1,128], index: 0, kind: input, shape index: {}]
  %s1 = inlined_call_operand.vmem [shape: f32[1,1,1,128], index: 1, kind: input, shape index: {}]
  %s2 = inlined_call_operand.vmem [shape: bf16[2,16,16,128], index: 2, kind: input, shape index: {}, may-alias: {2,3,4}]
  %s3 = inlined_call_operand.vmem [shape: bf16[2,16,16,128], index: 3, kind: input, shape index: {}, may-alias: {2,3,4}]
  %s4 = inlined_call_operand.vmem [shape: bf16[2,16,16,128], index: 4, kind: input, shape index: {}, may-alias: {2,3,4}]
  %s5 = inlined_call_operand.vmem [shape: bf16[1152,128], index: 5, kind: input, shape index: {}]
  %s6 = inlined_call_operand.vmem [shape: bf16[2,16,16,128], index: 6, kind: output, shape index: {0}]
  %s7 = inlined_call_operand.vmem [shape: f32[2,1,1,128], index: 7, kind: output, shape index: {1}]
  %s8 = inlined_call_operand.vmem [shape: f32[2,1,1,128], index: 8, kind: output, shape index: {2}]
  %9 = xla_tuple %s6, %s7, %s8
  %s10 = sld [smem:[#allocation0]]
  $region89: #{double_conv_forward.3} parent=0
    _
  %s12 = ssub.s32 1, %s10
  %s13 = scalar_select 0, %s12, %s10
  loop: start=0, step=1, limit=4
  $region2: #{double_conv_forward.3} parent=0 // loop_pre_header
    _
  $region3: #{double_conv_forward.3} parent=0 // loop_header
    %s15 = sphi 0, %s19
    %p16 = scmp.ge.s32.totalorder %s15, 4
    %s22 = sphi 0, %s34
    %s23 = sphi 0, %s30
    %s24 = sphi 0, %s22
    %s25 = sphi 0, %s23
    %s26 = sphi 0, %s24
    %s27 = sphi 0, %s25
    %s35 = sphi 0, %s35
    %s37 = sphi 0, %s35
    %s38 = sphi 0, %s37
    %s52 = sphi 0, %s38
    %s56 = sphi 0, %s56
    %s58 = sphi 0, %s56
    %s59 = sphi 0, %s58
    %s73 = sphi 0, %s59
    %s89 = sphi 0, %s91
    %s92 = sphi 0, %s89
    %s93 = sphi 0, %s92
    %s109 = sphi 0, %s93
    %s117 = sphi 0, %s119
    %s120 = sphi 0, %s117
    %s121 = sphi 0, %s120
    %s137 = sphi 0, %s121
    %s153 = sphi 0, %s155
    %s156 = sphi 0, %s153
    %s157 = sphi 0, %s156
    %s173 = sphi 0, %s157
    %s177 = sphi 0, %s177
    %s179 = sphi 0, %s177
    %s180 = sphi 0, %s179
    %s194 = sphi 0, %s180
    %s202 = sphi 0, %s204
    %s205 = sphi 0, %s202
    %s206 = sphi 0, %s205
    %s222 = sphi 0, %s206
    %s230 = sphi 0, %s232
    %s233 = sphi 0, %s230
    %s234 = sphi 0, %s233
    %s250 = sphi 0, %s234
    %s258 = sphi 0, %s260
    %s261 = sphi 0, %s258
    %s262 = sphi 0, %s261
    %s278 = sphi 0, %s262
  $region4: #{double_conv_forward.3} parent=0 // loop_header_branch
    %18 = sbr.rel (%p16) target = $region8
  $region5: #{double_conv_forward.3} parent=0 // loop_body
    %s20 = ssub.s32 %s15, 1
    %s21 = ssub.s32 %s15, 2
    %s28 = sadd.s32 1, %s23
    %p29 = scmp.ge.s32.totalorder %s28, 1
    %s30 = scalar_select %p29, 0, %s28
    %s31 = sadd.s32 1, %s22
    %s32 = scalar_select %p29, %s31, %s22
    %p33 = scmp.ge.s32.totalorder %s32, 2
    %s34 = scalar_select %p33, 0, %s32
    %s36 = sadd.s32 %s35, 1
    %p39 = scmp.eq.s32.totalorder %s15, 1
    %p40 = scmp.ne.s32.totalorder %s35, %s37
    %p41 = scmp.eq.s32.totalorder %s15, 0
    %p42 = por %p40, %p41
    %p43 = scmp.ne.s32.totalorder %s35, %s37
    %p44 = scmp.eq.s32.totalorder %s20, 1
    %p45 = por %p43, %p44
    %p46 = scmp.ne.s32.totalorder %s37, %s38
    %p47 = scmp.eq.s32.totalorder %s20, 0
    %p48 = por %p46, %p47
    %p49 = scmp.ne.s32.totalorder %s37, %s38
    %p50 = scmp.eq.s32.totalorder %s21, 1
    %p51 = por %p49, %p50
    %p53 = scmp.ne.s32.totalorder %s38, %s52
    %p54 = scmp.eq.s32.totalorder %s21, 0
    %p55 = por %p53, %p54
    %s57 = sadd.s32 %s56, 1
    %p60 = scmp.eq.s32.totalorder %s15, 1
    %p61 = scmp.ne.s32.totalorder %s56, %s58
    %p62 = scmp.eq.s32.totalorder %s15, 0
    %p63 = por %p61, %p62
    %p64 = scmp.ne.s32.totalorder %s56, %s58
    %p65 = scmp.eq.s32.totalorder %s20, 1
    %p66 = por %p64, %p65
    %p67 = scmp.ne.s32.totalorder %s58, %s59
    %p68 = scmp.eq.s32.totalorder %s20, 0
    %p69 = por %p67, %p68
    %p70 = scmp.ne.s32.totalorder %s58, %s59
    %p71 = scmp.eq.s32.totalorder %s21, 1
    %p72 = por %p70, %p71
    %p74 = scmp.ne.s32.totalorder %s59, %s73
    %p75 = scmp.eq.s32.totalorder %s21, 0
    %p76 = por %p74, %p75
    %s77 = smul.u32 %s23, 16
    %s78 = ssub.s32 %s77, 1
    %p79 = scmp.gt.s32.totalorder %s78, 0
    %s80 = scalar_select %p79, %s78, 0
    %s81 = smul.u32 %s30, 16
    %s82 = ssub.s32 %s81, 1
    %p83 = scmp.gt.s32.totalorder %s82, 0
    %s84 = scalar_select %p83, %s82, 0
    %s85 = ssub.s32 %s22, %s34
    %s86 = ssub.s32 %s80, %s84
    %s87 = sor.u32 %s85, %s86
    %p88 = scmp.eq.s32.totalorder %s87, 0
    %s90 = sadd.s32 %s89, 1
    %s91 = scalar_select %p88, %s89, %s90
    %p94 = pneg %p88
    %p95 = scmp.eq.s32.totalorder %s15, 1
    %p96 = por %p94, %p95
    %p97 = scmp.ne.s32.totalorder %s89, %s92
    %p98 = scmp.eq.s32.totalorder %s15, 0
    %p99 = por %p97, %p98
    %p100 = scmp.ne.s32.totalorder %s89, %s92
    %p101 = scmp.eq.s32.totalorder %s20, 1
    %p102 = por %p100, %p101
    %p103 = scmp.ne.s32.totalorder %s92, %s93
    %p104 = scmp.eq.s32.totalorder %s20, 0
    %p105 = por %p103, %p104
    %p106 = scmp.ne.s32.totalorder %s92, %s93
    %p107 = scmp.eq.s32.totalorder %s21, 1
    %p108 = por %p106, %p107
    %p110 = scmp.ne.s32.totalorder %s93, %s109
    %p111 = scmp.eq.s32.totalorder %s21, 0
    %p112 = por %p110, %p111
    %s113 = ssub.s32 %s22, %s34
    %s114 = ssub.s32 %s23, %s30
    %s115 = sor.u32 %s113, %s114
    %p116 = scmp.eq.s32.totalorder %s115, 0
    %s118 = sadd.s32 %s117, 1
    %s119 = scalar_select %p116, %s117, %s118
    %p122 = pneg %p116
    %p123 = scmp.eq.s32.totalorder %s15, 1
    %p124 = por %p122, %p123
    %p125 = scmp.ne.s32.totalorder %s117, %s120
    %p126 = scmp.eq.s32.totalorder %s15, 0
    %p127 = por %p125, %p126
    %p128 = scmp.ne.s32.totalorder %s117, %s120
    %p129 = scmp.eq.s32.totalorder %s20, 1
    %p130 = por %p128, %p129
    %p131 = scmp.ne.s32.totalorder %s120, %s121
    %p132 = scmp.eq.s32.totalorder %s20, 0
    %p133 = por %p131, %p132
    %p134 = scmp.ne.s32.totalorder %s120, %s121
    %p135 = scmp.eq.s32.totalorder %s21, 1
    %p136 = por %p134, %p135
    %p138 = scmp.ne.s32.totalorder %s121, %s137
    %p139 = scmp.eq.s32.totalorder %s21, 0
    %p140 = por %p138, %p139
    %s141 = smul.u32 %s23, 16
    %s142 = sadd.s32 %s141, 16
    %p143 = scmp.lt.s32.totalorder %s142, 15
    %s144 = scalar_select %p143, %s142, 15
    %s145 = smul.u32 %s30, 16
    %s146 = sadd.s32 %s145, 16
    %p147 = scmp.lt.s32.totalorder %s146, 15
    %s148 = scalar_select %p147, %s146, 15
    %s149 = ssub.s32 %s22, %s34
    %s150 = ssub.s32 %s144, %s148
    %s151 = sor.u32 %s149, %s150
    %p152 = scmp.eq.s32.totalorder %s151, 0
    %s154 = sadd.s32 %s153, 1
    %s155 = scalar_select %p152, %s153, %s154
    %p158 = pneg %p152
    %p159 = scmp.eq.s32.totalorder %s15, 1
    %p160 = por %p158, %p159
    %p161 = scmp.ne.s32.totalorder %s153, %s156
    %p162 = scmp.eq.s32.totalorder %s15, 0
    %p163 = por %p161, %p162
    %p164 = scmp.ne.s32.totalorder %s153, %s156
    %p165 = scmp.eq.s32.totalorder %s20, 1
    %p166 = por %p164, %p165
    %p167 = scmp.ne.s32.totalorder %s156, %s157
    %p168 = scmp.eq.s32.totalorder %s20, 0
    %p169 = por %p167, %p168
    %p170 = scmp.ne.s32.totalorder %s156, %s157
    %p171 = scmp.eq.s32.totalorder %s21, 1
    %p172 = por %p170, %p171
    %p174 = scmp.ne.s32.totalorder %s157, %s173
    %p175 = scmp.eq.s32.totalorder %s21, 0
    %p176 = por %p174, %p175
    %s178 = sadd.s32 %s177, 1
    %p181 = scmp.eq.s32.totalorder %s15, 1
    %p182 = scmp.ne.s32.totalorder %s177, %s179
    %p183 = scmp.eq.s32.totalorder %s15, 0
    %p184 = por %p182, %p183
    %p185 = scmp.ne.s32.totalorder %s177, %s179
    %p186 = scmp.eq.s32.totalorder %s20, 1
    %p187 = por %p185, %p186
    %p188 = scmp.ne.s32.totalorder %s179, %s180
    %p189 = scmp.eq.s32.totalorder %s20, 0
    %p190 = por %p188, %p189
    %p191 = scmp.ne.s32.totalorder %s179, %s180
    %p192 = scmp.eq.s32.totalorder %s21, 1
    %p193 = por %p191, %p192
    %p195 = scmp.ne.s32.totalorder %s180, %s194
    %p196 = scmp.eq.s32.totalorder %s21, 0
    %p197 = por %p195, %p196
    %s198 = ssub.s32 %s22, %s34
    %s199 = ssub.s32 %s23, %s30
    %s200 = sor.u32 %s198, %s199
    %p201 = scmp.eq.s32.totalorder %s200, 0
    %s203 = sadd.s32 %s202, 1
    %s204 = scalar_select %p201, %s202, %s203
    %p207 = pneg %p201
    %p208 = scmp.eq.s32.totalorder %s15, 1
    %p209 = por %p207, %p208
    %p210 = scmp.ne.s32.totalorder %s202, %s205
    %p211 = scmp.eq.s32.totalorder %s15, 0
    %p212 = por %p210, %p211
    %p213 = scmp.ne.s32.totalorder %s202, %s205
    %p214 = scmp.eq.s32.totalorder %s20, 1
    %p215 = por %p213, %p214
    %p216 = scmp.ne.s32.totalorder %s205, %s206
    %p217 = scmp.eq.s32.totalorder %s20, 0
    %p218 = por %p216, %p217
    %p219 = scmp.ne.s32.totalorder %s205, %s206
    %p220 = scmp.eq.s32.totalorder %s21, 1
    %p221 = por %p219, %p220
    %p223 = scmp.ne.s32.totalorder %s206, %s222
    %p224 = scmp.eq.s32.totalorder %s21, 0
    %p225 = por %p223, %p224
    %s226 = ssub.s32 %s22, %s34
    %s227 = ssub.s32 %s23, %s30
    %s228 = sor.u32 %s226, %s227
    %p229 = scmp.eq.s32.totalorder %s228, 0
    %s231 = sadd.s32 %s230, 1
    %s232 = scalar_select %p229, %s230, %s231
    %p235 = pneg %p229
    %p236 = scmp.eq.s32.totalorder %s15, 1
    %p237 = por %p235, %p236
    %p238 = scmp.ne.s32.totalorder %s230, %s233
    %p239 = scmp.eq.s32.totalorder %s15, 0
    %p240 = por %p238, %p239
    %p241 = scmp.ne.s32.totalorder %s230, %s233
    %p242 = scmp.eq.s32.totalorder %s20, 1
    %p243 = por %p241, %p242
    %p244 = scmp.ne.s32.totalorder %s233, %s234
    %p245 = scmp.eq.s32.totalorder %s20, 0
    %p246 = por %p244, %p245
    %p247 = scmp.ne.s32.totalorder %s233, %s234
    %p248 = scmp.eq.s32.totalorder %s21, 1
    %p249 = por %p247, %p248
    %p251 = scmp.ne.s32.totalorder %s234, %s250
    %p252 = scmp.eq.s32.totalorder %s21, 0
    %p253 = por %p251, %p252
    %s254 = ssub.s32 %s22, %s34
    %s255 = ssub.s32 %s23, %s30
    %s256 = sor.u32 %s254, %s255
    %p257 = scmp.eq.s32.totalorder %s256, 0
    %s259 = sadd.s32 %s258, 1
    %s260 = scalar_select %p257, %s258, %s259
    %p263 = pneg %p257
    %p264 = scmp.eq.s32.totalorder %s15, 1
    %p265 = por %p263, %p264
    %p266 = scmp.ne.s32.totalorder %s258, %s261
    %p267 = scmp.eq.s32.totalorder %s15, 0
    %p268 = por %p266, %p267
    %p269 = scmp.ne.s32.totalorder %s258, %s261
    %p270 = scmp.eq.s32.totalorder %s20, 1
    %p271 = por %p269, %p270
    %p272 = scmp.ne.s32.totalorder %s261, %s262
    %p273 = scmp.eq.s32.totalorder %s20, 0
    %p274 = por %p272, %p273
    %p275 = scmp.ne.s32.totalorder %s261, %s262
    %p276 = scmp.eq.s32.totalorder %s21, 1
    %p277 = por %p275, %p276
    %p279 = scmp.ne.s32.totalorder %s262, %s278
    %p280 = scmp.eq.s32.totalorder %s21, 0
    %p281 = por %p279, %p280
    %p282 = scmp.le.s32.totalorder 1, %s15
    %p283 = scmp.lt.s32.totalorder %s15, 3
    %p284 = pnand %p282, %p283
    %p285 = pneg %p284
    // Predicated region
    $region9: #{double_conv_forward.3} parent=5 // pred_check
      _
    $region10: #{double_conv_forward.3} parent=5 // pred_check_branch
      %287 = sbr.rel (%p284) target = $region12
    $region11: #{double_conv_forward.3} parent=5 // pred_region
      %s288 = ssub.s32 %s15, 1
      // Predicated region
      $region13: #{double_conv_forward.3} parent=11 // pred_check
        %p289 = pneg %p48
      $region14: #{double_conv_forward.3} parent=11 // pred_check_branch
        %291 = sbr.rel (%p289) target = $region16
      $region15: #{double_conv_forward.3} parent=11 // pred_region
        _
      $region16: #{double_conv_forward.3} parent=11 // pred_fallthru
        _
      // Predicated region
      $region17: #{double_conv_forward.3} parent=11 // pred_check
        %p292 = pneg %p69
      $region18: #{double_conv_forward.3} parent=11 // pred_check_branch
        %294 = sbr.rel (%p292) target = $region20
      $region19: #{double_conv_forward.3} parent=11 // pred_region
        _
      $region20: #{double_conv_forward.3} parent=11 // pred_fallthru
        _
      // Predicated region
      $region21: #{double_conv_forward.3} parent=11 // pred_check
        %p295 = pneg %p190
      $region22: #{double_conv_forward.3} parent=11 // pred_check_branch
        %297 = sbr.rel (%p295) target = $region24
      $region23: #{double_conv_forward.3} parent=11 // pred_region
        _
      $region24: #{double_conv_forward.3} parent=11 // pred_fallthru
        _
    $region12: #{double_conv_forward.3} parent=5 // pred_fallthru
      _
    %p298 = scmp.lt.s32.totalorder %s15, 2
    // Predicated region
    $region25: #{double_conv_forward.3} parent=5 // pred_check
      %p299 = pneg %p298
    $region26: #{double_conv_forward.3} parent=5 // pred_check_branch
      %301 = sbr.rel (%p299) target = $region28
    $region27: #{double_conv_forward.3} parent=5 // pred_region
      // Predicated region
      $region29: #{double_conv_forward.3} parent=27 // pred_check
        %p302 = pneg %p99
      $region30: #{double_conv_forward.3} parent=27 // pred_check_branch
        %304 = sbr.rel (%p302) target = $region32
      $region31: #{double_conv_forward.3} parent=27 // pred_region
        %s305 = smul.u32 %s23, 16
        %s306 = ssub.s32 %s305, 1
        %p307 = scmp.gt.s32.totalorder %s306, 0
        %s308 = scalar_select %p307, %s306, 0
        %p309 = scmp.lt.s32.totalorder %s22, 1
        %s310 = scalar_select %p309, %s22, 1
        %p311 = scmp.lt.s32.totalorder %s308, 15
        %s312 = scalar_select %p311, %s308, 15
        %s313 = smul.addr %s312, 2
        %s314 = smul.addr %s310, 32
        %s315 = sadd.s32 %s313, %s314
        %s316 = smul.addr %s315, 4
        %s317 = scalar_lea.vmem %s2, %s316
        %s318 = smul.u32 %s23, 16
        %s319 = ssub.s32 %s318, 1
        %p320 = scmp.gt.s32.totalorder %s319, 0
        %s321 = scalar_select %p320, %s319, 0
      $region32: #{double_conv_forward.3} parent=27 // pred_fallthru
        _
      // Predicated region
      $region33: #{double_conv_forward.3} parent=27 // pred_check
        %p322 = pneg %p127
      $region34: #{double_conv_forward.3} parent=27 // pred_check_branch
        %324 = sbr.rel (%p322) target = $region36
      $region35: #{double_conv_forward.3} parent=27 // pred_region
        %s325 = smul.u32 16, %s23
        %p326 = scmp.lt.s32.totalorder %s22, 1
        %s327 = scalar_select %p326, %s22, 1
        %p328 = scmp.lt.s32.totalorder %s325, 15
        %s329 = scalar_select %p328, %s325, 15
        %s330 = smul.addr %s329, 2
        %s331 = smul.addr %s327, 32
        %s332 = sadd.s32 %s330, %s331
        %s333 = smul.addr %s332, 4
        %s334 = scalar_lea.vmem %s3, %s333
        %s335 = smul.u32 16, %s23
      $region36: #{double_conv_forward.3} parent=27 // pred_fallthru
        _
      // Predicated region
      $region37: #{double_conv_forward.3} parent=27 // pred_check
        %p336 = pneg %p163
      $region38: #{double_conv_forward.3} parent=27 // pred_check_branch
        %338 = sbr.rel (%p336) target = $region40
      $region39: #{double_conv_forward.3} parent=27 // pred_region
        %s339 = smul.u32 %s23, 16
        %s340 = sadd.s32 %s339, 16
        %p341 = scmp.lt.s32.totalorder %s340, 15
        %s342 = scalar_select %p341, %s340, 15
        %p343 = scmp.lt.s32.totalorder %s22, 1
        %s344 = scalar_select %p343, %s22, 1
        %p345 = scmp.lt.s32.totalorder %s342, 15
        %s346 = scalar_select %p345, %s342, 15
        %s347 = smul.addr %s346, 2
        %s348 = smul.addr %s344, 32
        %s349 = sadd.s32 %s347, %s348
        %s350 = smul.addr %s349, 4
        %s351 = scalar_lea.vmem %s4, %s350
        %s352 = smul.u32 %s23, 16
        %s353 = sadd.s32 %s352, 16
        %p354 = scmp.lt.s32.totalorder %s353, 15
        %s355 = scalar_select %p354, %s353, 15
      $region40: #{double_conv_forward.3} parent=27 // pred_fallthru
        _
    $region28: #{double_conv_forward.3} parent=5 // pred_fallthru
      _
    %p356 = scmp.le.s32.totalorder 1, %s15
    %p357 = scmp.lt.s32.totalorder %s15, 3
    %p358 = pnand %p356, %p357
    %p359 = pneg %p358
    // Predicated region
    $region41: #{double_conv_forward.3} parent=5 // pred_check
      _
    $region42: #{double_conv_forward.3} parent=5 // pred_check_branch
      %361 = sbr.rel (%p358) target = $region44
    $region43: #{double_conv_forward.3} parent=5 // pred_region
      %s362 = ssub.s32 %s15, 1
      %p363 = pneg %p48
      %p364 = pneg %p45
      %p365 = pneg %p69
      %p366 = pneg %p66
      %s367 = smul.u32 %s25, 16
      %s368 = ssub.s32 %s367, 1
      %p369 = scmp.gt.s32.totalorder %s368, 0
      %s370 = scalar_select %p369, %s368, 0
      %p371 = scmp.lt.s32.totalorder %s24, 1
      %s372 = scalar_select %p371, %s24, 1
      %p373 = scmp.lt.s32.totalorder %s370, 15
      %s374 = scalar_select %p373, %s370, 15
      %s375 = smul.addr %s374, 2
      %s376 = smul.addr %s372, 32
      %s377 = sadd.s32 %s375, %s376
      %s378 = smul.addr %s377, 4
      %s379 = scalar_lea.vmem %s2, %s378
      %p380 = pneg %p105
      %p381 = pneg %p102
      %s382 = smul.u32 16, %s25
      %p383 = scmp.lt.s32.totalorder %s24, 1
      %s384 = scalar_select %p383, %s24, 1
      %p385 = scmp.lt.s32.totalorder %s382, 15
      %s386 = scalar_select %p385, %s382, 15
      %s387 = smul.addr %s386, 2
      %s388 = smul.addr %s384, 32
      %s389 = sadd.s32 %s387, %s388
      %s390 = smul.addr %s389, 4
      %s391 = scalar_lea.vmem %s3, %s390
      %p392 = pneg %p133
      %p393 = pneg %p130
      %s394 = smul.u32 %s25, 16
      %s395 = sadd.s32 %s394, 16
      %p396 = scmp.lt.s32.totalorder %s395, 15
      %s397 = scalar_select %p396, %s395, 15
      %p398 = scmp.lt.s32.totalorder %s24, 1
      %s399 = scalar_select %p398, %s24, 1
      %p400 = scmp.lt.s32.totalorder %s397, 15
      %s401 = scalar_select %p400, %s397, 15
      %s402 = smul.addr %s401, 2
      %s403 = smul.addr %s399, 32
      %s404 = sadd.s32 %s402, %s403
      %s405 = smul.addr %s404, 4
      %s406 = scalar_lea.vmem %s4, %s405
      %p407 = pneg %p169
      %p408 = pneg %p166
      %p409 = pneg %p190
      %p410 = pneg %p187
      %p411 = pneg %p218
      %p412 = pneg %p215
      %s413 = smul.u32 16, %s25
      %p414 = scmp.lt.s32.totalorder %s24, 1
      %s415 = scalar_select %p414, %s24, 1
      %p416 = scmp.lt.s32.totalorder %s413, 15
      %s417 = scalar_select %p416, %s413, 15
      %s418 = smul.addr %s417, 2
      %s419 = smul.addr %s415, 32
      %s420 = sadd.s32 %s418, %s419
      %s421 = smul.addr %s420, 4
      %s422 = scalar_lea.vmem %s6, %s421
      %p423 = pneg %p246
      %p424 = pneg %p243
      %p425 = scmp.lt.s32.totalorder %s24, 1
      %s426 = scalar_select %p425, %s24, 1
      %p427 = scmp.lt.s32.totalorder %s25, 0
      %s428 = scalar_select %p427, %s25, 0
      %s429 = sadd.s32 %s428, %s426
      %s430 = scalar_lea.vmem %s7, %s429
      %p431 = pneg %p274
      %p432 = pneg %p271
      %p433 = scmp.lt.s32.totalorder %s24, 1
      %s434 = scalar_select %p433, %s24, 1
      %p435 = scmp.lt.s32.totalorder %s25, 0
      %s436 = scalar_select %p435, %s25, 0
      %s437 = sadd.s32 %s436, %s434
      %s438 = scalar_lea.vmem %s8, %s437
      %s439 = smul.u32 %s25, 16
      %s440 = ssub.s32 %s439, 1
      %p441 = scmp.gt.s32.totalorder %s440, 0
      %s442 = scalar_select %p441, %s440, 0
      %p443 = scmp.lt.s32.totalorder %s24, 1
      %s444 = scalar_select %p443, %s24, 1
      %p445 = scmp.lt.s32.totalorder %s442, 15
      %s446 = scalar_select %p445, %s442, 15
      %s447 = smul.addr %s446, 2
      %s448 = smul.addr %s444, 32
      %s449 = sadd.s32 %s447, %s448
      %s450 = smul.addr %s449, 4
      %s451 = scalar_lea.vmem %s2, %s450
      %s452 = smul.u32 %s25, 16
      %s453 = ssub.s32 %s452, 1
      %p454 = scmp.gt.s32.totalorder %s453, 0
      %s455 = scalar_select %p454, %s453, 0
      %s456 = smul.u32 16, %s25
      %p457 = scmp.lt.s32.totalorder %s24, 1
      %s458 = scalar_select %p457, %s24, 1
      %p459 = scmp.lt.s32.totalorder %s456, 15
      %s460 = scalar_select %p459, %s456, 15
      %s461 = smul.addr %s460, 2
      %s462 = smul.addr %s458, 32
      %s463 = sadd.s32 %s461, %s462
      %s464 = smul.addr %s463, 4
      %s465 = scalar_lea.vmem %s3, %s464
      %s466 = smul.u32 16, %s25
      %s467 = smul.u32 %s25, 16
      %s468 = sadd.s32 %s467, 16
      %p469 = scmp.lt.s32.totalorder %s468, 15
      %s470 = scalar_select %p469, %s468, 15
      %p471 = scmp.lt.s32.totalorder %s24, 1
      %s472 = scalar_select %p471, %s24, 1
      %p473 = scmp.lt.s32.totalorder %s470, 15
      %s474 = scalar_select %p473, %s470, 15
      %s475 = smul.addr %s474, 2
      %s476 = smul.addr %s472, 32
      %s477 = sadd.s32 %s475, %s476
      %s478 = smul.addr %s477, 4
      %s479 = scalar_lea.vmem %s4, %s478
      %s480 = smul.u32 %s25, 16
      %s481 = sadd.s32 %s480, 16
      %p482 = scmp.lt.s32.totalorder %s481, 15
      %s483 = scalar_select %p482, %s481, 15
      %s484 = smul.u32 16, %s25
      %p485 = scmp.lt.s32.totalorder %s24, 1
      %s486 = scalar_select %p485, %s24, 1
      %p487 = scmp.lt.s32.totalorder %s484, 15
      %s488 = scalar_select %p487, %s484, 15
      %s489 = smul.addr %s488, 2
      %s490 = smul.addr %s486, 32
      %s491 = sadd.s32 %s489, %s490
      %s492 = smul.addr %s491, 4
      %s493 = scalar_lea.vmem %s6, %s492
      %s494 = smul.u32 16, %s25
      %p495 = scmp.lt.s32.totalorder %s24, 1
      %s496 = scalar_select %p495, %s24, 1
      %p497 = scmp.lt.s32.totalorder %s25, 0
      %s498 = scalar_select %p497, %s25, 0
      %s499 = sadd.s32 %s498, %s496
      %s500 = scalar_lea.vmem %s7, %s499
      %p501 = scmp.lt.s32.totalorder %s24, 1
      %s502 = scalar_select %p501, %s24, 1
      %p503 = scmp.lt.s32.totalorder %s25, 0
      %s504 = scalar_select %p503, %s25, 0
      %s505 = sadd.s32 %s504, %s502
      %s506 = scalar_lea.vmem %s8, %s505
      %508 = vst [vmem:[#allocation2] sm:$0x1] 0.0
      %509 = vst [vmem:[#allocation2 + $0x18] sm:$0x1] 0.0
      %510 = vst [vmem:[#allocation2 + $0x30] sm:$0x1] 0.0
      %511 = vst [vmem:[#allocation2 + $0x48] sm:$0x1] 0.0
      %512 = vst [vmem:[#allocation2 + $0x60] sm:$0x1] 0.0
      %513 = vst [vmem:[#allocation2 + $0x78] sm:$0x1] 0.0
      %514 = vst [vmem:[#allocation2 + $0x90] sm:$0x1] 0.0
      %515 = vst [vmem:[#allocation2 + $0xa8] sm:$0x1] 0.0
      %516 = vst [vmem:[#allocation2 + $0xc0] sm:$0x1] 0.0
      %517 = vst [vmem:[#allocation2 + $0xd8] sm:$0x1] 0.0
      %518 = vst [vmem:[#allocation2 + $0xf0] sm:$0x1] 0.0
      %519 = vst [vmem:[#allocation2 + $0x108] sm:$0x1] 0.0
      %520 = vst [vmem:[#allocation2 + $0x120] sm:$0x1] 0.0
      %521 = vst [vmem:[#allocation2 + $0x138] sm:$0x1] 0.0
      %522 = vst [vmem:[#allocation2 + $0x150] sm:$0x1] 0.0
      %523 = vst [vmem:[#allocation2 + $0x168] sm:$0x1] 0.0
      %524 = vst [vmem:[#allocation2 + $0x180] sm:$0x1] 0.0
      %525 = vst [vmem:[#allocation2 + $0x198] sm:$0x1] 0.0
      %526 = vst [vmem:[#allocation2 + $0x11] sm:$0x1] 0.0
      %527 = vst [vmem:[#allocation2 + $0x29] sm:$0x1] 0.0
      %528 = vst [vmem:[#allocation2 + $0x41] sm:$0x1] 0.0
      %529 = vst [vmem:[#allocation2 + $0x59] sm:$0x1] 0.0
      %530 = vst [vmem:[#allocation2 + $0x71] sm:$0x1] 0.0
      %531 = vst [vmem:[#allocation2 + $0x89] sm:$0x1] 0.0
      %532 = vst [vmem:[#allocation2 + $0xa1] sm:$0x1] 0.0
      %533 = vst [vmem:[#allocation2 + $0xb9] sm:$0x1] 0.0
      %534 = vst [vmem:[#allocation2 + $0xd1] sm:$0x1] 0.0
      %535 = vst [vmem:[#allocation2 + $0xe9] sm:$0x1] 0.0
      %536 = vst [vmem:[#allocation2 + $0x101] sm:$0x1] 0.0
      %537 = vst [vmem:[#allocation2 + $0x119] sm:$0x1] 0.0
      %538 = vst [vmem:[#allocation2 + $0x131] sm:$0x1] 0.0
      %539 = vst [vmem:[#allocation2 + $0x149] sm:$0x1] 0.0
      %540 = vst [vmem:[#allocation2 + $0x161] sm:$0x1] 0.0
      %541 = vst [vmem:[#allocation2 + $0x179] sm:$0x1] 0.0
      %542 = vst [vmem:[#allocation2 + $0x191] sm:$0x1] 0.0
      %543 = vst [vmem:[#allocation2 + $0x1a9] sm:$0x1] 0.0
      %v544 = vld [vmem:[%s465] sm:$0xf]
      %v545 = vld [vmem:[%s465 + $0x4] sm:$0xf]
      %v546 = vld [vmem:[%s465 + $0x8] sm:$0xf]
      %v547 = vld [vmem:[%s465 + $0xc] sm:$0xf]
      %v548 = vld [vmem:[%s465 + $0x10] sm:$0xf]
      %v549 = vld [vmem:[%s465 + $0x14] sm:$0xf]
      %v550 = vld [vmem:[%s465 + $0x18] sm:$0xf]
      %v551 = vld [vmem:[%s465 + $0x1c] sm:$0xf]
      %v552 = vld [vmem:[%s465 + $0x20] sm:$0xf]
      %v553 = vld [vmem:[%s465 + $0x24] sm:$0xf]
      %v554 = vld [vmem:[%s465 + $0x28] sm:$0xf]
      %v555 = vld [vmem:[%s465 + $0x2c] sm:$0xf]
      %v556 = vld [vmem:[%s465 + $0x30] sm:$0xf]
      %v557 = vld [vmem:[%s465 + $0x34] sm:$0xf]
      %v558 = vld [vmem:[%s465 + $0x38] sm:$0xf]
      %v559 = vld [vmem:[%s465 + $0x3c] sm:$0xf]
      %v560 = vld [vmem:[%s465 + $0x40] sm:$0xf]
      %v561 = vld [vmem:[%s465 + $0x44] sm:$0xf]
      %v562 = vld [vmem:[%s465 + $0x48] sm:$0xf]
      %v563 = vld [vmem:[%s465 + $0x4c] sm:$0xf]
      %v564 = vld [vmem:[%s465 + $0x50] sm:$0xf]
      %v565 = vld [vmem:[%s465 + $0x54] sm:$0xf]
      %v566 = vld [vmem:[%s465 + $0x58] sm:$0xf]
      %v567 = vld [vmem:[%s465 + $0x5c] sm:$0xf]
      %v568 = vld [vmem:[%s465 + $0x60] sm:$0xf]
      %v569 = vld [vmem:[%s465 + $0x64] sm:$0xf]
      %v570 = vld [vmem:[%s465 + $0x68] sm:$0xf]
      %v571 = vld [vmem:[%s465 + $0x6c] sm:$0xf]
      %v572 = vld [vmem:[%s465 + $0x70] sm:$0xf]
      %v573 = vld [vmem:[%s465 + $0x74] sm:$0xf]
      %v574 = vld [vmem:[%s465 + $0x78] sm:$0xf]
      %v575 = vld [vmem:[%s465 + $0x7c] sm:$0xf]
      %v576 = vunpack.c.l.bf16 %v544
      %v577 = vunpack.c.l.bf16 %v545
      %v578 = vunpack.c.l.bf16 %v546
      %v579 = vunpack.c.l.bf16 %v547
      %v580 = vunpack.c.l.bf16 %v548
      %v581 = vunpack.c.l.bf16 %v549
      %v582 = vunpack.c.l.bf16 %v550
      %v583 = vunpack.c.l.bf16 %v551
      %v584 = vunpack.c.l.bf16 %v552
      %v585 = vunpack.c.l.bf16 %v553
      %v586 = vunpack.c.l.bf16 %v554
      %v587 = vunpack.c.l.bf16 %v555
      %v588 = vunpack.c.l.bf16 %v556
      %v589 = vunpack.c.l.bf16 %v557
      %v590 = vunpack.c.l.bf16 %v558
      %v591 = vunpack.c.l.bf16 %v559
      %v592 = vunpack.c.l.bf16 %v560
      %v593 = vunpack.c.l.bf16 %v561
      %v594 = vunpack.c.l.bf16 %v562
      %v595 = vunpack.c.l.bf16 %v563
      %v596 = vunpack.c.l.bf16 %v564
      %v597 = vunpack.c.l.bf16 %v565
      %v598 = vunpack.c.l.bf16 %v566
      %v599 = vunpack.c.l.bf16 %v567
      %v600 = vunpack.c.l.bf16 %v568
      %v601 = vunpack.c.l.bf16 %v569
      %v602 = vunpack.c.l.bf16 %v570
      %v603 = vunpack.c.l.bf16 %v571
      %v604 = vunpack.c.l.bf16 %v572
      %v605 = vunpack.c.l.bf16 %v573
      %v606 = vunpack.c.l.bf16 %v574
      %v607 = vunpack.c.l.bf16 %v575
      %s608 = scalar_lea.vmem [#allocation2], 24
      %609 = vst [vmem:[%s608 + $0x1] sm:$0xff] %v576
      %610 = vst [vmem:[%s608 + $0x9] sm:$0xff] %v577
      %611 = vst [vmem:[%s608 + $0x19] sm:$0xff] %v578
      %612 = vst [vmem:[%s608 + $0x21] sm:$0xff] %v579
      %613 = vst [vmem:[%s608 + $0x31] sm:$0xff] %v580
      %614 = vst [vmem:[%s608 + $0x39] sm:$0xff] %v581
      %615 = vst [vmem:[%s608 + $0x49] sm:$0xff] %v582
      %616 = vst [vmem:[%s608 + $0x51] sm:$0xff] %v583
      %617 = vst [vmem:[%s608 + $0x61] sm:$0xff] %v584
      %618 = vst [vmem:[%s608 + $0x69] sm:$0xff] %v585
      %619 = vst [vmem:[%s608 + $0x79] sm:$0xff] %v586
      %620 = vst [vmem:[%s608 + $0x81] sm:$0xff] %v587
      %621 = vst [vmem:[%s608 + $0x91] sm:$0xff] %v588
      %622 = vst [vmem:[%s608 + $0x99] sm:$0xff] %v589
      %623 = vst [vmem:[%s608 + $0xa9] sm:$0xff] %v590
      %624 = vst [vmem:[%s608 + $0xb1] sm:$0xff] %v591
      %625 = vst [vmem:[%s608 + $0xc1] sm:$0xff] %v592
      %626 = vst [vmem:[%s608 + $0xc9] sm:$0xff] %v593
      %627 = vst [vmem:[%s608 + $0xd9] sm:$0xff] %v594
      %628 = vst [vmem:[%s608 + $0xe1] sm:$0xff] %v595
      %629 = vst [vmem:[%s608 + $0xf1] sm:$0xff] %v596
      %630 = vst [vmem:[%s608 + $0xf9] sm:$0xff] %v597
      %631 = vst [vmem:[%s608 + $0x109] sm:$0xff] %v598
      %632 = vst [vmem:[%s608 + $0x111] sm:$0xff] %v599
      %633 = vst [vmem:[%s608 + $0x121] sm:$0xff] %v600
      %634 = vst [vmem:[%s608 + $0x129] sm:$0xff] %v601
      %635 = vst [vmem:[%s608 + $0x139] sm:$0xff] %v602
      %636 = vst [vmem:[%s608 + $0x141] sm:$0xff] %v603
      %637 = vst [vmem:[%s608 + $0x151] sm:$0xff] %v604
      %638 = vst [vmem:[%s608 + $0x159] sm:$0xff] %v605
      %639 = vst [vmem:[%s608 + $0x169] sm:$0xff] %v606
      %640 = vst [vmem:[%s608 + $0x171] sm:$0xff] %v607
      %p641 = scmp.eq.s32.totalorder %s25, 0
      // Predicated region
      $region45: #{double_conv_forward.3} parent=43 // pred_check
        %p642 = pneg %p641
      $region46: #{double_conv_forward.3} parent=43 // pred_check_branch
        %644 = sbr.rel (%p642) target = $region48
      $region47: #{double_conv_forward.3} parent=43 // pred_region
        %645 = vst [vmem:[#allocation2 + $0x1] sm:$0xff] 0.0
        %646 = vst [vmem:[#allocation2 + $0x9] sm:$0xff] 0.0
      $region48: #{double_conv_forward.3} parent=43 // pred_fallthru
        _
      %p647 = scmp.gt.s32.totalorder %s25, 0
      // Predicated region
      $region49: #{double_conv_forward.3} parent=43 // pred_check
        %p648 = pneg %p647
      $region50: #{double_conv_forward.3} parent=43 // pred_check_branch
        %650 = sbr.rel (%p648) target = $region52
      $region51: #{double_conv_forward.3} parent=43 // pred_region
        %v651 = vld [vmem:[%s451] sm:$0xf]
        %v652 = vld [vmem:[%s451 + $0x4] sm:$0xf]
        %v653 = vunpack.c.l.bf16 %v651
        %v654 = vunpack.c.l.bf16 %v652
        %655 = vst [vmem:[#allocation2 + $0x1] sm:$0xff] %v653
        %656 = vst [vmem:[#allocation2 + $0x9] sm:$0xff] %v654
      $region52: #{double_conv_forward.3} parent=43 // pred_fallthru
        _
      // Predicated region
      $region53: #{double_conv_forward.3} parent=43 // pred_check
        %p657 = pneg %p641
      $region54: #{double_conv_forward.3} parent=43 // pred_check_branch
        %659 = sbr.rel (%p657) target = $region56
      $region55: #{double_conv_forward.3} parent=43 // pred_region
        %s660 = scalar_lea.vmem [#allocation2], 408
        %661 = vst [vmem:[%s660 + $0x1] sm:$0xff] 0.0
        %662 = vst [vmem:[%s660 + $0x9] sm:$0xff] 0.0
      $region56: #{double_conv_forward.3} parent=43 // pred_fallthru
        _
      %p663 = scmp.lt.s32.totalorder %s25, 0
      // Predicated region
      $region57: #{double_conv_forward.3} parent=43 // pred_check
        %p664 = pneg %p663
      $region58: #{double_conv_forward.3} parent=43 // pred_check_branch
        %666 = sbr.rel (%p664) target = $region60
      $region59: #{double_conv_forward.3} parent=43 // pred_region
        %v667 = vld [vmem:[%s479] sm:$0xf]
        %v668 = vld [vmem:[%s479 + $0x4] sm:$0xf]
        %v669 = vunpack.c.l.bf16 %v667
        %v670 = vunpack.c.l.bf16 %v668
        %s671 = scalar_lea.vmem [#allocation2], 408
        %672 = vst [vmem:[%s671 + $0x1] sm:$0xff] %v669
        %673 = vst [vmem:[%s671 + $0x9] sm:$0xff] %v670
      $region60: #{double_conv_forward.3} parent=43 // pred_fallthru
        _
      %v674 = vld [vmem:[#allocation2] sm:$0xff]
      %v675 = vld [vmem:[#allocation2 + $0x8] sm:$0xff]
      %v676 = vld [vmem:[#allocation2 + $0x18] sm:$0xff]
      %v677 = vld [vmem:[#allocation2 + $0x20] sm:$0xff]
      %v678 = vld [vmem:[#allocation2 + $0x30] sm:$0xff]
      %v679 = vld [vmem:[#allocation2 + $0x38] sm:$0xff]
      %v680 = vld [vmem:[#allocation2 + $0x48] sm:$0xff]
      %v681 = vld [vmem:[#allocation2 + $0x50] sm:$0xff]
      %v682 = vld [vmem:[#allocation2 + $0x60] sm:$0xff]
      %v683 = vld [vmem:[#allocation2 + $0x68] sm:$0xff]
      %v684 = vld [vmem:[#allocation2 + $0x78] sm:$0xff]
      %v685 = vld [vmem:[#allocation2 + $0x80] sm:$0xff]
      %v686 = vld [vmem:[#allocation2 + $0x90] sm:$0xff]
      %v687 = vld [vmem:[#allocation2 + $0x98] sm:$0xff]
      %v688 = vld [vmem:[#allocation2 + $0xa8] sm:$0xff]
      %v689 = vld [vmem:[#allocation2 + $0xb0] sm:$0xff]
      %v690 = vld [vmem:[#allocation2 + $0xc0] sm:$0xff]
      %v691 = vld [vmem:[#allocation2 + $0xc8] sm:$0xff]
      %v692 = vld [vmem:[#allocation2 + $0xd8] sm:$0xff]
      %v693 = vld [vmem:[#allocation2 + $0xe0] sm:$0xff]
      %v694 = vld [vmem:[#allocation2 + $0xf0] sm:$0xff]
      %v695 = vld [vmem:[#allocation2 + $0xf8] sm:$0xff]
      %v696 = vld [vmem:[#allocation2 + $0x108] sm:$0xff]
      %v697 = vld [vmem:[#allocation2 + $0x110] sm:$0xff]
      %v698 = vld [vmem:[#allocation2 + $0x120] sm:$0xff]
      %v699 = vld [vmem:[#allocation2 + $0x128] sm:$0xff]
      %v700 = vld [vmem:[#allocation2 + $0x138] sm:$0xff]
      %v701 = vld [vmem:[#allocation2 + $0x140] sm:$0xff]
      %v702 = vld [vmem:[#allocation2 + $0x150] sm:$0xff]
      %v703 = vld [vmem:[#allocation2 + $0x158] sm:$0xff]
      %v704 = vld [vmem:[#allocation2 + $0x168] sm:$0xff]
      %v705 = vld [vmem:[#allocation2 + $0x170] sm:$0xff]
      %v706 = vpack.c.bf16 %v675, %v674
      %v707 = vpack.c.bf16 %v677, %v676
      %v708 = vpack.c.bf16 %v679, %v678
      %v709 = vpack.c.bf16 %v681, %v680
      %v710 = vpack.c.bf16 %v683, %v682
      %v711 = vpack.c.bf16 %v685, %v684
      %v712 = vpack.c.bf16 %v687, %v686
      %v713 = vpack.c.bf16 %v689, %v688
      %v714 = vpack.c.bf16 %v691, %v690
      %v715 = vpack.c.bf16 %v693, %v692
      %v716 = vpack.c.bf16 %v695, %v694
      %v717 = vpack.c.bf16 %v697, %v696
      %v718 = vpack.c.bf16 %v699, %v698
      %v719 = vpack.c.bf16 %v701, %v700
      %v720 = vpack.c.bf16 %v703, %v702
      %v721 = vpack.c.bf16 %v705, %v704
      %722 = vst [vmem:[#allocation3] sm:$0xff] %v706
      %723 = vst [vmem:[#allocation3 + $0x48] sm:$0xff] %v707
      %724 = vst [vmem:[#allocation3 + $0x90] sm:$0xff] %v708
      %725 = vst [vmem:[#allocation3 + $0xd8] sm:$0xff] %v709
      %726 = vst [vmem:[#allocation3 + $0x120] sm:$0xff] %v710
      %727 = vst [vmem:[#allocation3 + $0x168] sm:$0xff] %v711
      %728 = vst [vmem:[#allocation3 + $0x1b0] sm:$0xff] %v712
      %729 = vst [vmem:[#allocation3 + $0x1f8] sm:$0xff] %v713
      %730 = vst [vmem:[#allocation3 + $0x240] sm:$0xff] %v714
      %731 = vst [vmem:[#allocation3 + $0x288] sm:$0xff] %v715
      %732 = vst [vmem:[#allocation3 + $0x2d0] sm:$0xff] %v716
      %733 = vst [vmem:[#allocation3 + $0x318] sm:$0xff] %v717
      %734 = vst [vmem:[#allocation3 + $0x360] sm:$0xff] %v718
      %735 = vst [vmem:[#allocation3 + $0x3a8] sm:$0xff] %v719
      %736 = vst [vmem:[#allocation3 + $0x3f0] sm:$0xff] %v720
      %737 = vst [vmem:[#allocation3 + $0x438] sm:$0xff] %v721
      %v738 = vld [vmem:[#allocation2 + $0x1] sm:$0xff]
      %v739 = vld [vmem:[#allocation2 + $0x9] sm:$0xff]
      %v740 = vld [vmem:[#allocation2 + $0x19] sm:$0xff]
      %v741 = vld [vmem:[#allocation2 + $0x21] sm:$0xff]
      %v742 = vld [vmem:[#allocation2 + $0x31] sm:$0xff]
      %v743 = vld [vmem:[#allocation2 + $0x39] sm:$0xff]
      %v744 = vld [vmem:[#allocation2 + $0x49] sm:$0xff]
      %v745 = vld [vmem:[#allocation2 + $0x51] sm:$0xff]
      %v746 = vld [vmem:[#allocation2 + $0x61] sm:$0xff]
      %v747 = vld [vmem:[#allocation2 + $0x69] sm:$0xff]
      %v748 = vld [vmem:[#allocation2 + $0x79] sm:$0xff]
      %v749 = vld [vmem:[#allocation2 + $0x81] sm:$0xff]
      %v750 = vld [vmem:[#allocation2 + $0x91] sm:$0xff]
      %v751 = vld [vmem:[#allocation2 + $0x99] sm:$0xff]
      %v752 = vld [vmem:[#allocation2 + $0xa9] sm:$0xff]
      %v753 = vld [vmem:[#allocation2 + $0xb1] sm:$0xff]
      %v754 = vld [vmem:[#allocation2 + $0xc1] sm:$0xff]
      %v755 = vld [vmem:[#allocation2 + $0xc9] sm:$0xff]
      %v756 = vld [vmem:[#allocation2 + $0xd9] sm:$0xff]
      %v757 = vld [vmem:[#allocation2 + $0xe1] sm:$0xff]
      %v758 = vld [vmem:[#allocation2 + $0xf1] sm:$0xff]
      %v759 = vld [vmem:[#allocation2 + $0xf9] sm:$0xff]
      %v760 = vld [vmem:[#allocation2 + $0x109] sm:$0xff]
      %v761 = vld [vmem:[#allocation2 + $0x111] sm:$0xff]
      %v762 = vld [vmem:[#allocation2 + $0x121] sm:$0xff]
      %v763 = vld [vmem:[#allocation2 + $0x129] sm:$0xff]
      %v764 = vld [vmem:[#allocation2 + $0x139] sm:$0xff]
      %v765 = vld [vmem:[#allocation2 + $0x141] sm:$0xff]
      %v766 = vld [vmem:[#allocation2 + $0x151] sm:$0xff]
      %v767 = vld [vmem:[#allocation2 + $0x159] sm:$0xff]
      %v768 = vld [vmem:[#allocation2 + $0x169] sm:$0xff]
      %v769 = vld [vmem:[#allocation2 + $0x171] sm:$0xff]
      %v770 = vpack.c.bf16 %v739, %v738
      %v771 = vpack.c.bf16 %v741, %v740
      %v772 = vpack.c.bf16 %v743, %v742
      %v773 = vpack.c.bf16 %v745, %v744
      %v774 = vpack.c.bf16 %v747, %v746
      %v775 = vpack.c.bf16 %v749, %v748
      %v776 = vpack.c.bf16 %v751, %v750
      %v777 = vpack.c.bf16 %v753, %v752
      %v778 = vpack.c.bf16 %v755, %v754
      %v779 = vpack.c.bf16 %v757, %v756
      %v780 = vpack.c.bf16 %v759, %v758
      %v781 = vpack.c.bf16 %v761, %v760
      %v782 = vpack.c.bf16 %v763, %v762
      %v783 = vpack.c.bf16 %v765, %v764
      %v784 = vpack.c.bf16 %v767, %v766
      %v785 = vpack.c.bf16 %v769, %v768
      %786 = vst [vmem:[#allocation3 + $0x8] sm:$0xff] %v770
      %787 = vst [vmem:[#allocation3 + $0x50] sm:$0xff] %v771
      %788 = vst [vmem:[#allocation3 + $0x98] sm:$0xff] %v772
      %789 = vst [vmem:[#allocation3 + $0xe0] sm:$0xff] %v773
      %790 = vst [vmem:[#allocation3 + $0x128] sm:$0xff] %v774
      %791 = vst [vmem:[#allocation3 + $0x170] sm:$0xff] %v775
      %792 = vst [vmem:[#allocation3 + $0x1b8] sm:$0xff] %v776
      %793 = vst [vmem:[#allocation3 + $0x200] sm:$0xff] %v777
      %794 = vst [vmem:[#allocation3 + $0x248] sm:$0xff] %v778
      %795 = vst [vmem:[#allocation3 + $0x290] sm:$0xff] %v779
      %796 = vst [vmem:[#allocation3 + $0x2d8] sm:$0xff] %v780
      %797 = vst [vmem:[#allocation3 + $0x320] sm:$0xff] %v781
      %798 = vst [vmem:[#allocation3 + $0x368] sm:$0xff] %v782
      %799 = vst [vmem:[#allocation3 + $0x3b0] sm:$0xff] %v783
      %800 = vst [vmem:[#allocation3 + $0x3f8] sm:$0xff] %v784
      %801 = vst [vmem:[#allocation3 + $0x440] sm:$0xff] %v785
      %v802 = vld [vmem:[#allocation2 + $0x2] sm:$0xff]
      %v803 = vld [vmem:[#allocation2 + $0xa] sm:$0xff]
      %v804 = vld [vmem:[#allocation2 + $0x1a] sm:$0xff]
      %v805 = vld [vmem:[#allocation2 + $0x22] sm:$0xff]
      %v806 = vld [vmem:[#allocation2 + $0x32] sm:$0xff]
      %v807 = vld [vmem:[#allocation2 + $0x3a] sm:$0xff]
      %v808 = vld [vmem:[#allocation2 + $0x4a] sm:$0xff]
      %v809 = vld [vmem:[#allocation2 + $0x52] sm:$0xff]
      %v810 = vld [vmem:[#allocation2 + $0x62] sm:$0xff]
      %v811 = vld [vmem:[#allocation2 + $0x6a] sm:$0xff]
      %v812 = vld [vmem:[#allocation2 + $0x7a] sm:$0xff]
      %v813 = vld [vmem:[#allocation2 + $0x82] sm:$0xff]
      %v814 = vld [vmem:[#allocation2 + $0x92] sm:$0xff]
      %v815 = vld [vmem:[#allocation2 + $0x9a] sm:$0xff]
      %v816 = vld [vmem:[#allocation2 + $0xaa] sm:$0xff]
      %v817 = vld [vmem:[#allocation2 + $0xb2] sm:$0xff]
      %v818 = vld [vmem:[#allocation2 + $0xc2] sm:$0xff]
      %v819 = vld [vmem:[#allocation2 + $0xca] sm:$0xff]
      %v820 = vld [vmem:[#allocation2 + $0xda] sm:$0xff]
      %v821 = vld [vmem:[#allocation2 + $0xe2] sm:$0xff]
      %v822 = vld [vmem:[#allocation2 + $0xf2] sm:$0xff]
      %v823 = vld [vmem:[#allocation2 + $0xfa] sm:$0xff]
      %v824 = vld [vmem:[#allocation2 + $0x10a] sm:$0xff]
      %v825 = vld [vmem:[#allocation2 + $0x112] sm:$0xff]
      %v826 = vld [vmem:[#allocation2 + $0x122] sm:$0xff]
      %v827 = vld [vmem:[#allocation2 + $0x12a] sm:$0xff]
      %v828 = vld [vmem:[#allocation2 + $0x13a] sm:$0xff]
      %v829 = vld [vmem:[#allocation2 + $0x142] sm:$0xff]
      %v830 = vld [vmem:[#allocation2 + $0x152] sm:$0xff]
      %v831 = vld [vmem:[#allocation2 + $0x15a] sm:$0xff]
      %v832 = vld [vmem:[#allocation2 + $0x16a] sm:$0xff]
      %v833 = vld [vmem:[#allocation2 + $0x172] sm:$0xff]
      %v834 = vpack.c.bf16 %v803, %v802
      %v835 = vpack.c.bf16 %v805, %v804
      %v836 = vpack.c.bf16 %v807, %v806
      %v837 = vpack.c.bf16 %v809, %v808
      %v838 = vpack.c.bf16 %v811, %v810
      %v839 = vpack.c.bf16 %v813, %v812
      %v840 = vpack.c.bf16 %v815, %v814
      %v841 = vpack.c.bf16 %v817, %v816
      %v842 = vpack.c.bf16 %v819, %v818
      %v843 = vpack.c.bf16 %v821, %v820
      %v844 = vpack.c.bf16 %v823, %v822
      %v845 = vpack.c.bf16 %v825, %v824
      %v846 = vpack.c.bf16 %v827, %v826
      %v847 = vpack.c.bf16 %v829, %v828
      %v848 = vpack.c.bf16 %v831, %v830
      %v849 = vpack.c.bf16 %v833, %v832
      %850 = vst [vmem:[#allocation3 + $0x10] sm:$0xff] %v834
      %851 = vst [vmem:[#allocation3 + $0x58] sm:$0xff] %v835
      %852 = vst [vmem:[#allocation3 + $0xa0] sm:$0xff] %v836
      %853 = vst [vmem:[#allocation3 + $0xe8] sm:$0xff] %v837
      %854 = vst [vmem:[#allocation3 + $0x130] sm:$0xff] %v838
      %855 = vst [vmem:[#allocation3 + $0x178] sm:$0xff] %v839
      %856 = vst [vmem:[#allocation3 + $0x1c0] sm:$0xff] %v840
      %857 = vst [vmem:[#allocation3 + $0x208] sm:$0xff] %v841
      %858 = vst [vmem:[#allocation3 + $0x250] sm:$0xff] %v842
      %859 = vst [vmem:[#allocation3 + $0x298] sm:$0xff] %v843
      %860 = vst [vmem:[#allocation3 + $0x2e0] sm:$0xff] %v844
      %861 = vst [vmem:[#allocation3 + $0x328] sm:$0xff] %v845
      %862 = vst [vmem:[#allocation3 + $0x370] sm:$0xff] %v846
      %863 = vst [vmem:[#allocation3 + $0x3b8] sm:$0xff] %v847
      %864 = vst [vmem:[#allocation3 + $0x400] sm:$0xff] %v848
      %865 = vst [vmem:[#allocation3 + $0x448] sm:$0xff] %v849
      %v866 = vld [vmem:[%s608] sm:$0xff]
      %v867 = vld [vmem:[%s608 + $0x8] sm:$0xff]
      %v868 = vld [vmem:[%s608 + $0x18] sm:$0xff]
      %v869 = vld [vmem:[%s608 + $0x20] sm:$0xff]
      %v870 = vld [vmem:[%s608 + $0x30] sm:$0xff]
      %v871 = vld [vmem:[%s608 + $0x38] sm:$0xff]
      %v872 = vld [vmem:[%s608 + $0x48] sm:$0xff]
      %v873 = vld [vmem:[%s608 + $0x50] sm:$0xff]
      %v874 = vld [vmem:[%s608 + $0x60] sm:$0xff]
      %v875 = vld [vmem:[%s608 + $0x68] sm:$0xff]
      %v876 = vld [vmem:[%s608 + $0x78] sm:$0xff]
      %v877 = vld [vmem:[%s608 + $0x80] sm:$0xff]
      %v878 = vld [vmem:[%s608 + $0x90] sm:$0xff]
      %v879 = vld [vmem:[%s608 + $0x98] sm:$0xff]
      %v880 = vld [vmem:[%s608 + $0xa8] sm:$0xff]
      %v881 = vld [vmem:[%s608 + $0xb0] sm:$0xff]
      %v882 = vld [vmem:[%s608 + $0xc0] sm:$0xff]
      %v883 = vld [vmem:[%s608 + $0xc8] sm:$0xff]
      %v884 = vld [vmem:[%s608 + $0xd8] sm:$0xff]
      %v885 = vld [vmem:[%s608 + $0xe0] sm:$0xff]
      %v886 = vld [vmem:[%s608 + $0xf0] sm:$0xff]
      %v887 = vld [vmem:[%s608 + $0xf8] sm:$0xff]
      %v888 = vld [vmem:[%s608 + $0x108] sm:$0xff]
      %v889 = vld [vmem:[%s608 + $0x110] sm:$0xff]
      %v890 = vld [vmem:[%s608 + $0x120] sm:$0xff]
      %v891 = vld [vmem:[%s608 + $0x128] sm:$0xff]
      %v892 = vld [vmem:[%s608 + $0x138] sm:$0xff]
      %v893 = vld [vmem:[%s608 + $0x140] sm:$0xff]
      %v894 = vld [vmem:[%s608 + $0x150] sm:$0xff]
      %v895 = vld [vmem:[%s608 + $0x158] sm:$0xff]
      %v896 = vld [vmem:[%s608 + $0x168] sm:$0xff]
      %v897 = vld [vmem:[%s608 + $0x170] sm:$0xff]
      %v898 = vpack.c.bf16 %v867, %v866
      %v899 = vpack.c.bf16 %v869, %v868
      %v900 = vpack.c.bf16 %v871, %v870
      %v901 = vpack.c.bf16 %v873, %v872
      %v902 = vpack.c.bf16 %v875, %v874
      %v903 = vpack.c.bf16 %v877, %v876
      %v904 = vpack.c.bf16 %v879, %v878
      %v905 = vpack.c.bf16 %v881, %v880
      %v906 = vpack.c.bf16 %v883, %v882
      %v907 = vpack.c.bf16 %v885, %v884
      %v908 = vpack.c.bf16 %v887, %v886
      %v909 = vpack.c.bf16 %v889, %v888
      %v910 = vpack.c.bf16 %v891, %v890
      %v911 = vpack.c.bf16 %v893, %v892
      %v912 = vpack.c.bf16 %v895, %v894
      %v913 = vpack.c.bf16 %v897, %v896
      %914 = vst [vmem:[#allocation3 + $0x18] sm:$0xff] %v898
      %915 = vst [vmem:[#allocation3 + $0x60] sm:$0xff] %v899
      %916 = vst [vmem:[#allocation3 + $0xa8] sm:$0xff] %v900
      %917 = vst [vmem:[#allocation3 + $0xf0] sm:$0xff] %v901
      %918 = vst [vmem:[#allocation3 + $0x138] sm:$0xff] %v902
      %919 = vst [vmem:[#allocation3 + $0x180] sm:$0xff] %v903
      %920 = vst [vmem:[#allocation3 + $0x1c8] sm:$0xff] %v904
      %921 = vst [vmem:[#allocation3 + $0x210] sm:$0xff] %v905
      %922 = vst [vmem:[#allocation3 + $0x258] sm:$0xff] %v906
      %923 = vst [vmem:[#allocation3 + $0x2a0] sm:$0xff] %v907
      %924 = vst [vmem:[#allocation3 + $0x2e8] sm:$0xff] %v908
      %925 = vst [vmem:[#allocation3 + $0x330] sm:$0xff] %v909
      %926 = vst [vmem:[#allocation3 + $0x378] sm:$0xff] %v910
      %927 = vst [vmem:[#allocation3 + $0x3c0] sm:$0xff] %v911
      %928 = vst [vmem:[#allocation3 + $0x408] sm:$0xff] %v912
      %929 = vst [vmem:[#allocation3 + $0x450] sm:$0xff] %v913
      %v930 = vld [vmem:[%s608 + $0x1] sm:$0xff]
      %v931 = vld [vmem:[%s608 + $0x9] sm:$0xff]
      %v932 = vld [vmem:[%s608 + $0x19] sm:$0xff]
      %v933 = vld [vmem:[%s608 + $0x21] sm:$0xff]
      %v934 = vld [vmem:[%s608 + $0x31] sm:$0xff]
      %v935 = vld [vmem:[%s608 + $0x39] sm:$0xff]
      %v936 = vld [vmem:[%s608 + $0x49] sm:$0xff]
      %v937 = vld [vmem:[%s608 + $0x51] sm:$0xff]
      %v938 = vld [vmem:[%s608 + $0x61] sm:$0xff]
      %v939 = vld [vmem:[%s608 + $0x69] sm:$0xff]
      %v940 = vld [vmem:[%s608 + $0x79] sm:$0xff]
      %v941 = vld [vmem:[%s608 + $0x81] sm:$0xff]
      %v942 = vld [vmem:[%s608 + $0x91] sm:$0xff]
      %v943 = vld [vmem:[%s608 + $0x99] sm:$0xff]
      %v944 = vld [vmem:[%s608 + $0xa9] sm:$0xff]
      %v945 = vld [vmem:[%s608 + $0xb1] sm:$0xff]
      %v946 = vld [vmem:[%s608 + $0xc1] sm:$0xff]
      %v947 = vld [vmem:[%s608 + $0xc9] sm:$0xff]
      %v948 = vld [vmem:[%s608 + $0xd9] sm:$0xff]
      %v949 = vld [vmem:[%s608 + $0xe1] sm:$0xff]
      %v950 = vld [vmem:[%s608 + $0xf1] sm:$0xff]
      %v951 = vld [vmem:[%s608 + $0xf9] sm:$0xff]
      %v952 = vld [vmem:[%s608 + $0x109] sm:$0xff]
      %v953 = vld [vmem:[%s608 + $0x111] sm:$0xff]
      %v954 = vld [vmem:[%s608 + $0x121] sm:$0xff]
      %v955 = vld [vmem:[%s608 + $0x129] sm:$0xff]
      %v956 = vld [vmem:[%s608 + $0x139] sm:$0xff]
      %v957 = vld [vmem:[%s608 + $0x141] sm:$0xff]
      %v958 = vld [vmem:[%s608 + $0x151] sm:$0xff]
      %v959 = vld [vmem:[%s608 + $0x159] sm:$0xff]
      %v960 = vld [vmem:[%s608 + $0x169] sm:$0xff]
      %v961 = vld [vmem:[%s608 + $0x171] sm:$0xff]
      %v962 = vpack.c.bf16 %v931, %v930
      %v963 = vpack.c.bf16 %v933, %v932
      %v964 = vpack.c.bf16 %v935, %v934
      %v965 = vpack.c.bf16 %v937, %v936
      %v966 = vpack.c.bf16 %v939, %v938
      %v967 = vpack.c.bf16 %v941, %v940
      %v968 = vpack.c.bf16 %v943, %v942
      %v969 = vpack.c.bf16 %v945, %v944
      %v970 = vpack.c.bf16 %v947, %v946
      %v971 = vpack.c.bf16 %v949, %v948
      %v972 = vpack.c.bf16 %v951, %v950
      %v973 = vpack.c.bf16 %v953, %v952
      %v974 = vpack.c.bf16 %v955, %v954
      %v975 = vpack.c.bf16 %v957, %v956
      %v976 = vpack.c.bf16 %v959, %v958
      %v977 = vpack.c.bf16 %v961, %v960
      %978 = vst [vmem:[#allocation3 + $0x20] sm:$0xff] %v962
      %979 = vst [vmem:[#allocation3 + $0x68] sm:$0xff] %v963
      %980 = vst [vmem:[#allocation3 + $0xb0] sm:$0xff] %v964
      %981 = vst [vmem:[#allocation3 + $0xf8] sm:$0xff] %v965
      %982 = vst [vmem:[#allocation3 + $0x140] sm:$0xff] %v966
      %983 = vst [vmem:[#allocation3 + $0x188] sm:$0xff] %v967
      %984 = vst [vmem:[#allocation3 + $0x1d0] sm:$0xff] %v968
      %985 = vst [vmem:[#allocation3 + $0x218] sm:$0xff] %v969
      %986 = vst [vmem:[#allocation3 + $0x260] sm:$0xff] %v970
      %987 = vst [vmem:[#allocation3 + $0x2a8] sm:$0xff] %v971
      %988 = vst [vmem:[#allocation3 + $0x2f0] sm:$0xff] %v972
      %989 = vst [vmem:[#allocation3 + $0x338] sm:$0xff] %v973
      %990 = vst [vmem:[#allocation3 + $0x380] sm:$0xff] %v974
      %991 = vst [vmem:[#allocation3 + $0x3c8] sm:$0xff] %v975
      %992 = vst [vmem:[#allocation3 + $0x410] sm:$0xff] %v976
      %993 = vst [vmem:[#allocation3 + $0x458] sm:$0xff] %v977
      %v994 = vld [vmem:[%s608 + $0x2] sm:$0xff]
      %v995 = vld [vmem:[%s608 + $0xa] sm:$0xff]
      %v996 = vld [vmem:[%s608 + $0x1a] sm:$0xff]
      %v997 = vld [vmem:[%s608 + $0x22] sm:$0xff]
      %v998 = vld [vmem:[%s608 + $0x32] sm:$0xff]
      %v999 = vld [vmem:[%s608 + $0x3a] sm:$0xff]
      %v1000 = vld [vmem:[%s608 + $0x4a] sm:$0xff]
      %v1001 = vld [vmem:[%s608 + $0x52] sm:$0xff]
      %v1002 = vld [vmem:[%s608 + $0x62] sm:$0xff]
      %v1003 = vld [vmem:[%s608 + $0x6a] sm:$0xff]
      %v1004 = vld [vmem:[%s608 + $0x7a] sm:$0xff]
      %v1005 = vld [vmem:[%s608 + $0x82] sm:$0xff]
      %v1006 = vld [vmem:[%s608 + $0x92] sm:$0xff]
      %v1007 = vld [vmem:[%s608 + $0x9a] sm:$0xff]
      %v1008 = vld [vmem:[%s608 + $0xaa] sm:$0xff]
      %v1009 = vld [vmem:[%s608 + $0xb2] sm:$0xff]
      %v1010 = vld [vmem:[%s608 + $0xc2] sm:$0xff]
      %v1011 = vld [vmem:[%s608 + $0xca] sm:$0xff]
      %v1012 = vld [vmem:[%s608 + $0xda] sm:$0xff]
      %v1013 = vld [vmem:[%s608 + $0xe2] sm:$0xff]
      %v1014 = vld [vmem:[%s608 + $0xf2] sm:$0xff]
      %v1015 = vld [vmem:[%s608 + $0xfa] sm:$0xff]
      %v1016 = vld [vmem:[%s608 + $0x10a] sm:$0xff]
      %v1017 = vld [vmem:[%s608 + $0x112] sm:$0xff]
      %v1018 = vld [vmem:[%s608 + $0x122] sm:$0xff]
      %v1019 = vld [vmem:[%s608 + $0x12a] sm:$0xff]
      %v1020 = vld [vmem:[%s608 + $0x13a] sm:$0xff]
      %v1021 = vld [vmem:[%s608 + $0x142] sm:$0xff]
      %v1022 = vld [vmem:[%s608 + $0x152] sm:$0xff]
      %v1023 = vld [vmem:[%s608 + $0x15a] sm:$0xff]
      %v1024 = vld [vmem:[%s608 + $0x16a] sm:$0xff]
      %v1025 = vld [vmem:[%s608 + $0x172] sm:$0xff]
      %v1026 = vpack.c.bf16 %v995, %v994
      %v1027 = vpack.c.bf16 %v997, %v996
      %v1028 = vpack.c.bf16 %v999, %v998
      %v1029 = vpack.c.bf16 %v1001, %v1000
      %v1030 = vpack.c.bf16 %v1003, %v1002
      %v1031 = vpack.c.bf16 %v1005, %v1004
      %v1032 = vpack.c.bf16 %v1007, %v1006
      %v1033 = vpack.c.bf16 %v1009, %v1008
      %v1034 = vpack.c.bf16 %v1011, %v1010
      %v1035 = vpack.c.bf16 %v1013, %v1012
      %v1036 = vpack.c.bf16 %v1015, %v1014
      %v1037 = vpack.c.bf16 %v1017, %v1016
      %v1038 = vpack.c.bf16 %v1019, %v1018
      %v1039 = vpack.c.bf16 %v1021, %v1020
      %v1040 = vpack.c.bf16 %v1023, %v1022
      %v1041 = vpack.c.bf16 %v1025, %v1024
      %1042 = vst [vmem:[#allocation3 + $0x28] sm:$0xff] %v1026
      %1043 = vst [vmem:[#allocation3 + $0x70] sm:$0xff] %v1027
      %1044 = vst [vmem:[#allocation3 + $0xb8] sm:$0xff] %v1028
      %1045 = vst [vmem:[#allocation3 + $0x100] sm:$0xff] %v1029
      %1046 = vst [vmem:[#allocation3 + $0x148] sm:$0xff] %v1030
      %1047 = vst [vmem:[#allocation3 + $0x190] sm:$0xff] %v1031
      %1048 = vst [vmem:[#allocation3 + $0x1d8] sm:$0xff] %v1032
      %1049 = vst [vmem:[#allocation3 + $0x220] sm:$0xff] %v1033
      %1050 = vst [vmem:[#allocation3 + $0x268] sm:$0xff] %v1034
      %1051 = vst [vmem:[#allocation3 + $0x2b0] sm:$0xff] %v1035
      %1052 = vst [vmem:[#allocation3 + $0x2f8] sm:$0xff] %v1036
      %1053 = vst [vmem:[#allocation3 + $0x340] sm:$0xff] %v1037
      %1054 = vst [vmem:[#allocation3 + $0x388] sm:$0xff] %v1038
      %1055 = vst [vmem:[#allocation3 + $0x3d0] sm:$0xff] %v1039
      %1056 = vst [vmem:[#allocation3 + $0x418] sm:$0xff] %v1040
      %1057 = vst [vmem:[#allocation3 + $0x460] sm:$0xff] %v1041
      %s1058 = scalar_lea.vmem [#allocation2], 48
      %v1059 = vld [vmem:[%s1058] sm:$0xff]
      %v1060 = vld [vmem:[%s1058 + $0x8] sm:$0xff]
      %v1061 = vld [vmem:[%s1058 + $0x18] sm:$0xff]
      %v1062 = vld [vmem:[%s1058 + $0x20] sm:$0xff]
      %v1063 = vld [vmem:[%s1058 + $0x30] sm:$0xff]
      %v1064 = vld [vmem:[%s1058 + $0x38] sm:$0xff]
      %v1065 = vld [vmem:[%s1058 + $0x48] sm:$0xff]
      %v1066 = vld [vmem:[%s1058 + $0x50] sm:$0xff]
      %v1067 = vld [vmem:[%s1058 + $0x60] sm:$0xff]
      %v1068 = vld [vmem:[%s1058 + $0x68] sm:$0xff]
      %v1069 = vld [vmem:[%s1058 + $0x78] sm:$0xff]
      %v1070 = vld [vmem:[%s1058 + $0x80] sm:$0xff]
      %v1071 = vld [vmem:[%s1058 + $0x90] sm:$0xff]
      %v1072 = vld [vmem:[%s1058 + $0x98] sm:$0xff]
      %v1073 = vld [vmem:[%s1058 + $0xa8] sm:$0xff]
      %v1074 = vld [vmem:[%s1058 + $0xb0] sm:$0xff]
      %v1075 = vld [vmem:[%s1058 + $0xc0] sm:$0xff]
      %v1076 = vld [vmem:[%s1058 + $0xc8] sm:$0xff]
      %v1077 = vld [vmem:[%s1058 + $0xd8] sm:$0xff]
      %v1078 = vld [vmem:[%s1058 + $0xe0] sm:$0xff]
      %v1079 = vld [vmem:[%s1058 + $0xf0] sm:$0xff]
      %v1080 = vld [vmem:[%s1058 + $0xf8] sm:$0xff]
      %v1081 = vld [vmem:[%s1058 + $0x108] sm:$0xff]
      %v1082 = vld [vmem:[%s1058 + $0x110] sm:$0xff]
      %v1083 = vld [vmem:[%s1058 + $0x120] sm:$0xff]
      %v1084 = vld [vmem:[%s1058 + $0x128] sm:$0xff]
      %v1085 = vld [vmem:[%s1058 + $0x138] sm:$0xff]
      %v1086 = vld [vmem:[%s1058 + $0x140] sm:$0xff]
      %v1087 = vld [vmem:[%s1058 + $0x150] sm:$0xff]
      %v1088 = vld [vmem:[%s1058 + $0x158] sm:$0xff]
      %v1089 = vld [vmem:[%s1058 + $0x168] sm:$0xff]
      %v1090 = vld [vmem:[%s1058 + $0x170] sm:$0xff]
      %v1091 = vpack.c.bf16 %v1060, %v1059
      %v1092 = vpack.c.bf16 %v1062, %v1061
      %v1093 = vpack.c.bf16 %v1064, %v1063
      %v1094 = vpack.c.bf16 %v1066, %v1065
      %v1095 = vpack.c.bf16 %v1068, %v1067
      %v1096 = vpack.c.bf16 %v1070, %v1069
      %v1097 = vpack.c.bf16 %v1072, %v1071
      %v1098 = vpack.c.bf16 %v1074, %v1073
      %v1099 = vpack.c.bf16 %v1076, %v1075
      %v1100 = vpack.c.bf16 %v1078, %v1077
      %v1101 = vpack.c.bf16 %v1080, %v1079
      %v1102 = vpack.c.bf16 %v1082, %v1081
      %v1103 = vpack.c.bf16 %v1084, %v1083
      %v1104 = vpack.c.bf16 %v1086, %v1085
      %v1105 = vpack.c.bf16 %v1088, %v1087
      %v1106 = vpack.c.bf16 %v1090, %v1089
      %1107 = vst [vmem:[#allocation3 + $0x30] sm:$0xff] %v1091
      %1108 = vst [vmem:[#allocation3 + $0x78] sm:$0xff] %v1092
      %1109 = vst [vmem:[#allocation3 + $0xc0] sm:$0xff] %v1093
      %1110 = vst [vmem:[#allocation3 + $0x108] sm:$0xff] %v1094
      %1111 = vst [vmem:[#allocation3 + $0x150] sm:$0xff] %v1095
      %1112 = vst [vmem:[#allocation3 + $0x198] sm:$0xff] %v1096
      %1113 = vst [vmem:[#allocation3 + $0x1e0] sm:$0xff] %v1097
      %1114 = vst [vmem:[#allocation3 + $0x228] sm:$0xff] %v1098
      %1115 = vst [vmem:[#allocation3 + $0x270] sm:$0xff] %v1099
      %1116 = vst [vmem:[#allocation3 + $0x2b8] sm:$0xff] %v1100
      %1117 = vst [vmem:[#allocation3 + $0x300] sm:$0xff] %v1101
      %1118 = vst [vmem:[#allocation3 + $0x348] sm:$0xff] %v1102
      %1119 = vst [vmem:[#allocation3 + $0x390] sm:$0xff] %v1103
      %1120 = vst [vmem:[#allocation3 + $0x3d8] sm:$0xff] %v1104
      %1121 = vst [vmem:[#allocation3 + $0x420] sm:$0xff] %v1105
      %1122 = vst [vmem:[#allocation3 + $0x468] sm:$0xff] %v1106
      %v1123 = vld [vmem:[%s1058 + $0x1] sm:$0xff]
      %v1124 = vld [vmem:[%s1058 + $0x9] sm:$0xff]
      %v1125 = vld [vmem:[%s1058 + $0x19] sm:$0xff]
      %v1126 = vld [vmem:[%s1058 + $0x21] sm:$0xff]
      %v1127 = vld [vmem:[%s1058 + $0x31] sm:$0xff]
      %v1128 = vld [vmem:[%s1058 + $0x39] sm:$0xff]
      %v1129 = vld [vmem:[%s1058 + $0x49] sm:$0xff]
      %v1130 = vld [vmem:[%s1058 + $0x51] sm:$0xff]
      %v1131 = vld [vmem:[%s1058 + $0x61] sm:$0xff]
      %v1132 = vld [vmem:[%s1058 + $0x69] sm:$0xff]
      %v1133 = vld [vmem:[%s1058 + $0x79] sm:$0xff]
      %v1134 = vld [vmem:[%s1058 + $0x81] sm:$0xff]
      %v1135 = vld [vmem:[%s1058 + $0x91] sm:$0xff]
      %v1136 = vld [vmem:[%s1058 + $0x99] sm:$0xff]
      %v1137 = vld [vmem:[%s1058 + $0xa9] sm:$0xff]
      %v1138 = vld [vmem:[%s1058 + $0xb1] sm:$0xff]
      %v1139 = vld [vmem:[%s1058 + $0xc1] sm:$0xff]
      %v1140 = vld [vmem:[%s1058 + $0xc9] sm:$0xff]
      %v1141 = vld [vmem:[%s1058 + $0xd9] sm:$0xff]
      %v1142 = vld [vmem:[%s1058 + $0xe1] sm:$0xff]
      %v1143 = vld [vmem:[%s1058 + $0xf1] sm:$0xff]
      %v1144 = vld [vmem:[%s1058 + $0xf9] sm:$0xff]
      %v1145 = vld [vmem:[%s1058 + $0x109] sm:$0xff]
      %v1146 = vld [vmem:[%s1058 + $0x111] sm:$0xff]
      %v1147 = vld [vmem:[%s1058 + $0x121] sm:$0xff]
      %v1148 = vld [vmem:[%s1058 + $0x129] sm:$0xff]
      %v1149 = vld [vmem:[%s1058 + $0x139] sm:$0xff]
      %v1150 = vld [vmem:[%s1058 + $0x141] sm:$0xff]
      %v1151 = vld [vmem:[%s1058 + $0x151] sm:$0xff]
      %v1152 = vld [vmem:[%s1058 + $0x159] sm:$0xff]
      %v1153 = vld [vmem:[%s1058 + $0x169] sm:$0xff]
      %v1154 = vld [vmem:[%s1058 + $0x171] sm:$0xff]
      %v1155 = vpack.c.bf16 %v1124, %v1123
      %v1156 = vpack.c.bf16 %v1126, %v1125
      %v1157 = vpack.c.bf16 %v1128, %v1127
      %v1158 = vpack.c.bf16 %v1130, %v1129
      %v1159 = vpack.c.bf16 %v1132, %v1131
      %v1160 = vpack.c.bf16 %v1134, %v1133
      %v1161 = vpack.c.bf16 %v1136, %v1135
      %v1162 = vpack.c.bf16 %v1138, %v1137
      %v1163 = vpack.c.bf16 %v1140, %v1139
      %v1164 = vpack.c.bf16 %v1142, %v1141
      %v1165 = vpack.c.bf16 %v1144, %v1143
      %v1166 = vpack.c.bf16 %v1146, %v1145
      %v1167 = vpack.c.bf16 %v1148, %v1147
      %v1168 = vpack.c.bf16 %v1150, %v1149
      %v1169 = vpack.c.bf16 %v1152, %v1151
      %v1170 = vpack.c.bf16 %v1154, %v1153
      %1171 = vst [vmem:[#allocation3 + $0x38] sm:$0xff] %v1155
      %1172 = vst [vmem:[#allocation3 + $0x80] sm:$0xff] %v1156
      %1173 = vst [vmem:[#allocation3 + $0xc8] sm:$0xff] %v1157
      %1174 = vst [vmem:[#allocation3 + $0x110] sm:$0xff] %v1158
      %1175 = vst [vmem:[#allocation3 + $0x158] sm:$0xff] %v1159
      %1176 = vst [vmem:[#allocation3 + $0x1a0] sm:$0xff] %v1160
      %1177 = vst [vmem:[#allocation3 + $0x1e8] sm:$0xff] %v1161
      %1178 = vst [vmem:[#allocation3 + $0x230] sm:$0xff] %v1162
      %1179 = vst [vmem:[#allocation3 + $0x278] sm:$0xff] %v1163
      %1180 = vst [vmem:[#allocation3 + $0x2c0] sm:$0xff] %v1164
      %1181 = vst [vmem:[#allocation3 + $0x308] sm:$0xff] %v1165
      %1182 = vst [vmem:[#allocation3 + $0x350] sm:$0xff] %v1166
      %1183 = vst [vmem:[#allocation3 + $0x398] sm:$0xff] %v1167
      %1184 = vst [vmem:[#allocation3 + $0x3e0] sm:$0xff] %v1168
      %1185 = vst [vmem:[#allocation3 + $0x428] sm:$0xff] %v1169
      %1186 = vst [vmem:[#allocation3 + $0x470] sm:$0xff] %v1170
      %v1187 = vld [vmem:[%s1058 + $0x2] sm:$0xff]
      %v1188 = vld [vmem:[%s1058 + $0xa] sm:$0xff]
      %v1189 = vld [vmem:[%s1058 + $0x1a] sm:$0xff]
      %v1190 = vld [vmem:[%s1058 + $0x22] sm:$0xff]
      %v1191 = vld [vmem:[%s1058 + $0x32] sm:$0xff]
      %v1192 = vld [vmem:[%s1058 + $0x3a] sm:$0xff]
      %v1193 = vld [vmem:[%s1058 + $0x4a] sm:$0xff]
      %v1194 = vld [vmem:[%s1058 + $0x52] sm:$0xff]
      %v1195 = vld [vmem:[%s1058 + $0x62] sm:$0xff]
      %v1196 = vld [vmem:[%s1058 + $0x6a] sm:$0xff]
      %v1197 = vld [vmem:[%s1058 + $0x7a] sm:$0xff]
      %v1198 = vld [vmem:[%s1058 + $0x82] sm:$0xff]
      %v1199 = vld [vmem:[%s1058 + $0x92] sm:$0xff]
      %v1200 = vld [vmem:[%s1058 + $0x9a] sm:$0xff]
      %v1201 = vld [vmem:[%s1058 + $0xaa] sm:$0xff]
      %v1202 = vld [vmem:[%s1058 + $0xb2] sm:$0xff]
      %v1203 = vld [vmem:[%s1058 + $0xc2] sm:$0xff]
      %v1204 = vld [vmem:[%s1058 + $0xca] sm:$0xff]
      %v1205 = vld [vmem:[%s1058 + $0xda] sm:$0xff]
      %v1206 = vld [vmem:[%s1058 + $0xe2] sm:$0xff]
      %v1207 = vld [vmem:[%s1058 + $0xf2] sm:$0xff]
      %v1208 = vld [vmem:[%s1058 + $0xfa] sm:$0xff]
      %v1209 = vld [vmem:[%s1058 + $0x10a] sm:$0xff]
      %v1210 = vld [vmem:[%s1058 + $0x112] sm:$0xff]
      %v1211 = vld [vmem:[%s1058 + $0x122] sm:$0xff]
      %v1212 = vld [vmem:[%s1058 + $0x12a] sm:$0xff]
      %v1213 = vld [vmem:[%s1058 + $0x13a] sm:$0xff]
      %v1214 = vld [vmem:[%s1058 + $0x142] sm:$0xff]
      %v1215 = vld [vmem:[%s1058 + $0x152] sm:$0xff]
      %v1216 = vld [vmem:[%s1058 + $0x15a] sm:$0xff]
      %v1217 = vld [vmem:[%s1058 + $0x16a] sm:$0xff]
      %v1218 = vld [vmem:[%s1058 + $0x172] sm:$0xff]
      %v1219 = vpack.c.bf16 %v1188, %v1187
      %v1220 = vpack.c.bf16 %v1190, %v1189
      %v1221 = vpack.c.bf16 %v1192, %v1191
      %v1222 = vpack.c.bf16 %v1194, %v1193
      %v1223 = vpack.c.bf16 %v1196, %v1195
      %v1224 = vpack.c.bf16 %v1198, %v1197
      %v1225 = vpack.c.bf16 %v1200, %v1199
      %v1226 = vpack.c.bf16 %v1202, %v1201
      %v1227 = vpack.c.bf16 %v1204, %v1203
      %v1228 = vpack.c.bf16 %v1206, %v1205
      %v1229 = vpack.c.bf16 %v1208, %v1207
      %v1230 = vpack.c.bf16 %v1210, %v1209
      %v1231 = vpack.c.bf16 %v1212, %v1211
      %v1232 = vpack.c.bf16 %v1214, %v1213
      %v1233 = vpack.c.bf16 %v1216, %v1215
      %v1234 = vpack.c.bf16 %v1218, %v1217
      %1235 = vst [vmem:[#allocation3 + $0x40] sm:$0xff] %v1219
      %1236 = vst [vmem:[#allocation3 + $0x88] sm:$0xff] %v1220
      %1237 = vst [vmem:[#allocation3 + $0xd0] sm:$0xff] %v1221
      %1238 = vst [vmem:[#allocation3 + $0x118] sm:$0xff] %v1222
      %1239 = vst [vmem:[#allocation3 + $0x160] sm:$0xff] %v1223
      %1240 = vst [vmem:[#allocation3 + $0x1a8] sm:$0xff] %v1224
      %1241 = vst [vmem:[#allocation3 + $0x1f0] sm:$0xff] %v1225
      %1242 = vst [vmem:[#allocation3 + $0x238] sm:$0xff] %v1226
      %1243 = vst [vmem:[#allocation3 + $0x280] sm:$0xff] %v1227
      %1244 = vst [vmem:[#allocation3 + $0x2c8] sm:$0xff] %v1228
      %1245 = vst [vmem:[#allocation3 + $0x310] sm:$0xff] %v1229
      %1246 = vst [vmem:[#allocation3 + $0x358] sm:$0xff] %v1230
      %1247 = vst [vmem:[#allocation3 + $0x3a0] sm:$0xff] %v1231
      %1248 = vst [vmem:[#allocation3 + $0x3e8] sm:$0xff] %v1232
      %1249 = vst [vmem:[#allocation3 + $0x430] sm:$0xff] %v1233
      %1250 = vst [vmem:[#allocation3 + $0x478] sm:$0xff] %v1234
      %v1251 = vld [vmem:[#allocation3] sm:$0xff]
      %v1252 = vld [vmem:[#allocation3 + $0x8] sm:$0xff]
      %v1253 = vld [vmem:[#allocation3 + $0x10] sm:$0xff]
      %v1254 = vld [vmem:[#allocation3 + $0x18] sm:$0xff]
      %v1255 = vld [vmem:[#allocation3 + $0x20] sm:$0xff]
      %v1256 = vld [vmem:[#allocation3 + $0x28] sm:$0xff]
      %v1257 = vld [vmem:[#allocation3 + $0x30] sm:$0xff]
      %v1258 = vld [vmem:[#allocation3 + $0x38] sm:$0xff]
      %v1259 = vld [vmem:[#allocation3 + $0x40] sm:$0xff]
      %v1260 = vld [vmem:[#allocation3 + $0x48] sm:$0xff]
      %v1261 = vld [vmem:[#allocation3 + $0x50] sm:$0xff]
      %v1262 = vld [vmem:[#allocation3 + $0x58] sm:$0xff]
      %v1263 = vld [vmem:[#allocation3 + $0x60] sm:$0xff]
      %v1264 = vld [vmem:[#allocation3 + $0x68] sm:$0xff]
      %v1265 = vld [vmem:[#allocation3 + $0x70] sm:$0xff]
      %v1266 = vld [vmem:[#allocation3 + $0x78] sm:$0xff]
      %v1267 = vld [vmem:[#allocation3 + $0x80] sm:$0xff]
      %v1268 = vld [vmem:[#allocation3 + $0x88] sm:$0xff]
      %v1269 = vld [vmem:[#allocation3 + $0x90] sm:$0xff]
      %v1270 = vld [vmem:[#allocation3 + $0x98] sm:$0xff]
      %v1271 = vld [vmem:[#allocation3 + $0xa0] sm:$0xff]
      %v1272 = vld [vmem:[#allocation3 + $0xa8] sm:$0xff]
      %v1273 = vld [vmem:[#allocation3 + $0xb0] sm:$0xff]
      %v1274 = vld [vmem:[#allocation3 + $0xb8] sm:$0xff]
      %v1275 = vld [vmem:[#allocation3 + $0xc0] sm:$0xff]
      %v1276 = vld [vmem:[#allocation3 + $0xc8] sm:$0xff]
      %v1277 = vld [vmem:[#allocation3 + $0xd0] sm:$0xff]
      %v1278 = vld [vmem:[#allocation3 + $0xd8] sm:$0xff]
      %v1279 = vld [vmem:[#allocation3 + $0xe0] sm:$0xff]
      %v1280 = vld [vmem:[#allocation3 + $0xe8] sm:$0xff]
      %v1281 = vld [vmem:[#allocation3 + $0xf0] sm:$0xff]
      %v1282 = vld [vmem:[#allocation3 + $0xf8] sm:$0xff]
      %v1283 = vld [vmem:[#allocation3 + $0x100] sm:$0xff]
      %v1284 = vld [vmem:[#allocation3 + $0x108] sm:$0xff]
      %v1285 = vld [vmem:[#allocation3 + $0x110] sm:$0xff]
      %v1286 = vld [vmem:[#allocation3 + $0x118] sm:$0xff]
      %v1287 = vld [vmem:[#allocation3 + $0x120] sm:$0xff]
      %v1288 = vld [vmem:[#allocation3 + $0x128] sm:$0xff]
      %v1289 = vld [vmem:[#allocation3 + $0x130] sm:$0xff]
      %v1290 = vld [vmem:[#allocation3 + $0x138] sm:$0xff]
      %v1291 = vld [vmem:[#allocation3 + $0x140] sm:$0xff]
      %v1292 = vld [vmem:[#allocation3 + $0x148] sm:$0xff]
      %v1293 = vld [vmem:[#allocation3 + $0x150] sm:$0xff]
      %v1294 = vld [vmem:[#allocation3 + $0x158] sm:$0xff]
      %v1295 = vld [vmem:[#allocation3 + $0x160] sm:$0xff]
      %v1296 = vld [vmem:[#allocation3 + $0x168] sm:$0xff]
      %v1297 = vld [vmem:[#allocation3 + $0x170] sm:$0xff]
      %v1298 = vld [vmem:[#allocation3 + $0x178] sm:$0xff]
      %v1299 = vld [vmem:[#allocation3 + $0x180] sm:$0xff]
      %v1300 = vld [vmem:[#allocation3 + $0x188] sm:$0xff]
      %v1301 = vld [vmem:[#allocation3 + $0x190] sm:$0xff]
      %v1302 = vld [vmem:[#allocation3 + $0x198] sm:$0xff]
      %v1303 = vld [vmem:[#allocation3 + $0x1a0] sm:$0xff]
      %v1304 = vld [vmem:[#allocation3 + $0x1a8] sm:$0xff]
      %v1305 = vld [vmem:[#allocation3 + $0x1b0] sm:$0xff]
      %v1306 = vld [vmem:[#allocation3 + $0x1b8] sm:$0xff]
      %v1307 = vld [vmem:[#allocation3 + $0x1c0] sm:$0xff]
      %v1308 = vld [vmem:[#allocation3 + $0x1c8] sm:$0xff]
      %v1309 = vld [vmem:[#allocation3 + $0x1d0] sm:$0xff]
      %v1310 = vld [vmem:[#allocation3 + $0x1d8] sm:$0xff]
      %v1311 = vld [vmem:[#allocation3 + $0x1e0] sm:$0xff]
      %v1312 = vld [vmem:[#allocation3 + $0x1e8] sm:$0xff]
      %v1313 = vld [vmem:[#allocation3 + $0x1f0] sm:$0xff]
      %v1314 = vld [vmem:[#allocation3 + $0x1f8] sm:$0xff]
      %v1315 = vld [vmem:[#allocation3 + $0x200] sm:$0xff]
      %v1316 = vld [vmem:[#allocation3 + $0x208] sm:$0xff]
      %v1317 = vld [vmem:[#allocation3 + $0x210] sm:$0xff]
      %v1318 = vld [vmem:[#allocation3 + $0x218] sm:$0xff]
      %v1319 = vld [vmem:[#allocation3 + $0x220] sm:$0xff]
      %v1320 = vld [vmem:[#allocation3 + $0x228] sm:$0xff]
      %v1321 = vld [vmem:[#allocation3 + $0x230] sm:$0xff]
      %v1322 = vld [vmem:[#allocation3 + $0x238] sm:$0xff]
      %v1323 = vld [vmem:[#allocation3 + $0x240] sm:$0xff]
      %v1324 = vld [vmem:[#allocation3 + $0x248] sm:$0xff]
      %v1325 = vld [vmem:[#allocation3 + $0x250] sm:$0xff]
      %v1326 = vld [vmem:[#allocation3 + $0x258] sm:$0xff]
      %v1327 = vld [vmem:[#allocation3 + $0x260] sm:$0xff]
      %v1328 = vld [vmem:[#allocation3 + $0x268] sm:$0xff]
      %v1329 = vld [vmem:[#allocation3 + $0x270] sm:$0xff]
      %v1330 = vld [vmem:[#allocation3 + $0x278] sm:$0xff]
      %v1331 = vld [vmem:[#allocation3 + $0x280] sm:$0xff]
      %v1332 = vld [vmem:[#allocation3 + $0x288] sm:$0xff]
      %v1333 = vld [vmem:[#allocation3 + $0x290] sm:$0xff]
      %v1334 = vld [vmem:[#allocation3 + $0x298] sm:$0xff]
      %v1335 = vld [vmem:[#allocation3 + $0x2a0] sm:$0xff]
      %v1336 = vld [vmem:[#allocation3 + $0x2a8] sm:$0xff]
      %v1337 = vld [vmem:[#allocation3 + $0x2b0] sm:$0xff]
      %v1338 = vld [vmem:[#allocation3 + $0x2b8] sm:$0xff]
      %v1339 = vld [vmem:[#allocation3 + $0x2c0] sm:$0xff]
      %v1340 = vld [vmem:[#allocation3 + $0x2c8] sm:$0xff]
      %v1341 = vld [vmem:[#allocation3 + $0x2d0] sm:$0xff]
      %v1342 = vld [vmem:[#allocation3 + $0x2d8] sm:$0xff]
      %v1343 = vld [vmem:[#allocation3 + $0x2e0] sm:$0xff]
      %v1344 = vld [vmem:[#allocation3 + $0x2e8] sm:$0xff]
      %v1345 = vld [vmem:[#allocation3 + $0x2f0] sm:$0xff]
      %v1346 = vld [vmem:[#allocation3 + $0x2f8] sm:$0xff]
      %v1347 = vld [vmem:[#allocation3 + $0x300] sm:$0xff]
      %v1348 = vld [vmem:[#allocation3 + $0x308] sm:$0xff]
      %v1349 = vld [vmem:[#allocation3 + $0x310] sm:$0xff]
      %v1350 = vld [vmem:[#allocation3 + $0x318] sm:$0xff]
      %v1351 = vld [vmem:[#allocation3 + $0x320] sm:$0xff]
      %v1352 = vld [vmem:[#allocation3 + $0x328] sm:$0xff]
      %v1353 = vld [vmem:[#allocation3 + $0x330] sm:$0xff]
      %v1354 = vld [vmem:[#allocation3 + $0x338] sm:$0xff]
      %v1355 = vld [vmem:[#allocation3 + $0x340] sm:$0xff]
      %v1356 = vld [vmem:[#allocation3 + $0x348] sm:$0xff]
      %v1357 = vld [vmem:[#allocation3 + $0x350] sm:$0xff]
      %v1358 = vld [vmem:[#allocation3 + $0x358] sm:$0xff]
      %v1359 = vld [vmem:[#allocation3 + $0x360] sm:$0xff]
      %v1360 = vld [vmem:[#allocation3 + $0x368] sm:$0xff]
      %v1361 = vld [vmem:[#allocation3 + $0x370] sm:$0xff]
      %v1362 = vld [vmem:[#allocation3 + $0x378] sm:$0xff]
      %v1363 = vld [vmem:[#allocation3 + $0x380] sm:$0xff]
      %v1364 = vld [vmem:[#allocation3 + $0x388] sm:$0xff]
      %v1365 = vld [vmem:[#allocation3 + $0x390] sm:$0xff]
      %v1366 = vld [vmem:[#allocation3 + $0x398] sm:$0xff]
      %v1367 = vld [vmem:[#allocation3 + $0x3a0] sm:$0xff]
      %v1368 = vld [vmem:[#allocation3 + $0x3a8] sm:$0xff]
      %v1369 = vld [vmem:[#allocation3 + $0x3b0] sm:$0xff]
      %v1370 = vld [vmem:[#allocation3 + $0x3b8] sm:$0xff]
      %v1371 = vld [vmem:[#allocation3 + $0x3c0] sm:$0xff]
      %v1372 = vld [vmem:[#allocation3 + $0x3c8] sm:$0xff]
      %v1373 = vld [vmem:[#allocation3 + $0x3d0] sm:$0xff]
      %v1374 = vld [vmem:[#allocation3 + $0x3d8] sm:$0xff]
      %v1375 = vld [vmem:[#allocation3 + $0x3e0] sm:$0xff]
      %v1376 = vld [vmem:[#allocation3 + $0x3e8] sm:$0xff]
      %v1377 = vld [vmem:[#allocation3 + $0x3f0] sm:$0xff]
      %v1378 = vld [vmem:[#allocation3 + $0x3f8] sm:$0xff]
      %v1379 = vld [vmem:[#allocation3 + $0x400] sm:$0xff]
      %v1380 = vld [vmem:[#allocation3 + $0x408] sm:$0xff]
      %v1381 = vld [vmem:[#allocation3 + $0x410] sm:$0xff]
      %v1382 = vld [vmem:[#allocation3 + $0x418] sm:$0xff]
      %v1383 = vld [vmem:[#allocation3 + $0x420] sm:$0xff]
      %v1384 = vld [vmem:[#allocation3 + $0x428] sm:$0xff]
      %v1385 = vld [vmem:[#allocation3 + $0x430] sm:$0xff]
      %v1386 = vld [vmem:[#allocation3 + $0x438] sm:$0xff]
      %v1387 = vld [vmem:[#allocation3 + $0x440] sm:$0xff]
      %v1388 = vld [vmem:[#allocation3 + $0x448] sm:$0xff]
      %v1389 = vld [vmem:[#allocation3 + $0x450] sm:$0xff]
      %v1390 = vld [vmem:[#allocation3 + $0x458] sm:$0xff]
      %v1391 = vld [vmem:[#allocation3 + $0x460] sm:$0xff]
      %v1392 = vld [vmem:[#allocation3 + $0x468] sm:$0xff]
      %v1393 = vld [vmem:[#allocation3 + $0x470] sm:$0xff]
      %v1394 = vld [vmem:[#allocation3 + $0x478] sm:$0xff]
      %v1395 = vld [vmem:[%s5] sm:$0xf]
      %v1396 = vld [vmem:[%s5 + $0x4] sm:$0xf]
      %v1397 = vld [vmem:[%s5 + $0x8] sm:$0xf]
      %v1398 = vld [vmem:[%s5 + $0xc] sm:$0xf]
      %v1399 = vld [vmem:[%s5 + $0x10] sm:$0xf]
      %v1400 = vld [vmem:[%s5 + $0x14] sm:$0xf]
      %v1401 = vld [vmem:[%s5 + $0x18] sm:$0xf]
      %v1402 = vld [vmem:[%s5 + $0x1c] sm:$0xf]
      %v1403 = vld [vmem:[%s5 + $0x20] sm:$0xf]
      %v1404 = vld [vmem:[%s5 + $0x24] sm:$0xf]
      %v1405 = vld [vmem:[%s5 + $0x28] sm:$0xf]
      %v1406 = vld [vmem:[%s5 + $0x2c] sm:$0xf]
      %v1407 = vld [vmem:[%s5 + $0x30] sm:$0xf]
      %v1408 = vld [vmem:[%s5 + $0x34] sm:$0xf]
      %v1409 = vld [vmem:[%s5 + $0x38] sm:$0xf]
      %v1410 = vld [vmem:[%s5 + $0x3c] sm:$0xf]
      %v1411 = vld [vmem:[%s5 + $0x40] sm:$0xf]
      %v1412 = vld [vmem:[%s5 + $0x44] sm:$0xf]
      %v1413 = vld [vmem:[%s5 + $0x48] sm:$0xf]
      %v1414 = vld [vmem:[%s5 + $0x4c] sm:$0xf]
      %v1415 = vld [vmem:[%s5 + $0x50] sm:$0xf]
      %v1416 = vld [vmem:[%s5 + $0x54] sm:$0xf]
      %v1417 = vld [vmem:[%s5 + $0x58] sm:$0xf]
      %v1418 = vld [vmem:[%s5 + $0x5c] sm:$0xf]
      %v1419 = vld [vmem:[%s5 + $0x60] sm:$0xf]
      %v1420 = vld [vmem:[%s5 + $0x64] sm:$0xf]
      %v1421 = vld [vmem:[%s5 + $0x68] sm:$0xf]
      %v1422 = vld [vmem:[%s5 + $0x6c] sm:$0xf]
      %v1423 = vld [vmem:[%s5 + $0x70] sm:$0xf]
      %v1424 = vld [vmem:[%s5 + $0x74] sm:$0xf]
      %v1425 = vld [vmem:[%s5 + $0x78] sm:$0xf]
      %v1426 = vld [vmem:[%s5 + $0x7c] sm:$0xf]
      %v1427 = vld [vmem:[%s5 + $0x80] sm:$0xf]
      %v1428 = vld [vmem:[%s5 + $0x84] sm:$0xf]
      %v1429 = vld [vmem:[%s5 + $0x88] sm:$0xf]
      %v1430 = vld [vmem:[%s5 + $0x8c] sm:$0xf]
      %v1431 = vld [vmem:[%s5 + $0x90] sm:$0xf]
      %v1432 = vld [vmem:[%s5 + $0x94] sm:$0xf]
      %v1433 = vld [vmem:[%s5 + $0x98] sm:$0xf]
      %v1434 = vld [vmem:[%s5 + $0x9c] sm:$0xf]
      %v1435 = vld [vmem:[%s5 + $0xa0] sm:$0xf]
      %v1436 = vld [vmem:[%s5 + $0xa4] sm:$0xf]
      %v1437 = vld [vmem:[%s5 + $0xa8] sm:$0xf]
      %v1438 = vld [vmem:[%s5 + $0xac] sm:$0xf]
      %v1439 = vld [vmem:[%s5 + $0xb0] sm:$0xf]
      %v1440 = vld [vmem:[%s5 + $0xb4] sm:$0xf]
      %v1441 = vld [vmem:[%s5 + $0xb8] sm:$0xf]
      %v1442 = vld [vmem:[%s5 + $0xbc] sm:$0xf]
      %v1443 = vld [vmem:[%s5 + $0xc0] sm:$0xf]
      %v1444 = vld [vmem:[%s5 + $0xc4] sm:$0xf]
      %v1445 = vld [vmem:[%s5 + $0xc8] sm:$0xf]
      %v1446 = vld [vmem:[%s5 + $0xcc] sm:$0xf]
      %v1447 = vld [vmem:[%s5 + $0xd0] sm:$0xf]
      %v1448 = vld [vmem:[%s5 + $0xd4] sm:$0xf]
      %v1449 = vld [vmem:[%s5 + $0xd8] sm:$0xf]
      %v1450 = vld [vmem:[%s5 + $0xdc] sm:$0xf]
      %v1451 = vld [vmem:[%s5 + $0xe0] sm:$0xf]
      %v1452 = vld [vmem:[%s5 + $0xe4] sm:$0xf]
      %v1453 = vld [vmem:[%s5 + $0xe8] sm:$0xf]
      %v1454 = vld [vmem:[%s5 + $0xec] sm:$0xf]
      %v1455 = vld [vmem:[%s5 + $0xf0] sm:$0xf]
      %v1456 = vld [vmem:[%s5 + $0xf4] sm:$0xf]
      %v1457 = vld [vmem:[%s5 + $0xf8] sm:$0xf]
      %v1458 = vld [vmem:[%s5 + $0xfc] sm:$0xf]
      %v1459 = vld [vmem:[%s5 + $0x100] sm:$0xf]
      %v1460 = vld [vmem:[%s5 + $0x104] sm:$0xf]
      %v1461 = vld [vmem:[%s5 + $0x108] sm:$0xf]
      %v1462 = vld [vmem:[%s5 + $0x10c] sm:$0xf]
      %v1463 = vld [vmem:[%s5 + $0x110] sm:$0xf]
      %v1464 = vld [vmem:[%s5 + $0x114] sm:$0xf]
      %v1465 = vld [vmem:[%s5 + $0x118] sm:$0xf]
      %v1466 = vld [vmem:[%s5 + $0x11c] sm:$0xf]
      %v1467 = vld [vmem:[%s5 + $0x120] sm:$0xf]
      %v1468 = vld [vmem:[%s5 + $0x124] sm:$0xf]
      %v1469 = vld [vmem:[%s5 + $0x128] sm:$0xf]
      %v1470 = vld [vmem:[%s5 + $0x12c] sm:$0xf]
      %v1471 = vld [vmem:[%s5 + $0x130] sm:$0xf]
      %v1472 = vld [vmem:[%s5 + $0x134] sm:$0xf]
      %v1473 = vld [vmem:[%s5 + $0x138] sm:$0xf]
      %v1474 = vld [vmem:[%s5 + $0x13c] sm:$0xf]
      %v1475 = vld [vmem:[%s5 + $0x140] sm:$0xf]
      %v1476 = vld [vmem:[%s5 + $0x144] sm:$0xf]
      %v1477 = vld [vmem:[%s5 + $0x148] sm:$0xf]
      %v1478 = vld [vmem:[%s5 + $0x14c] sm:$0xf]
      %v1479 = vld [vmem:[%s5 + $0x150] sm:$0xf]
      %v1480 = vld [vmem:[%s5 + $0x154] sm:$0xf]
      %v1481 = vld [vmem:[%s5 + $0x158] sm:$0xf]
      %v1482 = vld [vmem:[%s5 + $0x15c] sm:$0xf]
      %v1483 = vld [vmem:[%s5 + $0x160] sm:$0xf]
      %v1484 = vld [vmem:[%s5 + $0x164] sm:$0xf]
      %v1485 = vld [vmem:[%s5 + $0x168] sm:$0xf]
      %v1486 = vld [vmem:[%s5 + $0x16c] sm:$0xf]
      %v1487 = vld [vmem:[%s5 + $0x170] sm:$0xf]
      %v1488 = vld [vmem:[%s5 + $0x174] sm:$0xf]
      %v1489 = vld [vmem:[%s5 + $0x178] sm:$0xf]
      %v1490 = vld [vmem:[%s5 + $0x17c] sm:$0xf]
      %v1491 = vld [vmem:[%s5 + $0x180] sm:$0xf]
      %v1492 = vld [vmem:[%s5 + $0x184] sm:$0xf]
      %v1493 = vld [vmem:[%s5 + $0x188] sm:$0xf]
      %v1494 = vld [vmem:[%s5 + $0x18c] sm:$0xf]
      %v1495 = vld [vmem:[%s5 + $0x190] sm:$0xf]
      %v1496 = vld [vmem:[%s5 + $0x194] sm:$0xf]
      %v1497 = vld [vmem:[%s5 + $0x198] sm:$0xf]
      %v1498 = vld [vmem:[%s5 + $0x19c] sm:$0xf]
      %v1499 = vld [vmem:[%s5 + $0x1a0] sm:$0xf]
      %v1500 = vld [vmem:[%s5 + $0x1a4] sm:$0xf]
      %v1501 = vld [vmem:[%s5 + $0x1a8] sm:$0xf]
      %v1502 = vld [vmem:[%s5 + $0x1ac] sm:$0xf]
      %v1503 = vld [vmem:[%s5 + $0x1b0] sm:$0xf]
      %v1504 = vld [vmem:[%s5 + $0x1b4] sm:$0xf]
      %v1505 = vld [vmem:[%s5 + $0x1b8] sm:$0xf]
      %v1506 = vld [vmem:[%s5 + $0x1bc] sm:$0xf]
      %v1507 = vld [vmem:[%s5 + $0x1c0] sm:$0xf]
      %v1508 = vld [vmem:[%s5 + $0x1c4] sm:$0xf]
      %v1509 = vld [vmem:[%s5 + $0x1c8] sm:$0xf]
      %v1510 = vld [vmem:[%s5 + $0x1cc] sm:$0xf]
      %v1511 = vld [vmem:[%s5 + $0x1d0] sm:$0xf]
      %v1512 = vld [vmem:[%s5 + $0x1d4] sm:$0xf]
      %v1513 = vld [vmem:[%s5 + $0x1d8] sm:$0xf]
      %v1514 = vld [vmem:[%s5 + $0x1dc] sm:$0xf]
      %v1515 = vld [vmem:[%s5 + $0x1e0] sm:$0xf]
      %v1516 = vld [vmem:[%s5 + $0x1e4] sm:$0xf]
      %v1517 = vld [vmem:[%s5 + $0x1e8] sm:$0xf]
      %v1518 = vld [vmem:[%s5 + $0x1ec] sm:$0xf]
      %v1519 = vld [vmem:[%s5 + $0x1f0] sm:$0xf]
      %v1520 = vld [vmem:[%s5 + $0x1f4] sm:$0xf]
      %v1521 = vld [vmem:[%s5 + $0x1f8] sm:$0xf]
      %v1522 = vld [vmem:[%s5 + $0x1fc] sm:$0xf]
      %v1523 = vld [vmem:[%s5 + $0x200] sm:$0xf]
      %v1524 = vld [vmem:[%s5 + $0x204] sm:$0xf]
      %v1525 = vld [vmem:[%s5 + $0x208] sm:$0xf]
      %v1526 = vld [vmem:[%s5 + $0x20c] sm:$0xf]
      %v1527 = vld [vmem:[%s5 + $0x210] sm:$0xf]
      %v1528 = vld [vmem:[%s5 + $0x214] sm:$0xf]
      %v1529 = vld [vmem:[%s5 + $0x218] sm:$0xf]
      %v1530 = vld [vmem:[%s5 + $0x21c] sm:$0xf]
      %v1531 = vld [vmem:[%s5 + $0x220] sm:$0xf]
      %v1532 = vld [vmem:[%s5 + $0x224] sm:$0xf]
      %v1533 = vld [vmem:[%s5 + $0x228] sm:$0xf]
      %v1534 = vld [vmem:[%s5 + $0x22c] sm:$0xf]
      %v1535 = vld [vmem:[%s5 + $0x230] sm:$0xf]
      %v1536 = vld [vmem:[%s5 + $0x234] sm:$0xf]
      %v1537 = vld [vmem:[%s5 + $0x238] sm:$0xf]
      %v1538 = vld [vmem:[%s5 + $0x23c] sm:$0xf]
      %v1683 = vunpack.c.l.b16 %v1395
      %v1684 = vunpack.c.l.b16 %v1396
      %v1685 = vunpack.c.l.b16 %v1397
      %v1686 = vunpack.c.l.b16 %v1398
      %v1687 = vunpack.c.l.b16 %v1399
      %v1688 = vunpack.c.l.b16 %v1400
      %v1689 = vunpack.c.l.b16 %v1401
      %v1690 = vunpack.c.l.b16 %v1402
      %v1691 = vunpack.c.l.b16 %v1403
      %v1692 = vunpack.c.l.b16 %v1404
      %v1693 = vunpack.c.l.b16 %v1405
      %v1694 = vunpack.c.l.b16 %v1406
      %v1695 = vunpack.c.l.b16 %v1407
      %v1696 = vunpack.c.l.b16 %v1408
      %v1697 = vunpack.c.l.b16 %v1409
      %v1698 = vunpack.c.l.b16 %v1410
      %v1699 = vunpack.c.l.b16 %v1411
      %v1700 = vunpack.c.l.b16 %v1412
      %v1701 = vunpack.c.l.b16 %v1413
      %v1702 = vunpack.c.l.b16 %v1414
      %v1703 = vunpack.c.l.b16 %v1415
      %v1704 = vunpack.c.l.b16 %v1416
      %v1705 = vunpack.c.l.b16 %v1417
      %v1706 = vunpack.c.l.b16 %v1418
      %v1707 = vunpack.c.l.b16 %v1419
      %v1708 = vunpack.c.l.b16 %v1420
      %v1709 = vunpack.c.l.b16 %v1421
      %v1710 = vunpack.c.l.b16 %v1422
      %v1711 = vunpack.c.l.b16 %v1423
      %v1712 = vunpack.c.l.b16 %v1424
      %v1713 = vunpack.c.l.b16 %v1425
      %v1714 = vunpack.c.l.b16 %v1426
      %v1715 = vunpack.c.l.b16 %v1427
      %v1716 = vunpack.c.l.b16 %v1428
      %v1717 = vunpack.c.l.b16 %v1429
      %v1718 = vunpack.c.l.b16 %v1430
      %v1719 = vunpack.c.l.b16 %v1431
      %v1720 = vunpack.c.l.b16 %v1432
      %v1721 = vunpack.c.l.b16 %v1433
      %v1722 = vunpack.c.l.b16 %v1434
      %v1723 = vunpack.c.l.b16 %v1435
      %v1724 = vunpack.c.l.b16 %v1436
      %v1725 = vunpack.c.l.b16 %v1437
      %v1726 = vunpack.c.l.b16 %v1438
      %v1727 = vunpack.c.l.b16 %v1439
      %v1728 = vunpack.c.l.b16 %v1440
      %v1729 = vunpack.c.l.b16 %v1441
      %v1730 = vunpack.c.l.b16 %v1442
      %v1731 = vunpack.c.l.b16 %v1443
      %v1732 = vunpack.c.l.b16 %v1444
      %v1733 = vunpack.c.l.b16 %v1445
      %v1734 = vunpack.c.l.b16 %v1446
      %v1735 = vunpack.c.l.b16 %v1447
      %v1736 = vunpack.c.l.b16 %v1448
      %v1737 = vunpack.c.l.b16 %v1449
      %v1738 = vunpack.c.l.b16 %v1450
      %v1739 = vunpack.c.l.b16 %v1451
      %v1740 = vunpack.c.l.b16 %v1452
      %v1741 = vunpack.c.l.b16 %v1453
      %v1742 = vunpack.c.l.b16 %v1454
      %v1743 = vunpack.c.l.b16 %v1455
      %v1744 = vunpack.c.l.b16 %v1456
      %v1745 = vunpack.c.l.b16 %v1457
      %v1746 = vunpack.c.l.b16 %v1458
      %v1747 = vunpack.c.l.b16 %v1459
      %v1748 = vunpack.c.l.b16 %v1460
      %v1749 = vunpack.c.l.b16 %v1461
      %v1750 = vunpack.c.l.b16 %v1462
      %v1751 = vunpack.c.l.b16 %v1463
      %v1752 = vunpack.c.l.b16 %v1464
      %v1753 = vunpack.c.l.b16 %v1465
      %v1754 = vunpack.c.l.b16 %v1466
      %v1755 = vunpack.c.l.b16 %v1467
      %v1756 = vunpack.c.l.b16 %v1468
      %v1757 = vunpack.c.l.b16 %v1469
      %v1758 = vunpack.c.l.b16 %v1470
      %v1759 = vunpack.c.l.b16 %v1471
      %v1760 = vunpack.c.l.b16 %v1472
      %v1761 = vunpack.c.l.b16 %v1473
      %v1762 = vunpack.c.l.b16 %v1474
      %v1763 = vunpack.c.l.b16 %v1475
      %v1764 = vunpack.c.l.b16 %v1476
      %v1765 = vunpack.c.l.b16 %v1477
      %v1766 = vunpack.c.l.b16 %v1478
      %v1767 = vunpack.c.l.b16 %v1479
      %v1768 = vunpack.c.l.b16 %v1480
      %v1769 = vunpack.c.l.b16 %v1481
      %v1770 = vunpack.c.l.b16 %v1482
      %v1771 = vunpack.c.l.b16 %v1483
      %v1772 = vunpack.c.l.b16 %v1484
      %v1773 = vunpack.c.l.b16 %v1485
      %v1774 = vunpack.c.l.b16 %v1486
      %v1775 = vunpack.c.l.b16 %v1487
      %v1776 = vunpack.c.l.b16 %v1488
      %v1777 = vunpack.c.l.b16 %v1489
      %v1778 = vunpack.c.l.b16 %v1490
      %v1779 = vunpack.c.l.b16 %v1491
      %v1780 = vunpack.c.l.b16 %v1492
      %v1781 = vunpack.c.l.b16 %v1493
      %v1782 = vunpack.c.l.b16 %v1494
      %v1783 = vunpack.c.l.b16 %v1495
      %v1784 = vunpack.c.l.b16 %v1496
      %v1785 = vunpack.c.l.b16 %v1497
      %v1786 = vunpack.c.l.b16 %v1498
      %v1787 = vunpack.c.l.b16 %v1499
      %v1788 = vunpack.c.l.b16 %v1500
      %v1789 = vunpack.c.l.b16 %v1501
      %v1790 = vunpack.c.l.b16 %v1502
      %v1791 = vunpack.c.l.b16 %v1503
      %v1792 = vunpack.c.l.b16 %v1504
      %v1793 = vunpack.c.l.b16 %v1505
      %v1794 = vunpack.c.l.b16 %v1506
      %v1795 = vunpack.c.l.b16 %v1507
      %v1796 = vunpack.c.l.b16 %v1508
      %v1797 = vunpack.c.l.b16 %v1509
      %v1798 = vunpack.c.l.b16 %v1510
      %v1799 = vunpack.c.l.b16 %v1511
      %v1800 = vunpack.c.l.b16 %v1512
      %v1801 = vunpack.c.l.b16 %v1513
      %v1802 = vunpack.c.l.b16 %v1514
      %v1803 = vunpack.c.l.b16 %v1515
      %v1804 = vunpack.c.l.b16 %v1516
      %v1805 = vunpack.c.l.b16 %v1517
      %v1806 = vunpack.c.l.b16 %v1518
      %v1807 = vunpack.c.l.b16 %v1519
      %v1808 = vunpack.c.l.b16 %v1520
      %v1809 = vunpack.c.l.b16 %v1521
      %v1810 = vunpack.c.l.b16 %v1522
      %v1811 = vunpack.c.l.b16 %v1523
      %v1812 = vunpack.c.l.b16 %v1524
      %v1813 = vunpack.c.l.b16 %v1525
      %v1814 = vunpack.c.l.b16 %v1526
      %v1815 = vunpack.c.l.b16 %v1527
      %v1816 = vunpack.c.l.b16 %v1528
      %v1817 = vunpack.c.l.b16 %v1529
      %v1818 = vunpack.c.l.b16 %v1530
      %v1819 = vunpack.c.l.b16 %v1531
      %v1820 = vunpack.c.l.b16 %v1532
      %v1821 = vunpack.c.l.b16 %v1533
      %v1822 = vunpack.c.l.b16 %v1534
      %v1823 = vunpack.c.l.b16 %v1535
      %v1824 = vunpack.c.l.b16 %v1536
      %v1825 = vunpack.c.l.b16 %v1537
      %v1826 = vunpack.c.l.b16 %v1538
      %v1827 = vpack.c.b16 %v1684, %v1683
      %v1828 = vpack.c.b16 %v1686, %v1685
      %v1829 = vpack.c.b16 %v1688, %v1687
      %v1830 = vpack.c.b16 %v1690, %v1689
      %v1831 = vpack.c.b16 %v1692, %v1691
      %v1832 = vpack.c.b16 %v1694, %v1693
      %v1833 = vpack.c.b16 %v1696, %v1695
      %v1834 = vpack.c.b16 %v1698, %v1697
      %v1835 = vpack.c.b16 %v1700, %v1699
      %v1836 = vpack.c.b16 %v1702, %v1701
      %v1837 = vpack.c.b16 %v1704, %v1703
      %v1838 = vpack.c.b16 %v1706, %v1705
      %v1839 = vpack.c.b16 %v1708, %v1707
      %v1840 = vpack.c.b16 %v1710, %v1709
      %v1841 = vpack.c.b16 %v1712, %v1711
      %v1842 = vpack.c.b16 %v1714, %v1713
      %v1843 = vpack.c.b16 %v1716, %v1715
      %v1844 = vpack.c.b16 %v1718, %v1717
      %v1845 = vpack.c.b16 %v1720, %v1719
      %v1846 = vpack.c.b16 %v1722, %v1721
      %v1847 = vpack.c.b16 %v1724, %v1723
      %v1848 = vpack.c.b16 %v1726, %v1725
      %v1849 = vpack.c.b16 %v1728, %v1727
      %v1850 = vpack.c.b16 %v1730, %v1729
      %v1851 = vpack.c.b16 %v1732, %v1731
      %v1852 = vpack.c.b16 %v1734, %v1733
      %v1853 = vpack.c.b16 %v1736, %v1735
      %v1854 = vpack.c.b16 %v1738, %v1737
      %v1855 = vpack.c.b16 %v1740, %v1739
      %v1856 = vpack.c.b16 %v1742, %v1741
      %v1857 = vpack.c.b16 %v1744, %v1743
      %v1858 = vpack.c.b16 %v1746, %v1745
      %v1859 = vpack.c.b16 %v1748, %v1747
      %v1860 = vpack.c.b16 %v1750, %v1749
      %v1861 = vpack.c.b16 %v1752, %v1751
      %v1862 = vpack.c.b16 %v1754, %v1753
      %v1863 = vpack.c.b16 %v1756, %v1755
      %v1864 = vpack.c.b16 %v1758, %v1757
      %v1865 = vpack.c.b16 %v1760, %v1759
      %v1866 = vpack.c.b16 %v1762, %v1761
      %v1867 = vpack.c.b16 %v1764, %v1763
      %v1868 = vpack.c.b16 %v1766, %v1765
      %v1869 = vpack.c.b16 %v1768, %v1767
      %v1870 = vpack.c.b16 %v1770, %v1769
      %v1871 = vpack.c.b16 %v1772, %v1771
      %v1872 = vpack.c.b16 %v1774, %v1773
      %v1873 = vpack.c.b16 %v1776, %v1775
      %v1874 = vpack.c.b16 %v1778, %v1777
      %v1875 = vpack.c.b16 %v1780, %v1779
      %v1876 = vpack.c.b16 %v1782, %v1781
      %v1877 = vpack.c.b16 %v1784, %v1783
      %v1878 = vpack.c.b16 %v1786, %v1785
      %v1879 = vpack.c.b16 %v1788, %v1787
      %v1880 = vpack.c.b16 %v1790, %v1789
      %v1881 = vpack.c.b16 %v1792, %v1791
      %v1882 = vpack.c.b16 %v1794, %v1793
      %v1883 = vpack.c.b16 %v1796, %v1795
      %v1884 = vpack.c.b16 %v1798, %v1797
      %v1885 = vpack.c.b16 %v1800, %v1799
      %v1886 = vpack.c.b16 %v1802, %v1801
      %v1887 = vpack.c.b16 %v1804, %v1803
      %v1888 = vpack.c.b16 %v1806, %v1805
      %v1889 = vpack.c.b16 %v1808, %v1807
      %v1890 = vpack.c.b16 %v1810, %v1809
      %v1891 = vpack.c.b16 %v1812, %v1811
      %v1892 = vpack.c.b16 %v1814, %v1813
      %v1893 = vpack.c.b16 %v1816, %v1815
      %v1894 = vpack.c.b16 %v1818, %v1817
      %v1895 = vpack.c.b16 %v1820, %v1819
      %v1896 = vpack.c.b16 %v1822, %v1821
      %v1897 = vpack.c.b16 %v1824, %v1823
      %v1898 = vpack.c.b16 %v1826, %v1825
      %1971 = vmatprep.subr.bf16.mxu0 0
      %1972 = vmatpush1.bf16.msra.mxu0 %v1827
      %1973 = vmatprep.subr.bf16.mxu0 0
      %1974 = vmatpush1.bf16.msra.mxu0 %v1828
      %1975 = vmatprep.subr.bf16.mxu0 0
      %1976 = vmatpush1.bf16.msra.mxu0 %v1829
      %1977 = vmatprep.subr.bf16.mxu0 0
      %1978 = vmatpush1.bf16.msra.mxu0 %v1830
      %1979 = vmatprep.subr.bf16.mxu0 0
      %1980 = vmatpush1.bf16.msra.mxu0 %v1831
      %1981 = vmatprep.subr.bf16.mxu0 0
      %1982 = vmatpush1.bf16.msra.mxu0 %v1832
      %1983 = vmatprep.subr.bf16.mxu0 0
      %1984 = vmatpush1.bf16.msra.mxu0 %v1833
      %1985 = vmatprep.subr.bf16.mxu0 0
      %1986 = vmatpush1.bf16.msra.mxu0 %v1834
      %1987 = vmatprep.subr.bf16.mxu0 0
      %1988 = vmatpush1.bf16.msra.mxu0 %v1835
      %1989 = vmatprep.subr.bf16.mxu0 0
      %1990 = vmatpush1.bf16.msra.mxu0 %v1836
      %1991 = vmatprep.subr.bf16.mxu0 0
      %1992 = vmatpush1.bf16.msra.mxu0 %v1837
      %1993 = vmatprep.subr.bf16.mxu0 0
      %1994 = vmatpush1.bf16.msra.mxu0 %v1838
      %1995 = vmatprep.subr.bf16.mxu0 0
      %1996 = vmatpush1.bf16.msra.mxu0 %v1839
      %1997 = vmatprep.subr.bf16.mxu0 0
      %1998 = vmatpush1.bf16.msra.mxu0 %v1840
      %1999 = vmatprep.subr.bf16.mxu0 0
      %2000 = vmatpush1.bf16.msra.mxu0 %v1841
      %2001 = vmatprep.subr.bf16.mxu0 0
      %2002 = vmatpush1.bf16.msra.mxu0 %v1842
      %2003 = vmatprep.mubr.bf16.mxu0 %v1252
      %2004 = vmatmul.mubr.bf16.gmra.mrb[0].mxu0 %v1251
      %v2005 = vpop.f32.mrb[0].mxu0
      %v2006 = vadd.f32 0.0, %v2005
      %v2007 = vpop.f32.mrb[0].mxu0
      %v2008 = vpop.f32.mrb[0].mxu0
      %v2009 = vadd.f32 0.0, %v2008
      %v2010 = vpop.f32.mrb[0].mxu0
      %2011 = vmatprep.mubr.bf16.mxu0 %v1261
      %2012 = vmatmul.mubr.bf16.gmra.mrb[0].mxu0 %v1260
      %v2013 = vpop.f32.mrb[0].mxu0
      %v2014 = vadd.f32 0.0, %v2013
      %v2015 = vpop.f32.mrb[0].mxu0
      %v2016 = vpop.f32.mrb[0].mxu0
      %v2017 = vadd.f32 0.0, %v2016
      %v2018 = vpop.f32.mrb[0].mxu0
      %2019 = vmatprep.mubr.bf16.mxu0 %v1270
      %2020 = vmatmul.mubr.bf16.gmra.mrb[0].mxu0 %v1269
      %v2021 = vpop.f32.mrb[0].mxu0
      %v2022 = vadd.f32 0.0, %v2021
      %v2023 = vpop.f32.mrb[0].mxu0
      %v2024 = vpop.f32.mrb[0].mxu0
      %v2025 = vadd.f32 0.0, %v2024
      %v2026 = vpop.f32.mrb[0].mxu0
      %2027 = vmatprep.mubr.bf16.mxu0 %v1279
      %2028 = vmatmul.mubr.bf16.gmra.mrb[0].mxu0 %v1278
      %v2029 = vpop.f32.mrb[0].mxu0
      %v2030 = vadd.f32 0.0, %v2029
      %v2031 = vpop.f32.mrb[0].mxu0
      %v2032 = vpop.f32.mrb[0].mxu0
      %v2033 = vadd.f32 0.0, %v2032
      %v2034 = vpop.f32.mrb[0].mxu0
      %2035 = vmatprep.mubr.bf16.mxu0 %v1288
      %2036 = vmatmul.mubr.bf16.gmra.mrb[0].mxu0 %v1287
      %v2037 = vpop.f32.mrb[0].mxu0
      %v2038 = vadd.f32 0.0, %v2037
      %v2039 = vpop.f32.mrb[0].mxu0
      %v2040 = vpop.f32.mrb[0].mxu0
      %v2041 = vadd.f32 0.0, %v2040
      %v2042 = vpop.f32.mrb[0].mxu0
      %2043 = vmatprep.mubr.bf16.mxu0 %v1297
      %2044 = vmatmul.mubr.bf16.gmra.mrb[0].mxu0 %v1296
      %v2045 = vpop.f32.mrb[0].mxu0
      %v2046 = vadd.f32 0.0, %v2045
      %v2047 = vpop.f32.mrb[0].mxu0
      %v2048 = vpop.f32.mrb[0].mxu0
      %v2049 = vadd.f32 0.0, %v2048
      %v2050 = vpop.f32.mrb[0].mxu0
      %2051 = vmatprep.mubr.bf16.mxu0 %v1306
      %2052 = vmatmul.mubr.bf16.gmra.mrb[0].mxu0 %v1305
      %v2053 = vpop.f32.mrb[0].mxu0
      %v2054 = vadd.f32 0.0, %v2053
      %v2055 = vpop.f32.mrb[0].mxu0
      %v2056 = vpop.f32.mrb[0].mxu0
      %v2057 = vadd.f32 0.0, %v2056
      %v2058 = vpop.f32.mrb[0].mxu0
      %2059 = vmatprep.mubr.bf16.mxu0 %v1315
      %2060 = vmatmul.mubr.bf16.gmra.mrb[0].mxu0 %v1314
      %v2061 = vpop.f32.mrb[0].mxu0
      %v2062 = vadd.f32 0.0, %v2061
      %v2063 = vpop.f32.mrb[0].mxu0
      %v2064 = vpop.f32.mrb[0].mxu0
      %v2065 = vadd.f32 0.0, %v2064
      %v2066 = vpop.f32.mrb[0].mxu0
      %2067 = vmatprep.mubr.bf16.mxu0 %v1324
      %2068 = vmatmul.mubr.bf16.gmra.mrb[0].mxu0 %v1323
      %v2069 = vpop.f32.mrb[0].mxu0
      %v2070 = vadd.f32 0.0, %v2069
      %v2071 = vpop.f32.mrb[0].mxu0
      %v2072 = vpop.f32.mrb[0].mxu0
      %v2073 = vadd.f32 0.0, %v2072
      %v2074 = vpop.f32.mrb[0].mxu0
      %2075 = vmatprep.mubr.bf16.mxu0 %v1333
      %2076 = vmatmul.mubr.bf16.gmra.mrb[0].mxu0 %v1332
      %v2077 = vpop.f32.mrb[0].mxu0
      %v2078 = vadd.f32 0.0, %v2077
      %v2079 = vpop.f32.mrb[0].mxu0
      %v2080 = vpop.f32.mrb[0].mxu0
      %v2081 = vadd.f32 0.0, %v2080
      %v2082 = vpop.f32.mrb[0].mxu0
      %2083 = vmatprep.mubr.bf16.mxu0 %v1342
      %2084 = vmatmul.mubr.bf16.gmra.mrb[0].mxu0 %v1341
      %v2085 = vpop.f32.mrb[0].mxu0
      %v2086 = vadd.f32 0.0, %v2085
      %v2087 = vpop.f32.mrb[0].mxu0
      %v2088 = vpop.f32.mrb[0].mxu0
      %v2089 = vadd.f32 0.0, %v2088
      %v2090 = vpop.f32.mrb[0].mxu0
      %2091 = vmatprep.mubr.bf16.mxu0 %v1351
      %2092 = vmatmul.mubr.bf16.gmra.mrb[0].mxu0 %v1350
      %v2093 = vpop.f32.mrb[0].mxu0
      %v2094 = vadd.f32 0.0, %v2093
      %v2095 = vpop.f32.mrb[0].mxu0
      %v2096 = vpop.f32.mrb[0].mxu0
      %v2097 = vadd.f32 0.0, %v2096
      %v2098 = vpop.f32.mrb[0].mxu0
      %2099 = vmatprep.mubr.bf16.mxu0 %v1360
      %2100 = vmatmul.mubr.bf16.gmra.mrb[0].mxu0 %v1359
      %v2101 = vpop.f32.mrb[0].mxu0
      %v2102 = vadd.f32 0.0, %v2101
      %v2103 = vpop.f32.mrb[0].mxu0
      %v2104 = vpop.f32.mrb[0].mxu0
      %v2105 = vadd.f32 0.0, %v2104
      %v2106 = vpop.f32.mrb[0].mxu0
      %2107 = vmatprep.mubr.bf16.mxu0 %v1369
      %2108 = vmatmul.mubr.bf16.gmra.mrb[0].mxu0 %v1368
      %v2109 = vpop.f32.mrb[0].mxu0
      %v2110 = vadd.f32 0.0, %v2109
      %v2111 = vpop.f32.mrb[0].mxu0
      %v2112 = vpop.f32.mrb[0].mxu0
      %v2113 = vadd.f32 0.0, %v2112
      %v2114 = vpop.f32.mrb[0].mxu0
      %2115 = vmatprep.mubr.bf16.mxu0 %v1378
      %2116 = vmatmul.mubr.bf16.gmra.mrb[0].mxu0 %v1377
      %v2117 = vpop.f32.mrb[0].mxu0
      %v2118 = vadd.f32 0.0, %v2117
      %v2119 = vpop.f32.mrb[0].mxu0
      %v2120 = vpop.f32.mrb[0].mxu0
      %v2121 = vadd.f32 0.0, %v2120
      %v2122 = vpop.f32.mrb[0].mxu0
      %2123 = vmatprep.mubr.bf16.mxu0 %v1387
      %2124 = vmatmul.mubr.bf16.gmra.mrb[0].mxu0 %v1386
      %v2125 = vpop.f32.mrb[0].mxu0
      %v2126 = vadd.f32 0.0, %v2125
      %v2127 = vpop.f32.mrb[0].mxu0
      %v2128 = vpop.f32.mrb[0].mxu0
      %v2129 = vadd.f32 0.0, %v2128
      %v2130 = vpop.f32.mrb[0].mxu0
      %2131 = vdwg.mxu0
      %2132 = vmatprep.subr.bf16.mxu0 0
      %2133 = vmatpush1.bf16.msra.mxu0 %v1843
      %2134 = vmatprep.subr.bf16.mxu0 0
      %2135 = vmatpush1.bf16.msra.mxu0 %v1844
      %2136 = vmatprep.subr.bf16.mxu0 0
      %2137 = vmatpush1.bf16.msra.mxu0 %v1845
      %2138 = vmatprep.subr.bf16.mxu0 0
      %2139 = vmatpush1.bf16.msra.mxu0 %v1846
      %2140 = vmatprep.subr.bf16.mxu0 0
      %2141 = vmatpush1.bf16.msra.mxu0 %v1847
      %2142 = vmatprep.subr.bf16.mxu0 0
      %2143 = vmatpush1.bf16.msra.mxu0 %v1848
      %2144 = vmatprep.subr.bf16.mxu0 0
      %2145 = vmatpush1.bf16.msra.mxu0 %v1849
      %2146 = vmatprep.subr.bf16.mxu0 0
      %2147 = vmatpush1.bf16.msra.mxu0 %v1850
      %2148 = vmatprep.subr.bf16.mxu0 0
      %2149 = vmatpush1.bf16.msra.mxu0 %v1851
      %2150 = vmatprep.subr.bf16.mxu0 0
      %2151 = vmatpush1.bf16.msra.mxu0 %v1852
      %2152 = vmatprep.subr.bf16.mxu0 0
      %2153 = vmatpush1.bf16.msra.mxu0 %v1853
      %2154 = vmatprep.subr.bf16.mxu0 0
      %2155 = vmatpush1.bf16.msra.mxu0 %v1854
      %2156 = vmatprep.subr.bf16.mxu0 0
      %2157 = vmatpush1.bf16.msra.mxu0 %v1855
      %2158 = vmatprep.subr.bf16.mxu0 0
      %2159 = vmatpush1.bf16.msra.mxu0 %v1856
      %2160 = vmatprep.subr.bf16.mxu0 0
      %2161 = vmatpush1.bf16.msra.mxu0 %v1857
      %2162 = vmatprep.subr.bf16.mxu0 0
      %2163 = vmatpush1.bf16.msra.mxu0 %v1858
      %2164 = vmatprep.mubr.bf16.mxu0 %v1254
      %2165 = vmatmul.mubr.bf16.gmra.mrb[0].mxu0 %v1253
      %v2166 = vpop.f32.mrb[0].mxu0
      %v2167 = vadd.f32 %v2006, %v2166
      %v2168 = vpop.f32.mrb[0].mxu0
      %v2169 = vpop.f32.mrb[0].mxu0
      %v2170 = vadd.f32 %v2009, %v2169
      %v2171 = vpop.f32.mrb[0].mxu0
      %2172 = vmatprep.mubr.bf16.mxu0 %v1263
      %2173 = vmatmul.mubr.bf16.gmra.mrb[0].mxu0 %v1262
      %v2174 = vpop.f32.mrb[0].mxu0
      %v2175 = vadd.f32 %v2014, %v2174
      %v2176 = vpop.f32.mrb[0].mxu0
      %v2177 = vpop.f32.mrb[0].mxu0
      %v2178 = vadd.f32 %v2017, %v2177
      %v2179 = vpop.f32.mrb[0].mxu0
      %2180 = vmatprep.mubr.bf16.mxu0 %v1272
      %2181 = vmatmul.mubr.bf16.gmra.mrb[0].mxu0 %v1271
      %v2182 = vpop.f32.mrb[0].mxu0
      %v2183 = vadd.f32 %v2022, %v2182
      %v2184 = vpop.f32.mrb[0].mxu0
      %v2185 = vpop.f32.mrb[0].mxu0
      %v2186 = vadd.f32 %v2025, %v2185
      %v2187 = vpop.f32.mrb[0].mxu0
      %2188 = vmatprep.mubr.bf16.mxu0 %v1281
      %2189 = vmatmul.mubr.bf16.gmra.mrb[0].mxu0 %v1280
      %v2190 = vpop.f32.mrb[0].mxu0
      %v2191 = vadd.f32 %v2030, %v2190
      %v2192 = vpop.f32.mrb[0].mxu0
      %v2193 = vpop.f32.mrb[0].mxu0
      %v2194 = vadd.f32 %v2033, %v2193
      %v2195 = vpop.f32.mrb[0].mxu0
      %2196 = vmatprep.mubr.bf16.mxu0 %v1290
      %2197 = vmatmul.mubr.bf16.gmra.mrb[0].mxu0 %v1289
      %v2198 = vpop.f32.mrb[0].mxu0
      %v2199 = vadd.f32 %v2038, %v2198
      %v2200 = vpop.f32.mrb[0].mxu0
      %v2201 = vpop.f32.mrb[0].mxu0
      %v2202 = vadd.f32 %v2041, %v2201
      %v2203 = vpop.f32.mrb[0].mxu0
      %2204 = vmatprep.mubr.bf16.mxu0 %v1299
      %2205 = vmatmul.mubr.bf16.gmra.mrb[0].mxu0 %v1298
      %v2206 = vpop.f32.mrb[0].mxu0
      %v2207 = vadd.f32 %v2046, %v2206
      %v2208 = vpop.f32.mrb[0].mxu0
      %v2209 = vpop.f32.mrb[0].mxu0
      %v2210 = vadd.f32 %v2049, %v2209
      %v2211 = vpop.f32.mrb[0].mxu0
      %2212 = vmatprep.mubr.bf16.mxu0 %v1308
      %2213 = vmatmul.mubr.bf16.gmra.mrb[0].mxu0 %v1307
      %v2214 = vpop.f32.mrb[0].mxu0
      %v2215 = vadd.f32 %v2054, %v2214
      %v2216 = vpop.f32.mrb[0].mxu0
      %v2217 = vpop.f32.mrb[0].mxu0
      %v2218 = vadd.f32 %v2057, %v2217
      %v2219 = vpop.f32.mrb[0].mxu0
      %2220 = vmatprep.mubr.bf16.mxu0 %v1317
      %2221 = vmatmul.mubr.bf16.gmra.mrb[0].mxu0 %v1316
      %v2222 = vpop.f32.mrb[0].mxu0
      %v2223 = vadd.f32 %v2062, %v2222
      %v2224 = vpop.f32.mrb[0].mxu0
      %v2225 = vpop.f32.mrb[0].mxu0
      %v2226 = vadd.f32 %v2065, %v2225
      %v2227 = vpop.f32.mrb[0].mxu0
      %2228 = vmatprep.mubr.bf16.mxu0 %v1326
      %2229 = vmatmul.mubr.bf16.gmra.mrb[0].mxu0 %v1325
      %v2230 = vpop.f32.mrb[0].mxu0
      %v2231 = vadd.f32 %v2070, %v2230
      %v2232 = vpop.f32.mrb[0].mxu0
      %v2233 = vpop.f32.mrb[0].mxu0
      %v2234 = vadd.f32 %v2073, %v2233
      %v2235 = vpop.f32.mrb[0].mxu0
      %2236 = vmatprep.mubr.bf16.mxu0 %v1335
      %2237 = vmatmul.mubr.bf16.gmra.mrb[0].mxu0 %v1334
      %v2238 = vpop.f32.mrb[0].mxu0
      %v2239 = vadd.f32 %v2078, %v2238
      %v2240 = vpop.f32.mrb[0].mxu0
      %v2241 = vpop.f32.mrb[0].mxu0
      %v2242 = vadd.f32 %v2081, %v2241
      %v2243 = vpop.f32.mrb[0].mxu0
      %2244 = vmatprep.mubr.bf16.mxu0 %v1344
      %2245 = vmatmul.mubr.bf16.gmra.mrb[0].mxu0 %v1343
      %v2246 = vpop.f32.mrb[0].mxu0
      %v2247 = vadd.f32 %v2086, %v2246
      %v2248 = vpop.f32.mrb[0].mxu0
      %v2249 = vpop.f32.mrb[0].mxu0
      %v2250 = vadd.f32 %v2089, %v2249
      %v2251 = vpop.f32.mrb[0].mxu0
      %2252 = vmatprep.mubr.bf16.mxu0 %v1353
      %2253 = vmatmul.mubr.bf16.gmra.mrb[0].mxu0 %v1352
      %v2254 = vpop.f32.mrb[0].mxu0
      %v2255 = vadd.f32 %v2094, %v2254
      %v2256 = vpop.f32.mrb[0].mxu0
      %v2257 = vpop.f32.mrb[0].mxu0
      %v2258 = vadd.f32 %v2097, %v2257
      %v2259 = vpop.f32.mrb[0].mxu0
      %2260 = vmatprep.mubr.bf16.mxu0 %v1362
      %2261 = vmatmul.mubr.bf16.gmra.mrb[0].mxu0 %v1361
      %v2262 = vpop.f32.mrb[0].mxu0
      %v2263 = vadd.f32 %v2102, %v2262
      %v2264 = vpop.f32.mrb[0].mxu0
      %v2265 = vpop.f32.mrb[0].mxu0
      %v2266 = vadd.f32 %v2105, %v2265
      %v2267 = vpop.f32.mrb[0].mxu0
      %2268 = vmatprep.mubr.bf16.mxu0 %v1371
      %2269 = vmatmul.mubr.bf16.gmra.mrb[0].mxu0 %v1370
      %v2270 = vpop.f32.mrb[0].mxu0
      %v2271 = vadd.f32 %v2110, %v2270
      %v2272 = vpop.f32.mrb[0].mxu0
      %v2273 = vpop.f32.mrb[0].mxu0
      %v2274 = vadd.f32 %v2113, %v2273
      %v2275 = vpop.f32.mrb[0].mxu0
      %2276 = vmatprep.mubr.bf16.mxu0 %v1380
      %2277 = vmatmul.mubr.bf16.gmra.mrb[0].mxu0 %v1379
      %v2278 = vpop.f32.mrb[0].mxu0
      %v2279 = vadd.f32 %v2118, %v2278
      %v2280 = vpop.f32.mrb[0].mxu0
      %v2281 = vpop.f32.mrb[0].mxu0
      %v2282 = vadd.f32 %v2121, %v2281
      %v2283 = vpop.f32.mrb[0].mxu0
      %2284 = vmatprep.mubr.bf16.mxu0 %v1389
      %2285 = vmatmul.mubr.bf16.gmra.mrb[0].mxu0 %v1388
      %v2286 = vpop.f32.mrb[0].mxu0
      %v2287 = vadd.f32 %v2126, %v2286
      %v2288 = vpop.f32.mrb[0].mxu0
      %v2289 = vpop.f32.mrb[0].mxu0
      %v2290 = vadd.f32 %v2129, %v2289
      %v2291 = vpop.f32.mrb[0].mxu0
      %2292 = vdwg.mxu0
      %2293 = vmatprep.subr.bf16.mxu0 0
      %2294 = vmatpush1.bf16.msra.mxu0 %v1859
      %2295 = vmatprep.subr.bf16.mxu0 0
      %2296 = vmatpush1.bf16.msra.mxu0 %v1860
      %2297 = vmatprep.subr.bf16.mxu0 0
      %2298 = vmatpush1.bf16.msra.mxu0 %v1861
      %2299 = vmatprep.subr.bf16.mxu0 0
      %2300 = vmatpush1.bf16.msra.mxu0 %v1862
      %2301 = vmatprep.subr.bf16.mxu0 0
      %2302 = vmatpush1.bf16.msra.mxu0 %v1863
      %2303 = vmatprep.subr.bf16.mxu0 0
      %2304 = vmatpush1.bf16.msra.mxu0 %v1864
      %2305 = vmatprep.subr.bf16.mxu0 0
      %2306 = vmatpush1.bf16.msra.mxu0 %v1865
      %2307 = vmatprep.subr.bf16.mxu0 0
      %2308 = vmatpush1.bf16.msra.mxu0 %v1866
      %2309 = vmatprep.subr.bf16.mxu0 0
      %2310 = vmatpush1.bf16.msra.mxu0 %v1867
      %2311 = vmatprep.subr.bf16.mxu0 0
      %2312 = vmatpush1.bf16.msra.mxu0 %v1868
      %2313 = vmatprep.subr.bf16.mxu0 0
      %2314 = vmatpush1.bf16.msra.mxu0 %v1869
      %2315 = vmatprep.subr.bf16.mxu0 0
      %2316 = vmatpush1.bf16.msra.mxu0 %v1870
      %2317 = vmatprep.subr.bf16.mxu0 0
      %2318 = vmatpush1.bf16.msra.mxu0 %v1871
      %2319 = vmatprep.subr.bf16.mxu0 0
      %2320 = vmatpush1.bf16.msra.mxu0 %v1872
      %2321 = vmatprep.subr.bf16.mxu0 0
      %2322 = vmatpush1.bf16.msra.mxu0 %v1873
      %2323 = vmatprep.subr.bf16.mxu0 0
      %2324 = vmatpush1.bf16.msra.mxu0 %v1874
      %2325 = vmatprep.mubr.bf16.mxu0 %v1256
      %2326 = vmatmul.mubr.bf16.gmra.mrb[0].mxu0 %v1255
      %v2327 = vpop.f32.mrb[0].mxu0
      %v2328 = vadd.f32 %v2167, %v2327
      %v2329 = vpop.f32.mrb[0].mxu0
      %v2330 = vpop.f32.mrb[0].mxu0
      %v2331 = vadd.f32 %v2170, %v2330
      %v2332 = vpop.f32.mrb[0].mxu0
      %2333 = vmatprep.mubr.bf16.mxu0 %v1265
      %2334 = vmatmul.mubr.bf16.gmra.mrb[0].mxu0 %v1264
      %v2335 = vpop.f32.mrb[0].mxu0
      %v2336 = vadd.f32 %v2175, %v2335
      %v2337 = vpop.f32.mrb[0].mxu0
      %v2338 = vpop.f32.mrb[0].mxu0
      %v2339 = vadd.f32 %v2178, %v2338
      %v2340 = vpop.f32.mrb[0].mxu0
      %2341 = vmatprep.mubr.bf16.mxu0 %v1274
      %2342 = vmatmul.mubr.bf16.gmra.mrb[0].mxu0 %v1273
      %v2343 = vpop.f32.mrb[0].mxu0
      %v2344 = vadd.f32 %v2183, %v2343
      %v2345 = vpop.f32.mrb[0].mxu0
      %v2346 = vpop.f32.mrb[0].mxu0
      %v2347 = vadd.f32 %v2186, %v2346
      %v2348 = vpop.f32.mrb[0].mxu0
      %2349 = vmatprep.mubr.bf16.mxu0 %v1283
      %2350 = vmatmul.mubr.bf16.gmra.mrb[0].mxu0 %v1282
      %v2351 = vpop.f32.mrb[0].mxu0
      %v2352 = vadd.f32 %v2191, %v2351
      %v2353 = vpop.f32.mrb[0].mxu0
      %v2354 = vpop.f32.mrb[0].mxu0
      %v2355 = vadd.f32 %v2194, %v2354
      %v2356 = vpop.f32.mrb[0].mxu0
      %2357 = vmatprep.mubr.bf16.mxu0 %v1292
      %2358 = vmatmul.mubr.bf16.gmra.mrb[0].mxu0 %v1291
      %v2359 = vpop.f32.mrb[0].mxu0
      %v2360 = vadd.f32 %v2199, %v2359
      %v2361 = vpop.f32.mrb[0].mxu0
      %v2362 = vpop.f32.mrb[0].mxu0
      %v2363 = vadd.f32 %v2202, %v2362
      %v2364 = vpop.f32.mrb[0].mxu0
      %2365 = vmatprep.mubr.bf16.mxu0 %v1301
      %2366 = vmatmul.mubr.bf16.gmra.mrb[0].mxu0 %v1300
      %v2367 = vpop.f32.mrb[0].mxu0
      %v2368 = vadd.f32 %v2207, %v2367
      %v2369 = vpop.f32.mrb[0].mxu0
      %v2370 = vpop.f32.mrb[0].mxu0
      %v2371 = vadd.f32 %v2210, %v2370
      %v2372 = vpop.f32.mrb[0].mxu0
      %2373 = vmatprep.mubr.bf16.mxu0 %v1310
      %2374 = vmatmul.mubr.bf16.gmra.mrb[0].mxu0 %v1309
      %v2375 = vpop.f32.mrb[0].mxu0
      %v2376 = vadd.f32 %v2215, %v2375
      %v2377 = vpop.f32.mrb[0].mxu0
      %v2378 = vpop.f32.mrb[0].mxu0
      %v2379 = vadd.f32 %v2218, %v2378
      %v2380 = vpop.f32.mrb[0].mxu0
      %2381 = vmatprep.mubr.bf16.mxu0 %v1319
      %2382 = vmatmul.mubr.bf16.gmra.mrb[0].mxu0 %v1318
      %v2383 = vpop.f32.mrb[0].mxu0
      %v2384 = vadd.f32 %v2223, %v2383
      %v2385 = vpop.f32.mrb[0].mxu0
      %v2386 = vpop.f32.mrb[0].mxu0
      %v2387 = vadd.f32 %v2226, %v2386
      %v2388 = vpop.f32.mrb[0].mxu0
      %2389 = vmatprep.mubr.bf16.mxu0 %v1328
      %2390 = vmatmul.mubr.bf16.gmra.mrb[0].mxu0 %v1327
      %v2391 = vpop.f32.mrb[0].mxu0
      %v2392 = vadd.f32 %v2231, %v2391
      %v2393 = vpop.f32.mrb[0].mxu0
      %v2394 = vpop.f32.mrb[0].mxu0
      %v2395 = vadd.f32 %v2234, %v2394
      %v2396 = vpop.f32.mrb[0].mxu0
      %2397 = vmatprep.mubr.bf16.mxu0 %v1337
      %2398 = vmatmul.mubr.bf16.gmra.mrb[0].mxu0 %v1336
      %v2399 = vpop.f32.mrb[0].mxu0
      %v2400 = vadd.f32 %v2239, %v2399
      %v2401 = vpop.f32.mrb[0].mxu0
      %v2402 = vpop.f32.mrb[0].mxu0
      %v2403 = vadd.f32 %v2242, %v2402
      %v2404 = vpop.f32.mrb[0].mxu0
      %2405 = vmatprep.mubr.bf16.mxu0 %v1346
      %2406 = vmatmul.mubr.bf16.gmra.mrb[0].mxu0 %v1345
      %v2407 = vpop.f32.mrb[0].mxu0
      %v2408 = vadd.f32 %v2247, %v2407
      %v2409 = vpop.f32.mrb[0].mxu0
      %v2410 = vpop.f32.mrb[0].mxu0
      %v2411 = vadd.f32 %v2250, %v2410
      %v2412 = vpop.f32.mrb[0].mxu0
      %2413 = vmatprep.mubr.bf16.mxu0 %v1355
      %2414 = vmatmul.mubr.bf16.gmra.mrb[0].mxu0 %v1354
      %v2415 = vpop.f32.mrb[0].mxu0
      %v2416 = vadd.f32 %v2255, %v2415
      %v2417 = vpop.f32.mrb[0].mxu0
      %v2418 = vpop.f32.mrb[0].mxu0
      %v2419 = vadd.f32 %v2258, %v2418
      %v2420 = vpop.f32.mrb[0].mxu0
      %2421 = vmatprep.mubr.bf16.mxu0 %v1364
      %2422 = vmatmul.mubr.bf16.gmra.mrb[0].mxu0 %v1363
      %v2423 = vpop.f32.mrb[0].mxu0
      %v2424 = vadd.f32 %v2263, %v2423
      %v2425 = vpop.f32.mrb[0].mxu0
      %v2426 = vpop.f32.mrb[0].mxu0
      %v2427 = vadd.f32 %v2266, %v2426
      %v2428 = vpop.f32.mrb[0].mxu0
      %2429 = vmatprep.mubr.bf16.mxu0 %v1373
      %2430 = vmatmul.mubr.bf16.gmra.mrb[0].mxu0 %v1372
      %v2431 = vpop.f32.mrb[0].mxu0
      %v2432 = vadd.f32 %v2271, %v2431
      %v2433 = vpop.f32.mrb[0].mxu0
      %v2434 = vpop.f32.mrb[0].mxu0
      %v2435 = vadd.f32 %v2274, %v2434
      %v2436 = vpop.f32.mrb[0].mxu0
      %2437 = vmatprep.mubr.bf16.mxu0 %v1382
      %2438 = vmatmul.mubr.bf16.gmra.mrb[0].mxu0 %v1381
      %v2439 = vpop.f32.mrb[0].mxu0
      %v2440 = vadd.f32 %v2279, %v2439
      %v2441 = vpop.f32.mrb[0].mxu0
      %v2442 = vpop.f32.mrb[0].mxu0
      %v2443 = vadd.f32 %v2282, %v2442
      %v2444 = vpop.f32.mrb[0].mxu0
      %2445 = vmatprep.mubr.bf16.mxu0 %v1391
      %2446 = vmatmul.mubr.bf16.gmra.mrb[0].mxu0 %v1390
      %v2447 = vpop.f32.mrb[0].mxu0
      %v2448 = vadd.f32 %v2287, %v2447
      %v2449 = vpop.f32.mrb[0].mxu0
      %v2450 = vpop.f32.mrb[0].mxu0
      %v2451 = vadd.f32 %v2290, %v2450
      %v2452 = vpop.f32.mrb[0].mxu0
      %2453 = vdwg.mxu0
      %2454 = vmatprep.subr.bf16.mxu0 0
      %2455 = vmatpush1.bf16.msra.mxu0 %v1875
      %2456 = vmatprep.subr.bf16.mxu0 0
      %2457 = vmatpush1.bf16.msra.mxu0 %v1876
      %2458 = vmatprep.subr.bf16.mxu0 0
      %2459 = vmatpush1.bf16.msra.mxu0 %v1877
      %2460 = vmatprep.subr.bf16.mxu0 0
      %2461 = vmatpush1.bf16.msra.mxu0 %v1878
      %2462 = vmatprep.subr.bf16.mxu0 0
      %2463 = vmatpush1.bf16.msra.mxu0 %v1879
      %2464 = vmatprep.subr.bf16.mxu0 0
      %2465 = vmatpush1.bf16.msra.mxu0 %v1880
      %2466 = vmatprep.subr.bf16.mxu0 0
      %2467 = vmatpush1.bf16.msra.mxu0 %v1881
      %2468 = vmatprep.subr.bf16.mxu0 0
      %2469 = vmatpush1.bf16.msra.mxu0 %v1882
      %2470 = vmatprep.subr.bf16.mxu0 0
      %2471 = vmatpush1.bf16.msra.mxu0 %v1883
      %2472 = vmatprep.subr.bf16.mxu0 0
      %2473 = vmatpush1.bf16.msra.mxu0 %v1884
      %2474 = vmatprep.subr.bf16.mxu0 0
      %2475 = vmatpush1.bf16.msra.mxu0 %v1885
      %2476 = vmatprep.subr.bf16.mxu0 0
      %2477 = vmatpush1.bf16.msra.mxu0 %v1886
      %2478 = vmatprep.subr.bf16.mxu0 0
      %2479 = vmatpush1.bf16.msra.mxu0 %v1887
      %2480 = vmatprep.subr.bf16.mxu0 0
      %2481 = vmatpush1.bf16.msra.mxu0 %v1888
      %2482 = vmatprep.subr.bf16.mxu0 0
      %2483 = vmatpush1.bf16.msra.mxu0 %v1889
      %2484 = vmatprep.subr.bf16.mxu0 0
      %2485 = vmatpush1.bf16.msra.mxu0 %v1890
      %2486 = vmatprep.mubr.bf16.mxu0 %v1258
      %2487 = vmatmul.mubr.bf16.gmra.mrb[0].mxu0 %v1257
      %v2488 = vpop.f32.mrb[0].mxu0
      %v2489 = vadd.f32 %v2328, %v2488
      %v2490 = vpop.f32.mrb[0].mxu0
      %v2491 = vpop.f32.mrb[0].mxu0
      %v2492 = vadd.f32 %v2331, %v2491
      %v2493 = vpop.f32.mrb[0].mxu0
      %2494 = vmatprep.mubr.bf16.mxu0 %v1267
      %2495 = vmatmul.mubr.bf16.gmra.mrb[0].mxu0 %v1266
      %v2496 = vpop.f32.mrb[0].mxu0
      %v2497 = vadd.f32 %v2336, %v2496
      %v2498 = vpop.f32.mrb[0].mxu0
      %v2499 = vpop.f32.mrb[0].mxu0
      %v2500 = vadd.f32 %v2339, %v2499
      %v2501 = vpop.f32.mrb[0].mxu0
      %2502 = vmatprep.mubr.bf16.mxu0 %v1276
      %2503 = vmatmul.mubr.bf16.gmra.mrb[0].mxu0 %v1275
      %v2504 = vpop.f32.mrb[0].mxu0
      %v2505 = vadd.f32 %v2344, %v2504
      %v2506 = vpop.f32.mrb[0].mxu0
      %v2507 = vpop.f32.mrb[0].mxu0
      %v2508 = vadd.f32 %v2347, %v2507
      %v2509 = vpop.f32.mrb[0].mxu0
      %2510 = vmatprep.mubr.bf16.mxu0 %v1285
      %2511 = vmatmul.mubr.bf16.gmra.mrb[0].mxu0 %v1284
      %v2512 = vpop.f32.mrb[0].mxu0
      %v2513 = vadd.f32 %v2352, %v2512
      %v2514 = vpop.f32.mrb[0].mxu0
      %v2515 = vpop.f32.mrb[0].mxu0
      %v2516 = vadd.f32 %v2355, %v2515
      %v2517 = vpop.f32.mrb[0].mxu0
      %2518 = vmatprep.mubr.bf16.mxu0 %v1294
      %2519 = vmatmul.mubr.bf16.gmra.mrb[0].mxu0 %v1293
      %v2520 = vpop.f32.mrb[0].mxu0
      %v2521 = vadd.f32 %v2360, %v2520
      %v2522 = vpop.f32.mrb[0].mxu0
      %v2523 = vpop.f32.mrb[0].mxu0
      %v2524 = vadd.f32 %v2363, %v2523
      %v2525 = vpop.f32.mrb[0].mxu0
      %2526 = vmatprep.mubr.bf16.mxu0 %v1303
      %2527 = vmatmul.mubr.bf16.gmra.mrb[0].mxu0 %v1302
      %v2528 = vpop.f32.mrb[0].mxu0
      %v2529 = vadd.f32 %v2368, %v2528
      %v2530 = vpop.f32.mrb[0].mxu0
      %v2531 = vpop.f32.mrb[0].mxu0
      %v2532 = vadd.f32 %v2371, %v2531
      %v2533 = vpop.f32.mrb[0].mxu0
      %2534 = vmatprep.mubr.bf16.mxu0 %v1312
      %2535 = vmatmul.mubr.bf16.gmra.mrb[0].mxu0 %v1311
      %v2536 = vpop.f32.mrb[0].mxu0
      %v2537 = vadd.f32 %v2376, %v2536
      %v2538 = vpop.f32.mrb[0].mxu0
      %v2539 = vpop.f32.mrb[0].mxu0
      %v2540 = vadd.f32 %v2379, %v2539
      %v2541 = vpop.f32.mrb[0].mxu0
      %2542 = vmatprep.mubr.bf16.mxu0 %v1321
      %2543 = vmatmul.mubr.bf16.gmra.mrb[0].mxu0 %v1320
      %v2544 = vpop.f32.mrb[0].mxu0
      %v2545 = vadd.f32 %v2384, %v2544
      %v2546 = vpop.f32.mrb[0].mxu0
      %v2547 = vpop.f32.mrb[0].mxu0
      %v2548 = vadd.f32 %v2387, %v2547
      %v2549 = vpop.f32.mrb[0].mxu0
      %2550 = vmatprep.mubr.bf16.mxu0 %v1330
      %2551 = vmatmul.mubr.bf16.gmra.mrb[0].mxu0 %v1329
      %v2552 = vpop.f32.mrb[0].mxu0
      %v2553 = vadd.f32 %v2392, %v2552
      %v2554 = vpop.f32.mrb[0].mxu0
      %v2555 = vpop.f32.mrb[0].mxu0
      %v2556 = vadd.f32 %v2395, %v2555
      %v2557 = vpop.f32.mrb[0].mxu0
      %2558 = vmatprep.mubr.bf16.mxu0 %v1339
      %2559 = vmatmul.mubr.bf16.gmra.mrb[0].mxu0 %v1338
      %v2560 = vpop.f32.mrb[0].mxu0
      %v2561 = vadd.f32 %v2400, %v2560
      %v2562 = vpop.f32.mrb[0].mxu0
      %v2563 = vpop.f32.mrb[0].mxu0
      %v2564 = vadd.f32 %v2403, %v2563
      %v2565 = vpop.f32.mrb[0].mxu0
      %2566 = vmatprep.mubr.bf16.mxu0 %v1348
      %2567 = vmatmul.mubr.bf16.gmra.mrb[0].mxu0 %v1347
      %v2568 = vpop.f32.mrb[0].mxu0
      %v2569 = vadd.f32 %v2408, %v2568
      %v2570 = vpop.f32.mrb[0].mxu0
      %v2571 = vpop.f32.mrb[0].mxu0
      %v2572 = vadd.f32 %v2411, %v2571
      %v2573 = vpop.f32.mrb[0].mxu0
      %2574 = vmatprep.mubr.bf16.mxu0 %v1357
      %2575 = vmatmul.mubr.bf16.gmra.mrb[0].mxu0 %v1356
      %v2576 = vpop.f32.mrb[0].mxu0
      %v2577 = vadd.f32 %v2416, %v2576
      %v2578 = vpop.f32.mrb[0].mxu0
      %v2579 = vpop.f32.mrb[0].mxu0
      %v2580 = vadd.f32 %v2419, %v2579
      %v2581 = vpop.f32.mrb[0].mxu0
      %2582 = vmatprep.mubr.bf16.mxu0 %v1366
      %2583 = vmatmul.mubr.bf16.gmra.mrb[0].mxu0 %v1365
      %v2584 = vpop.f32.mrb[0].mxu0
      %v2585 = vadd.f32 %v2424, %v2584
      %v2586 = vpop.f32.mrb[0].mxu0
      %v2587 = vpop.f32.mrb[0].mxu0
      %v2588 = vadd.f32 %v2427, %v2587
      %v2589 = vpop.f32.mrb[0].mxu0
      %2590 = vmatprep.mubr.bf16.mxu0 %v1375
      %2591 = vmatmul.mubr.bf16.gmra.mrb[0].mxu0 %v1374
      %v2592 = vpop.f32.mrb[0].mxu0
      %v2593 = vadd.f32 %v2432, %v2592
      %v2594 = vpop.f32.mrb[0].mxu0
      %v2595 = vpop.f32.mrb[0].mxu0
      %v2596 = vadd.f32 %v2435, %v2595
      %v2597 = vpop.f32.mrb[0].mxu0
      %2598 = vmatprep.mubr.bf16.mxu0 %v1384
      %2599 = vmatmul.mubr.bf16.gmra.mrb[0].mxu0 %v1383
      %v2600 = vpop.f32.mrb[0].mxu0
      %v2601 = vadd.f32 %v2440, %v2600
      %v2602 = vpop.f32.mrb[0].mxu0
      %v2603 = vpop.f32.mrb[0].mxu0
      %v2604 = vadd.f32 %v2443, %v2603
      %v2605 = vpop.f32.mrb[0].mxu0
      %2606 = vmatprep.mubr.bf16.mxu0 %v1393
      %2607 = vmatmul.mubr.bf16.gmra.mrb[0].mxu0 %v1392
      %v2608 = vpop.f32.mrb[0].mxu0
      %v2609 = vadd.f32 %v2448, %v2608
      %v2610 = vpop.f32.mrb[0].mxu0
      %v2611 = vpop.f32.mrb[0].mxu0
      %v2612 = vadd.f32 %v2451, %v2611
      %v2613 = vpop.f32.mrb[0].mxu0
      %2614 = vdwg.mxu0
      %2615 = vmatprep.subr.bf16.mxu0 0
      %2616 = vmatpush1.bf16.msra.mxu0 %v1891
      %2617 = vmatprep.subr.bf16.mxu0 0
      %2618 = vmatpush1.bf16.msra.mxu0 %v1892
      %2619 = vmatprep.subr.bf16.mxu0 0
      %2620 = vmatpush1.bf16.msra.mxu0 %v1893
      %2621 = vmatprep.subr.bf16.mxu0 0
      %2622 = vmatpush1.bf16.msra.mxu0 %v1894
      %2623 = vmatprep.subr.bf16.mxu0 0
      %2624 = vmatpush1.bf16.msra.mxu0 %v1895
      %2625 = vmatprep.subr.bf16.mxu0 0
      %2626 = vmatpush1.bf16.msra.mxu0 %v1896
      %2627 = vmatprep.subr.bf16.mxu0 0
      %2628 = vmatpush1.bf16.msra.mxu0 %v1897
      %2629 = vmatprep.subr.bf16.mxu0 0
      %2630 = vmatpush1.bf16.msra.mxu0 %v1898
      %2631 = vmatprep.subr.bf16.mxu0 0
      %2632 = vmatpush1.bf16.msra.mxu0 0
      %2633 = vmatprep.subr.bf16.mxu0 0
      %2634 = vmatpush1.bf16.msra.mxu0 0
      %2635 = vmatprep.subr.bf16.mxu0 0
      %2636 = vmatpush1.bf16.msra.mxu0 0
      %2637 = vmatprep.subr.bf16.mxu0 0
      %2638 = vmatpush1.bf16.msra.mxu0 0
      %2639 = vmatprep.subr.bf16.mxu0 0
      %2640 = vmatpush1.bf16.msra.mxu0 0
      %2641 = vmatprep.subr.bf16.mxu0 0
      %2642 = vmatpush1.bf16.msra.mxu0 0
      %2643 = vmatprep.subr.bf16.mxu0 0
      %2644 = vmatpush1.bf16.msra.mxu0 0
      %2645 = vmatprep.subr.bf16.mxu0 0
      %2646 = vmatpush1.bf16.msra.mxu0 0
      %2647 = vmatprep.mubr.bf16.mxu0 0
      %2648 = vmatmul.mubr.bf16.gmra.mrb[0].mxu0 %v1259
      %v2649 = vpop.f32.mrb[0].mxu0
      %v2650 = vadd.f32 %v2489, %v2649
      %v2651 = vpop.f32.mrb[0].mxu0
      %v2652 = vpop.f32.mrb[0].mxu0
      %v2653 = vadd.f32 %v2492, %v2652
      %v2654 = vpop.f32.mrb[0].mxu0
      %2655 = vmatprep.mubr.bf16.mxu0 0
      %2656 = vmatmul.mubr.bf16.gmra.mrb[0].mxu0 %v1268
      %v2657 = vpop.f32.mrb[0].mxu0
      %v2658 = vadd.f32 %v2497, %v2657
      %v2659 = vpop.f32.mrb[0].mxu0
      %v2660 = vpop.f32.mrb[0].mxu0
      %v2661 = vadd.f32 %v2500, %v2660
      %v2662 = vpop.f32.mrb[0].mxu0
      %2663 = vmatprep.mubr.bf16.mxu0 0
      %2664 = vmatmul.mubr.bf16.gmra.mrb[0].mxu0 %v1277
      %v2665 = vpop.f32.mrb[0].mxu0
      %v2666 = vadd.f32 %v2505, %v2665
      %v2667 = vpop.f32.mrb[0].mxu0
      %v2668 = vpop.f32.mrb[0].mxu0
      %v2669 = vadd.f32 %v2508, %v2668
      %v2670 = vpop.f32.mrb[0].mxu0
      %2671 = vmatprep.mubr.bf16.mxu0 0
      %2672 = vmatmul.mubr.bf16.gmra.mrb[0].mxu0 %v1286
      %v2673 = vpop.f32.mrb[0].mxu0
      %v2674 = vadd.f32 %v2513, %v2673
      %v2675 = vpop.f32.mrb[0].mxu0
      %v2676 = vpop.f32.mrb[0].mxu0
      %v2677 = vadd.f32 %v2516, %v2676
      %v2678 = vpop.f32.mrb[0].mxu0
      %2679 = vmatprep.mubr.bf16.mxu0 0
      %2680 = vmatmul.mubr.bf16.gmra.mrb[0].mxu0 %v1295
      %v2681 = vpop.f32.mrb[0].mxu0
      %v2682 = vadd.f32 %v2521, %v2681
      %v2683 = vpop.f32.mrb[0].mxu0
      %v2684 = vpop.f32.mrb[0].mxu0
      %v2685 = vadd.f32 %v2524, %v2684
      %v2686 = vpop.f32.mrb[0].mxu0
      %2687 = vmatprep.mubr.bf16.mxu0 0
      %2688 = vmatmul.mubr.bf16.gmra.mrb[0].mxu0 %v1304
      %v2689 = vpop.f32.mrb[0].mxu0
      %v2690 = vadd.f32 %v2529, %v2689
      %v2691 = vpop.f32.mrb[0].mxu0
      %v2692 = vpop.f32.mrb[0].mxu0
      %v2693 = vadd.f32 %v2532, %v2692
      %v2694 = vpop.f32.mrb[0].mxu0
      %2695 = vmatprep.mubr.bf16.mxu0 0
      %2696 = vmatmul.mubr.bf16.gmra.mrb[0].mxu0 %v1313
      %v2697 = vpop.f32.mrb[0].mxu0
      %v2698 = vadd.f32 %v2537, %v2697
      %v2699 = vpop.f32.mrb[0].mxu0
      %v2700 = vpop.f32.mrb[0].mxu0
      %v2701 = vadd.f32 %v2540, %v2700
      %v2702 = vpop.f32.mrb[0].mxu0
      %2703 = vmatprep.mubr.bf16.mxu0 0
      %2704 = vmatmul.mubr.bf16.gmra.mrb[0].mxu0 %v1322
      %v2705 = vpop.f32.mrb[0].mxu0
      %v2706 = vadd.f32 %v2545, %v2705
      %v2707 = vpop.f32.mrb[0].mxu0
      %v2708 = vpop.f32.mrb[0].mxu0
      %v2709 = vadd.f32 %v2548, %v2708
      %v2710 = vpop.f32.mrb[0].mxu0
      %2711 = vmatprep.mubr.bf16.mxu0 0
      %2712 = vmatmul.mubr.bf16.gmra.mrb[0].mxu0 %v1331
      %v2713 = vpop.f32.mrb[0].mxu0
      %v2714 = vadd.f32 %v2553, %v2713
      %v2715 = vpop.f32.mrb[0].mxu0
      %v2716 = vpop.f32.mrb[0].mxu0
      %v2717 = vadd.f32 %v2556, %v2716
      %v2718 = vpop.f32.mrb[0].mxu0
      %2719 = vmatprep.mubr.bf16.mxu0 0
      %2720 = vmatmul.mubr.bf16.gmra.mrb[0].mxu0 %v1340
      %v2721 = vpop.f32.mrb[0].mxu0
      %v2722 = vadd.f32 %v2561, %v2721
      %v2723 = vpop.f32.mrb[0].mxu0
      %v2724 = vpop.f32.mrb[0].mxu0
      %v2725 = vadd.f32 %v2564, %v2724
      %v2726 = vpop.f32.mrb[0].mxu0
      %2727 = vmatprep.mubr.bf16.mxu0 0
      %2728 = vmatmul.mubr.bf16.gmra.mrb[0].mxu0 %v1349
      %v2729 = vpop.f32.mrb[0].mxu0
      %v2730 = vadd.f32 %v2569, %v2729
      %v2731 = vpop.f32.mrb[0].mxu0
      %v2732 = vpop.f32.mrb[0].mxu0
      %v2733 = vadd.f32 %v2572, %v2732
      %v2734 = vpop.f32.mrb[0].mxu0
      %2735 = vmatprep.mubr.bf16.mxu0 0
      %2736 = vmatmul.mubr.bf16.gmra.mrb[0].mxu0 %v1358
      %v2737 = vpop.f32.mrb[0].mxu0
      %v2738 = vadd.f32 %v2577, %v2737
      %v2739 = vpop.f32.mrb[0].mxu0
      %v2740 = vpop.f32.mrb[0].mxu0
      %v2741 = vadd.f32 %v2580, %v2740
      %v2742 = vpop.f32.mrb[0].mxu0
      %2743 = vmatprep.mubr.bf16.mxu0 0
      %2744 = vmatmul.mubr.bf16.gmra.mrb[0].mxu0 %v1367
      %v2745 = vpop.f32.mrb[0].mxu0
      %v2746 = vadd.f32 %v2585, %v2745
      %v2747 = vpop.f32.mrb[0].mxu0
      %v2748 = vpop.f32.mrb[0].mxu0
      %v2749 = vadd.f32 %v2588, %v2748
      %v2750 = vpop.f32.mrb[0].mxu0
      %2751 = vmatprep.mubr.bf16.mxu0 0
      %2752 = vmatmul.mubr.bf16.gmra.mrb[0].mxu0 %v1376
      %v2753 = vpop.f32.mrb[0].mxu0
      %v2754 = vadd.f32 %v2593, %v2753
      %v2755 = vpop.f32.mrb[0].mxu0
      %v2756 = vpop.f32.mrb[0].mxu0
      %v2757 = vadd.f32 %v2596, %v2756
      %v2758 = vpop.f32.mrb[0].mxu0
      %2759 = vmatprep.mubr.bf16.mxu0 0
      %2760 = vmatmul.mubr.bf16.gmra.mrb[0].mxu0 %v1385
      %v2761 = vpop.f32.mrb[0].mxu0
      %v2762 = vadd.f32 %v2601, %v2761
      %v2763 = vpop.f32.mrb[0].mxu0
      %v2764 = vpop.f32.mrb[0].mxu0
      %v2765 = vadd.f32 %v2604, %v2764
      %v2766 = vpop.f32.mrb[0].mxu0
      %2767 = vmatprep.mubr.bf16.mxu0 0
      %2768 = vmatmul.mubr.bf16.gmra.mrb[0].mxu0 %v1394
      %v2769 = vpop.f32.mrb[0].mxu0
      %v2770 = vadd.f32 %v2609, %v2769
      %v2771 = vpop.f32.mrb[0].mxu0
      %v2772 = vpop.f32.mrb[0].mxu0
      %v2773 = vadd.f32 %v2612, %v2772
      %v2774 = vpop.f32.mrb[0].mxu0
      %2775 = vdwg.mxu0
      %v2776 = vpack.c.bf16 %v2653, %v2650
      %v2777 = vpack.c.bf16 %v2661, %v2658
      %v2778 = vpack.c.bf16 %v2669, %v2666
      %v2779 = vpack.c.bf16 %v2677, %v2674
      %v2780 = vpack.c.bf16 %v2685, %v2682
      %v2781 = vpack.c.bf16 %v2693, %v2690
      %v2782 = vpack.c.bf16 %v2701, %v2698
      %v2783 = vpack.c.bf16 %v2709, %v2706
      %v2784 = vpack.c.bf16 %v2717, %v2714
      %v2785 = vpack.c.bf16 %v2725, %v2722
      %v2786 = vpack.c.bf16 %v2733, %v2730
      %v2787 = vpack.c.bf16 %v2741, %v2738
      %v2788 = vpack.c.bf16 %v2749, %v2746
      %v2789 = vpack.c.bf16 %v2757, %v2754
      %v2790 = vpack.c.bf16 %v2765, %v2762
      %v2791 = vpack.c.bf16 %v2773, %v2770
      %v2808 = vunpack.c.l.b16 %v2776
      %v2809 = vunpack.c.h.b16 %v2776
      %v2810 = vunpack.c.l.b16 %v2777
      %v2811 = vunpack.c.h.b16 %v2777
      %v2812 = vunpack.c.l.b16 %v2778
      %v2813 = vunpack.c.h.b16 %v2778
      %v2814 = vunpack.c.l.b16 %v2779
      %v2815 = vunpack.c.h.b16 %v2779
      %v2816 = vunpack.c.l.b16 %v2780
      %v2817 = vunpack.c.h.b16 %v2780
      %v2818 = vunpack.c.l.b16 %v2781
      %v2819 = vunpack.c.h.b16 %v2781
      %v2820 = vunpack.c.l.b16 %v2782
      %v2821 = vunpack.c.h.b16 %v2782
      %v2822 = vunpack.c.l.b16 %v2783
      %v2823 = vunpack.c.h.b16 %v2783
      %v2824 = vunpack.c.l.b16 %v2784
      %v2825 = vunpack.c.h.b16 %v2784
      %v2826 = vunpack.c.l.b16 %v2785
      %v2827 = vunpack.c.h.b16 %v2785
      %v2828 = vunpack.c.l.b16 %v2786
      %v2829 = vunpack.c.h.b16 %v2786
      %v2830 = vunpack.c.l.b16 %v2787
      %v2831 = vunpack.c.h.b16 %v2787
      %v2832 = vunpack.c.l.b16 %v2788
      %v2833 = vunpack.c.h.b16 %v2788
      %v2834 = vunpack.c.l.b16 %v2789
      %v2835 = vunpack.c.h.b16 %v2789
      %v2836 = vunpack.c.l.b16 %v2790
      %v2837 = vunpack.c.h.b16 %v2790
      %v2838 = vunpack.c.l.b16 %v2791
      %v2839 = vunpack.c.h.b16 %v2791
      %v2840 = vpack.c.b16 %v2808, %v2808
      %v2841 = vpack.c.b16 %v2809, %v2809
      %v2842 = vpack.c.b16 %v2810, %v2810
      %v2843 = vpack.c.b16 %v2811, %v2811
      %v2844 = vpack.c.b16 %v2812, %v2812
      %v2845 = vpack.c.b16 %v2813, %v2813
      %v2846 = vpack.c.b16 %v2814, %v2814
      %v2847 = vpack.c.b16 %v2815, %v2815
      %v2848 = vpack.c.b16 %v2816, %v2816
      %v2849 = vpack.c.b16 %v2817, %v2817
      %v2850 = vpack.c.b16 %v2818, %v2818
      %v2851 = vpack.c.b16 %v2819, %v2819
      %v2852 = vpack.c.b16 %v2820, %v2820
      %v2853 = vpack.c.b16 %v2821, %v2821
      %v2854 = vpack.c.b16 %v2822, %v2822
      %v2855 = vpack.c.b16 %v2823, %v2823
      %v2856 = vpack.c.b16 %v2824, %v2824
      %v2857 = vpack.c.b16 %v2825, %v2825
      %v2858 = vpack.c.b16 %v2826, %v2826
      %v2859 = vpack.c.b16 %v2827, %v2827
      %v2860 = vpack.c.b16 %v2828, %v2828
      %v2861 = vpack.c.b16 %v2829, %v2829
      %v2862 = vpack.c.b16 %v2830, %v2830
      %v2863 = vpack.c.b16 %v2831, %v2831
      %v2864 = vpack.c.b16 %v2832, %v2832
      %v2865 = vpack.c.b16 %v2833, %v2833
      %v2866 = vpack.c.b16 %v2834, %v2834
      %v2867 = vpack.c.b16 %v2835, %v2835
      %v2868 = vpack.c.b16 %v2836, %v2836
      %v2869 = vpack.c.b16 %v2837, %v2837
      %v2870 = vpack.c.b16 %v2838, %v2838
      %v2871 = vpack.c.b16 %v2839, %v2839
      %2904 = vst [vmem:[%s493] sm:$0xf] %v2840
      %2905 = vst [vmem:[%s493 + $0x4] sm:$0xf] %v2841
      %2906 = vst [vmem:[%s493 + $0x8] sm:$0xf] %v2842
      %2907 = vst [vmem:[%s493 + $0xc] sm:$0xf] %v2843
      %2908 = vst [vmem:[%s493 + $0x10] sm:$0xf] %v2844
      %2909 = vst [vmem:[%s493 + $0x14] sm:$0xf] %v2845
      %2910 = vst [vmem:[%s493 + $0x18] sm:$0xf] %v2846
      %2911 = vst [vmem:[%s493 + $0x1c] sm:$0xf] %v2847
      %2912 = vst [vmem:[%s493 + $0x20] sm:$0xf] %v2848
      %2913 = vst [vmem:[%s493 + $0x24] sm:$0xf] %v2849
      %2914 = vst [vmem:[%s493 + $0x28] sm:$0xf] %v2850
      %2915 = vst [vmem:[%s493 + $0x2c] sm:$0xf] %v2851
      %2916 = vst [vmem:[%s493 + $0x30] sm:$0xf] %v2852
      %2917 = vst [vmem:[%s493 + $0x34] sm:$0xf] %v2853
      %2918 = vst [vmem:[%s493 + $0x38] sm:$0xf] %v2854
      %2919 = vst [vmem:[%s493 + $0x3c] sm:$0xf] %v2855
      %2920 = vst [vmem:[%s493 + $0x40] sm:$0xf] %v2856
      %2921 = vst [vmem:[%s493 + $0x44] sm:$0xf] %v2857
      %2922 = vst [vmem:[%s493 + $0x48] sm:$0xf] %v2858
      %2923 = vst [vmem:[%s493 + $0x4c] sm:$0xf] %v2859
      %2924 = vst [vmem:[%s493 + $0x50] sm:$0xf] %v2860
      %2925 = vst [vmem:[%s493 + $0x54] sm:$0xf] %v2861
      %2926 = vst [vmem:[%s493 + $0x58] sm:$0xf] %v2862
      %2927 = vst [vmem:[%s493 + $0x5c] sm:$0xf] %v2863
      %2928 = vst [vmem:[%s493 + $0x60] sm:$0xf] %v2864
      %2929 = vst [vmem:[%s493 + $0x64] sm:$0xf] %v2865
      %2930 = vst [vmem:[%s493 + $0x68] sm:$0xf] %v2866
      %2931 = vst [vmem:[%s493 + $0x6c] sm:$0xf] %v2867
      %2932 = vst [vmem:[%s493 + $0x70] sm:$0xf] %v2868
      %2933 = vst [vmem:[%s493 + $0x74] sm:$0xf] %v2869
      %2934 = vst [vmem:[%s493 + $0x78] sm:$0xf] %v2870
      %2935 = vst [vmem:[%s493 + $0x7c] sm:$0xf] %v2871
      %v2936 = vadd.f32 %v2650, %v2653
      %v2937 = vadd.f32 %v2936, %v2658
      %v2938 = vadd.f32 %v2937, %v2661
      %v2939 = vadd.f32 %v2938, %v2666
      %v2940 = vadd.f32 %v2939, %v2669
      %v2941 = vadd.f32 %v2940, %v2674
      %v2942 = vadd.f32 %v2941, %v2677
      %v2943 = vadd.f32 %v2942, %v2682
      %v2944 = vadd.f32 %v2943, %v2685
      %v2945 = vadd.f32 %v2944, %v2690
      %v2946 = vadd.f32 %v2945, %v2693
      %v2947 = vadd.f32 %v2946, %v2698
      %v2948 = vadd.f32 %v2947, %v2701
      %v2949 = vadd.f32 %v2948, %v2706
      %v2950 = vadd.f32 %v2949, %v2709
      %v2951 = vadd.f32 %v2950, %v2714
      %v2952 = vadd.f32 %v2951, %v2717
      %v2953 = vadd.f32 %v2952, %v2722
      %v2954 = vadd.f32 %v2953, %v2725
      %v2955 = vadd.f32 %v2954, %v2730
      %v2956 = vadd.f32 %v2955, %v2733
      %v2957 = vadd.f32 %v2956, %v2738
      %v2958 = vadd.f32 %v2957, %v2741
      %v2959 = vadd.f32 %v2958, %v2746
      %v2960 = vadd.f32 %v2959, %v2749
      %v2961 = vadd.f32 %v2960, %v2754
      %v2962 = vadd.f32 %v2961, %v2757
      %v2963 = vadd.f32 %v2962, %v2762
      %v2964 = vadd.f32 %v2963, %v2765
      %v2965 = vadd.f32 %v2964, %v2770
      %v2966 = vadd.f32 %v2965, %v2773
      %v2967 = vrot.slane %v2966, 4
      %v2968 = vadd.f32 %v2966, %v2967
      %v2969 = vrot.slane %v2968, 2
      %v2970 = vadd.f32 %v2968, %v2969
      %v2971 = vrot.slane %v2970, 1
      %v2972 = vadd.f32 %v2970, %v2971
      %2973 = vst [vmem:[%s500] sm:$0x1] %v2972
      %v2974 = vmul.f32 %v2650, %v2650
      %v2975 = vmul.f32 %v2653, %v2653
      %v2976 = vmul.f32 %v2658, %v2658
      %v2977 = vmul.f32 %v2661, %v2661
      %v2978 = vmul.f32 %v2666, %v2666
      %v2979 = vmul.f32 %v2669, %v2669
      %v2980 = vmul.f32 %v2674, %v2674
      %v2981 = vmul.f32 %v2677, %v2677
      %v2982 = vmul.f32 %v2682, %v2682
      %v2983 = vmul.f32 %v2685, %v2685
      %v2984 = vmul.f32 %v2690, %v2690
      %v2985 = vmul.f32 %v2693, %v2693
      %v2986 = vmul.f32 %v2698, %v2698
      %v2987 = vmul.f32 %v2701, %v2701
      %v2988 = vmul.f32 %v2706, %v2706
      %v2989 = vmul.f32 %v2709, %v2709
      %v2990 = vmul.f32 %v2714, %v2714
      %v2991 = vmul.f32 %v2717, %v2717
      %v2992 = vmul.f32 %v2722, %v2722
      %v2993 = vmul.f32 %v2725, %v2725
      %v2994 = vmul.f32 %v2730, %v2730
      %v2995 = vmul.f32 %v2733, %v2733
      %v2996 = vmul.f32 %v2738, %v2738
      %v2997 = vmul.f32 %v2741, %v2741
      %v2998 = vmul.f32 %v2746, %v2746
      %v2999 = vmul.f32 %v2749, %v2749
      %v3000 = vmul.f32 %v2754, %v2754
      %v3001 = vmul.f32 %v2757, %v2757
      %v3002 = vmul.f32 %v2762, %v2762
      %v3003 = vmul.f32 %v2765, %v2765
      %v3004 = vmul.f32 %v2770, %v2770
      %v3005 = vmul.f32 %v2773, %v2773
      %v3006 = vadd.f32 %v2974, %v2975
      %v3007 = vadd.f32 %v3006, %v2976
      %v3008 = vadd.f32 %v3007, %v2977
      %v3009 = vadd.f32 %v3008, %v2978
      %v3010 = vadd.f32 %v3009, %v2979
      %v3011 = vadd.f32 %v3010, %v2980
      %v3012 = vadd.f32 %v3011, %v2981
      %v3013 = vadd.f32 %v3012, %v2982
      %v3014 = vadd.f32 %v3013, %v2983
      %v3015 = vadd.f32 %v3014, %v2984
      %v3016 = vadd.f32 %v3015, %v2985
      %v3017 = vadd.f32 %v3016, %v2986
      %v3018 = vadd.f32 %v3017, %v2987
      %v3019 = vadd.f32 %v3018, %v2988
      %v3020 = vadd.f32 %v3019, %v2989
      %v3021 = vadd.f32 %v3020, %v2990
      %v3022 = vadd.f32 %v3021, %v2991
      %v3023 = vadd.f32 %v3022, %v2992
      %v3024 = vadd.f32 %v3023, %v2993
      %v3025 = vadd.f32 %v3024, %v2994
      %v3026 = vadd.f32 %v3025, %v2995
      %v3027 = vadd.f32 %v3026, %v2996
      %v3028 = vadd.f32 %v3027, %v2997
      %v3029 = vadd.f32 %v3028, %v2998
      %v3030 = vadd.f32 %v3029, %v2999
      %v3031 = vadd.f32 %v3030, %v3000
      %v3032 = vadd.f32 %v3031, %v3001
      %v3033 = vadd.f32 %v3032, %v3002
      %v3034 = vadd.f32 %v3033, %v3003
      %v3035 = vadd.f32 %v3034, %v3004
      %v3036 = vadd.f32 %v3035, %v3005
      %v3037 = vrot.slane %v3036, 4
      %v3038 = vadd.f32 %v3036, %v3037
      %v3039 = vrot.slane %v3038, 2
      %v3040 = vadd.f32 %v3038, %v3039
      %v3041 = vrot.slane %v3040, 1
      %v3042 = vadd.f32 %v3040, %v3041
      %3043 = vst [vmem:[%s506] sm:$0x1] %v3042
      %s3044 = smul.u32 16, %s25
      %p3045 = scmp.lt.s32.totalorder %s24, 1
      %s3046 = scalar_select %p3045, %s24, 1
      %p3047 = scmp.lt.s32.totalorder %s3044, 15
      %s3048 = scalar_select %p3047, %s3044, 15
      %s3049 = smul.addr %s3048, 2
      %s3050 = smul.addr %s3046, 32
      %s3051 = sadd.s32 %s3049, %s3050
      %s3052 = smul.addr %s3051, 4
      %s3053 = scalar_lea.vmem %s6, %s3052
      %p3054 = scmp.lt.s32.totalorder %s24, 1
      %s3055 = scalar_select %p3054, %s24, 1
      %p3056 = scmp.lt.s32.totalorder %s25, 0
      %s3057 = scalar_select %p3056, %s25, 0
      %s3058 = sadd.s32 %s3057, %s3055
      %s3059 = scalar_lea.vmem %s7, %s3058
      %p3060 = scmp.lt.s32.totalorder %s24, 1
      %s3061 = scalar_select %p3060, %s24, 1
      %p3062 = scmp.lt.s32.totalorder %s25, 0
      %s3063 = scalar_select %p3062, %s25, 0
      %s3064 = sadd.s32 %s3063, %s3061
      %s3065 = scalar_lea.vmem %s8, %s3064
      // Predicated region
      $region61: #{double_conv_forward.3} parent=43 // pred_check
        %p3066 = pneg %p215
      $region62: #{double_conv_forward.3} parent=43 // pred_check_branch
        %3068 = sbr.rel (%p3066) target = $region64
      $region63: #{double_conv_forward.3} parent=43 // pred_region
        %s3069 = smul.u32 16, %s25
      $region64: #{double_conv_forward.3} parent=43 // pred_fallthru
        _
      // Predicated region
      $region65: #{double_conv_forward.3} parent=43 // pred_check
        %p3070 = pneg %p243
      $region66: #{double_conv_forward.3} parent=43 // pred_check_branch
        %3072 = sbr.rel (%p3070) target = $region68
      $region67: #{double_conv_forward.3} parent=43 // pred_region
        _
      $region68: #{double_conv_forward.3} parent=43 // pred_fallthru
        _
      // Predicated region
      $region69: #{double_conv_forward.3} parent=43 // pred_check
        %p3073 = pneg %p271
      $region70: #{double_conv_forward.3} parent=43 // pred_check_branch
        %3075 = sbr.rel (%p3073) target = $region72
      $region71: #{double_conv_forward.3} parent=43 // pred_region
        _
      $region72: #{double_conv_forward.3} parent=43 // pred_fallthru
        _
    $region44: #{double_conv_forward.3} parent=5 // pred_fallthru
      _
    %p3076 = scmp.le.s32.totalorder 2, %s15
    // Predicated region
    $region73: #{double_conv_forward.3} parent=5 // pred_check
      %p3077 = pneg %p3076
    $region74: #{double_conv_forward.3} parent=5 // pred_check_branch
      %3079 = sbr.rel (%p3077) target = $region76
    $region75: #{double_conv_forward.3} parent=5 // pred_region
      %s3080 = ssub.s32 %s15, 2
      // Predicated region
      $region77: #{double_conv_forward.3} parent=75 // pred_check
        %p3081 = pneg %p221
      $region78: #{double_conv_forward.3} parent=75 // pred_check_branch
        %3083 = sbr.rel (%p3081) target = $region80
      $region79: #{double_conv_forward.3} parent=75 // pred_region
        %s3084 = smul.u32 16, %s27
        %p3085 = scmp.lt.s32.totalorder %s26, 1
        %s3086 = scalar_select %p3085, %s26, 1
        %p3087 = scmp.lt.s32.totalorder %s3084, 15
        %s3088 = scalar_select %p3087, %s3084, 15
        %s3089 = smul.addr %s3088, 2
        %s3090 = smul.addr %s3086, 32
        %s3091 = sadd.s32 %s3089, %s3090
        %s3092 = smul.addr %s3091, 4
        %s3093 = scalar_lea.vmem %s6, %s3092
      $region80: #{double_conv_forward.3} parent=75 // pred_fallthru
        _
      // Predicated region
      $region81: #{double_conv_forward.3} parent=75 // pred_check
        %p3094 = pneg %p249
      $region82: #{double_conv_forward.3} parent=75 // pred_check_branch
        %3096 = sbr.rel (%p3094) target = $region84
      $region83: #{double_conv_forward.3} parent=75 // pred_region
        %p3097 = scmp.lt.s32.totalorder %s26, 1
        %s3098 = scalar_select %p3097, %s26, 1
        %p3099 = scmp.lt.s32.totalorder %s27, 0
        %s3100 = scalar_select %p3099, %s27, 0
        %s3101 = sadd.s32 %s3100, %s3098
        %s3102 = scalar_lea.vmem %s7, %s3101
      $region84: #{double_conv_forward.3} parent=75 // pred_fallthru
        _
      // Predicated region
      $region85: #{double_conv_forward.3} parent=75 // pred_check
        %p3103 = pneg %p277
      $region86: #{double_conv_forward.3} parent=75 // pred_check_branch
        %3105 = sbr.rel (%p3103) target = $region88
      $region87: #{double_conv_forward.3} parent=75 // pred_region
        %p3106 = scmp.lt.s32.totalorder %s26, 1
        %s3107 = scalar_select %p3106, %s26, 1
        %p3108 = scmp.lt.s32.totalorder %s27, 0
        %s3109 = scalar_select %p3108, %s27, 0
        %s3110 = sadd.s32 %s3109, %s3107
        %s3111 = scalar_lea.vmem %s8, %s3110
      $region88: #{double_conv_forward.3} parent=75 // pred_fallthru
        _
    $region76: #{double_conv_forward.3} parent=5 // pred_fallthru
      _
  $region6: #{double_conv_forward.3} parent=0 // loop_footer
    %s19 = sadd.s32 1, %s15
  $region7: #{double_conv_forward.3} parent=0 // loop_footer_branch
    %14 = sbr.rel target = $region3
  $region8: #{double_conv_forward.3} parent=0 // loop_exit
    _

// kernel: double_conv_forward.4
$region0: #{double_conv_forward.4}
  #allocation0 [shape = 'u32[]', space=smem, size = 0x4, offset = 0x4, fixed_abs, tag = 'smem constant byte address 0x4 - core index']
  #allocation1 [shape = 'u32[144,128]{1,0:T(1,128)}', space=vmem, size = 0x12000, scoped, tag = 'internal scratch']
  #allocation2 [shape = 'f32[18,18,128]{2,1,0:T(8,128)}', space=vmem, size = 0x36000, scoped, tag = 'scratch operand']
  #allocation3 [shape = 'bf16[256,1152]{1,0:T(16,128)(2,1)}', space=vmem, size = 0x90000, scoped, tag = 'scratch operand']
  %s0 = inlined_call_operand.vmem [shape: f32[1,1,1,128], index: 0, kind: input, shape index: {}]
  %s1 = inlined_call_operand.vmem [shape: f32[1,1,1,128], index: 1, kind: input, shape index: {}]
  %s2 = inlined_call_operand.vmem [shape: bf16[2,16,16,128], index: 2, kind: input, shape index: {}, may-alias: {2,3,4}]
  %s3 = inlined_call_operand.vmem [shape: bf16[2,16,16,128], index: 3, kind: input, shape index: {}, may-alias: {2,3,4}]
  %s4 = inlined_call_operand.vmem [shape: bf16[2,16,16,128], index: 4, kind: input, shape index: {}, may-alias: {2,3,4}]
  %s5 = inlined_call_operand.vmem [shape: bf16[1152,128], index: 5, kind: input, shape index: {}]
  %s6 = inlined_call_operand.vmem [shape: bf16[2,16,16,128], index: 6, kind: output, shape index: {0}]
  %s7 = inlined_call_operand.vmem [shape: f32[2,1,1,128], index: 7, kind: output, shape index: {1}]
  %s8 = inlined_call_operand.vmem [shape: f32[2,1,1,128], index: 8, kind: output, shape index: {2}]
  %9 = xla_tuple %s6, %s7, %s8
  %s10 = sld [smem:[#allocation0]]
  $region89: #{double_conv_forward.4} parent=0
    _
  %s12 = ssub.s32 1, %s10
  %s13 = scalar_select 0, %s12, %s10
  loop: start=0, step=1, limit=4
  $region2: #{double_conv_forward.4} parent=0 // loop_pre_header
    _
  $region3: #{double_conv_forward.4} parent=0 // loop_header
    %s15 = sphi 0, %s19
    %p16 = scmp.ge.s32.totalorder %s15, 4
    %s22 = sphi 0, %s34
    %s23 = sphi 0, %s30
    %s24 = sphi 0, %s22
    %s25 = sphi 0, %s23
    %s26 = sphi 0, %s24
    %s27 = sphi 0, %s25
    %s35 = sphi 0, %s35
    %s37 = sphi 0, %s35
    %s38 = sphi 0, %s37
    %s52 = sphi 0, %s38
    %s56 = sphi 0, %s56
    %s58 = sphi 0, %s56
    %s59 = sphi 0, %s58
    %s73 = sphi 0, %s59
    %s89 = sphi 0, %s91
    %s92 = sphi 0, %s89
    %s93 = sphi 0, %s92
    %s109 = sphi 0, %s93
    %s117 = sphi 0, %s119
    %s120 = sphi 0, %s117
    %s121 = sphi 0, %s120
    %s137 = sphi 0, %s121
    %s153 = sphi 0, %s155
    %s156 = sphi 0, %s153
    %s157 = sphi 0, %s156
    %s173 = sphi 0, %s157
    %s177 = sphi 0, %s177
    %s179 = sphi 0, %s177
    %s180 = sphi 0, %s179
    %s194 = sphi 0, %s180
    %s202 = sphi 0, %s204
    %s205 = sphi 0, %s202
    %s206 = sphi 0, %s205
    %s222 = sphi 0, %s206
    %s230 = sphi 0, %s232
    %s233 = sphi 0, %s230
    %s234 = sphi 0, %s233
    %s250 = sphi 0, %s234
    %s258 = sphi 0, %s260
    %s261 = sphi 0, %s258
    %s262 = sphi 0, %s261
    %s278 = sphi 0, %s262
  $region4: #{double_conv_forward.4} parent=0 // loop_header_branch
    %18 = sbr.rel (%p16) target = $region8
  $region5: #{double_conv_forward.4} parent=0 // loop_body
    %s20 = ssub.s32 %s15, 1
    %s21 = ssub.s32 %s15, 2
    %s28 = sadd.s32 1, %s23
    %p29 = scmp.ge.s32.totalorder %s28, 1
    %s30 = scalar_select %p29, 0, %s28
    %s31 = sadd.s32 1, %s22
    %s32 = scalar_select %p29, %s31, %s22
    %p33 = scmp.ge.s32.totalorder %s32, 2
    %s34 = scalar_select %p33, 0, %s32
    %s36 = sadd.s32 %s35, 1
    %p39 = scmp.eq.s32.totalorder %s15, 1
    %p40 = scmp.ne.s32.totalorder %s35, %s37
    %p41 = scmp.eq.s32.totalorder %s15, 0
    %p42 = por %p40, %p41
    %p43 = scmp.ne.s32.totalorder %s35, %s37
    %p44 = scmp.eq.s32.totalorder %s20, 1
    %p45 = por %p43, %p44
    %p46 = scmp.ne.s32.totalorder %s37, %s38
    %p47 = scmp.eq.s32.totalorder %s20, 0
    %p48 = por %p46, %p47
    %p49 = scmp.ne.s32.totalorder %s37, %s38
    %p50 = scmp.eq.s32.totalorder %s21, 1
    %p51 = por %p49, %p50
    %p53 = scmp.ne.s32.totalorder %s38, %s52
    %p54 = scmp.eq.s32.totalorder %s21, 0
    %p55 = por %p53, %p54
    %s57 = sadd.s32 %s56, 1
    %p60 = scmp.eq.s32.totalorder %s15, 1
    %p61 = scmp.ne.s32.totalorder %s56, %s58
    %p62 = scmp.eq.s32.totalorder %s15, 0
    %p63 = por %p61, %p62
    %p64 = scmp.ne.s32.totalorder %s56, %s58
    %p65 = scmp.eq.s32.totalorder %s20, 1
    %p66 = por %p64, %p65
    %p67 = scmp.ne.s32.totalorder %s58, %s59
    %p68 = scmp.eq.s32.totalorder %s20, 0
    %p69 = por %p67, %p68
    %p70 = scmp.ne.s32.totalorder %s58, %s59
    %p71 = scmp.eq.s32.totalorder %s21, 1
    %p72 = por %p70, %p71
    %p74 = scmp.ne.s32.totalorder %s59, %s73
    %p75 = scmp.eq.s32.totalorder %s21, 0
    %p76 = por %p74, %p75
    %s77 = smul.u32 %s23, 16
    %s78 = ssub.s32 %s77, 1
    %p79 = scmp.gt.s32.totalorder %s78, 0
    %s80 = scalar_select %p79, %s78, 0
    %s81 = smul.u32 %s30, 16
    %s82 = ssub.s32 %s81, 1
    %p83 = scmp.gt.s32.totalorder %s82, 0
    %s84 = scalar_select %p83, %s82, 0
    %s85 = ssub.s32 %s22, %s34
    %s86 = ssub.s32 %s80, %s84
    %s87 = sor.u32 %s85, %s86
    %p88 = scmp.eq.s32.totalorder %s87, 0
    %s90 = sadd.s32 %s89, 1
    %s91 = scalar_select %p88, %s89, %s90
    %p94 = pneg %p88
    %p95 = scmp.eq.s32.totalorder %s15, 1
    %p96 = por %p94, %p95
    %p97 = scmp.ne.s32.totalorder %s89, %s92
    %p98 = scmp.eq.s32.totalorder %s15, 0
    %p99 = por %p97, %p98
    %p100 = scmp.ne.s32.totalorder %s89, %s92
    %p101 = scmp.eq.s32.totalorder %s20, 1
    %p102 = por %p100, %p101
    %p103 = scmp.ne.s32.totalorder %s92, %s93
    %p104 = scmp.eq.s32.totalorder %s20, 0
    %p105 = por %p103, %p104
    %p106 = scmp.ne.s32.totalorder %s92, %s93
    %p107 = scmp.eq.s32.totalorder %s21, 1
    %p108 = por %p106, %p107
    %p110 = scmp.ne.s32.totalorder %s93, %s109
    %p111 = scmp.eq.s32.totalorder %s21, 0
    %p112 = por %p110, %p111
    %s113 = ssub.s32 %s22, %s34
    %s114 = ssub.s32 %s23, %s30
    %s115 = sor.u32 %s113, %s114
    %p116 = scmp.eq.s32.totalorder %s115, 0
    %s118 = sadd.s32 %s117, 1
    %s119 = scalar_select %p116, %s117, %s118
    %p122 = pneg %p116
    %p123 = scmp.eq.s32.totalorder %s15, 1
    %p124 = por %p122, %p123
    %p125 = scmp.ne.s32.totalorder %s117, %s120
    %p126 = scmp.eq.s32.totalorder %s15, 0
    %p127 = por %p125, %p126
    %p128 = scmp.ne.s32.totalorder %s117, %s120
    %p129 = scmp.eq.s32.totalorder %s20, 1
    %p130 = por %p128, %p129
    %p131 = scmp.ne.s32.totalorder %s120, %s121
    %p132 = scmp.eq.s32.totalorder %s20, 0
    %p133 = por %p131, %p132
    %p134 = scmp.ne.s32.totalorder %s120, %s121
    %p135 = scmp.eq.s32.totalorder %s21, 1
    %p136 = por %p134, %p135
    %p138 = scmp.ne.s32.totalorder %s121, %s137
    %p139 = scmp.eq.s32.totalorder %s21, 0
    %p140 = por %p138, %p139
    %s141 = smul.u32 %s23, 16
    %s142 = sadd.s32 %s141, 16
    %p143 = scmp.lt.s32.totalorder %s142, 15
    %s144 = scalar_select %p143, %s142, 15
    %s145 = smul.u32 %s30, 16
    %s146 = sadd.s32 %s145, 16
    %p147 = scmp.lt.s32.totalorder %s146, 15
    %s148 = scalar_select %p147, %s146, 15
    %s149 = ssub.s32 %s22, %s34
    %s150 = ssub.s32 %s144, %s148
    %s151 = sor.u32 %s149, %s150
    %p152 = scmp.eq.s32.totalorder %s151, 0
    %s154 = sadd.s32 %s153, 1
    %s155 = scalar_select %p152, %s153, %s154
    %p158 = pneg %p152
    %p159 = scmp.eq.s32.totalorder %s15, 1
    %p160 = por %p158, %p159
    %p161 = scmp.ne.s32.totalorder %s153, %s156
    %p162 = scmp.eq.s32.totalorder %s15, 0
    %p163 = por %p161, %p162
    %p164 = scmp.ne.s32.totalorder %s153, %s156
    %p165 = scmp.eq.s32.totalorder %s20, 1
    %p166 = por %p164, %p165
    %p167 = scmp.ne.s32.totalorder %s156, %s157
    %p168 = scmp.eq.s32.totalorder %s20, 0
    %p169 = por %p167, %p168
    %p170 = scmp.ne.s32.totalorder %s156, %s157
    %p171 = scmp.eq.s32.totalorder %s21, 1
    %p172 = por %p170, %p171
    %p174 = scmp.ne.s32.totalorder %s157, %s173
    %p175 = scmp.eq.s32.totalorder %s21, 0
    %p176 = por %p174, %p175
    %s178 = sadd.s32 %s177, 1
    %p181 = scmp.eq.s32.totalorder %s15, 1
    %p182 = scmp.ne.s32.totalorder %s177, %s179
    %p183 = scmp.eq.s32.totalorder %s15, 0
    %p184 = por %p182, %p183
    %p185 = scmp.ne.s32.totalorder %s177, %s179
    %p186 = scmp.eq.s32.totalorder %s20, 1
    %p187 = por %p185, %p186
    %p188 = scmp.ne.s32.totalorder %s179, %s180
    %p189 = scmp.eq.s32.totalorder %s20, 0
    %p190 = por %p188, %p189
    %p191 = scmp.ne.s32.totalorder %s179, %s180
    %p192 = scmp.eq.s32.totalorder %s21, 1
    %p193 = por %p191, %p192
    %p195 = scmp.ne.s32.totalorder %s180, %s194
    %p196 = scmp.eq.s32.totalorder %s21, 0
    %p197 = por %p195, %p196
    %s198 = ssub.s32 %s22, %s34
    %s199 = ssub.s32 %s23, %s30
    %s200 = sor.u32 %s198, %s199
    %p201 = scmp.eq.s32.totalorder %s200, 0
    %s203 = sadd.s32 %s202, 1
    %s204 = scalar_select %p201, %s202, %s203
    %p207 = pneg %p201
    %p208 = scmp.eq.s32.totalorder %s15, 1
    %p209 = por %p207, %p208
    %p210 = scmp.ne.s32.totalorder %s202, %s205
    %p211 = scmp.eq.s32.totalorder %s15, 0
    %p212 = por %p210, %p211
    %p213 = scmp.ne.s32.totalorder %s202, %s205
    %p214 = scmp.eq.s32.totalorder %s20, 1
    %p215 = por %p213, %p214
    %p216 = scmp.ne.s32.totalorder %s205, %s206
    %p217 = scmp.eq.s32.totalorder %s20, 0
    %p218 = por %p216, %p217
    %p219 = scmp.ne.s32.totalorder %s205, %s206
    %p220 = scmp.eq.s32.totalorder %s21, 1
    %p221 = por %p219, %p220
    %p223 = scmp.ne.s32.totalorder %s206, %s222
    %p224 = scmp.eq.s32.totalorder %s21, 0
    %p225 = por %p223, %p224
    %s226 = ssub.s32 %s22, %s34
    %s227 = ssub.s32 %s23, %s30
    %s228 = sor.u32 %s226, %s227
    %p229 = scmp.eq.s32.totalorder %s228, 0
    %s231 = sadd.s32 %s230, 1
    %s232 = scalar_select %p229, %s230, %s231
    %p235 = pneg %p229
    %p236 = scmp.eq.s32.totalorder %s15, 1
    %p237 = por %p235, %p236
    %p238 = scmp.ne.s32.totalorder %s230, %s233
    %p239 = scmp.eq.s32.totalorder %s15, 0
    %p240 = por %p238, %p239
    %p241 = scmp.ne.s32.totalorder %s230, %s233
    %p242 = scmp.eq.s32.totalorder %s20, 1
    %p243 = por %p241, %p242
    %p244 = scmp.ne.s32.totalorder %s233, %s234
    %p245 = scmp.eq.s32.totalorder %s20, 0
    %p246 = por %p244, %p245
    %p247 = scmp.ne.s32.totalorder %s233, %s234
    %p248 = scmp.eq.s32.totalorder %s21, 1
    %p249 = por %p247, %p248
    %p251 = scmp.ne.s32.totalorder %s234, %s250
    %p252 = scmp.eq.s32.totalorder %s21, 0
    %p253 = por %p251, %p252
    %s254 = ssub.s32 %s22, %s34
    %s255 = ssub.s32 %s23, %s30
    %s256 = sor.u32 %s254, %s255
    %p257 = scmp.eq.s32.totalorder %s256, 0
    %s259 = sadd.s32 %s258, 1
    %s260 = scalar_select %p257, %s258, %s259
    %p263 = pneg %p257
    %p264 = scmp.eq.s32.totalorder %s15, 1
    %p265 = por %p263, %p264
    %p266 = scmp.ne.s32.totalorder %s258, %s261
    %p267 = scmp.eq.s32.totalorder %s15, 0
    %p268 = por %p266, %p267
    %p269 = scmp.ne.s32.totalorder %s258, %s261
    %p270 = scmp.eq.s32.totalorder %s20, 1
    %p271 = por %p269, %p270
    %p272 = scmp.ne.s32.totalorder %s261, %s262
    %p273 = scmp.eq.s32.totalorder %s20, 0
    %p274 = por %p272, %p273
    %p275 = scmp.ne.s32.totalorder %s261, %s262
    %p276 = scmp.eq.s32.totalorder %s21, 1
    %p277 = por %p275, %p276
    %p279 = scmp.ne.s32.totalorder %s262, %s278
    %p280 = scmp.eq.s32.totalorder %s21, 0
    %p281 = por %p279, %p280
    %p282 = scmp.le.s32.totalorder 1, %s15
    %p283 = scmp.lt.s32.totalorder %s15, 3
    %p284 = pnand %p282, %p283
    %p285 = pneg %p284
    // Predicated region
    $region9: #{double_conv_forward.4} parent=5 // pred_check
      _
    $region10: #{double_conv_forward.4} parent=5 // pred_check_branch
      %287 = sbr.rel (%p284) target = $region12
    $region11: #{double_conv_forward.4} parent=5 // pred_region
      %s288 = ssub.s32 %s15, 1
      // Predicated region
      $region13: #{double_conv_forward.4} parent=11 // pred_check
        %p289 = pneg %p48
      $region14: #{double_conv_forward.4} parent=11 // pred_check_branch
        %291 = sbr.rel (%p289) target = $region16
      $region15: #{double_conv_forward.4} parent=11 // pred_region
        _
      $region16: #{double_conv_forward.4} parent=11 // pred_fallthru
        _
      // Predicated region
      $region17: #{double_conv_forward.4} parent=11 // pred_check
        %p292 = pneg %p69
      $region18: #{double_conv_forward.4} parent=11 // pred_check_branch
        %294 = sbr.rel (%p292) target = $region20
      $region19: #{double_conv_forward.4} parent=11 // pred_region
        _
      $region20: #{double_conv_forward.4} parent=11 // pred_fallthru
        _
      // Predicated region
      $region21: #{double_conv_forward.4} parent=11 // pred_check
        %p295 = pneg %p190
      $region22: #{double_conv_forward.4} parent=11 // pred_check_branch
        %297 = sbr.rel (%p295) target = $region24
      $region23: #{double_conv_forward.4} parent=11 // pred_region
        _
      $region24: #{double_conv_forward.4} parent=11 // pred_fallthru
        _
    $region12: #{double_conv_forward.4} parent=5 // pred_fallthru
      _
    %p298 = scmp.lt.s32.totalorder %s15, 2
    // Predicated region
    $region25: #{double_conv_forward.4} parent=5 // pred_check
      %p299 = pneg %p298
    $region26: #{double_conv_forward.4} parent=5 // pred_check_branch
      %301 = sbr.rel (%p299) target = $region28
    $region27: #{double_conv_forward.4} parent=5 // pred_region
      // Predicated region
      $region29: #{double_conv_forward.4} parent=27 // pred_check
        %p302 = pneg %p99
      $region30: #{double_conv_forward.4} parent=27 // pred_check_branch
        %304 = sbr.rel (%p302) target = $region32
      $region31: #{double_conv_forward.4} parent=27 // pred_region
        %s305 = smul.u32 %s23, 16
        %s306 = ssub.s32 %s305, 1
        %p307 = scmp.gt.s32.totalorder %s306, 0
        %s308 = scalar_select %p307, %s306, 0
        %p309 = scmp.lt.s32.totalorder %s22, 1
        %s310 = scalar_select %p309, %s22, 1
        %p311 = scmp.lt.s32.totalorder %s308, 15
        %s312 = scalar_select %p311, %s308, 15
        %s313 = smul.addr %s312, 2
        %s314 = smul.addr %s310, 32
        %s315 = sadd.s32 %s313, %s314
        %s316 = smul.addr %s315, 4
        %s317 = scalar_lea.vmem %s2, %s316
        %s318 = smul.u32 %s23, 16
        %s319 = ssub.s32 %s318, 1
        %p320 = scmp.gt.s32.totalorder %s319, 0
        %s321 = scalar_select %p320, %s319, 0
      $region32: #{double_conv_forward.4} parent=27 // pred_fallthru
        _
      // Predicated region
      $region33: #{double_conv_forward.4} parent=27 // pred_check
        %p322 = pneg %p127
      $region34: #{double_conv_forward.4} parent=27 // pred_check_branch
        %324 = sbr.rel (%p322) target = $region36
      $region35: #{double_conv_forward.4} parent=27 // pred_region
        %s325 = smul.u32 16, %s23
        %p326 = scmp.lt.s32.totalorder %s22, 1
        %s327 = scalar_select %p326, %s22, 1
        %p328 = scmp.lt.s32.totalorder %s325, 15
        %s329 = scalar_select %p328, %s325, 15
        %s330 = smul.addr %s329, 2
        %s331 = smul.addr %s327, 32
        %s332 = sadd.s32 %s330, %s331
        %s333 = smul.addr %s332, 4
        %s334 = scalar_lea.vmem %s3, %s333
        %s335 = smul.u32 16, %s23
      $region36: #{double_conv_forward.4} parent=27 // pred_fallthru
        _
      // Predicated region
      $region37: #{double_conv_forward.4} parent=27 // pred_check
        %p336 = pneg %p163
      $region38: #{double_conv_forward.4} parent=27 // pred_check_branch
        %338 = sbr.rel (%p336) target = $region40
      $region39: #{double_conv_forward.4} parent=27 // pred_region
        %s339 = smul.u32 %s23, 16
        %s340 = sadd.s32 %s339, 16
        %p341 = scmp.lt.s32.totalorder %s340, 15
        %s342 = scalar_select %p341, %s340, 15
        %p343 = scmp.lt.s32.totalorder %s22, 1
        %s344 = scalar_select %p343, %s22, 1
        %p345 = scmp.lt.s32.totalorder %s342, 15
        %s346 = scalar_select %p345, %s342, 15
        %s347 = smul.addr %s346, 2
        %s348 = smul.addr %s344, 32
        %s349 = sadd.s32 %s347, %s348
        %s350 = smul.addr %s349, 4
        %s351 = scalar_lea.vmem %s4, %s350
        %s352 = smul.u32 %s23, 16
        %s353 = sadd.s32 %s352, 16
        %p354 = scmp.lt.s32.totalorder %s353, 15
        %s355 = scalar_select %p354, %s353, 15
      $region40: #{double_conv_forward.4} parent=27 // pred_fallthru
        _
    $region28: #{double_conv_forward.4} parent=5 // pred_fallthru
      _
    %p356 = scmp.le.s32.totalorder 1, %s15
    %p357 = scmp.lt.s32.totalorder %s15, 3
    %p358 = pnand %p356, %p357
    %p359 = pneg %p358
    // Predicated region
    $region41: #{double_conv_forward.4} parent=5 // pred_check
      _
    $region42: #{double_conv_forward.4} parent=5 // pred_check_branch
      %361 = sbr.rel (%p358) target = $region44
    $region43: #{double_conv_forward.4} parent=5 // pred_region
      %s362 = ssub.s32 %s15, 1
      %p363 = pneg %p48
      %p364 = pneg %p45
      %p365 = pneg %p69
      %p366 = pneg %p66
      %s367 = smul.u32 %s25, 16
      %s368 = ssub.s32 %s367, 1
      %p369 = scmp.gt.s32.totalorder %s368, 0
      %s370 = scalar_select %p369, %s368, 0
      %p371 = scmp.lt.s32.totalorder %s24, 1
      %s372 = scalar_select %p371, %s24, 1
      %p373 = scmp.lt.s32.totalorder %s370, 15
      %s374 = scalar_select %p373, %s370, 15
      %s375 = smul.addr %s374, 2
      %s376 = smul.addr %s372, 32
      %s377 = sadd.s32 %s375, %s376
      %s378 = smul.addr %s377, 4
      %s379 = scalar_lea.vmem %s2, %s378
      %p380 = pneg %p105
      %p381 = pneg %p102
      %s382 = smul.u32 16, %s25
      %p383 = scmp.lt.s32.totalorder %s24, 1
      %s384 = scalar_select %p383, %s24, 1
      %p385 = scmp.lt.s32.totalorder %s382, 15
      %s386 = scalar_select %p385, %s382, 15
      %s387 = smul.addr %s386, 2
      %s388 = smul.addr %s384, 32
      %s389 = sadd.s32 %s387, %s388
      %s390 = smul.addr %s389, 4
      %s391 = scalar_lea.vmem %s3, %s390
      %p392 = pneg %p133
      %p393 = pneg %p130
      %s394 = smul.u32 %s25, 16
      %s395 = sadd.s32 %s394, 16
      %p396 = scmp.lt.s32.totalorder %s395, 15
      %s397 = scalar_select %p396, %s395, 15
      %p398 = scmp.lt.s32.totalorder %s24, 1
      %s399 = scalar_select %p398, %s24, 1
      %p400 = scmp.lt.s32.totalorder %s397, 15
      %s401 = scalar_select %p400, %s397, 15
      %s402 = smul.addr %s401, 2
      %s403 = smul.addr %s399, 32
      %s404 = sadd.s32 %s402, %s403
      %s405 = smul.addr %s404, 4
      %s406 = scalar_lea.vmem %s4, %s405
      %p407 = pneg %p169
      %p408 = pneg %p166
      %p409 = pneg %p190
      %p410 = pneg %p187
      %p411 = pneg %p218
      %p412 = pneg %p215
      %s413 = smul.u32 16, %s25
      %p414 = scmp.lt.s32.totalorder %s24, 1
      %s415 = scalar_select %p414, %s24, 1
      %p416 = scmp.lt.s32.totalorder %s413, 15
      %s417 = scalar_select %p416, %s413, 15
      %s418 = smul.addr %s417, 2
      %s419 = smul.addr %s415, 32
      %s420 = sadd.s32 %s418, %s419
      %s421 = smul.addr %s420, 4
      %s422 = scalar_lea.vmem %s6, %s421
      %p423 = pneg %p246
      %p424 = pneg %p243
      %p425 = scmp.lt.s32.totalorder %s24, 1
      %s426 = scalar_select %p425, %s24, 1
      %p427 = scmp.lt.s32.totalorder %s25, 0
      %s428 = scalar_select %p427, %s25, 0
      %s429 = sadd.s32 %s428, %s426
      %s430 = scalar_lea.vmem %s7, %s429
      %p431 = pneg %p274
      %p432 = pneg %p271
      %p433 = scmp.lt.s32.totalorder %s24, 1
      %s434 = scalar_select %p433, %s24, 1
      %p435 = scmp.lt.s32.totalorder %s25, 0
      %s436 = scalar_select %p435, %s25, 0
      %s437 = sadd.s32 %s436, %s434
      %s438 = scalar_lea.vmem %s8, %s437
      %s439 = smul.u32 %s25, 16
      %s440 = ssub.s32 %s439, 1
      %p441 = scmp.gt.s32.totalorder %s440, 0
      %s442 = scalar_select %p441, %s440, 0
      %p443 = scmp.lt.s32.totalorder %s24, 1
      %s444 = scalar_select %p443, %s24, 1
      %p445 = scmp.lt.s32.totalorder %s442, 15
      %s446 = scalar_select %p445, %s442, 15
      %s447 = smul.addr %s446, 2
      %s448 = smul.addr %s444, 32
      %s449 = sadd.s32 %s447, %s448
      %s450 = smul.addr %s449, 4
      %s451 = scalar_lea.vmem %s2, %s450
      %s452 = smul.u32 %s25, 16
      %s453 = ssub.s32 %s452, 1
      %p454 = scmp.gt.s32.totalorder %s453, 0
      %s455 = scalar_select %p454, %s453, 0
      %s456 = smul.u32 16, %s25
      %p457 = scmp.lt.s32.totalorder %s24, 1
      %s458 = scalar_select %p457, %s24, 1
      %p459 = scmp.lt.s32.totalorder %s456, 15
      %s460 = scalar_select %p459, %s456, 15
      %s461 = smul.addr %s460, 2
      %s462 = smul.addr %s458, 32
      %s463 = sadd.s32 %s461, %s462
      %s464 = smul.addr %s463, 4
      %s465 = scalar_lea.vmem %s3, %s464
      %s466 = smul.u32 16, %s25
      %s467 = smul.u32 %s25, 16
      %s468 = sadd.s32 %s467, 16
      %p469 = scmp.lt.s32.totalorder %s468, 15
      %s470 = scalar_select %p469, %s468, 15
      %p471 = scmp.lt.s32.totalorder %s24, 1
      %s472 = scalar_select %p471, %s24, 1
      %p473 = scmp.lt.s32.totalorder %s470, 15
      %s474 = scalar_select %p473, %s470, 15
      %s475 = smul.addr %s474, 2
      %s476 = smul.addr %s472, 32
      %s477 = sadd.s32 %s475, %s476
      %s478 = smul.addr %s477, 4
      %s479 = scalar_lea.vmem %s4, %s478
      %s480 = smul.u32 %s25, 16
      %s481 = sadd.s32 %s480, 16
      %p482 = scmp.lt.s32.totalorder %s481, 15
      %s483 = scalar_select %p482, %s481, 15
      %s484 = smul.u32 16, %s25
      %p485 = scmp.lt.s32.totalorder %s24, 1
      %s486 = scalar_select %p485, %s24, 1
      %p487 = scmp.lt.s32.totalorder %s484, 15
      %s488 = scalar_select %p487, %s484, 15
      %s489 = smul.addr %s488, 2
      %s490 = smul.addr %s486, 32
      %s491 = sadd.s32 %s489, %s490
      %s492 = smul.addr %s491, 4
      %s493 = scalar_lea.vmem %s6, %s492
      %s494 = smul.u32 16, %s25
      %p495 = scmp.lt.s32.totalorder %s24, 1
      %s496 = scalar_select %p495, %s24, 1
      %p497 = scmp.lt.s32.totalorder %s25, 0
      %s498 = scalar_select %p497, %s25, 0
      %s499 = sadd.s32 %s498, %s496
      %s500 = scalar_lea.vmem %s7, %s499
      %p501 = scmp.lt.s32.totalorder %s24, 1
      %s502 = scalar_select %p501, %s24, 1
      %p503 = scmp.lt.s32.totalorder %s25, 0
      %s504 = scalar_select %p503, %s25, 0
      %s505 = sadd.s32 %s504, %s502
      %s506 = scalar_lea.vmem %s8, %s505
      %v508 = vld [vmem:[%s0] sm:$0x1]
      %v509 = vld [vmem:[%s1] sm:$0x1]
      %510 = vst [vmem:[#allocation2] sm:$0x1] 0.0
      %511 = vst [vmem:[#allocation2 + $0x18] sm:$0x1] 0.0
      %512 = vst [vmem:[#allocation2 + $0x30] sm:$0x1] 0.0
      %513 = vst [vmem:[#allocation2 + $0x48] sm:$0x1] 0.0
      %514 = vst [vmem:[#allocation2 + $0x60] sm:$0x1] 0.0
      %515 = vst [vmem:[#allocation2 + $0x78] sm:$0x1] 0.0
      %516 = vst [vmem:[#allocation2 + $0x90] sm:$0x1] 0.0
      %517 = vst [vmem:[#allocation2 + $0xa8] sm:$0x1] 0.0
      %518 = vst [vmem:[#allocation2 + $0xc0] sm:$0x1] 0.0
      %519 = vst [vmem:[#allocation2 + $0xd8] sm:$0x1] 0.0
      %520 = vst [vmem:[#allocation2 + $0xf0] sm:$0x1] 0.0
      %521 = vst [vmem:[#allocation2 + $0x108] sm:$0x1] 0.0
      %522 = vst [vmem:[#allocation2 + $0x120] sm:$0x1] 0.0
      %523 = vst [vmem:[#allocation2 + $0x138] sm:$0x1] 0.0
      %524 = vst [vmem:[#allocation2 + $0x150] sm:$0x1] 0.0
      %525 = vst [vmem:[#allocation2 + $0x168] sm:$0x1] 0.0
      %526 = vst [vmem:[#allocation2 + $0x180] sm:$0x1] 0.0
      %527 = vst [vmem:[#allocation2 + $0x198] sm:$0x1] 0.0
      %528 = vst [vmem:[#allocation2 + $0x11] sm:$0x1] 0.0
      %529 = vst [vmem:[#allocation2 + $0x29] sm:$0x1] 0.0
      %530 = vst [vmem:[#allocation2 + $0x41] sm:$0x1] 0.0
      %531 = vst [vmem:[#allocation2 + $0x59] sm:$0x1] 0.0
      %532 = vst [vmem:[#allocation2 + $0x71] sm:$0x1] 0.0
      %533 = vst [vmem:[#allocation2 + $0x89] sm:$0x1] 0.0
      %534 = vst [vmem:[#allocation2 + $0xa1] sm:$0x1] 0.0
      %535 = vst [vmem:[#allocation2 + $0xb9] sm:$0x1] 0.0
      %536 = vst [vmem:[#allocation2 + $0xd1] sm:$0x1] 0.0
      %537 = vst [vmem:[#allocation2 + $0xe9] sm:$0x1] 0.0
      %538 = vst [vmem:[#allocation2 + $0x101] sm:$0x1] 0.0
      %539 = vst [vmem:[#allocation2 + $0x119] sm:$0x1] 0.0
      %540 = vst [vmem:[#allocation2 + $0x131] sm:$0x1] 0.0
      %541 = vst [vmem:[#allocation2 + $0x149] sm:$0x1] 0.0
      %542 = vst [vmem:[#allocation2 + $0x161] sm:$0x1] 0.0
      %543 = vst [vmem:[#allocation2 + $0x179] sm:$0x1] 0.0
      %544 = vst [vmem:[#allocation2 + $0x191] sm:$0x1] 0.0
      %545 = vst [vmem:[#allocation2 + $0x1a9] sm:$0x1] 0.0
      %v546 = vld [vmem:[%s465] sm:$0xf]
      %v547 = vld [vmem:[%s465 + $0x4] sm:$0xf]
      %v548 = vld [vmem:[%s465 + $0x8] sm:$0xf]
      %v549 = vld [vmem:[%s465 + $0xc] sm:$0xf]
      %v550 = vld [vmem:[%s465 + $0x10] sm:$0xf]
      %v551 = vld [vmem:[%s465 + $0x14] sm:$0xf]
      %v552 = vld [vmem:[%s465 + $0x18] sm:$0xf]
      %v553 = vld [vmem:[%s465 + $0x1c] sm:$0xf]
      %v554 = vld [vmem:[%s465 + $0x20] sm:$0xf]
      %v555 = vld [vmem:[%s465 + $0x24] sm:$0xf]
      %v556 = vld [vmem:[%s465 + $0x28] sm:$0xf]
      %v557 = vld [vmem:[%s465 + $0x2c] sm:$0xf]
      %v558 = vld [vmem:[%s465 + $0x30] sm:$0xf]
      %v559 = vld [vmem:[%s465 + $0x34] sm:$0xf]
      %v560 = vld [vmem:[%s465 + $0x38] sm:$0xf]
      %v561 = vld [vmem:[%s465 + $0x3c] sm:$0xf]
      %v562 = vld [vmem:[%s465 + $0x40] sm:$0xf]
      %v563 = vld [vmem:[%s465 + $0x44] sm:$0xf]
      %v564 = vld [vmem:[%s465 + $0x48] sm:$0xf]
      %v565 = vld [vmem:[%s465 + $0x4c] sm:$0xf]
      %v566 = vld [vmem:[%s465 + $0x50] sm:$0xf]
      %v567 = vld [vmem:[%s465 + $0x54] sm:$0xf]
      %v568 = vld [vmem:[%s465 + $0x58] sm:$0xf]
      %v569 = vld [vmem:[%s465 + $0x5c] sm:$0xf]
      %v570 = vld [vmem:[%s465 + $0x60] sm:$0xf]
      %v571 = vld [vmem:[%s465 + $0x64] sm:$0xf]
      %v572 = vld [vmem:[%s465 + $0x68] sm:$0xf]
      %v573 = vld [vmem:[%s465 + $0x6c] sm:$0xf]
      %v574 = vld [vmem:[%s465 + $0x70] sm:$0xf]
      %v575 = vld [vmem:[%s465 + $0x74] sm:$0xf]
      %v576 = vld [vmem:[%s465 + $0x78] sm:$0xf]
      %v577 = vld [vmem:[%s465 + $0x7c] sm:$0xf]
      %v578 = vunpack.c.l.bf16 %v546
      %v579 = vunpack.c.l.bf16 %v547
      %v580 = vunpack.c.l.bf16 %v548
      %v581 = vunpack.c.l.bf16 %v549
      %v582 = vunpack.c.l.bf16 %v550
      %v583 = vunpack.c.l.bf16 %v551
      %v584 = vunpack.c.l.bf16 %v552
      %v585 = vunpack.c.l.bf16 %v553
      %v586 = vunpack.c.l.bf16 %v554
      %v587 = vunpack.c.l.bf16 %v555
      %v588 = vunpack.c.l.bf16 %v556
      %v589 = vunpack.c.l.bf16 %v557
      %v590 = vunpack.c.l.bf16 %v558
      %v591 = vunpack.c.l.bf16 %v559
      %v592 = vunpack.c.l.bf16 %v560
      %v593 = vunpack.c.l.bf16 %v561
      %v594 = vunpack.c.l.bf16 %v562
      %v595 = vunpack.c.l.bf16 %v563
      %v596 = vunpack.c.l.bf16 %v564
      %v597 = vunpack.c.l.bf16 %v565
      %v598 = vunpack.c.l.bf16 %v566
      %v599 = vunpack.c.l.bf16 %v567
      %v600 = vunpack.c.l.bf16 %v568
      %v601 = vunpack.c.l.bf16 %v569
      %v602 = vunpack.c.l.bf16 %v570
      %v603 = vunpack.c.l.bf16 %v571
      %v604 = vunpack.c.l.bf16 %v572
      %v605 = vunpack.c.l.bf16 %v573
      %v606 = vunpack.c.l.bf16 %v574
      %v607 = vunpack.c.l.bf16 %v575
      %v608 = vunpack.c.l.bf16 %v576
      %v609 = vunpack.c.l.bf16 %v577
      %v611 = vlaneseq
      %v612 = vshrl.u32 %v611, 7
      %v613 = vsub.s32 0, %v612
      %v614 = vrot.slane %v508, %v613
      %v616 = vmul.f32 %v578, %v614
      %v617 = vmul.f32 %v579, %v614
      %v618 = vmul.f32 %v580, %v614
      %v619 = vmul.f32 %v581, %v614
      %v620 = vmul.f32 %v582, %v614
      %v621 = vmul.f32 %v583, %v614
      %v622 = vmul.f32 %v584, %v614
      %v623 = vmul.f32 %v585, %v614
      %v624 = vmul.f32 %v586, %v614
      %v625 = vmul.f32 %v587, %v614
      %v626 = vmul.f32 %v588, %v614
      %v627 = vmul.f32 %v589, %v614
      %v628 = vmul.f32 %v590, %v614
      %v629 = vmul.f32 %v591, %v614
      %v630 = vmul.f32 %v592, %v614
      %v631 = vmul.f32 %v593, %v614
      %v632 = vmul.f32 %v594, %v614
      %v633 = vmul.f32 %v595, %v614
      %v634 = vmul.f32 %v596, %v614
      %v635 = vmul.f32 %v597, %v614
      %v636 = vmul.f32 %v598, %v614
      %v637 = vmul.f32 %v599, %v614
      %v638 = vmul.f32 %v600, %v614
      %v639 = vmul.f32 %v601, %v614
      %v640 = vmul.f32 %v602, %v614
      %v641 = vmul.f32 %v603, %v614
      %v642 = vmul.f32 %v604, %v614
      %v643 = vmul.f32 %v605, %v614
      %v644 = vmul.f32 %v606, %v614
      %v645 = vmul.f32 %v607, %v614
      %v646 = vmul.f32 %v608, %v614
      %v647 = vmul.f32 %v609, %v614
      %v649 = vlaneseq
      %v650 = vshrl.u32 %v649, 7
      %v651 = vsub.s32 0, %v650
      %v652 = vrot.slane %v509, %v651
      %v654 = vadd.f32 %v616, %v652
      %v655 = vadd.f32 %v617, %v652
      %v656 = vadd.f32 %v618, %v652
      %v657 = vadd.f32 %v619, %v652
      %v658 = vadd.f32 %v620, %v652
      %v659 = vadd.f32 %v621, %v652
      %v660 = vadd.f32 %v622, %v652
      %v661 = vadd.f32 %v623, %v652
      %v662 = vadd.f32 %v624, %v652
      %v663 = vadd.f32 %v625, %v652
      %v664 = vadd.f32 %v626, %v652
      %v665 = vadd.f32 %v627, %v652
      %v666 = vadd.f32 %v628, %v652
      %v667 = vadd.f32 %v629, %v652
      %v668 = vadd.f32 %v630, %v652
      %v669 = vadd.f32 %v631, %v652
      %v670 = vadd.f32 %v632, %v652
      %v671 = vadd.f32 %v633, %v652
      %v672 = vadd.f32 %v634, %v652
      %v673 = vadd.f32 %v635, %v652
      %v674 = vadd.f32 %v636, %v652
      %v675 = vadd.f32 %v637, %v652
      %v676 = vadd.f32 %v638, %v652
      %v677 = vadd.f32 %v639, %v652
      %v678 = vadd.f32 %v640, %v652
      %v679 = vadd.f32 %v641, %v652
      %v680 = vadd.f32 %v642, %v652
      %v681 = vadd.f32 %v643, %v652
      %v682 = vadd.f32 %v644, %v652
      %v683 = vadd.f32 %v645, %v652
      %v684 = vadd.f32 %v646, %v652
      %v685 = vadd.f32 %v647, %v652
      %v686 = vmax.f32 %v654, 0.0
      %v687 = vmax.f32 %v655, 0.0
      %v688 = vmax.f32 %v656, 0.0
      %v689 = vmax.f32 %v657, 0.0
      %v690 = vmax.f32 %v658, 0.0
      %v691 = vmax.f32 %v659, 0.0
      %v692 = vmax.f32 %v660, 0.0
      %v693 = vmax.f32 %v661, 0.0
      %v694 = vmax.f32 %v662, 0.0
      %v695 = vmax.f32 %v663, 0.0
      %v696 = vmax.f32 %v664, 0.0
      %v697 = vmax.f32 %v665, 0.0
      %v698 = vmax.f32 %v666, 0.0
      %v699 = vmax.f32 %v667, 0.0
      %v700 = vmax.f32 %v668, 0.0
      %v701 = vmax.f32 %v669, 0.0
      %v702 = vmax.f32 %v670, 0.0
      %v703 = vmax.f32 %v671, 0.0
      %v704 = vmax.f32 %v672, 0.0
      %v705 = vmax.f32 %v673, 0.0
      %v706 = vmax.f32 %v674, 0.0
      %v707 = vmax.f32 %v675, 0.0
      %v708 = vmax.f32 %v676, 0.0
      %v709 = vmax.f32 %v677, 0.0
      %v710 = vmax.f32 %v678, 0.0
      %v711 = vmax.f32 %v679, 0.0
      %v712 = vmax.f32 %v680, 0.0
      %v713 = vmax.f32 %v681, 0.0
      %v714 = vmax.f32 %v682, 0.0
      %v715 = vmax.f32 %v683, 0.0
      %v716 = vmax.f32 %v684, 0.0
      %v717 = vmax.f32 %v685, 0.0
      %s718 = scalar_lea.vmem [#allocation2], 24
      %719 = vst [vmem:[%s718 + $0x1] sm:$0xff] %v686
      %720 = vst [vmem:[%s718 + $0x9] sm:$0xff] %v687
      %721 = vst [vmem:[%s718 + $0x19] sm:$0xff] %v688
      %722 = vst [vmem:[%s718 + $0x21] sm:$0xff] %v689
      %723 = vst [vmem:[%s718 + $0x31] sm:$0xff] %v690
      %724 = vst [vmem:[%s718 + $0x39] sm:$0xff] %v691
      %725 = vst [vmem:[%s718 + $0x49] sm:$0xff] %v692
      %726 = vst [vmem:[%s718 + $0x51] sm:$0xff] %v693
      %727 = vst [vmem:[%s718 + $0x61] sm:$0xff] %v694
      %728 = vst [vmem:[%s718 + $0x69] sm:$0xff] %v695
      %729 = vst [vmem:[%s718 + $0x79] sm:$0xff] %v696
      %730 = vst [vmem:[%s718 + $0x81] sm:$0xff] %v697
      %731 = vst [vmem:[%s718 + $0x91] sm:$0xff] %v698
      %732 = vst [vmem:[%s718 + $0x99] sm:$0xff] %v699
      %733 = vst [vmem:[%s718 + $0xa9] sm:$0xff] %v700
      %734 = vst [vmem:[%s718 + $0xb1] sm:$0xff] %v701
      %735 = vst [vmem:[%s718 + $0xc1] sm:$0xff] %v702
      %736 = vst [vmem:[%s718 + $0xc9] sm:$0xff] %v703
      %737 = vst [vmem:[%s718 + $0xd9] sm:$0xff] %v704
      %738 = vst [vmem:[%s718 + $0xe1] sm:$0xff] %v705
      %739 = vst [vmem:[%s718 + $0xf1] sm:$0xff] %v706
      %740 = vst [vmem:[%s718 + $0xf9] sm:$0xff] %v707
      %741 = vst [vmem:[%s718 + $0x109] sm:$0xff] %v708
      %742 = vst [vmem:[%s718 + $0x111] sm:$0xff] %v709
      %743 = vst [vmem:[%s718 + $0x121] sm:$0xff] %v710
      %744 = vst [vmem:[%s718 + $0x129] sm:$0xff] %v711
      %745 = vst [vmem:[%s718 + $0x139] sm:$0xff] %v712
      %746 = vst [vmem:[%s718 + $0x141] sm:$0xff] %v713
      %747 = vst [vmem:[%s718 + $0x151] sm:$0xff] %v714
      %748 = vst [vmem:[%s718 + $0x159] sm:$0xff] %v715
      %749 = vst [vmem:[%s718 + $0x169] sm:$0xff] %v716
      %750 = vst [vmem:[%s718 + $0x171] sm:$0xff] %v717
      %p751 = scmp.eq.s32.totalorder %s25, 0
      // Predicated region
      $region45: #{double_conv_forward.4} parent=43 // pred_check
        %p752 = pneg %p751
      $region46: #{double_conv_forward.4} parent=43 // pred_check_branch
        %754 = sbr.rel (%p752) target = $region48
      $region47: #{double_conv_forward.4} parent=43 // pred_region
        %755 = vst [vmem:[#allocation2 + $0x1] sm:$0xff] 0.0
        %756 = vst [vmem:[#allocation2 + $0x9] sm:$0xff] 0.0
      $region48: #{double_conv_forward.4} parent=43 // pred_fallthru
        _
      %p757 = scmp.gt.s32.totalorder %s25, 0
      // Predicated region
      $region49: #{double_conv_forward.4} parent=43 // pred_check
        %p758 = pneg %p757
      $region50: #{double_conv_forward.4} parent=43 // pred_check_branch
        %760 = sbr.rel (%p758) target = $region52
      $region51: #{double_conv_forward.4} parent=43 // pred_region
        %v761 = vld [vmem:[%s451] sm:$0xf]
        %v762 = vld [vmem:[%s451 + $0x4] sm:$0xf]
        %v763 = vunpack.c.l.bf16 %v761
        %v764 = vunpack.c.l.bf16 %v762
        %v765 = vmul.f32 %v763, %v614
        %v766 = vmul.f32 %v764, %v614
        %v767 = vadd.f32 %v765, %v652
        %v768 = vadd.f32 %v766, %v652
        %v769 = vmax.f32 %v767, 0.0
        %v770 = vmax.f32 %v768, 0.0
        %771 = vst [vmem:[#allocation2 + $0x1] sm:$0xff] %v769
        %772 = vst [vmem:[#allocation2 + $0x9] sm:$0xff] %v770
      $region52: #{double_conv_forward.4} parent=43 // pred_fallthru
        _
      // Predicated region
      $region53: #{double_conv_forward.4} parent=43 // pred_check
        %p773 = pneg %p751
      $region54: #{double_conv_forward.4} parent=43 // pred_check_branch
        %775 = sbr.rel (%p773) target = $region56
      $region55: #{double_conv_forward.4} parent=43 // pred_region
        %s776 = scalar_lea.vmem [#allocation2], 408
        %777 = vst [vmem:[%s776 + $0x1] sm:$0xff] 0.0
        %778 = vst [vmem:[%s776 + $0x9] sm:$0xff] 0.0
      $region56: #{double_conv_forward.4} parent=43 // pred_fallthru
        _
      %p779 = scmp.lt.s32.totalorder %s25, 0
      // Predicated region
      $region57: #{double_conv_forward.4} parent=43 // pred_check
        %p780 = pneg %p779
      $region58: #{double_conv_forward.4} parent=43 // pred_check_branch
        %782 = sbr.rel (%p780) target = $region60
      $region59: #{double_conv_forward.4} parent=43 // pred_region
        %v783 = vld [vmem:[%s479] sm:$0xf]
        %v784 = vld [vmem:[%s479 + $0x4] sm:$0xf]
        %v785 = vunpack.c.l.bf16 %v783
        %v786 = vunpack.c.l.bf16 %v784
        %v787 = vmul.f32 %v785, %v614
        %v788 = vmul.f32 %v786, %v614
        %v789 = vadd.f32 %v787, %v652
        %v790 = vadd.f32 %v788, %v652
        %v791 = vmax.f32 %v789, 0.0
        %v792 = vmax.f32 %v790, 0.0
        %s793 = scalar_lea.vmem [#allocation2], 408
        %794 = vst [vmem:[%s793 + $0x1] sm:$0xff] %v791
        %795 = vst [vmem:[%s793 + $0x9] sm:$0xff] %v792
      $region60: #{double_conv_forward.4} parent=43 // pred_fallthru
        _
      %v796 = vld [vmem:[#allocation2] sm:$0xff]
      %v797 = vld [vmem:[#allocation2 + $0x8] sm:$0xff]
      %v798 = vld [vmem:[#allocation2 + $0x18] sm:$0xff]
      %v799 = vld [vmem:[#allocation2 + $0x20] sm:$0xff]
      %v800 = vld [vmem:[#allocation2 + $0x30] sm:$0xff]
      %v801 = vld [vmem:[#allocation2 + $0x38] sm:$0xff]
      %v802 = vld [vmem:[#allocation2 + $0x48] sm:$0xff]
      %v803 = vld [vmem:[#allocation2 + $0x50] sm:$0xff]
      %v804 = vld [vmem:[#allocation2 + $0x60] sm:$0xff]
      %v805 = vld [vmem:[#allocation2 + $0x68] sm:$0xff]
      %v806 = vld [vmem:[#allocation2 + $0x78] sm:$0xff]
      %v807 = vld [vmem:[#allocation2 + $0x80] sm:$0xff]
      %v808 = vld [vmem:[#allocation2 + $0x90] sm:$0xff]
      %v809 = vld [vmem:[#allocation2 + $0x98] sm:$0xff]
      %v810 = vld [vmem:[#allocation2 + $0xa8] sm:$0xff]
      %v811 = vld [vmem:[#allocation2 + $0xb0] sm:$0xff]
      %v812 = vld [vmem:[#allocation2 + $0xc0] sm:$0xff]
      %v813 = vld [vmem:[#allocation2 + $0xc8] sm:$0xff]
      %v814 = vld [vmem:[#allocation2 + $0xd8] sm:$0xff]
      %v815 = vld [vmem:[#allocation2 + $0xe0] sm:$0xff]
      %v816 = vld [vmem:[#allocation2 + $0xf0] sm:$0xff]
      %v817 = vld [vmem:[#allocation2 + $0xf8] sm:$0xff]
      %v818 = vld [vmem:[#allocation2 + $0x108] sm:$0xff]
      %v819 = vld [vmem:[#allocation2 + $0x110] sm:$0xff]
      %v820 = vld [vmem:[#allocation2 + $0x120] sm:$0xff]
      %v821 = vld [vmem:[#allocation2 + $0x128] sm:$0xff]
      %v822 = vld [vmem:[#allocation2 + $0x138] sm:$0xff]
      %v823 = vld [vmem:[#allocation2 + $0x140] sm:$0xff]
      %v824 = vld [vmem:[#allocation2 + $0x150] sm:$0xff]
      %v825 = vld [vmem:[#allocation2 + $0x158] sm:$0xff]
      %v826 = vld [vmem:[#allocation2 + $0x168] sm:$0xff]
      %v827 = vld [vmem:[#allocation2 + $0x170] sm:$0xff]
      %v828 = vpack.c.bf16 %v797, %v796
      %v829 = vpack.c.bf16 %v799, %v798
      %v830 = vpack.c.bf16 %v801, %v800
      %v831 = vpack.c.bf16 %v803, %v802
      %v832 = vpack.c.bf16 %v805, %v804
      %v833 = vpack.c.bf16 %v807, %v806
      %v834 = vpack.c.bf16 %v809, %v808
      %v835 = vpack.c.bf16 %v811, %v810
      %v836 = vpack.c.bf16 %v813, %v812
      %v837 = vpack.c.bf16 %v815, %v814
      %v838 = vpack.c.bf16 %v817, %v816
      %v839 = vpack.c.bf16 %v819, %v818
      %v840 = vpack.c.bf16 %v821, %v820
      %v841 = vpack.c.bf16 %v823, %v822
      %v842 = vpack.c.bf16 %v825, %v824
      %v843 = vpack.c.bf16 %v827, %v826
      %844 = vst [vmem:[#allocation3] sm:$0xff] %v828
      %845 = vst [vmem:[#allocation3 + $0x48] sm:$0xff] %v829
      %846 = vst [vmem:[#allocation3 + $0x90] sm:$0xff] %v830
      %847 = vst [vmem:[#allocation3 + $0xd8] sm:$0xff] %v831
      %848 = vst [vmem:[#allocation3 + $0x120] sm:$0xff] %v832
      %849 = vst [vmem:[#allocation3 + $0x168] sm:$0xff] %v833
      %850 = vst [vmem:[#allocation3 + $0x1b0] sm:$0xff] %v834
      %851 = vst [vmem:[#allocation3 + $0x1f8] sm:$0xff] %v835
      %852 = vst [vmem:[#allocation3 + $0x240] sm:$0xff] %v836
      %853 = vst [vmem:[#allocation3 + $0x288] sm:$0xff] %v837
      %854 = vst [vmem:[#allocation3 + $0x2d0] sm:$0xff] %v838
      %855 = vst [vmem:[#allocation3 + $0x318] sm:$0xff] %v839
      %856 = vst [vmem:[#allocation3 + $0x360] sm:$0xff] %v840
      %857 = vst [vmem:[#allocation3 + $0x3a8] sm:$0xff] %v841
      %858 = vst [vmem:[#allocation3 + $0x3f0] sm:$0xff] %v842
      %859 = vst [vmem:[#allocation3 + $0x438] sm:$0xff] %v843
      %v860 = vld [vmem:[#allocation2 + $0x1] sm:$0xff]
      %v861 = vld [vmem:[#allocation2 + $0x9] sm:$0xff]
      %v862 = vld [vmem:[#allocation2 + $0x19] sm:$0xff]
      %v863 = vld [vmem:[#allocation2 + $0x21] sm:$0xff]
      %v864 = vld [vmem:[#allocation2 + $0x31] sm:$0xff]
      %v865 = vld [vmem:[#allocation2 + $0x39] sm:$0xff]
      %v866 = vld [vmem:[#allocation2 + $0x49] sm:$0xff]
      %v867 = vld [vmem:[#allocation2 + $0x51] sm:$0xff]
      %v868 = vld [vmem:[#allocation2 + $0x61] sm:$0xff]
      %v869 = vld [vmem:[#allocation2 + $0x69] sm:$0xff]
      %v870 = vld [vmem:[#allocation2 + $0x79] sm:$0xff]
      %v871 = vld [vmem:[#allocation2 + $0x81] sm:$0xff]
      %v872 = vld [vmem:[#allocation2 + $0x91] sm:$0xff]
      %v873 = vld [vmem:[#allocation2 + $0x99] sm:$0xff]
      %v874 = vld [vmem:[#allocation2 + $0xa9] sm:$0xff]
      %v875 = vld [vmem:[#allocation2 + $0xb1] sm:$0xff]
      %v876 = vld [vmem:[#allocation2 + $0xc1] sm:$0xff]
      %v877 = vld [vmem:[#allocation2 + $0xc9] sm:$0xff]
      %v878 = vld [vmem:[#allocation2 + $0xd9] sm:$0xff]
      %v879 = vld [vmem:[#allocation2 + $0xe1] sm:$0xff]
      %v880 = vld [vmem:[#allocation2 + $0xf1] sm:$0xff]
      %v881 = vld [vmem:[#allocation2 + $0xf9] sm:$0xff]
      %v882 = vld [vmem:[#allocation2 + $0x109] sm:$0xff]
      %v883 = vld [vmem:[#allocation2 + $0x111] sm:$0xff]
      %v884 = vld [vmem:[#allocation2 + $0x121] sm:$0xff]
      %v885 = vld [vmem:[#allocation2 + $0x129] sm:$0xff]
      %v886 = vld [vmem:[#allocation2 + $0x139] sm:$0xff]
      %v887 = vld [vmem:[#allocation2 + $0x141] sm:$0xff]
      %v888 = vld [vmem:[#allocation2 + $0x151] sm:$0xff]
      %v889 = vld [vmem:[#allocation2 + $0x159] sm:$0xff]
      %v890 = vld [vmem:[#allocation2 + $0x169] sm:$0xff]
      %v891 = vld [vmem:[#allocation2 + $0x171] sm:$0xff]
      %v892 = vpack.c.bf16 %v861, %v860
      %v893 = vpack.c.bf16 %v863, %v862
      %v894 = vpack.c.bf16 %v865, %v864
      %v895 = vpack.c.bf16 %v867, %v866
      %v896 = vpack.c.bf16 %v869, %v868
      %v897 = vpack.c.bf16 %v871, %v870
      %v898 = vpack.c.bf16 %v873, %v872
      %v899 = vpack.c.bf16 %v875, %v874
      %v900 = vpack.c.bf16 %v877, %v876
      %v901 = vpack.c.bf16 %v879, %v878
      %v902 = vpack.c.bf16 %v881, %v880
      %v903 = vpack.c.bf16 %v883, %v882
      %v904 = vpack.c.bf16 %v885, %v884
      %v905 = vpack.c.bf16 %v887, %v886
      %v906 = vpack.c.bf16 %v889, %v888
      %v907 = vpack.c.bf16 %v891, %v890
      %908 = vst [vmem:[#allocation3 + $0x8] sm:$0xff] %v892
      %909 = vst [vmem:[#allocation3 + $0x50] sm:$0xff] %v893
      %910 = vst [vmem:[#allocation3 + $0x98] sm:$0xff] %v894
      %911 = vst [vmem:[#allocation3 + $0xe0] sm:$0xff] %v895
      %912 = vst [vmem:[#allocation3 + $0x128] sm:$0xff] %v896
      %913 = vst [vmem:[#allocation3 + $0x170] sm:$0xff] %v897
      %914 = vst [vmem:[#allocation3 + $0x1b8] sm:$0xff] %v898
      %915 = vst [vmem:[#allocation3 + $0x200] sm:$0xff] %v899
      %916 = vst [vmem:[#allocation3 + $0x248] sm:$0xff] %v900
      %917 = vst [vmem:[#allocation3 + $0x290] sm:$0xff] %v901
      %918 = vst [vmem:[#allocation3 + $0x2d8] sm:$0xff] %v902
      %919 = vst [vmem:[#allocation3 + $0x320] sm:$0xff] %v903
      %920 = vst [vmem:[#allocation3 + $0x368] sm:$0xff] %v904
      %921 = vst [vmem:[#allocation3 + $0x3b0] sm:$0xff] %v905
      %922 = vst [vmem:[#allocation3 + $0x3f8] sm:$0xff] %v906
      %923 = vst [vmem:[#allocation3 + $0x440] sm:$0xff] %v907
      %v924 = vld [vmem:[#allocation2 + $0x2] sm:$0xff]
      %v925 = vld [vmem:[#allocation2 + $0xa] sm:$0xff]
      %v926 = vld [vmem:[#allocation2 + $0x1a] sm:$0xff]
      %v927 = vld [vmem:[#allocation2 + $0x22] sm:$0xff]
      %v928 = vld [vmem:[#allocation2 + $0x32] sm:$0xff]
      %v929 = vld [vmem:[#allocation2 + $0x3a] sm:$0xff]
      %v930 = vld [vmem:[#allocation2 + $0x4a] sm:$0xff]
      %v931 = vld [vmem:[#allocation2 + $0x52] sm:$0xff]
      %v932 = vld [vmem:[#allocation2 + $0x62] sm:$0xff]
      %v933 = vld [vmem:[#allocation2 + $0x6a] sm:$0xff]
      %v934 = vld [vmem:[#allocation2 + $0x7a] sm:$0xff]
      %v935 = vld [vmem:[#allocation2 + $0x82] sm:$0xff]
      %v936 = vld [vmem:[#allocation2 + $0x92] sm:$0xff]
      %v937 = vld [vmem:[#allocation2 + $0x9a] sm:$0xff]
      %v938 = vld [vmem:[#allocation2 + $0xaa] sm:$0xff]
      %v939 = vld [vmem:[#allocation2 + $0xb2] sm:$0xff]
      %v940 = vld [vmem:[#allocation2 + $0xc2] sm:$0xff]
      %v941 = vld [vmem:[#allocation2 + $0xca] sm:$0xff]
      %v942 = vld [vmem:[#allocation2 + $0xda] sm:$0xff]
      %v943 = vld [vmem:[#allocation2 + $0xe2] sm:$0xff]
      %v944 = vld [vmem:[#allocation2 + $0xf2] sm:$0xff]
      %v945 = vld [vmem:[#allocation2 + $0xfa] sm:$0xff]
      %v946 = vld [vmem:[#allocation2 + $0x10a] sm:$0xff]
      %v947 = vld [vmem:[#allocation2 + $0x112] sm:$0xff]
      %v948 = vld [vmem:[#allocation2 + $0x122] sm:$0xff]
      %v949 = vld [vmem:[#allocation2 + $0x12a] sm:$0xff]
      %v950 = vld [vmem:[#allocation2 + $0x13a] sm:$0xff]
      %v951 = vld [vmem:[#allocation2 + $0x142] sm:$0xff]
      %v952 = vld [vmem:[#allocation2 + $0x152] sm:$0xff]
      %v953 = vld [vmem:[#allocation2 + $0x15a] sm:$0xff]
      %v954 = vld [vmem:[#allocation2 + $0x16a] sm:$0xff]
      %v955 = vld [vmem:[#allocation2 + $0x172] sm:$0xff]
      %v956 = vpack.c.bf16 %v925, %v924
      %v957 = vpack.c.bf16 %v927, %v926
      %v958 = vpack.c.bf16 %v929, %v928
      %v959 = vpack.c.bf16 %v931, %v930
      %v960 = vpack.c.bf16 %v933, %v932
      %v961 = vpack.c.bf16 %v935, %v934
      %v962 = vpack.c.bf16 %v937, %v936
      %v963 = vpack.c.bf16 %v939, %v938
      %v964 = vpack.c.bf16 %v941, %v940
      %v965 = vpack.c.bf16 %v943, %v942
      %v966 = vpack.c.bf16 %v945, %v944
      %v967 = vpack.c.bf16 %v947, %v946
      %v968 = vpack.c.bf16 %v949, %v948
      %v969 = vpack.c.bf16 %v951, %v950
      %v970 = vpack.c.bf16 %v953, %v952
      %v971 = vpack.c.bf16 %v955, %v954
      %972 = vst [vmem:[#allocation3 + $0x10] sm:$0xff] %v956
      %973 = vst [vmem:[#allocation3 + $0x58] sm:$0xff] %v957
      %974 = vst [vmem:[#allocation3 + $0xa0] sm:$0xff] %v958
      %975 = vst [vmem:[#allocation3 + $0xe8] sm:$0xff] %v959
      %976 = vst [vmem:[#allocation3 + $0x130] sm:$0xff] %v960
      %977 = vst [vmem:[#allocation3 + $0x178] sm:$0xff] %v961
      %978 = vst [vmem:[#allocation3 + $0x1c0] sm:$0xff] %v962
      %979 = vst [vmem:[#allocation3 + $0x208] sm:$0xff] %v963
      %980 = vst [vmem:[#allocation3 + $0x250] sm:$0xff] %v964
      %981 = vst [vmem:[#allocation3 + $0x298] sm:$0xff] %v965
      %982 = vst [vmem:[#allocation3 + $0x2e0] sm:$0xff] %v966
      %983 = vst [vmem:[#allocation3 + $0x328] sm:$0xff] %v967
      %984 = vst [vmem:[#allocation3 + $0x370] sm:$0xff] %v968
      %985 = vst [vmem:[#allocation3 + $0x3b8] sm:$0xff] %v969
      %986 = vst [vmem:[#allocation3 + $0x400] sm:$0xff] %v970
      %987 = vst [vmem:[#allocation3 + $0x448] sm:$0xff] %v971
      %v988 = vld [vmem:[%s718] sm:$0xff]
      %v989 = vld [vmem:[%s718 + $0x8] sm:$0xff]
      %v990 = vld [vmem:[%s718 + $0x18] sm:$0xff]
      %v991 = vld [vmem:[%s718 + $0x20] sm:$0xff]
      %v992 = vld [vmem:[%s718 + $0x30] sm:$0xff]
      %v993 = vld [vmem:[%s718 + $0x38] sm:$0xff]
      %v994 = vld [vmem:[%s718 + $0x48] sm:$0xff]
      %v995 = vld [vmem:[%s718 + $0x50] sm:$0xff]
      %v996 = vld [vmem:[%s718 + $0x60] sm:$0xff]
      %v997 = vld [vmem:[%s718 + $0x68] sm:$0xff]
      %v998 = vld [vmem:[%s718 + $0x78] sm:$0xff]
      %v999 = vld [vmem:[%s718 + $0x80] sm:$0xff]
      %v1000 = vld [vmem:[%s718 + $0x90] sm:$0xff]
      %v1001 = vld [vmem:[%s718 + $0x98] sm:$0xff]
      %v1002 = vld [vmem:[%s718 + $0xa8] sm:$0xff]
      %v1003 = vld [vmem:[%s718 + $0xb0] sm:$0xff]
      %v1004 = vld [vmem:[%s718 + $0xc0] sm:$0xff]
      %v1005 = vld [vmem:[%s718 + $0xc8] sm:$0xff]
      %v1006 = vld [vmem:[%s718 + $0xd8] sm:$0xff]
      %v1007 = vld [vmem:[%s718 + $0xe0] sm:$0xff]
      %v1008 = vld [vmem:[%s718 + $0xf0] sm:$0xff]
      %v1009 = vld [vmem:[%s718 + $0xf8] sm:$0xff]
      %v1010 = vld [vmem:[%s718 + $0x108] sm:$0xff]
      %v1011 = vld [vmem:[%s718 + $0x110] sm:$0xff]
      %v1012 = vld [vmem:[%s718 + $0x120] sm:$0xff]
      %v1013 = vld [vmem:[%s718 + $0x128] sm:$0xff]
      %v1014 = vld [vmem:[%s718 + $0x138] sm:$0xff]
      %v1015 = vld [vmem:[%s718 + $0x140] sm:$0xff]
      %v1016 = vld [vmem:[%s718 + $0x150] sm:$0xff]
      %v1017 = vld [vmem:[%s718 + $0x158] sm:$0xff]
      %v1018 = vld [vmem:[%s718 + $0x168] sm:$0xff]
      %v1019 = vld [vmem:[%s718 + $0x170] sm:$0xff]
      %v1020 = vpack.c.bf16 %v989, %v988
      %v1021 = vpack.c.bf16 %v991, %v990
      %v1022 = vpack.c.bf16 %v993, %v992
      %v1023 = vpack.c.bf16 %v995, %v994
      %v1024 = vpack.c.bf16 %v997, %v996
      %v1025 = vpack.c.bf16 %v999, %v998
      %v1026 = vpack.c.bf16 %v1001, %v1000
      %v1027 = vpack.c.bf16 %v1003, %v1002
      %v1028 = vpack.c.bf16 %v1005, %v1004
      %v1029 = vpack.c.bf16 %v1007, %v1006
      %v1030 = vpack.c.bf16 %v1009, %v1008
      %v1031 = vpack.c.bf16 %v1011, %v1010
      %v1032 = vpack.c.bf16 %v1013, %v1012
      %v1033 = vpack.c.bf16 %v1015, %v1014
      %v1034 = vpack.c.bf16 %v1017, %v1016
      %v1035 = vpack.c.bf16 %v1019, %v1018
      %1036 = vst [vmem:[#allocation3 + $0x18] sm:$0xff] %v1020
      %1037 = vst [vmem:[#allocation3 + $0x60] sm:$0xff] %v1021
      %1038 = vst [vmem:[#allocation3 + $0xa8] sm:$0xff] %v1022
      %1039 = vst [vmem:[#allocation3 + $0xf0] sm:$0xff] %v1023
      %1040 = vst [vmem:[#allocation3 + $0x138] sm:$0xff] %v1024
      %1041 = vst [vmem:[#allocation3 + $0x180] sm:$0xff] %v1025
      %1042 = vst [vmem:[#allocation3 + $0x1c8] sm:$0xff] %v1026
      %1043 = vst [vmem:[#allocation3 + $0x210] sm:$0xff] %v1027
      %1044 = vst [vmem:[#allocation3 + $0x258] sm:$0xff] %v1028
      %1045 = vst [vmem:[#allocation3 + $0x2a0] sm:$0xff] %v1029
      %1046 = vst [vmem:[#allocation3 + $0x2e8] sm:$0xff] %v1030
      %1047 = vst [vmem:[#allocation3 + $0x330] sm:$0xff] %v1031
      %1048 = vst [vmem:[#allocation3 + $0x378] sm:$0xff] %v1032
      %1049 = vst [vmem:[#allocation3 + $0x3c0] sm:$0xff] %v1033
      %1050 = vst [vmem:[#allocation3 + $0x408] sm:$0xff] %v1034
      %1051 = vst [vmem:[#allocation3 + $0x450] sm:$0xff] %v1035
      %v1052 = vld [vmem:[%s718 + $0x1] sm:$0xff]
      %v1053 = vld [vmem:[%s718 + $0x9] sm:$0xff]
      %v1054 = vld [vmem:[%s718 + $0x19] sm:$0xff]
      %v1055 = vld [vmem:[%s718 + $0x21] sm:$0xff]
      %v1056 = vld [vmem:[%s718 + $0x31] sm:$0xff]
      %v1057 = vld [vmem:[%s718 + $0x39] sm:$0xff]
      %v1058 = vld [vmem:[%s718 + $0x49] sm:$0xff]
      %v1059 = vld [vmem:[%s718 + $0x51] sm:$0xff]
      %v1060 = vld [vmem:[%s718 + $0x61] sm:$0xff]
      %v1061 = vld [vmem:[%s718 + $0x69] sm:$0xff]
      %v1062 = vld [vmem:[%s718 + $0x79] sm:$0xff]
      %v1063 = vld [vmem:[%s718 + $0x81] sm:$0xff]
      %v1064 = vld [vmem:[%s718 + $0x91] sm:$0xff]
      %v1065 = vld [vmem:[%s718 + $0x99] sm:$0xff]
      %v1066 = vld [vmem:[%s718 + $0xa9] sm:$0xff]
      %v1067 = vld [vmem:[%s718 + $0xb1] sm:$0xff]
      %v1068 = vld [vmem:[%s718 + $0xc1] sm:$0xff]
      %v1069 = vld [vmem:[%s718 + $0xc9] sm:$0xff]
      %v1070 = vld [vmem:[%s718 + $0xd9] sm:$0xff]
      %v1071 = vld [vmem:[%s718 + $0xe1] sm:$0xff]
      %v1072 = vld [vmem:[%s718 + $0xf1] sm:$0xff]
      %v1073 = vld [vmem:[%s718 + $0xf9] sm:$0xff]
      %v1074 = vld [vmem:[%s718 + $0x109] sm:$0xff]
      %v1075 = vld [vmem:[%s718 + $0x111] sm:$0xff]
      %v1076 = vld [vmem:[%s718 + $0x121] sm:$0xff]
      %v1077 = vld [vmem:[%s718 + $0x129] sm:$0xff]
      %v1078 = vld [vmem:[%s718 + $0x139] sm:$0xff]
      %v1079 = vld [vmem:[%s718 + $0x141] sm:$0xff]
      %v1080 = vld [vmem:[%s718 + $0x151] sm:$0xff]
      %v1081 = vld [vmem:[%s718 + $0x159] sm:$0xff]
      %v1082 = vld [vmem:[%s718 + $0x169] sm:$0xff]
      %v1083 = vld [vmem:[%s718 + $0x171] sm:$0xff]
      %v1084 = vpack.c.bf16 %v1053, %v1052
      %v1085 = vpack.c.bf16 %v1055, %v1054
      %v1086 = vpack.c.bf16 %v1057, %v1056
      %v1087 = vpack.c.bf16 %v1059, %v1058
      %v1088 = vpack.c.bf16 %v1061, %v1060
      %v1089 = vpack.c.bf16 %v1063, %v1062
      %v1090 = vpack.c.bf16 %v1065, %v1064
      %v1091 = vpack.c.bf16 %v1067, %v1066
      %v1092 = vpack.c.bf16 %v1069, %v1068
      %v1093 = vpack.c.bf16 %v1071, %v1070
      %v1094 = vpack.c.bf16 %v1073, %v1072
      %v1095 = vpack.c.bf16 %v1075, %v1074
      %v1096 = vpack.c.bf16 %v1077, %v1076
      %v1097 = vpack.c.bf16 %v1079, %v1078
      %v1098 = vpack.c.bf16 %v1081, %v1080
      %v1099 = vpack.c.bf16 %v1083, %v1082
      %1100 = vst [vmem:[#allocation3 + $0x20] sm:$0xff] %v1084
      %1101 = vst [vmem:[#allocation3 + $0x68] sm:$0xff] %v1085
      %1102 = vst [vmem:[#allocation3 + $0xb0] sm:$0xff] %v1086
      %1103 = vst [vmem:[#allocation3 + $0xf8] sm:$0xff] %v1087
      %1104 = vst [vmem:[#allocation3 + $0x140] sm:$0xff] %v1088
      %1105 = vst [vmem:[#allocation3 + $0x188] sm:$0xff] %v1089
      %1106 = vst [vmem:[#allocation3 + $0x1d0] sm:$0xff] %v1090
      %1107 = vst [vmem:[#allocation3 + $0x218] sm:$0xff] %v1091
      %1108 = vst [vmem:[#allocation3 + $0x260] sm:$0xff] %v1092
      %1109 = vst [vmem:[#allocation3 + $0x2a8] sm:$0xff] %v1093
      %1110 = vst [vmem:[#allocation3 + $0x2f0] sm:$0xff] %v1094
      %1111 = vst [vmem:[#allocation3 + $0x338] sm:$0xff] %v1095
      %1112 = vst [vmem:[#allocation3 + $0x380] sm:$0xff] %v1096
      %1113 = vst [vmem:[#allocation3 + $0x3c8] sm:$0xff] %v1097
      %1114 = vst [vmem:[#allocation3 + $0x410] sm:$0xff] %v1098
      %1115 = vst [vmem:[#allocation3 + $0x458] sm:$0xff] %v1099
      %v1116 = vld [vmem:[%s718 + $0x2] sm:$0xff]
      %v1117 = vld [vmem:[%s718 + $0xa] sm:$0xff]
      %v1118 = vld [vmem:[%s718 + $0x1a] sm:$0xff]
      %v1119 = vld [vmem:[%s718 + $0x22] sm:$0xff]
      %v1120 = vld [vmem:[%s718 + $0x32] sm:$0xff]
      %v1121 = vld [vmem:[%s718 + $0x3a] sm:$0xff]
      %v1122 = vld [vmem:[%s718 + $0x4a] sm:$0xff]
      %v1123 = vld [vmem:[%s718 + $0x52] sm:$0xff]
      %v1124 = vld [vmem:[%s718 + $0x62] sm:$0xff]
      %v1125 = vld [vmem:[%s718 + $0x6a] sm:$0xff]
      %v1126 = vld [vmem:[%s718 + $0x7a] sm:$0xff]
      %v1127 = vld [vmem:[%s718 + $0x82] sm:$0xff]
      %v1128 = vld [vmem:[%s718 + $0x92] sm:$0xff]
      %v1129 = vld [vmem:[%s718 + $0x9a] sm:$0xff]
      %v1130 = vld [vmem:[%s718 + $0xaa] sm:$0xff]
      %v1131 = vld [vmem:[%s718 + $0xb2] sm:$0xff]
      %v1132 = vld [vmem:[%s718 + $0xc2] sm:$0xff]
      %v1133 = vld [vmem:[%s718 + $0xca] sm:$0xff]
      %v1134 = vld [vmem:[%s718 + $0xda] sm:$0xff]
      %v1135 = vld [vmem:[%s718 + $0xe2] sm:$0xff]
      %v1136 = vld [vmem:[%s718 + $0xf2] sm:$0xff]
      %v1137 = vld [vmem:[%s718 + $0xfa] sm:$0xff]
      %v1138 = vld [vmem:[%s718 + $0x10a] sm:$0xff]
      %v1139 = vld [vmem:[%s718 + $0x112] sm:$0xff]
      %v1140 = vld [vmem:[%s718 + $0x122] sm:$0xff]
      %v1141 = vld [vmem:[%s718 + $0x12a] sm:$0xff]
      %v1142 = vld [vmem:[%s718 + $0x13a] sm:$0xff]
      %v1143 = vld [vmem:[%s718 + $0x142] sm:$0xff]
      %v1144 = vld [vmem:[%s718 + $0x152] sm:$0xff]
      %v1145 = vld [vmem:[%s718 + $0x15a] sm:$0xff]
      %v1146 = vld [vmem:[%s718 + $0x16a] sm:$0xff]
      %v1147 = vld [vmem:[%s718 + $0x172] sm:$0xff]
      %v1148 = vpack.c.bf16 %v1117, %v1116
      %v1149 = vpack.c.bf16 %v1119, %v1118
      %v1150 = vpack.c.bf16 %v1121, %v1120
      %v1151 = vpack.c.bf16 %v1123, %v1122
      %v1152 = vpack.c.bf16 %v1125, %v1124
      %v1153 = vpack.c.bf16 %v1127, %v1126
      %v1154 = vpack.c.bf16 %v1129, %v1128
      %v1155 = vpack.c.bf16 %v1131, %v1130
      %v1156 = vpack.c.bf16 %v1133, %v1132
      %v1157 = vpack.c.bf16 %v1135, %v1134
      %v1158 = vpack.c.bf16 %v1137, %v1136
      %v1159 = vpack.c.bf16 %v1139, %v1138
      %v1160 = vpack.c.bf16 %v1141, %v1140
      %v1161 = vpack.c.bf16 %v1143, %v1142
      %v1162 = vpack.c.bf16 %v1145, %v1144
      %v1163 = vpack.c.bf16 %v1147, %v1146
      %1164 = vst [vmem:[#allocation3 + $0x28] sm:$0xff] %v1148
      %1165 = vst [vmem:[#allocation3 + $0x70] sm:$0xff] %v1149
      %1166 = vst [vmem:[#allocation3 + $0xb8] sm:$0xff] %v1150
      %1167 = vst [vmem:[#allocation3 + $0x100] sm:$0xff] %v1151
      %1168 = vst [vmem:[#allocation3 + $0x148] sm:$0xff] %v1152
      %1169 = vst [vmem:[#allocation3 + $0x190] sm:$0xff] %v1153
      %1170 = vst [vmem:[#allocation3 + $0x1d8] sm:$0xff] %v1154
      %1171 = vst [vmem:[#allocation3 + $0x220] sm:$0xff] %v1155
      %1172 = vst [vmem:[#allocation3 + $0x268] sm:$0xff] %v1156
      %1173 = vst [vmem:[#allocation3 + $0x2b0] sm:$0xff] %v1157
      %1174 = vst [vmem:[#allocation3 + $0x2f8] sm:$0xff] %v1158
      %1175 = vst [vmem:[#allocation3 + $0x340] sm:$0xff] %v1159
      %1176 = vst [vmem:[#allocation3 + $0x388] sm:$0xff] %v1160
      %1177 = vst [vmem:[#allocation3 + $0x3d0] sm:$0xff] %v1161
      %1178 = vst [vmem:[#allocation3 + $0x418] sm:$0xff] %v1162
      %1179 = vst [vmem:[#allocation3 + $0x460] sm:$0xff] %v1163
      %s1180 = scalar_lea.vmem [#allocation2], 48
      %v1181 = vld [vmem:[%s1180] sm:$0xff]
      %v1182 = vld [vmem:[%s1180 + $0x8] sm:$0xff]
      %v1183 = vld [vmem:[%s1180 + $0x18] sm:$0xff]
      %v1184 = vld [vmem:[%s1180 + $0x20] sm:$0xff]
      %v1185 = vld [vmem:[%s1180 + $0x30] sm:$0xff]
      %v1186 = vld [vmem:[%s1180 + $0x38] sm:$0xff]
      %v1187 = vld [vmem:[%s1180 + $0x48] sm:$0xff]
      %v1188 = vld [vmem:[%s1180 + $0x50] sm:$0xff]
      %v1189 = vld [vmem:[%s1180 + $0x60] sm:$0xff]
      %v1190 = vld [vmem:[%s1180 + $0x68] sm:$0xff]
      %v1191 = vld [vmem:[%s1180 + $0x78] sm:$0xff]
      %v1192 = vld [vmem:[%s1180 + $0x80] sm:$0xff]
      %v1193 = vld [vmem:[%s1180 + $0x90] sm:$0xff]
      %v1194 = vld [vmem:[%s1180 + $0x98] sm:$0xff]
      %v1195 = vld [vmem:[%s1180 + $0xa8] sm:$0xff]
      %v1196 = vld [vmem:[%s1180 + $0xb0] sm:$0xff]
      %v1197 = vld [vmem:[%s1180 + $0xc0] sm:$0xff]
      %v1198 = vld [vmem:[%s1180 + $0xc8] sm:$0xff]
      %v1199 = vld [vmem:[%s1180 + $0xd8] sm:$0xff]
      %v1200 = vld [vmem:[%s1180 + $0xe0] sm:$0xff]
      %v1201 = vld [vmem:[%s1180 + $0xf0] sm:$0xff]
      %v1202 = vld [vmem:[%s1180 + $0xf8] sm:$0xff]
      %v1203 = vld [vmem:[%s1180 + $0x108] sm:$0xff]
      %v1204 = vld [vmem:[%s1180 + $0x110] sm:$0xff]
      %v1205 = vld [vmem:[%s1180 + $0x120] sm:$0xff]
      %v1206 = vld [vmem:[%s1180 + $0x128] sm:$0xff]
      %v1207 = vld [vmem:[%s1180 + $0x138] sm:$0xff]
      %v1208 = vld [vmem:[%s1180 + $0x140] sm:$0xff]
      %v1209 = vld [vmem:[%s1180 + $0x150] sm:$0xff]
      %v1210 = vld [vmem:[%s1180 + $0x158] sm:$0xff]
      %v1211 = vld [vmem:[%s1180 + $0x168] sm:$0xff]
      %v1212 = vld [vmem:[%s1180 + $0x170] sm:$0xff]
      %v1213 = vpack.c.bf16 %v1182, %v1181
      %v1214 = vpack.c.bf16 %v1184, %v1183
      %v1215 = vpack.c.bf16 %v1186, %v1185
      %v1216 = vpack.c.bf16 %v1188, %v1187
      %v1217 = vpack.c.bf16 %v1190, %v1189
      %v1218 = vpack.c.bf16 %v1192, %v1191
      %v1219 = vpack.c.bf16 %v1194, %v1193
      %v1220 = vpack.c.bf16 %v1196, %v1195
      %v1221 = vpack.c.bf16 %v1198, %v1197
      %v1222 = vpack.c.bf16 %v1200, %v1199
      %v1223 = vpack.c.bf16 %v1202, %v1201
      %v1224 = vpack.c.bf16 %v1204, %v1203
      %v1225 = vpack.c.bf16 %v1206, %v1205
      %v1226 = vpack.c.bf16 %v1208, %v1207
      %v1227 = vpack.c.bf16 %v1210, %v1209
      %v1228 = vpack.c.bf16 %v1212, %v1211
      %1229 = vst [vmem:[#allocation3 + $0x30] sm:$0xff] %v1213
      %1230 = vst [vmem:[#allocation3 + $0x78] sm:$0xff] %v1214
      %1231 = vst [vmem:[#allocation3 + $0xc0] sm:$0xff] %v1215
      %1232 = vst [vmem:[#allocation3 + $0x108] sm:$0xff] %v1216
      %1233 = vst [vmem:[#allocation3 + $0x150] sm:$0xff] %v1217
      %1234 = vst [vmem:[#allocation3 + $0x198] sm:$0xff] %v1218
      %1235 = vst [vmem:[#allocation3 + $0x1e0] sm:$0xff] %v1219
      %1236 = vst [vmem:[#allocation3 + $0x228] sm:$0xff] %v1220
      %1237 = vst [vmem:[#allocation3 + $0x270] sm:$0xff] %v1221
      %1238 = vst [vmem:[#allocation3 + $0x2b8] sm:$0xff] %v1222
      %1239 = vst [vmem:[#allocation3 + $0x300] sm:$0xff] %v1223
      %1240 = vst [vmem:[#allocation3 + $0x348] sm:$0xff] %v1224
      %1241 = vst [vmem:[#allocation3 + $0x390] sm:$0xff] %v1225
      %1242 = vst [vmem:[#allocation3 + $0x3d8] sm:$0xff] %v1226
      %1243 = vst [vmem:[#allocation3 + $0x420] sm:$0xff] %v1227
      %1244 = vst [vmem:[#allocation3 + $0x468] sm:$0xff] %v1228
      %v1245 = vld [vmem:[%s1180 + $0x1] sm:$0xff]
      %v1246 = vld [vmem:[%s1180 + $0x9] sm:$0xff]
      %v1247 = vld [vmem:[%s1180 + $0x19] sm:$0xff]
      %v1248 = vld [vmem:[%s1180 + $0x21] sm:$0xff]
      %v1249 = vld [vmem:[%s1180 + $0x31] sm:$0xff]
      %v1250 = vld [vmem:[%s1180 + $0x39] sm:$0xff]
      %v1251 = vld [vmem:[%s1180 + $0x49] sm:$0xff]
      %v1252 = vld [vmem:[%s1180 + $0x51] sm:$0xff]
      %v1253 = vld [vmem:[%s1180 + $0x61] sm:$0xff]
      %v1254 = vld [vmem:[%s1180 + $0x69] sm:$0xff]
      %v1255 = vld [vmem:[%s1180 + $0x79] sm:$0xff]
      %v1256 = vld [vmem:[%s1180 + $0x81] sm:$0xff]
      %v1257 = vld [vmem:[%s1180 + $0x91] sm:$0xff]
      %v1258 = vld [vmem:[%s1180 + $0x99] sm:$0xff]
      %v1259 = vld [vmem:[%s1180 + $0xa9] sm:$0xff]
      %v1260 = vld [vmem:[%s1180 + $0xb1] sm:$0xff]
      %v1261 = vld [vmem:[%s1180 + $0xc1] sm:$0xff]
      %v1262 = vld [vmem:[%s1180 + $0xc9] sm:$0xff]
      %v1263 = vld [vmem:[%s1180 + $0xd9] sm:$0xff]
      %v1264 = vld [vmem:[%s1180 + $0xe1] sm:$0xff]
      %v1265 = vld [vmem:[%s1180 + $0xf1] sm:$0xff]
      %v1266 = vld [vmem:[%s1180 + $0xf9] sm:$0xff]
      %v1267 = vld [vmem:[%s1180 + $0x109] sm:$0xff]
      %v1268 = vld [vmem:[%s1180 + $0x111] sm:$0xff]
      %v1269 = vld [vmem:[%s1180 + $0x121] sm:$0xff]
      %v1270 = vld [vmem:[%s1180 + $0x129] sm:$0xff]
      %v1271 = vld [vmem:[%s1180 + $0x139] sm:$0xff]
      %v1272 = vld [vmem:[%s1180 + $0x141] sm:$0xff]
      %v1273 = vld [vmem:[%s1180 + $0x151] sm:$0xff]
      %v1274 = vld [vmem:[%s1180 + $0x159] sm:$0xff]
      %v1275 = vld [vmem:[%s1180 + $0x169] sm:$0xff]
      %v1276 = vld [vmem:[%s1180 + $0x171] sm:$0xff]
      %v1277 = vpack.c.bf16 %v1246, %v1245
      %v1278 = vpack.c.bf16 %v1248, %v1247
      %v1279 = vpack.c.bf16 %v1250, %v1249
      %v1280 = vpack.c.bf16 %v1252, %v1251
      %v1281 = vpack.c.bf16 %v1254, %v1253
      %v1282 = vpack.c.bf16 %v1256, %v1255
      %v1283 = vpack.c.bf16 %v1258, %v1257
      %v1284 = vpack.c.bf16 %v1260, %v1259
      %v1285 = vpack.c.bf16 %v1262, %v1261
      %v1286 = vpack.c.bf16 %v1264, %v1263
      %v1287 = vpack.c.bf16 %v1266, %v1265
      %v1288 = vpack.c.bf16 %v1268, %v1267
      %v1289 = vpack.c.bf16 %v1270, %v1269
      %v1290 = vpack.c.bf16 %v1272, %v1271
      %v1291 = vpack.c.bf16 %v1274, %v1273
      %v1292 = vpack.c.bf16 %v1276, %v1275
      %1293 = vst [vmem:[#allocation3 + $0x38] sm:$0xff] %v1277
      %1294 = vst [vmem:[#allocation3 + $0x80] sm:$0xff] %v1278
      %1295 = vst [vmem:[#allocation3 + $0xc8] sm:$0xff] %v1279
      %1296 = vst [vmem:[#allocation3 + $0x110] sm:$0xff] %v1280
      %1297 = vst [vmem:[#allocation3 + $0x158] sm:$0xff] %v1281
      %1298 = vst [vmem:[#allocation3 + $0x1a0] sm:$0xff] %v1282
      %1299 = vst [vmem:[#allocation3 + $0x1e8] sm:$0xff] %v1283
      %1300 = vst [vmem:[#allocation3 + $0x230] sm:$0xff] %v1284
      %1301 = vst [vmem:[#allocation3 + $0x278] sm:$0xff] %v1285
      %1302 = vst [vmem:[#allocation3 + $0x2c0] sm:$0xff] %v1286
      %1303 = vst [vmem:[#allocation3 + $0x308] sm:$0xff] %v1287
      %1304 = vst [vmem:[#allocation3 + $0x350] sm:$0xff] %v1288
      %1305 = vst [vmem:[#allocation3 + $0x398] sm:$0xff] %v1289
      %1306 = vst [vmem:[#allocation3 + $0x3e0] sm:$0xff] %v1290
      %1307 = vst [vmem:[#allocation3 + $0x428] sm:$0xff] %v1291
      %1308 = vst [vmem:[#allocation3 + $0x470] sm:$0xff] %v1292
      %v1309 = vld [vmem:[%s1180 + $0x2] sm:$0xff]
      %v1310 = vld [vmem:[%s1180 + $0xa] sm:$0xff]
      %v1311 = vld [vmem:[%s1180 + $0x1a] sm:$0xff]
      %v1312 = vld [vmem:[%s1180 + $0x22] sm:$0xff]
      %v1313 = vld [vmem:[%s1180 + $0x32] sm:$0xff]
      %v1314 = vld [vmem:[%s1180 + $0x3a] sm:$0xff]
      %v1315 = vld [vmem:[%s1180 + $0x4a] sm:$0xff]
      %v1316 = vld [vmem:[%s1180 + $0x52] sm:$0xff]
      %v1317 = vld [vmem:[%s1180 + $0x62] sm:$0xff]
      %v1318 = vld [vmem:[%s1180 + $0x6a] sm:$0xff]
      %v1319 = vld [vmem:[%s1180 + $0x7a] sm:$0xff]
      %v1320 = vld [vmem:[%s1180 + $0x82] sm:$0xff]
      %v1321 = vld [vmem:[%s1180 + $0x92] sm:$0xff]
      %v1322 = vld [vmem:[%s1180 + $0x9a] sm:$0xff]
      %v1323 = vld [vmem:[%s1180 + $0xaa] sm:$0xff]
      %v1324 = vld [vmem:[%s1180 + $0xb2] sm:$0xff]
      %v1325 = vld [vmem:[%s1180 + $0xc2] sm:$0xff]
      %v1326 = vld [vmem:[%s1180 + $0xca] sm:$0xff]
      %v1327 = vld [vmem:[%s1180 + $0xda] sm:$0xff]
      %v1328 = vld [vmem:[%s1180 + $0xe2] sm:$0xff]
      %v1329 = vld [vmem:[%s1180 + $0xf2] sm:$0xff]
      %v1330 = vld [vmem:[%s1180 + $0xfa] sm:$0xff]
      %v1331 = vld [vmem:[%s1180 + $0x10a] sm:$0xff]
      %v1332 = vld [vmem:[%s1180 + $0x112] sm:$0xff]
      %v1333 = vld [vmem:[%s1180 + $0x122] sm:$0xff]
      %v1334 = vld [vmem:[%s1180 + $0x12a] sm:$0xff]
      %v1335 = vld [vmem:[%s1180 + $0x13a] sm:$0xff]
      %v1336 = vld [vmem:[%s1180 + $0x142] sm:$0xff]
      %v1337 = vld [vmem:[%s1180 + $0x152] sm:$0xff]
      %v1338 = vld [vmem:[%s1180 + $0x15a] sm:$0xff]
      %v1339 = vld [vmem:[%s1180 + $0x16a] sm:$0xff]
      %v1340 = vld [vmem:[%s1180 + $0x172] sm:$0xff]
      %v1341 = vpack.c.bf16 %v1310, %v1309
      %v1342 = vpack.c.bf16 %v1312, %v1311
      %v1343 = vpack.c.bf16 %v1314, %v1313
      %v1344 = vpack.c.bf16 %v1316, %v1315
      %v1345 = vpack.c.bf16 %v1318, %v1317
      %v1346 = vpack.c.bf16 %v1320, %v1319
      %v1347 = vpack.c.bf16 %v1322, %v1321
      %v1348 = vpack.c.bf16 %v1324, %v1323
      %v1349 = vpack.c.bf16 %v1326, %v1325
      %v1350 = vpack.c.bf16 %v1328, %v1327
      %v1351 = vpack.c.bf16 %v1330, %v1329
      %v1352 = vpack.c.bf16 %v1332, %v1331
      %v1353 = vpack.c.bf16 %v1334, %v1333
      %v1354 = vpack.c.bf16 %v1336, %v1335
      %v1355 = vpack.c.bf16 %v1338, %v1337
      %v1356 = vpack.c.bf16 %v1340, %v1339
      %1357 = vst [vmem:[#allocation3 + $0x40] sm:$0xff] %v1341
      %1358 = vst [vmem:[#allocation3 + $0x88] sm:$0xff] %v1342
      %1359 = vst [vmem:[#allocation3 + $0xd0] sm:$0xff] %v1343
      %1360 = vst [vmem:[#allocation3 + $0x118] sm:$0xff] %v1344
      %1361 = vst [vmem:[#allocation3 + $0x160] sm:$0xff] %v1345
      %1362 = vst [vmem:[#allocation3 + $0x1a8] sm:$0xff] %v1346
      %1363 = vst [vmem:[#allocation3 + $0x1f0] sm:$0xff] %v1347
      %1364 = vst [vmem:[#allocation3 + $0x238] sm:$0xff] %v1348
      %1365 = vst [vmem:[#allocation3 + $0x280] sm:$0xff] %v1349
      %1366 = vst [vmem:[#allocation3 + $0x2c8] sm:$0xff] %v1350
      %1367 = vst [vmem:[#allocation3 + $0x310] sm:$0xff] %v1351
      %1368 = vst [vmem:[#allocation3 + $0x358] sm:$0xff] %v1352
      %1369 = vst [vmem:[#allocation3 + $0x3a0] sm:$0xff] %v1353
      %1370 = vst [vmem:[#allocation3 + $0x3e8] sm:$0xff] %v1354
      %1371 = vst [vmem:[#allocation3 + $0x430] sm:$0xff] %v1355
      %1372 = vst [vmem:[#allocation3 + $0x478] sm:$0xff] %v1356
      %v1373 = vld [vmem:[#allocation3] sm:$0xff]
      %v1374 = vld [vmem:[#allocation3 + $0x8] sm:$0xff]
      %v1375 = vld [vmem:[#allocation3 + $0x10] sm:$0xff]
      %v1376 = vld [vmem:[#allocation3 + $0x18] sm:$0xff]
      %v1377 = vld [vmem:[#allocation3 + $0x20] sm:$0xff]
      %v1378 = vld [vmem:[#allocation3 + $0x28] sm:$0xff]
      %v1379 = vld [vmem:[#allocation3 + $0x30] sm:$0xff]
      %v1380 = vld [vmem:[#allocation3 + $0x38] sm:$0xff]
      %v1381 = vld [vmem:[#allocation3 + $0x40] sm:$0xff]
      %v1382 = vld [vmem:[#allocation3 + $0x48] sm:$0xff]
      %v1383 = vld [vmem:[#allocation3 + $0x50] sm:$0xff]
      %v1384 = vld [vmem:[#allocation3 + $0x58] sm:$0xff]
      %v1385 = vld [vmem:[#allocation3 + $0x60] sm:$0xff]
      %v1386 = vld [vmem:[#allocation3 + $0x68] sm:$0xff]
      %v1387 = vld [vmem:[#allocation3 + $0x70] sm:$0xff]
      %v1388 = vld [vmem:[#allocation3 + $0x78] sm:$0xff]
      %v1389 = vld [vmem:[#allocation3 + $0x80] sm:$0xff]
      %v1390 = vld [vmem:[#allocation3 + $0x88] sm:$0xff]
      %v1391 = vld [vmem:[#allocation3 + $0x90] sm:$0xff]
      %v1392 = vld [vmem:[#allocation3 + $0x98] sm:$0xff]
      %v1393 = vld [vmem:[#allocation3 + $0xa0] sm:$0xff]
      %v1394 = vld [vmem:[#allocation3 + $0xa8] sm:$0xff]
      %v1395 = vld [vmem:[#allocation3 + $0xb0] sm:$0xff]
      %v1396 = vld [vmem:[#allocation3 + $0xb8] sm:$0xff]
      %v1397 = vld [vmem:[#allocation3 + $0xc0] sm:$0xff]
      %v1398 = vld [vmem:[#allocation3 + $0xc8] sm:$0xff]
      %v1399 = vld [vmem:[#allocation3 + $0xd0] sm:$0xff]
      %v1400 = vld [vmem:[#allocation3 + $0xd8] sm:$0xff]
      %v1401 = vld [vmem:[#allocation3 + $0xe0] sm:$0xff]
      %v1402 = vld [vmem:[#allocation3 + $0xe8] sm:$0xff]
      %v1403 = vld [vmem:[#allocation3 + $0xf0] sm:$0xff]
      %v1404 = vld [vmem:[#allocation3 + $0xf8] sm:$0xff]
      %v1405 = vld [vmem:[#allocation3 + $0x100] sm:$0xff]
      %v1406 = vld [vmem:[#allocation3 + $0x108] sm:$0xff]
      %v1407 = vld [vmem:[#allocation3 + $0x110] sm:$0xff]
      %v1408 = vld [vmem:[#allocation3 + $0x118] sm:$0xff]
      %v1409 = vld [vmem:[#allocation3 + $0x120] sm:$0xff]
      %v1410 = vld [vmem:[#allocation3 + $0x128] sm:$0xff]
      %v1411 = vld [vmem:[#allocation3 + $0x130] sm:$0xff]
      %v1412 = vld [vmem:[#allocation3 + $0x138] sm:$0xff]
      %v1413 = vld [vmem:[#allocation3 + $0x140] sm:$0xff]
      %v1414 = vld [vmem:[#allocation3 + $0x148] sm:$0xff]
      %v1415 = vld [vmem:[#allocation3 + $0x150] sm:$0xff]
      %v1416 = vld [vmem:[#allocation3 + $0x158] sm:$0xff]
      %v1417 = vld [vmem:[#allocation3 + $0x160] sm:$0xff]
      %v1418 = vld [vmem:[#allocation3 + $0x168] sm:$0xff]
      %v1419 = vld [vmem:[#allocation3 + $0x170] sm:$0xff]
      %v1420 = vld [vmem:[#allocation3 + $0x178] sm:$0xff]
      %v1421 = vld [vmem:[#allocation3 + $0x180] sm:$0xff]
      %v1422 = vld [vmem:[#allocation3 + $0x188] sm:$0xff]
      %v1423 = vld [vmem:[#allocation3 + $0x190] sm:$0xff]
      %v1424 = vld [vmem:[#allocation3 + $0x198] sm:$0xff]
      %v1425 = vld [vmem:[#allocation3 + $0x1a0] sm:$0xff]
      %v1426 = vld [vmem:[#allocation3 + $0x1a8] sm:$0xff]
      %v1427 = vld [vmem:[#allocation3 + $0x1b0] sm:$0xff]
      %v1428 = vld [vmem:[#allocation3 + $0x1b8] sm:$0xff]
      %v1429 = vld [vmem:[#allocation3 + $0x1c0] sm:$0xff]
      %v1430 = vld [vmem:[#allocation3 + $0x1c8] sm:$0xff]
      %v1431 = vld [vmem:[#allocation3 + $0x1d0] sm:$0xff]
      %v1432 = vld [vmem:[#allocation3 + $0x1d8] sm:$0xff]
      %v1433 = vld [vmem:[#allocation3 + $0x1e0] sm:$0xff]
      %v1434 = vld [vmem:[#allocation3 + $0x1e8] sm:$0xff]
      %v1435 = vld [vmem:[#allocation3 + $0x1f0] sm:$0xff]
      %v1436 = vld [vmem:[#allocation3 + $0x1f8] sm:$0xff]
      %v1437 = vld [vmem:[#allocation3 + $0x200] sm:$0xff]
      %v1438 = vld [vmem:[#allocation3 + $0x208] sm:$0xff]
      %v1439 = vld [vmem:[#allocation3 + $0x210] sm:$0xff]
      %v1440 = vld [vmem:[#allocation3 + $0x218] sm:$0xff]
      %v1441 = vld [vmem:[#allocation3 + $0x220] sm:$0xff]
      %v1442 = vld [vmem:[#allocation3 + $0x228] sm:$0xff]
      %v1443 = vld [vmem:[#allocation3 + $0x230] sm:$0xff]
      %v1444 = vld [vmem:[#allocation3 + $0x238] sm:$0xff]
      %v1445 = vld [vmem:[#allocation3 + $0x240] sm:$0xff]
      %v1446 = vld [vmem:[#allocation3 + $0x248] sm:$0xff]
      %v1447 = vld [vmem:[#allocation3 + $0x250] sm:$0xff]
      %v1448 = vld [vmem:[#allocation3 + $0x258] sm:$0xff]
      %v1449 = vld [vmem:[#allocation3 + $0x260] sm:$0xff]
      %v1450 = vld [vmem:[#allocation3 + $0x268] sm:$0xff]
      %v1451 = vld [vmem:[#allocation3 + $0x270] sm:$0xff]
      %v1452 = vld [vmem:[#allocation3 + $0x278] sm:$0xff]
      %v1453 = vld [vmem:[#allocation3 + $0x280] sm:$0xff]
      %v1454 = vld [vmem:[#allocation3 + $0x288] sm:$0xff]
      %v1455 = vld [vmem:[#allocation3 + $0x290] sm:$0xff]
      %v1456 = vld [vmem:[#allocation3 + $0x298] sm:$0xff]
      %v1457 = vld [vmem:[#allocation3 + $0x2a0] sm:$0xff]
      %v1458 = vld [vmem:[#allocation3 + $0x2a8] sm:$0xff]
      %v1459 = vld [vmem:[#allocation3 + $0x2b0] sm:$0xff]
      %v1460 = vld [vmem:[#allocation3 + $0x2b8] sm:$0xff]
      %v1461 = vld [vmem:[#allocation3 + $0x2c0] sm:$0xff]
      %v1462 = vld [vmem:[#allocation3 + $0x2c8] sm:$0xff]
      %v1463 = vld [vmem:[#allocation3 + $0x2d0] sm:$0xff]
      %v1464 = vld [vmem:[#allocation3 + $0x2d8] sm:$0xff]
      %v1465 = vld [vmem:[#allocation3 + $0x2e0] sm:$0xff]
      %v1466 = vld [vmem:[#allocation3 + $0x2e8] sm:$0xff]
      %v1467 = vld [vmem:[#allocation3 + $0x2f0] sm:$0xff]
      %v1468 = vld [vmem:[#allocation3 + $0x2f8] sm:$0xff]
      %v1469 = vld [vmem:[#allocation3 + $0x300] sm:$0xff]
      %v1470 = vld [vmem:[#allocation3 + $0x308] sm:$0xff]
      %v1471 = vld [vmem:[#allocation3 + $0x310] sm:$0xff]
      %v1472 = vld [vmem:[#allocation3 + $0x318] sm:$0xff]
      %v1473 = vld [vmem:[#allocation3 + $0x320] sm:$0xff]
      %v1474 = vld [vmem:[#allocation3 + $0x328] sm:$0xff]
      %v1475 = vld [vmem:[#allocation3 + $0x330] sm:$0xff]
      %v1476 = vld [vmem:[#allocation3 + $0x338] sm:$0xff]
      %v1477 = vld [vmem:[#allocation3 + $0x340] sm:$0xff]
      %v1478 = vld [vmem:[#allocation3 + $0x348] sm:$0xff]
      %v1479 = vld [vmem:[#allocation3 + $0x350] sm:$0xff]
      %v1480 = vld [vmem:[#allocation3 + $0x358] sm:$0xff]
      %v1481 = vld [vmem:[#allocation3 + $0x360] sm:$0xff]
      %v1482 = vld [vmem:[#allocation3 + $0x368] sm:$0xff]
      %v1483 = vld [vmem:[#allocation3 + $0x370] sm:$0xff]
      %v1484 = vld [vmem:[#allocation3 + $0x378] sm:$0xff]
      %v1485 = vld [vmem:[#allocation3 + $0x380] sm:$0xff]
      %v1486 = vld [vmem:[#allocation3 + $0x388] sm:$0xff]
      %v1487 = vld [vmem:[#allocation3 + $0x390] sm:$0xff]
      %v1488 = vld [vmem:[#allocation3 + $0x398] sm:$0xff]
      %v1489 = vld [vmem:[#allocation3 + $0x3a0] sm:$0xff]
      %v1490 = vld [vmem:[#allocation3 + $0x3a8] sm:$0xff]
      %v1491 = vld [vmem:[#allocation3 + $0x3b0] sm:$0xff]
      %v1492 = vld [vmem:[#allocation3 + $0x3b8] sm:$0xff]
      %v1493 = vld [vmem:[#allocation3 + $0x3c0] sm:$0xff]
      %v1494 = vld [vmem:[#allocation3 + $0x3c8] sm:$0xff]
      %v1495 = vld [vmem:[#allocation3 + $0x3d0] sm:$0xff]
      %v1496 = vld [vmem:[#allocation3 + $0x3d8] sm:$0xff]
      %v1497 = vld [vmem:[#allocation3 + $0x3e0] sm:$0xff]
      %v1498 = vld [vmem:[#allocation3 + $0x3e8] sm:$0xff]
      %v1499 = vld [vmem:[#allocation3 + $0x3f0] sm:$0xff]
      %v1500 = vld [vmem:[#allocation3 + $0x3f8] sm:$0xff]
      %v1501 = vld [vmem:[#allocation3 + $0x400] sm:$0xff]
      %v1502 = vld [vmem:[#allocation3 + $0x408] sm:$0xff]
      %v1503 = vld [vmem:[#allocation3 + $0x410] sm:$0xff]
      %v1504 = vld [vmem:[#allocation3 + $0x418] sm:$0xff]
      %v1505 = vld [vmem:[#allocation3 + $0x420] sm:$0xff]
      %v1506 = vld [vmem:[#allocation3 + $0x428] sm:$0xff]
      %v1507 = vld [vmem:[#allocation3 + $0x430] sm:$0xff]
      %v1508 = vld [vmem:[#allocation3 + $0x438] sm:$0xff]
      %v1509 = vld [vmem:[#allocation3 + $0x440] sm:$0xff]
      %v1510 = vld [vmem:[#allocation3 + $0x448] sm:$0xff]
      %v1511 = vld [vmem:[#allocation3 + $0x450] sm:$0xff]
      %v1512 = vld [vmem:[#allocation3 + $0x458] sm:$0xff]
      %v1513 = vld [vmem:[#allocation3 + $0x460] sm:$0xff]
      %v1514 = vld [vmem:[#allocation3 + $0x468] sm:$0xff]
      %v1515 = vld [vmem:[#allocation3 + $0x470] sm:$0xff]
      %v1516 = vld [vmem:[#allocation3 + $0x478] sm:$0xff]
      %v1517 = vld [vmem:[%s5] sm:$0xf]
      %v1518 = vld [vmem:[%s5 + $0x4] sm:$0xf]
      %v1519 = vld [vmem:[%s5 + $0x8] sm:$0xf]
      %v1520 = vld [vmem:[%s5 + $0xc] sm:$0xf]
      %v1521 = vld [vmem:[%s5 + $0x10] sm:$0xf]
      %v1522 = vld [vmem:[%s5 + $0x14] sm:$0xf]
      %v1523 = vld [vmem:[%s5 + $0x18] sm:$0xf]
      %v1524 = vld [vmem:[%s5 + $0x1c] sm:$0xf]
      %v1525 = vld [vmem:[%s5 + $0x20] sm:$0xf]
      %v1526 = vld [vmem:[%s5 + $0x24] sm:$0xf]
      %v1527 = vld [vmem:[%s5 + $0x28] sm:$0xf]
      %v1528 = vld [vmem:[%s5 + $0x2c] sm:$0xf]
      %v1529 = vld [vmem:[%s5 + $0x30] sm:$0xf]
      %v1530 = vld [vmem:[%s5 + $0x34] sm:$0xf]
      %v1531 = vld [vmem:[%s5 + $0x38] sm:$0xf]
      %v1532 = vld [vmem:[%s5 + $0x3c] sm:$0xf]
      %v1533 = vld [vmem:[%s5 + $0x40] sm:$0xf]
      %v1534 = vld [vmem:[%s5 + $0x44] sm:$0xf]
      %v1535 = vld [vmem:[%s5 + $0x48] sm:$0xf]
      %v1536 = vld [vmem:[%s5 + $0x4c] sm:$0xf]
      %v1537 = vld [vmem:[%s5 + $0x50] sm:$0xf]
      %v1538 = vld [vmem:[%s5 + $0x54] sm:$0xf]
      %v1539 = vld [vmem:[%s5 + $0x58] sm:$0xf]
      %v1540 = vld [vmem:[%s5 + $0x5c] sm:$0xf]
      %v1541 = vld [vmem:[%s5 + $0x60] sm:$0xf]
      %v1542 = vld [vmem:[%s5 + $0x64] sm:$0xf]
      %v1543 = vld [vmem:[%s5 + $0x68] sm:$0xf]
      %v1544 = vld [vmem:[%s5 + $0x6c] sm:$0xf]
      %v1545 = vld [vmem:[%s5 + $0x70] sm:$0xf]
      %v1546 = vld [vmem:[%s5 + $0x74] sm:$0xf]
      %v1547 = vld [vmem:[%s5 + $0x78] sm:$0xf]
      %v1548 = vld [vmem:[%s5 + $0x7c] sm:$0xf]
      %v1549 = vld [vmem:[%s5 + $0x80] sm:$0xf]
      %v1550 = vld [vmem:[%s5 + $0x84] sm:$0xf]
      %v1551 = vld [vmem:[%s5 + $0x88] sm:$0xf]
      %v1552 = vld [vmem:[%s5 + $0x8c] sm:$0xf]
      %v1553 = vld [vmem:[%s5 + $0x90] sm:$0xf]
      %v1554 = vld [vmem:[%s5 + $0x94] sm:$0xf]
      %v1555 = vld [vmem:[%s5 + $0x98] sm:$0xf]
      %v1556 = vld [vmem:[%s5 + $0x9c] sm:$0xf]
      %v1557 = vld [vmem:[%s5 + $0xa0] sm:$0xf]
      %v1558 = vld [vmem:[%s5 + $0xa4] sm:$0xf]
      %v1559 = vld [vmem:[%s5 + $0xa8] sm:$0xf]
      %v1560 = vld [vmem:[%s5 + $0xac] sm:$0xf]
      %v1561 = vld [vmem:[%s5 + $0xb0] sm:$0xf]
      %v1562 = vld [vmem:[%s5 + $0xb4] sm:$0xf]
      %v1563 = vld [vmem:[%s5 + $0xb8] sm:$0xf]
      %v1564 = vld [vmem:[%s5 + $0xbc] sm:$0xf]
      %v1565 = vld [vmem:[%s5 + $0xc0] sm:$0xf]
      %v1566 = vld [vmem:[%s5 + $0xc4] sm:$0xf]
      %v1567 = vld [vmem:[%s5 + $0xc8] sm:$0xf]
      %v1568 = vld [vmem:[%s5 + $0xcc] sm:$0xf]
      %v1569 = vld [vmem:[%s5 + $0xd0] sm:$0xf]
      %v1570 = vld [vmem:[%s5 + $0xd4] sm:$0xf]
      %v1571 = vld [vmem:[%s5 + $0xd8] sm:$0xf]
      %v1572 = vld [vmem:[%s5 + $0xdc] sm:$0xf]
      %v1573 = vld [vmem:[%s5 + $0xe0] sm:$0xf]
      %v1574 = vld [vmem:[%s5 + $0xe4] sm:$0xf]
      %v1575 = vld [vmem:[%s5 + $0xe8] sm:$0xf]
      %v1576 = vld [vmem:[%s5 + $0xec] sm:$0xf]
      %v1577 = vld [vmem:[%s5 + $0xf0] sm:$0xf]
      %v1578 = vld [vmem:[%s5 + $0xf4] sm:$0xf]
      %v1579 = vld [vmem:[%s5 + $0xf8] sm:$0xf]
      %v1580 = vld [vmem:[%s5 + $0xfc] sm:$0xf]
      %v1581 = vld [vmem:[%s5 + $0x100] sm:$0xf]
      %v1582 = vld [vmem:[%s5 + $0x104] sm:$0xf]
      %v1583 = vld [vmem:[%s5 + $0x108] sm:$0xf]
      %v1584 = vld [vmem:[%s5 + $0x10c] sm:$0xf]
      %v1585 = vld [vmem:[%s5 + $0x110] sm:$0xf]
      %v1586 = vld [vmem:[%s5 + $0x114] sm:$0xf]
      %v1587 = vld [vmem:[%s5 + $0x118] sm:$0xf]
      %v1588 = vld [vmem:[%s5 + $0x11c] sm:$0xf]
      %v1589 = vld [vmem:[%s5 + $0x120] sm:$0xf]
      %v1590 = vld [vmem:[%s5 + $0x124] sm:$0xf]
      %v1591 = vld [vmem:[%s5 + $0x128] sm:$0xf]
      %v1592 = vld [vmem:[%s5 + $0x12c] sm:$0xf]
      %v1593 = vld [vmem:[%s5 + $0x130] sm:$0xf]
      %v1594 = vld [vmem:[%s5 + $0x134] sm:$0xf]
      %v1595 = vld [vmem:[%s5 + $0x138] sm:$0xf]
      %v1596 = vld [vmem:[%s5 + $0x13c] sm:$0xf]
      %v1597 = vld [vmem:[%s5 + $0x140] sm:$0xf]
      %v1598 = vld [vmem:[%s5 + $0x144] sm:$0xf]
      %v1599 = vld [vmem:[%s5 + $0x148] sm:$0xf]
      %v1600 = vld [vmem:[%s5 + $0x14c] sm:$0xf]
      %v1601 = vld [vmem:[%s5 + $0x150] sm:$0xf]
      %v1602 = vld [vmem:[%s5 + $0x154] sm:$0xf]
      %v1603 = vld [vmem:[%s5 + $0x158] sm:$0xf]
      %v1604 = vld [vmem:[%s5 + $0x15c] sm:$0xf]
      %v1605 = vld [vmem:[%s5 + $0x160] sm:$0xf]
      %v1606 = vld [vmem:[%s5 + $0x164] sm:$0xf]
      %v1607 = vld [vmem:[%s5 + $0x168] sm:$0xf]
      %v1608 = vld [vmem:[%s5 + $0x16c] sm:$0xf]
      %v1609 = vld [vmem:[%s5 + $0x170] sm:$0xf]
      %v1610 = vld [vmem:[%s5 + $0x174] sm:$0xf]
      %v1611 = vld [vmem:[%s5 + $0x178] sm:$0xf]
      %v1612 = vld [vmem:[%s5 + $0x17c] sm:$0xf]
      %v1613 = vld [vmem:[%s5 + $0x180] sm:$0xf]
      %v1614 = vld [vmem:[%s5 + $0x184] sm:$0xf]
      %v1615 = vld [vmem:[%s5 + $0x188] sm:$0xf]
      %v1616 = vld [vmem:[%s5 + $0x18c] sm:$0xf]
      %v1617 = vld [vmem:[%s5 + $0x190] sm:$0xf]
      %v1618 = vld [vmem:[%s5 + $0x194] sm:$0xf]
      %v1619 = vld [vmem:[%s5 + $0x198] sm:$0xf]
      %v1620 = vld [vmem:[%s5 + $0x19c] sm:$0xf]
      %v1621 = vld [vmem:[%s5 + $0x1a0] sm:$0xf]
      %v1622 = vld [vmem:[%s5 + $0x1a4] sm:$0xf]
      %v1623 = vld [vmem:[%s5 + $0x1a8] sm:$0xf]
      %v1624 = vld [vmem:[%s5 + $0x1ac] sm:$0xf]
      %v1625 = vld [vmem:[%s5 + $0x1b0] sm:$0xf]
      %v1626 = vld [vmem:[%s5 + $0x1b4] sm:$0xf]
      %v1627 = vld [vmem:[%s5 + $0x1b8] sm:$0xf]
      %v1628 = vld [vmem:[%s5 + $0x1bc] sm:$0xf]
      %v1629 = vld [vmem:[%s5 + $0x1c0] sm:$0xf]
      %v1630 = vld [vmem:[%s5 + $0x1c4] sm:$0xf]
      %v1631 = vld [vmem:[%s5 + $0x1c8] sm:$0xf]
      %v1632 = vld [vmem:[%s5 + $0x1cc] sm:$0xf]
      %v1633 = vld [vmem:[%s5 + $0x1d0] sm:$0xf]
      %v1634 = vld [vmem:[%s5 + $0x1d4] sm:$0xf]
      %v1635 = vld [vmem:[%s5 + $0x1d8] sm:$0xf]
      %v1636 = vld [vmem:[%s5 + $0x1dc] sm:$0xf]
      %v1637 = vld [vmem:[%s5 + $0x1e0] sm:$0xf]
      %v1638 = vld [vmem:[%s5 + $0x1e4] sm:$0xf]
      %v1639 = vld [vmem:[%s5 + $0x1e8] sm:$0xf]
      %v1640 = vld [vmem:[%s5 + $0x1ec] sm:$0xf]
      %v1641 = vld [vmem:[%s5 + $0x1f0] sm:$0xf]
      %v1642 = vld [vmem:[%s5 + $0x1f4] sm:$0xf]
      %v1643 = vld [vmem:[%s5 + $0x1f8] sm:$0xf]
      %v1644 = vld [vmem:[%s5 + $0x1fc] sm:$0xf]
      %v1645 = vld [vmem:[%s5 + $0x200] sm:$0xf]
      %v1646 = vld [vmem:[%s5 + $0x204] sm:$0xf]
      %v1647 = vld [vmem:[%s5 + $0x208] sm:$0xf]
      %v1648 = vld [vmem:[%s5 + $0x20c] sm:$0xf]
      %v1649 = vld [vmem:[%s5 + $0x210] sm:$0xf]
      %v1650 = vld [vmem:[%s5 + $0x214] sm:$0xf]
      %v1651 = vld [vmem:[%s5 + $0x218] sm:$0xf]
      %v1652 = vld [vmem:[%s5 + $0x21c] sm:$0xf]
      %v1653 = vld [vmem:[%s5 + $0x220] sm:$0xf]
      %v1654 = vld [vmem:[%s5 + $0x224] sm:$0xf]
      %v1655 = vld [vmem:[%s5 + $0x228] sm:$0xf]
      %v1656 = vld [vmem:[%s5 + $0x22c] sm:$0xf]
      %v1657 = vld [vmem:[%s5 + $0x230] sm:$0xf]
      %v1658 = vld [vmem:[%s5 + $0x234] sm:$0xf]
      %v1659 = vld [vmem:[%s5 + $0x238] sm:$0xf]
      %v1660 = vld [vmem:[%s5 + $0x23c] sm:$0xf]
      %v1805 = vunpack.c.l.b16 %v1517
      %v1806 = vunpack.c.l.b16 %v1518
      %v1807 = vunpack.c.l.b16 %v1519
      %v1808 = vunpack.c.l.b16 %v1520
      %v1809 = vunpack.c.l.b16 %v1521
      %v1810 = vunpack.c.l.b16 %v1522
      %v1811 = vunpack.c.l.b16 %v1523
      %v1812 = vunpack.c.l.b16 %v1524
      %v1813 = vunpack.c.l.b16 %v1525
      %v1814 = vunpack.c.l.b16 %v1526
      %v1815 = vunpack.c.l.b16 %v1527
      %v1816 = vunpack.c.l.b16 %v1528
      %v1817 = vunpack.c.l.b16 %v1529
      %v1818 = vunpack.c.l.b16 %v1530
      %v1819 = vunpack.c.l.b16 %v1531
      %v1820 = vunpack.c.l.b16 %v1532
      %v1821 = vunpack.c.l.b16 %v1533
      %v1822 = vunpack.c.l.b16 %v1534
      %v1823 = vunpack.c.l.b16 %v1535
      %v1824 = vunpack.c.l.b16 %v1536
      %v1825 = vunpack.c.l.b16 %v1537
      %v1826 = vunpack.c.l.b16 %v1538
      %v1827 = vunpack.c.l.b16 %v1539
      %v1828 = vunpack.c.l.b16 %v1540
      %v1829 = vunpack.c.l.b16 %v1541
      %v1830 = vunpack.c.l.b16 %v1542
      %v1831 = vunpack.c.l.b16 %v1543
      %v1832 = vunpack.c.l.b16 %v1544
      %v1833 = vunpack.c.l.b16 %v1545
      %v1834 = vunpack.c.l.b16 %v1546
      %v1835 = vunpack.c.l.b16 %v1547
      %v1836 = vunpack.c.l.b16 %v1548
      %v1837 = vunpack.c.l.b16 %v1549
      %v1838 = vunpack.c.l.b16 %v1550
      %v1839 = vunpack.c.l.b16 %v1551
      %v1840 = vunpack.c.l.b16 %v1552
      %v1841 = vunpack.c.l.b16 %v1553
      %v1842 = vunpack.c.l.b16 %v1554
      %v1843 = vunpack.c.l.b16 %v1555
      %v1844 = vunpack.c.l.b16 %v1556
      %v1845 = vunpack.c.l.b16 %v1557
      %v1846 = vunpack.c.l.b16 %v1558
      %v1847 = vunpack.c.l.b16 %v1559
      %v1848 = vunpack.c.l.b16 %v1560
      %v1849 = vunpack.c.l.b16 %v1561
      %v1850 = vunpack.c.l.b16 %v1562
      %v1851 = vunpack.c.l.b16 %v1563
      %v1852 = vunpack.c.l.b16 %v1564
      %v1853 = vunpack.c.l.b16 %v1565
      %v1854 = vunpack.c.l.b16 %v1566
      %v1855 = vunpack.c.l.b16 %v1567
      %v1856 = vunpack.c.l.b16 %v1568
      %v1857 = vunpack.c.l.b16 %v1569
      %v1858 = vunpack.c.l.b16 %v1570
      %v1859 = vunpack.c.l.b16 %v1571
      %v1860 = vunpack.c.l.b16 %v1572
      %v1861 = vunpack.c.l.b16 %v1573
      %v1862 = vunpack.c.l.b16 %v1574
      %v1863 = vunpack.c.l.b16 %v1575
      %v1864 = vunpack.c.l.b16 %v1576
      %v1865 = vunpack.c.l.b16 %v1577
      %v1866 = vunpack.c.l.b16 %v1578
      %v1867 = vunpack.c.l.b16 %v1579
      %v1868 = vunpack.c.l.b16 %v1580
      %v1869 = vunpack.c.l.b16 %v1581
      %v1870 = vunpack.c.l.b16 %v1582
      %v1871 = vunpack.c.l.b16 %v1583
      %v1872 = vunpack.c.l.b16 %v1584
      %v1873 = vunpack.c.l.b16 %v1585
      %v1874 = vunpack.c.l.b16 %v1586
      %v1875 = vunpack.c.l.b16 %v1587
      %v1876 = vunpack.c.l.b16 %v1588
      %v1877 = vunpack.c.l.b16 %v1589
      %v1878 = vunpack.c.l.b16 %v1590
      %v1879 = vunpack.c.l.b16 %v1591
      %v1880 = vunpack.c.l.b16 %v1592
      %v1881 = vunpack.c.l.b16 %v1593
      %v1882 = vunpack.c.l.b16 %v1594
      %v1883 = vunpack.c.l.b16 %v1595
      %v1884 = vunpack.c.l.b16 %v1596
      %v1885 = vunpack.c.l.b16 %v1597
      %v1886 = vunpack.c.l.b16 %v1598
      %v1887 = vunpack.c.l.b16 %v1599
      %v1888 = vunpack.c.l.b16 %v1600
      %v1889 = vunpack.c.l.b16 %v1601
      %v1890 = vunpack.c.l.b16 %v1602
      %v1891 = vunpack.c.l.b16 %v1603
      %v1892 = vunpack.c.l.b16 %v1604
      %v1893 = vunpack.c.l.b16 %v1605
      %v1894 = vunpack.c.l.b16 %v1606
      %v1895 = vunpack.c.l.b16 %v1607
      %v1896 = vunpack.c.l.b16 %v1608
      %v1897 = vunpack.c.l.b16 %v1609
      %v1898 = vunpack.c.l.b16 %v1610
      %v1899 = vunpack.c.l.b16 %v1611
      %v1900 = vunpack.c.l.b16 %v1612
      %v1901 = vunpack.c.l.b16 %v1613
      %v1902 = vunpack.c.l.b16 %v1614
      %v1903 = vunpack.c.l.b16 %v1615
      %v1904 = vunpack.c.l.b16 %v1616
      %v1905 = vunpack.c.l.b16 %v1617
      %v1906 = vunpack.c.l.b16 %v1618
      %v1907 = vunpack.c.l.b16 %v1619
      %v1908 = vunpack.c.l.b16 %v1620
      %v1909 = vunpack.c.l.b16 %v1621
      %v1910 = vunpack.c.l.b16 %v1622
      %v1911 = vunpack.c.l.b16 %v1623
      %v1912 = vunpack.c.l.b16 %v1624
      %v1913 = vunpack.c.l.b16 %v1625
      %v1914 = vunpack.c.l.b16 %v1626
      %v1915 = vunpack.c.l.b16 %v1627
      %v1916 = vunpack.c.l.b16 %v1628
      %v1917 = vunpack.c.l.b16 %v1629
      %v1918 = vunpack.c.l.b16 %v1630
      %v1919 = vunpack.c.l.b16 %v1631
      %v1920 = vunpack.c.l.b16 %v1632
      %v1921 = vunpack.c.l.b16 %v1633
      %v1922 = vunpack.c.l.b16 %v1634
      %v1923 = vunpack.c.l.b16 %v1635
      %v1924 = vunpack.c.l.b16 %v1636
      %v1925 = vunpack.c.l.b16 %v1637
      %v1926 = vunpack.c.l.b16 %v1638
      %v1927 = vunpack.c.l.b16 %v1639
      %v1928 = vunpack.c.l.b16 %v1640
      %v1929 = vunpack.c.l.b16 %v1641
      %v1930 = vunpack.c.l.b16 %v1642
      %v1931 = vunpack.c.l.b16 %v1643
      %v1932 = vunpack.c.l.b16 %v1644
      %v1933 = vunpack.c.l.b16 %v1645
      %v1934 = vunpack.c.l.b16 %v1646
      %v1935 = vunpack.c.l.b16 %v1647
      %v1936 = vunpack.c.l.b16 %v1648
      %v1937 = vunpack.c.l.b16 %v1649
      %v1938 = vunpack.c.l.b16 %v1650
      %v1939 = vunpack.c.l.b16 %v1651
      %v1940 = vunpack.c.l.b16 %v1652
      %v1941 = vunpack.c.l.b16 %v1653
      %v1942 = vunpack.c.l.b16 %v1654
      %v1943 = vunpack.c.l.b16 %v1655
      %v1944 = vunpack.c.l.b16 %v1656
      %v1945 = vunpack.c.l.b16 %v1657
      %v1946 = vunpack.c.l.b16 %v1658
      %v1947 = vunpack.c.l.b16 %v1659
      %v1948 = vunpack.c.l.b16 %v1660
      %v1949 = vpack.c.b16 %v1806, %v1805
      %v1950 = vpack.c.b16 %v1808, %v1807
      %v1951 = vpack.c.b16 %v1810, %v1809
      %v1952 = vpack.c.b16 %v1812, %v1811
      %v1953 = vpack.c.b16 %v1814, %v1813
      %v1954 = vpack.c.b16 %v1816, %v1815
      %v1955 = vpack.c.b16 %v1818, %v1817
      %v1956 = vpack.c.b16 %v1820, %v1819
      %v1957 = vpack.c.b16 %v1822, %v1821
      %v1958 = vpack.c.b16 %v1824, %v1823
      %v1959 = vpack.c.b16 %v1826, %v1825
      %v1960 = vpack.c.b16 %v1828, %v1827
      %v1961 = vpack.c.b16 %v1830, %v1829
      %v1962 = vpack.c.b16 %v1832, %v1831
      %v1963 = vpack.c.b16 %v1834, %v1833
      %v1964 = vpack.c.b16 %v1836, %v1835
      %v1965 = vpack.c.b16 %v1838, %v1837
      %v1966 = vpack.c.b16 %v1840, %v1839
      %v1967 = vpack.c.b16 %v1842, %v1841
      %v1968 = vpack.c.b16 %v1844, %v1843
      %v1969 = vpack.c.b16 %v1846, %v1845
      %v1970 = vpack.c.b16 %v1848, %v1847
      %v1971 = vpack.c.b16 %v1850, %v1849
      %v1972 = vpack.c.b16 %v1852, %v1851
      %v1973 = vpack.c.b16 %v1854, %v1853
      %v1974 = vpack.c.b16 %v1856, %v1855
      %v1975 = vpack.c.b16 %v1858, %v1857
      %v1976 = vpack.c.b16 %v1860, %v1859
      %v1977 = vpack.c.b16 %v1862, %v1861
      %v1978 = vpack.c.b16 %v1864, %v1863
      %v1979 = vpack.c.b16 %v1866, %v1865
      %v1980 = vpack.c.b16 %v1868, %v1867
      %v1981 = vpack.c.b16 %v1870, %v1869
      %v1982 = vpack.c.b16 %v1872, %v1871
      %v1983 = vpack.c.b16 %v1874, %v1873
      %v1984 = vpack.c.b16 %v1876, %v1875
      %v1985 = vpack.c.b16 %v1878, %v1877
      %v1986 = vpack.c.b16 %v1880, %v1879
      %v1987 = vpack.c.b16 %v1882, %v1881
      %v1988 = vpack.c.b16 %v1884, %v1883
      %v1989 = vpack.c.b16 %v1886, %v1885
      %v1990 = vpack.c.b16 %v1888, %v1887
      %v1991 = vpack.c.b16 %v1890, %v1889
      %v1992 = vpack.c.b16 %v1892, %v1891
      %v1993 = vpack.c.b16 %v1894, %v1893
      %v1994 = vpack.c.b16 %v1896, %v1895
      %v1995 = vpack.c.b16 %v1898, %v1897
      %v1996 = vpack.c.b16 %v1900, %v1899
      %v1997 = vpack.c.b16 %v1902, %v1901
      %v1998 = vpack.c.b16 %v1904, %v1903
      %v1999 = vpack.c.b16 %v1906, %v1905
      %v2000 = vpack.c.b16 %v1908, %v1907
      %v2001 = vpack.c.b16 %v1910, %v1909
      %v2002 = vpack.c.b16 %v1912, %v1911
      %v2003 = vpack.c.b16 %v1914, %v1913
      %v2004 = vpack.c.b16 %v1916, %v1915
      %v2005 = vpack.c.b16 %v1918, %v1917
      %v2006 = vpack.c.b16 %v1920, %v1919
      %v2007 = vpack.c.b16 %v1922, %v1921
      %v2008 = vpack.c.b16 %v1924, %v1923
      %v2009 = vpack.c.b16 %v1926, %v1925
      %v2010 = vpack.c.b16 %v1928, %v1927
      %v2011 = vpack.c.b16 %v1930, %v1929
      %v2012 = vpack.c.b16 %v1932, %v1931
      %v2013 = vpack.c.b16 %v1934, %v1933
      %v2014 = vpack.c.b16 %v1936, %v1935
      %v2015 = vpack.c.b16 %v1938, %v1937
      %v2016 = vpack.c.b16 %v1940, %v1939
      %v2017 = vpack.c.b16 %v1942, %v1941
      %v2018 = vpack.c.b16 %v1944, %v1943
      %v2019 = vpack.c.b16 %v1946, %v1945
      %v2020 = vpack.c.b16 %v1948, %v1947
      %2093 = vmatprep.subr.bf16.mxu0 0
      %2094 = vmatpush1.bf16.msra.mxu0 %v1949
      %2095 = vmatprep.subr.bf16.mxu0 0
      %2096 = vmatpush1.bf16.msra.mxu0 %v1950
      %2097 = vmatprep.subr.bf16.mxu0 0
      %2098 = vmatpush1.bf16.msra.mxu0 %v1951
      %2099 = vmatprep.subr.bf16.mxu0 0
      %2100 = vmatpush1.bf16.msra.mxu0 %v1952
      %2101 = vmatprep.subr.bf16.mxu0 0
      %2102 = vmatpush1.bf16.msra.mxu0 %v1953
      %2103 = vmatprep.subr.bf16.mxu0 0
      %2104 = vmatpush1.bf16.msra.mxu0 %v1954
      %2105 = vmatprep.subr.bf16.mxu0 0
      %2106 = vmatpush1.bf16.msra.mxu0 %v1955
      %2107 = vmatprep.subr.bf16.mxu0 0
      %2108 = vmatpush1.bf16.msra.mxu0 %v1956
      %2109 = vmatprep.subr.bf16.mxu0 0
      %2110 = vmatpush1.bf16.msra.mxu0 %v1957
      %2111 = vmatprep.subr.bf16.mxu0 0
      %2112 = vmatpush1.bf16.msra.mxu0 %v1958
      %2113 = vmatprep.subr.bf16.mxu0 0
      %2114 = vmatpush1.bf16.msra.mxu0 %v1959
      %2115 = vmatprep.subr.bf16.mxu0 0
      %2116 = vmatpush1.bf16.msra.mxu0 %v1960
      %2117 = vmatprep.subr.bf16.mxu0 0
      %2118 = vmatpush1.bf16.msra.mxu0 %v1961
      %2119 = vmatprep.subr.bf16.mxu0 0
      %2120 = vmatpush1.bf16.msra.mxu0 %v1962
      %2121 = vmatprep.subr.bf16.mxu0 0
      %2122 = vmatpush1.bf16.msra.mxu0 %v1963
      %2123 = vmatprep.subr.bf16.mxu0 0
      %2124 = vmatpush1.bf16.msra.mxu0 %v1964
      %2125 = vmatprep.mubr.bf16.mxu0 %v1374
      %2126 = vmatmul.mubr.bf16.gmra.mrb[0].mxu0 %v1373
      %v2127 = vpop.f32.mrb[0].mxu0
      %v2128 = vadd.f32 0.0, %v2127
      %v2129 = vpop.f32.mrb[0].mxu0
      %v2130 = vpop.f32.mrb[0].mxu0
      %v2131 = vadd.f32 0.0, %v2130
      %v2132 = vpop.f32.mrb[0].mxu0
      %2133 = vmatprep.mubr.bf16.mxu0 %v1383
      %2134 = vmatmul.mubr.bf16.gmra.mrb[0].mxu0 %v1382
      %v2135 = vpop.f32.mrb[0].mxu0
      %v2136 = vadd.f32 0.0, %v2135
      %v2137 = vpop.f32.mrb[0].mxu0
      %v2138 = vpop.f32.mrb[0].mxu0
      %v2139 = vadd.f32 0.0, %v2138
      %v2140 = vpop.f32.mrb[0].mxu0
      %2141 = vmatprep.mubr.bf16.mxu0 %v1392
      %2142 = vmatmul.mubr.bf16.gmra.mrb[0].mxu0 %v1391
      %v2143 = vpop.f32.mrb[0].mxu0
      %v2144 = vadd.f32 0.0, %v2143
      %v2145 = vpop.f32.mrb[0].mxu0
      %v2146 = vpop.f32.mrb[0].mxu0
      %v2147 = vadd.f32 0.0, %v2146
      %v2148 = vpop.f32.mrb[0].mxu0
      %2149 = vmatprep.mubr.bf16.mxu0 %v1401
      %2150 = vmatmul.mubr.bf16.gmra.mrb[0].mxu0 %v1400
      %v2151 = vpop.f32.mrb[0].mxu0
      %v2152 = vadd.f32 0.0, %v2151
      %v2153 = vpop.f32.mrb[0].mxu0
      %v2154 = vpop.f32.mrb[0].mxu0
      %v2155 = vadd.f32 0.0, %v2154
      %v2156 = vpop.f32.mrb[0].mxu0
      %2157 = vmatprep.mubr.bf16.mxu0 %v1410
      %2158 = vmatmul.mubr.bf16.gmra.mrb[0].mxu0 %v1409
      %v2159 = vpop.f32.mrb[0].mxu0
      %v2160 = vadd.f32 0.0, %v2159
      %v2161 = vpop.f32.mrb[0].mxu0
      %v2162 = vpop.f32.mrb[0].mxu0
      %v2163 = vadd.f32 0.0, %v2162
      %v2164 = vpop.f32.mrb[0].mxu0
      %2165 = vmatprep.mubr.bf16.mxu0 %v1419
      %2166 = vmatmul.mubr.bf16.gmra.mrb[0].mxu0 %v1418
      %v2167 = vpop.f32.mrb[0].mxu0
      %v2168 = vadd.f32 0.0, %v2167
      %v2169 = vpop.f32.mrb[0].mxu0
      %v2170 = vpop.f32.mrb[0].mxu0
      %v2171 = vadd.f32 0.0, %v2170
      %v2172 = vpop.f32.mrb[0].mxu0
      %2173 = vmatprep.mubr.bf16.mxu0 %v1428
      %2174 = vmatmul.mubr.bf16.gmra.mrb[0].mxu0 %v1427
      %v2175 = vpop.f32.mrb[0].mxu0
      %v2176 = vadd.f32 0.0, %v2175
      %v2177 = vpop.f32.mrb[0].mxu0
      %v2178 = vpop.f32.mrb[0].mxu0
      %v2179 = vadd.f32 0.0, %v2178
      %v2180 = vpop.f32.mrb[0].mxu0
      %2181 = vmatprep.mubr.bf16.mxu0 %v1437
      %2182 = vmatmul.mubr.bf16.gmra.mrb[0].mxu0 %v1436
      %v2183 = vpop.f32.mrb[0].mxu0
      %v2184 = vadd.f32 0.0, %v2183
      %v2185 = vpop.f32.mrb[0].mxu0
      %v2186 = vpop.f32.mrb[0].mxu0
      %v2187 = vadd.f32 0.0, %v2186
      %v2188 = vpop.f32.mrb[0].mxu0
      %2189 = vmatprep.mubr.bf16.mxu0 %v1446
      %2190 = vmatmul.mubr.bf16.gmra.mrb[0].mxu0 %v1445
      %v2191 = vpop.f32.mrb[0].mxu0
      %v2192 = vadd.f32 0.0, %v2191
      %v2193 = vpop.f32.mrb[0].mxu0
      %v2194 = vpop.f32.mrb[0].mxu0
      %v2195 = vadd.f32 0.0, %v2194
      %v2196 = vpop.f32.mrb[0].mxu0
      %2197 = vmatprep.mubr.bf16.mxu0 %v1455
      %2198 = vmatmul.mubr.bf16.gmra.mrb[0].mxu0 %v1454
      %v2199 = vpop.f32.mrb[0].mxu0
      %v2200 = vadd.f32 0.0, %v2199
      %v2201 = vpop.f32.mrb[0].mxu0
      %v2202 = vpop.f32.mrb[0].mxu0
      %v2203 = vadd.f32 0.0, %v2202
      %v2204 = vpop.f32.mrb[0].mxu0
      %2205 = vmatprep.mubr.bf16.mxu0 %v1464
      %2206 = vmatmul.mubr.bf16.gmra.mrb[0].mxu0 %v1463
      %v2207 = vpop.f32.mrb[0].mxu0
      %v2208 = vadd.f32 0.0, %v2207
      %v2209 = vpop.f32.mrb[0].mxu0
      %v2210 = vpop.f32.mrb[0].mxu0
      %v2211 = vadd.f32 0.0, %v2210
      %v2212 = vpop.f32.mrb[0].mxu0
      %2213 = vmatprep.mubr.bf16.mxu0 %v1473
      %2214 = vmatmul.mubr.bf16.gmra.mrb[0].mxu0 %v1472
      %v2215 = vpop.f32.mrb[0].mxu0
      %v2216 = vadd.f32 0.0, %v2215
      %v2217 = vpop.f32.mrb[0].mxu0
      %v2218 = vpop.f32.mrb[0].mxu0
      %v2219 = vadd.f32 0.0, %v2218
      %v2220 = vpop.f32.mrb[0].mxu0
      %2221 = vmatprep.mubr.bf16.mxu0 %v1482
      %2222 = vmatmul.mubr.bf16.gmra.mrb[0].mxu0 %v1481
      %v2223 = vpop.f32.mrb[0].mxu0
      %v2224 = vadd.f32 0.0, %v2223
      %v2225 = vpop.f32.mrb[0].mxu0
      %v2226 = vpop.f32.mrb[0].mxu0
      %v2227 = vadd.f32 0.0, %v2226
      %v2228 = vpop.f32.mrb[0].mxu0
      %2229 = vmatprep.mubr.bf16.mxu0 %v1491
      %2230 = vmatmul.mubr.bf16.gmra.mrb[0].mxu0 %v1490
      %v2231 = vpop.f32.mrb[0].mxu0
      %v2232 = vadd.f32 0.0, %v2231
      %v2233 = vpop.f32.mrb[0].mxu0
      %v2234 = vpop.f32.mrb[0].mxu0
      %v2235 = vadd.f32 0.0, %v2234
      %v2236 = vpop.f32.mrb[0].mxu0
      %2237 = vmatprep.mubr.bf16.mxu0 %v1500
      %2238 = vmatmul.mubr.bf16.gmra.mrb[0].mxu0 %v1499
      %v2239 = vpop.f32.mrb[0].mxu0
      %v2240 = vadd.f32 0.0, %v2239
      %v2241 = vpop.f32.mrb[0].mxu0
      %v2242 = vpop.f32.mrb[0].mxu0
      %v2243 = vadd.f32 0.0, %v2242
      %v2244 = vpop.f32.mrb[0].mxu0
      %2245 = vmatprep.mubr.bf16.mxu0 %v1509
      %2246 = vmatmul.mubr.bf16.gmra.mrb[0].mxu0 %v1508
      %v2247 = vpop.f32.mrb[0].mxu0
      %v2248 = vadd.f32 0.0, %v2247
      %v2249 = vpop.f32.mrb[0].mxu0
      %v2250 = vpop.f32.mrb[0].mxu0
      %v2251 = vadd.f32 0.0, %v2250
      %v2252 = vpop.f32.mrb[0].mxu0
      %2253 = vdwg.mxu0
      %2254 = vmatprep.subr.bf16.mxu0 0
      %2255 = vmatpush1.bf16.msra.mxu0 %v1965
      %2256 = vmatprep.subr.bf16.mxu0 0
      %2257 = vmatpush1.bf16.msra.mxu0 %v1966
      %2258 = vmatprep.subr.bf16.mxu0 0
      %2259 = vmatpush1.bf16.msra.mxu0 %v1967
      %2260 = vmatprep.subr.bf16.mxu0 0
      %2261 = vmatpush1.bf16.msra.mxu0 %v1968
      %2262 = vmatprep.subr.bf16.mxu0 0
      %2263 = vmatpush1.bf16.msra.mxu0 %v1969
      %2264 = vmatprep.subr.bf16.mxu0 0
      %2265 = vmatpush1.bf16.msra.mxu0 %v1970
      %2266 = vmatprep.subr.bf16.mxu0 0
      %2267 = vmatpush1.bf16.msra.mxu0 %v1971
      %2268 = vmatprep.subr.bf16.mxu0 0
      %2269 = vmatpush1.bf16.msra.mxu0 %v1972
      %2270 = vmatprep.subr.bf16.mxu0 0
      %2271 = vmatpush1.bf16.msra.mxu0 %v1973
      %2272 = vmatprep.subr.bf16.mxu0 0
      %2273 = vmatpush1.bf16.msra.mxu0 %v1974
      %2274 = vmatprep.subr.bf16.mxu0 0
      %2275 = vmatpush1.bf16.msra.mxu0 %v1975
      %2276 = vmatprep.subr.bf16.mxu0 0
      %2277 = vmatpush1.bf16.msra.mxu0 %v1976
      %2278 = vmatprep.subr.bf16.mxu0 0
      %2279 = vmatpush1.bf16.msra.mxu0 %v1977
      %2280 = vmatprep.subr.bf16.mxu0 0
      %2281 = vmatpush1.bf16.msra.mxu0 %v1978
      %2282 = vmatprep.subr.bf16.mxu0 0
      %2283 = vmatpush1.bf16.msra.mxu0 %v1979
      %2284 = vmatprep.subr.bf16.mxu0 0
      %2285 = vmatpush1.bf16.msra.mxu0 %v1980
      %2286 = vmatprep.mubr.bf16.mxu0 %v1376
      %2287 = vmatmul.mubr.bf16.gmra.mrb[0].mxu0 %v1375
      %v2288 = vpop.f32.mrb[0].mxu0
      %v2289 = vadd.f32 %v2128, %v2288
      %v2290 = vpop.f32.mrb[0].mxu0
      %v2291 = vpop.f32.mrb[0].mxu0
      %v2292 = vadd.f32 %v2131, %v2291
      %v2293 = vpop.f32.mrb[0].mxu0
      %2294 = vmatprep.mubr.bf16.mxu0 %v1385
      %2295 = vmatmul.mubr.bf16.gmra.mrb[0].mxu0 %v1384
      %v2296 = vpop.f32.mrb[0].mxu0
      %v2297 = vadd.f32 %v2136, %v2296
      %v2298 = vpop.f32.mrb[0].mxu0
      %v2299 = vpop.f32.mrb[0].mxu0
      %v2300 = vadd.f32 %v2139, %v2299
      %v2301 = vpop.f32.mrb[0].mxu0
      %2302 = vmatprep.mubr.bf16.mxu0 %v1394
      %2303 = vmatmul.mubr.bf16.gmra.mrb[0].mxu0 %v1393
      %v2304 = vpop.f32.mrb[0].mxu0
      %v2305 = vadd.f32 %v2144, %v2304
      %v2306 = vpop.f32.mrb[0].mxu0
      %v2307 = vpop.f32.mrb[0].mxu0
      %v2308 = vadd.f32 %v2147, %v2307
      %v2309 = vpop.f32.mrb[0].mxu0
      %2310 = vmatprep.mubr.bf16.mxu0 %v1403
      %2311 = vmatmul.mubr.bf16.gmra.mrb[0].mxu0 %v1402
      %v2312 = vpop.f32.mrb[0].mxu0
      %v2313 = vadd.f32 %v2152, %v2312
      %v2314 = vpop.f32.mrb[0].mxu0
      %v2315 = vpop.f32.mrb[0].mxu0
      %v2316 = vadd.f32 %v2155, %v2315
      %v2317 = vpop.f32.mrb[0].mxu0
      %2318 = vmatprep.mubr.bf16.mxu0 %v1412
      %2319 = vmatmul.mubr.bf16.gmra.mrb[0].mxu0 %v1411
      %v2320 = vpop.f32.mrb[0].mxu0
      %v2321 = vadd.f32 %v2160, %v2320
      %v2322 = vpop.f32.mrb[0].mxu0
      %v2323 = vpop.f32.mrb[0].mxu0
      %v2324 = vadd.f32 %v2163, %v2323
      %v2325 = vpop.f32.mrb[0].mxu0
      %2326 = vmatprep.mubr.bf16.mxu0 %v1421
      %2327 = vmatmul.mubr.bf16.gmra.mrb[0].mxu0 %v1420
      %v2328 = vpop.f32.mrb[0].mxu0
      %v2329 = vadd.f32 %v2168, %v2328
      %v2330 = vpop.f32.mrb[0].mxu0
      %v2331 = vpop.f32.mrb[0].mxu0
      %v2332 = vadd.f32 %v2171, %v2331
      %v2333 = vpop.f32.mrb[0].mxu0
      %2334 = vmatprep.mubr.bf16.mxu0 %v1430
      %2335 = vmatmul.mubr.bf16.gmra.mrb[0].mxu0 %v1429
      %v2336 = vpop.f32.mrb[0].mxu0
      %v2337 = vadd.f32 %v2176, %v2336
      %v2338 = vpop.f32.mrb[0].mxu0
      %v2339 = vpop.f32.mrb[0].mxu0
      %v2340 = vadd.f32 %v2179, %v2339
      %v2341 = vpop.f32.mrb[0].mxu0
      %2342 = vmatprep.mubr.bf16.mxu0 %v1439
      %2343 = vmatmul.mubr.bf16.gmra.mrb[0].mxu0 %v1438
      %v2344 = vpop.f32.mrb[0].mxu0
      %v2345 = vadd.f32 %v2184, %v2344
      %v2346 = vpop.f32.mrb[0].mxu0
      %v2347 = vpop.f32.mrb[0].mxu0
      %v2348 = vadd.f32 %v2187, %v2347
      %v2349 = vpop.f32.mrb[0].mxu0
      %2350 = vmatprep.mubr.bf16.mxu0 %v1448
      %2351 = vmatmul.mubr.bf16.gmra.mrb[0].mxu0 %v1447
      %v2352 = vpop.f32.mrb[0].mxu0
      %v2353 = vadd.f32 %v2192, %v2352
      %v2354 = vpop.f32.mrb[0].mxu0
      %v2355 = vpop.f32.mrb[0].mxu0
      %v2356 = vadd.f32 %v2195, %v2355
      %v2357 = vpop.f32.mrb[0].mxu0
      %2358 = vmatprep.mubr.bf16.mxu0 %v1457
      %2359 = vmatmul.mubr.bf16.gmra.mrb[0].mxu0 %v1456
      %v2360 = vpop.f32.mrb[0].mxu0
      %v2361 = vadd.f32 %v2200, %v2360
      %v2362 = vpop.f32.mrb[0].mxu0
      %v2363 = vpop.f32.mrb[0].mxu0
      %v2364 = vadd.f32 %v2203, %v2363
      %v2365 = vpop.f32.mrb[0].mxu0
      %2366 = vmatprep.mubr.bf16.mxu0 %v1466
      %2367 = vmatmul.mubr.bf16.gmra.mrb[0].mxu0 %v1465
      %v2368 = vpop.f32.mrb[0].mxu0
      %v2369 = vadd.f32 %v2208, %v2368
      %v2370 = vpop.f32.mrb[0].mxu0
      %v2371 = vpop.f32.mrb[0].mxu0
      %v2372 = vadd.f32 %v2211, %v2371
      %v2373 = vpop.f32.mrb[0].mxu0
      %2374 = vmatprep.mubr.bf16.mxu0 %v1475
      %2375 = vmatmul.mubr.bf16.gmra.mrb[0].mxu0 %v1474
      %v2376 = vpop.f32.mrb[0].mxu0
      %v2377 = vadd.f32 %v2216, %v2376
      %v2378 = vpop.f32.mrb[0].mxu0
      %v2379 = vpop.f32.mrb[0].mxu0
      %v2380 = vadd.f32 %v2219, %v2379
      %v2381 = vpop.f32.mrb[0].mxu0
      %2382 = vmatprep.mubr.bf16.mxu0 %v1484
      %2383 = vmatmul.mubr.bf16.gmra.mrb[0].mxu0 %v1483
      %v2384 = vpop.f32.mrb[0].mxu0
      %v2385 = vadd.f32 %v2224, %v2384
      %v2386 = vpop.f32.mrb[0].mxu0
      %v2387 = vpop.f32.mrb[0].mxu0
      %v2388 = vadd.f32 %v2227, %v2387
      %v2389 = vpop.f32.mrb[0].mxu0
      %2390 = vmatprep.mubr.bf16.mxu0 %v1493
      %2391 = vmatmul.mubr.bf16.gmra.mrb[0].mxu0 %v1492
      %v2392 = vpop.f32.mrb[0].mxu0
      %v2393 = vadd.f32 %v2232, %v2392
      %v2394 = vpop.f32.mrb[0].mxu0
      %v2395 = vpop.f32.mrb[0].mxu0
      %v2396 = vadd.f32 %v2235, %v2395
      %v2397 = vpop.f32.mrb[0].mxu0
      %2398 = vmatprep.mubr.bf16.mxu0 %v1502
      %2399 = vmatmul.mubr.bf16.gmra.mrb[0].mxu0 %v1501
      %v2400 = vpop.f32.mrb[0].mxu0
      %v2401 = vadd.f32 %v2240, %v2400
      %v2402 = vpop.f32.mrb[0].mxu0
      %v2403 = vpop.f32.mrb[0].mxu0
      %v2404 = vadd.f32 %v2243, %v2403
      %v2405 = vpop.f32.mrb[0].mxu0
      %2406 = vmatprep.mubr.bf16.mxu0 %v1511
      %2407 = vmatmul.mubr.bf16.gmra.mrb[0].mxu0 %v1510
      %v2408 = vpop.f32.mrb[0].mxu0
      %v2409 = vadd.f32 %v2248, %v2408
      %v2410 = vpop.f32.mrb[0].mxu0
      %v2411 = vpop.f32.mrb[0].mxu0
      %v2412 = vadd.f32 %v2251, %v2411
      %v2413 = vpop.f32.mrb[0].mxu0
      %2414 = vdwg.mxu0
      %2415 = vmatprep.subr.bf16.mxu0 0
      %2416 = vmatpush1.bf16.msra.mxu0 %v1981
      %2417 = vmatprep.subr.bf16.mxu0 0
      %2418 = vmatpush1.bf16.msra.mxu0 %v1982
      %2419 = vmatprep.subr.bf16.mxu0 0
      %2420 = vmatpush1.bf16.msra.mxu0 %v1983
      %2421 = vmatprep.subr.bf16.mxu0 0
      %2422 = vmatpush1.bf16.msra.mxu0 %v1984
      %2423 = vmatprep.subr.bf16.mxu0 0
      %2424 = vmatpush1.bf16.msra.mxu0 %v1985
      %2425 = vmatprep.subr.bf16.mxu0 0
      %2426 = vmatpush1.bf16.msra.mxu0 %v1986
      %2427 = vmatprep.subr.bf16.mxu0 0
      %2428 = vmatpush1.bf16.msra.mxu0 %v1987
      %2429 = vmatprep.subr.bf16.mxu0 0
      %2430 = vmatpush1.bf16.msra.mxu0 %v1988
      %2431 = vmatprep.subr.bf16.mxu0 0
      %2432 = vmatpush1.bf16.msra.mxu0 %v1989
      %2433 = vmatprep.subr.bf16.mxu0 0
      %2434 = vmatpush1.bf16.msra.mxu0 %v1990
      %2435 = vmatprep.subr.bf16.mxu0 0
      %2436 = vmatpush1.bf16.msra.mxu0 %v1991
      %2437 = vmatprep.subr.bf16.mxu0 0
      %2438 = vmatpush1.bf16.msra.mxu0 %v1992
      %2439 = vmatprep.subr.bf16.mxu0 0
      %2440 = vmatpush1.bf16.msra.mxu0 %v1993
      %2441 = vmatprep.subr.bf16.mxu0 0
      %2442 = vmatpush1.bf16.msra.mxu0 %v1994
      %2443 = vmatprep.subr.bf16.mxu0 0
      %2444 = vmatpush1.bf16.msra.mxu0 %v1995
      %2445 = vmatprep.subr.bf16.mxu0 0
      %2446 = vmatpush1.bf16.msra.mxu0 %v1996
      %2447 = vmatprep.mubr.bf16.mxu0 %v1378
      %2448 = vmatmul.mubr.bf16.gmra.mrb[0].mxu0 %v1377
      %v2449 = vpop.f32.mrb[0].mxu0
      %v2450 = vadd.f32 %v2289, %v2449
      %v2451 = vpop.f32.mrb[0].mxu0
      %v2452 = vpop.f32.mrb[0].mxu0
      %v2453 = vadd.f32 %v2292, %v2452
      %v2454 = vpop.f32.mrb[0].mxu0
      %2455 = vmatprep.mubr.bf16.mxu0 %v1387
      %2456 = vmatmul.mubr.bf16.gmra.mrb[0].mxu0 %v1386
      %v2457 = vpop.f32.mrb[0].mxu0
      %v2458 = vadd.f32 %v2297, %v2457
      %v2459 = vpop.f32.mrb[0].mxu0
      %v2460 = vpop.f32.mrb[0].mxu0
      %v2461 = vadd.f32 %v2300, %v2460
      %v2462 = vpop.f32.mrb[0].mxu0
      %2463 = vmatprep.mubr.bf16.mxu0 %v1396
      %2464 = vmatmul.mubr.bf16.gmra.mrb[0].mxu0 %v1395
      %v2465 = vpop.f32.mrb[0].mxu0
      %v2466 = vadd.f32 %v2305, %v2465
      %v2467 = vpop.f32.mrb[0].mxu0
      %v2468 = vpop.f32.mrb[0].mxu0
      %v2469 = vadd.f32 %v2308, %v2468
      %v2470 = vpop.f32.mrb[0].mxu0
      %2471 = vmatprep.mubr.bf16.mxu0 %v1405
      %2472 = vmatmul.mubr.bf16.gmra.mrb[0].mxu0 %v1404
      %v2473 = vpop.f32.mrb[0].mxu0
      %v2474 = vadd.f32 %v2313, %v2473
      %v2475 = vpop.f32.mrb[0].mxu0
      %v2476 = vpop.f32.mrb[0].mxu0
      %v2477 = vadd.f32 %v2316, %v2476
      %v2478 = vpop.f32.mrb[0].mxu0
      %2479 = vmatprep.mubr.bf16.mxu0 %v1414
      %2480 = vmatmul.mubr.bf16.gmra.mrb[0].mxu0 %v1413
      %v2481 = vpop.f32.mrb[0].mxu0
      %v2482 = vadd.f32 %v2321, %v2481
      %v2483 = vpop.f32.mrb[0].mxu0
      %v2484 = vpop.f32.mrb[0].mxu0
      %v2485 = vadd.f32 %v2324, %v2484
      %v2486 = vpop.f32.mrb[0].mxu0
      %2487 = vmatprep.mubr.bf16.mxu0 %v1423
      %2488 = vmatmul.mubr.bf16.gmra.mrb[0].mxu0 %v1422
      %v2489 = vpop.f32.mrb[0].mxu0
      %v2490 = vadd.f32 %v2329, %v2489
      %v2491 = vpop.f32.mrb[0].mxu0
      %v2492 = vpop.f32.mrb[0].mxu0
      %v2493 = vadd.f32 %v2332, %v2492
      %v2494 = vpop.f32.mrb[0].mxu0
      %2495 = vmatprep.mubr.bf16.mxu0 %v1432
      %2496 = vmatmul.mubr.bf16.gmra.mrb[0].mxu0 %v1431
      %v2497 = vpop.f32.mrb[0].mxu0
      %v2498 = vadd.f32 %v2337, %v2497
      %v2499 = vpop.f32.mrb[0].mxu0
      %v2500 = vpop.f32.mrb[0].mxu0
      %v2501 = vadd.f32 %v2340, %v2500
      %v2502 = vpop.f32.mrb[0].mxu0
      %2503 = vmatprep.mubr.bf16.mxu0 %v1441
      %2504 = vmatmul.mubr.bf16.gmra.mrb[0].mxu0 %v1440
      %v2505 = vpop.f32.mrb[0].mxu0
      %v2506 = vadd.f32 %v2345, %v2505
      %v2507 = vpop.f32.mrb[0].mxu0
      %v2508 = vpop.f32.mrb[0].mxu0
      %v2509 = vadd.f32 %v2348, %v2508
      %v2510 = vpop.f32.mrb[0].mxu0
      %2511 = vmatprep.mubr.bf16.mxu0 %v1450
      %2512 = vmatmul.mubr.bf16.gmra.mrb[0].mxu0 %v1449
      %v2513 = vpop.f32.mrb[0].mxu0
      %v2514 = vadd.f32 %v2353, %v2513
      %v2515 = vpop.f32.mrb[0].mxu0
      %v2516 = vpop.f32.mrb[0].mxu0
      %v2517 = vadd.f32 %v2356, %v2516
      %v2518 = vpop.f32.mrb[0].mxu0
      %2519 = vmatprep.mubr.bf16.mxu0 %v1459
      %2520 = vmatmul.mubr.bf16.gmra.mrb[0].mxu0 %v1458
      %v2521 = vpop.f32.mrb[0].mxu0
      %v2522 = vadd.f32 %v2361, %v2521
      %v2523 = vpop.f32.mrb[0].mxu0
      %v2524 = vpop.f32.mrb[0].mxu0
      %v2525 = vadd.f32 %v2364, %v2524
      %v2526 = vpop.f32.mrb[0].mxu0
      %2527 = vmatprep.mubr.bf16.mxu0 %v1468
      %2528 = vmatmul.mubr.bf16.gmra.mrb[0].mxu0 %v1467
      %v2529 = vpop.f32.mrb[0].mxu0
      %v2530 = vadd.f32 %v2369, %v2529
      %v2531 = vpop.f32.mrb[0].mxu0
      %v2532 = vpop.f32.mrb[0].mxu0
      %v2533 = vadd.f32 %v2372, %v2532
      %v2534 = vpop.f32.mrb[0].mxu0
      %2535 = vmatprep.mubr.bf16.mxu0 %v1477
      %2536 = vmatmul.mubr.bf16.gmra.mrb[0].mxu0 %v1476
      %v2537 = vpop.f32.mrb[0].mxu0
      %v2538 = vadd.f32 %v2377, %v2537
      %v2539 = vpop.f32.mrb[0].mxu0
      %v2540 = vpop.f32.mrb[0].mxu0
      %v2541 = vadd.f32 %v2380, %v2540
      %v2542 = vpop.f32.mrb[0].mxu0
      %2543 = vmatprep.mubr.bf16.mxu0 %v1486
      %2544 = vmatmul.mubr.bf16.gmra.mrb[0].mxu0 %v1485
      %v2545 = vpop.f32.mrb[0].mxu0
      %v2546 = vadd.f32 %v2385, %v2545
      %v2547 = vpop.f32.mrb[0].mxu0
      %v2548 = vpop.f32.mrb[0].mxu0
      %v2549 = vadd.f32 %v2388, %v2548
      %v2550 = vpop.f32.mrb[0].mxu0
      %2551 = vmatprep.mubr.bf16.mxu0 %v1495
      %2552 = vmatmul.mubr.bf16.gmra.mrb[0].mxu0 %v1494
      %v2553 = vpop.f32.mrb[0].mxu0
      %v2554 = vadd.f32 %v2393, %v2553
      %v2555 = vpop.f32.mrb[0].mxu0
      %v2556 = vpop.f32.mrb[0].mxu0
      %v2557 = vadd.f32 %v2396, %v2556
      %v2558 = vpop.f32.mrb[0].mxu0
      %2559 = vmatprep.mubr.bf16.mxu0 %v1504
      %2560 = vmatmul.mubr.bf16.gmra.mrb[0].mxu0 %v1503
      %v2561 = vpop.f32.mrb[0].mxu0
      %v2562 = vadd.f32 %v2401, %v2561
      %v2563 = vpop.f32.mrb[0].mxu0
      %v2564 = vpop.f32.mrb[0].mxu0
      %v2565 = vadd.f32 %v2404, %v2564
      %v2566 = vpop.f32.mrb[0].mxu0
      %2567 = vmatprep.mubr.bf16.mxu0 %v1513
      %2568 = vmatmul.mubr.bf16.gmra.mrb[0].mxu0 %v1512
      %v2569 = vpop.f32.mrb[0].mxu0
      %v2570 = vadd.f32 %v2409, %v2569
      %v2571 = vpop.f32.mrb[0].mxu0
      %v2572 = vpop.f32.mrb[0].mxu0
      %v2573 = vadd.f32 %v2412, %v2572
      %v2574 = vpop.f32.mrb[0].mxu0
      %2575 = vdwg.mxu0
      %2576 = vmatprep.subr.bf16.mxu0 0
      %2577 = vmatpush1.bf16.msra.mxu0 %v1997
      %2578 = vmatprep.subr.bf16.mxu0 0
      %2579 = vmatpush1.bf16.msra.mxu0 %v1998
      %2580 = vmatprep.subr.bf16.mxu0 0
      %2581 = vmatpush1.bf16.msra.mxu0 %v1999
      %2582 = vmatprep.subr.bf16.mxu0 0
      %2583 = vmatpush1.bf16.msra.mxu0 %v2000
      %2584 = vmatprep.subr.bf16.mxu0 0
      %2585 = vmatpush1.bf16.msra.mxu0 %v2001
      %2586 = vmatprep.subr.bf16.mxu0 0
      %2587 = vmatpush1.bf16.msra.mxu0 %v2002
      %2588 = vmatprep.subr.bf16.mxu0 0
      %2589 = vmatpush1.bf16.msra.mxu0 %v2003
      %2590 = vmatprep.subr.bf16.mxu0 0
      %2591 = vmatpush1.bf16.msra.mxu0 %v2004
      %2592 = vmatprep.subr.bf16.mxu0 0
      %2593 = vmatpush1.bf16.msra.mxu0 %v2005
      %2594 = vmatprep.subr.bf16.mxu0 0
      %2595 = vmatpush1.bf16.msra.mxu0 %v2006
      %2596 = vmatprep.subr.bf16.mxu0 0
      %2597 = vmatpush1.bf16.msra.mxu0 %v2007
      %2598 = vmatprep.subr.bf16.mxu0 0
      %2599 = vmatpush1.bf16.msra.mxu0 %v2008
      %2600 = vmatprep.subr.bf16.mxu0 0
      %2601 = vmatpush1.bf16.msra.mxu0 %v2009
      %2602 = vmatprep.subr.bf16.mxu0 0
      %2603 = vmatpush1.bf16.msra.mxu0 %v2010
      %2604 = vmatprep.subr.bf16.mxu0 0
      %2605 = vmatpush1.bf16.msra.mxu0 %v2011
      %2606 = vmatprep.subr.bf16.mxu0 0
      %2607 = vmatpush1.bf16.msra.mxu0 %v2012
      %2608 = vmatprep.mubr.bf16.mxu0 %v1380
      %2609 = vmatmul.mubr.bf16.gmra.mrb[0].mxu0 %v1379
      %v2610 = vpop.f32.mrb[0].mxu0
      %v2611 = vadd.f32 %v2450, %v2610
      %v2612 = vpop.f32.mrb[0].mxu0
      %v2613 = vpop.f32.mrb[0].mxu0
      %v2614 = vadd.f32 %v2453, %v2613
      %v2615 = vpop.f32.mrb[0].mxu0
      %2616 = vmatprep.mubr.bf16.mxu0 %v1389
      %2617 = vmatmul.mubr.bf16.gmra.mrb[0].mxu0 %v1388
      %v2618 = vpop.f32.mrb[0].mxu0
      %v2619 = vadd.f32 %v2458, %v2618
      %v2620 = vpop.f32.mrb[0].mxu0
      %v2621 = vpop.f32.mrb[0].mxu0
      %v2622 = vadd.f32 %v2461, %v2621
      %v2623 = vpop.f32.mrb[0].mxu0
      %2624 = vmatprep.mubr.bf16.mxu0 %v1398
      %2625 = vmatmul.mubr.bf16.gmra.mrb[0].mxu0 %v1397
      %v2626 = vpop.f32.mrb[0].mxu0
      %v2627 = vadd.f32 %v2466, %v2626
      %v2628 = vpop.f32.mrb[0].mxu0
      %v2629 = vpop.f32.mrb[0].mxu0
      %v2630 = vadd.f32 %v2469, %v2629
      %v2631 = vpop.f32.mrb[0].mxu0
      %2632 = vmatprep.mubr.bf16.mxu0 %v1407
      %2633 = vmatmul.mubr.bf16.gmra.mrb[0].mxu0 %v1406
      %v2634 = vpop.f32.mrb[0].mxu0
      %v2635 = vadd.f32 %v2474, %v2634
      %v2636 = vpop.f32.mrb[0].mxu0
      %v2637 = vpop.f32.mrb[0].mxu0
      %v2638 = vadd.f32 %v2477, %v2637
      %v2639 = vpop.f32.mrb[0].mxu0
      %2640 = vmatprep.mubr.bf16.mxu0 %v1416
      %2641 = vmatmul.mubr.bf16.gmra.mrb[0].mxu0 %v1415
      %v2642 = vpop.f32.mrb[0].mxu0
      %v2643 = vadd.f32 %v2482, %v2642
      %v2644 = vpop.f32.mrb[0].mxu0
      %v2645 = vpop.f32.mrb[0].mxu0
      %v2646 = vadd.f32 %v2485, %v2645
      %v2647 = vpop.f32.mrb[0].mxu0
      %2648 = vmatprep.mubr.bf16.mxu0 %v1425
      %2649 = vmatmul.mubr.bf16.gmra.mrb[0].mxu0 %v1424
      %v2650 = vpop.f32.mrb[0].mxu0
      %v2651 = vadd.f32 %v2490, %v2650
      %v2652 = vpop.f32.mrb[0].mxu0
      %v2653 = vpop.f32.mrb[0].mxu0
      %v2654 = vadd.f32 %v2493, %v2653
      %v2655 = vpop.f32.mrb[0].mxu0
      %2656 = vmatprep.mubr.bf16.mxu0 %v1434
      %2657 = vmatmul.mubr.bf16.gmra.mrb[0].mxu0 %v1433
      %v2658 = vpop.f32.mrb[0].mxu0
      %v2659 = vadd.f32 %v2498, %v2658
      %v2660 = vpop.f32.mrb[0].mxu0
      %v2661 = vpop.f32.mrb[0].mxu0
      %v2662 = vadd.f32 %v2501, %v2661
      %v2663 = vpop.f32.mrb[0].mxu0
      %2664 = vmatprep.mubr.bf16.mxu0 %v1443
      %2665 = vmatmul.mubr.bf16.gmra.mrb[0].mxu0 %v1442
      %v2666 = vpop.f32.mrb[0].mxu0
      %v2667 = vadd.f32 %v2506, %v2666
      %v2668 = vpop.f32.mrb[0].mxu0
      %v2669 = vpop.f32.mrb[0].mxu0
      %v2670 = vadd.f32 %v2509, %v2669
      %v2671 = vpop.f32.mrb[0].mxu0
      %2672 = vmatprep.mubr.bf16.mxu0 %v1452
      %2673 = vmatmul.mubr.bf16.gmra.mrb[0].mxu0 %v1451
      %v2674 = vpop.f32.mrb[0].mxu0
      %v2675 = vadd.f32 %v2514, %v2674
      %v2676 = vpop.f32.mrb[0].mxu0
      %v2677 = vpop.f32.mrb[0].mxu0
      %v2678 = vadd.f32 %v2517, %v2677
      %v2679 = vpop.f32.mrb[0].mxu0
      %2680 = vmatprep.mubr.bf16.mxu0 %v1461
      %2681 = vmatmul.mubr.bf16.gmra.mrb[0].mxu0 %v1460
      %v2682 = vpop.f32.mrb[0].mxu0
      %v2683 = vadd.f32 %v2522, %v2682
      %v2684 = vpop.f32.mrb[0].mxu0
      %v2685 = vpop.f32.mrb[0].mxu0
      %v2686 = vadd.f32 %v2525, %v2685
      %v2687 = vpop.f32.mrb[0].mxu0
      %2688 = vmatprep.mubr.bf16.mxu0 %v1470
      %2689 = vmatmul.mubr.bf16.gmra.mrb[0].mxu0 %v1469
      %v2690 = vpop.f32.mrb[0].mxu0
      %v2691 = vadd.f32 %v2530, %v2690
      %v2692 = vpop.f32.mrb[0].mxu0
      %v2693 = vpop.f32.mrb[0].mxu0
      %v2694 = vadd.f32 %v2533, %v2693
      %v2695 = vpop.f32.mrb[0].mxu0
      %2696 = vmatprep.mubr.bf16.mxu0 %v1479
      %2697 = vmatmul.mubr.bf16.gmra.mrb[0].mxu0 %v1478
      %v2698 = vpop.f32.mrb[0].mxu0
      %v2699 = vadd.f32 %v2538, %v2698
      %v2700 = vpop.f32.mrb[0].mxu0
      %v2701 = vpop.f32.mrb[0].mxu0
      %v2702 = vadd.f32 %v2541, %v2701
      %v2703 = vpop.f32.mrb[0].mxu0
      %2704 = vmatprep.mubr.bf16.mxu0 %v1488
      %2705 = vmatmul.mubr.bf16.gmra.mrb[0].mxu0 %v1487
      %v2706 = vpop.f32.mrb[0].mxu0
      %v2707 = vadd.f32 %v2546, %v2706
      %v2708 = vpop.f32.mrb[0].mxu0
      %v2709 = vpop.f32.mrb[0].mxu0
      %v2710 = vadd.f32 %v2549, %v2709
      %v2711 = vpop.f32.mrb[0].mxu0
      %2712 = vmatprep.mubr.bf16.mxu0 %v1497
      %2713 = vmatmul.mubr.bf16.gmra.mrb[0].mxu0 %v1496
      %v2714 = vpop.f32.mrb[0].mxu0
      %v2715 = vadd.f32 %v2554, %v2714
      %v2716 = vpop.f32.mrb[0].mxu0
      %v2717 = vpop.f32.mrb[0].mxu0
      %v2718 = vadd.f32 %v2557, %v2717
      %v2719 = vpop.f32.mrb[0].mxu0
      %2720 = vmatprep.mubr.bf16.mxu0 %v1506
      %2721 = vmatmul.mubr.bf16.gmra.mrb[0].mxu0 %v1505
      %v2722 = vpop.f32.mrb[0].mxu0
      %v2723 = vadd.f32 %v2562, %v2722
      %v2724 = vpop.f32.mrb[0].mxu0
      %v2725 = vpop.f32.mrb[0].mxu0
      %v2726 = vadd.f32 %v2565, %v2725
      %v2727 = vpop.f32.mrb[0].mxu0
      %2728 = vmatprep.mubr.bf16.mxu0 %v1515
      %2729 = vmatmul.mubr.bf16.gmra.mrb[0].mxu0 %v1514
      %v2730 = vpop.f32.mrb[0].mxu0
      %v2731 = vadd.f32 %v2570, %v2730
      %v2732 = vpop.f32.mrb[0].mxu0
      %v2733 = vpop.f32.mrb[0].mxu0
      %v2734 = vadd.f32 %v2573, %v2733
      %v2735 = vpop.f32.mrb[0].mxu0
      %2736 = vdwg.mxu0
      %2737 = vmatprep.subr.bf16.mxu0 0
      %2738 = vmatpush1.bf16.msra.mxu0 %v2013
      %2739 = vmatprep.subr.bf16.mxu0 0
      %2740 = vmatpush1.bf16.msra.mxu0 %v2014
      %2741 = vmatprep.subr.bf16.mxu0 0
      %2742 = vmatpush1.bf16.msra.mxu0 %v2015
      %2743 = vmatprep.subr.bf16.mxu0 0
      %2744 = vmatpush1.bf16.msra.mxu0 %v2016
      %2745 = vmatprep.subr.bf16.mxu0 0
      %2746 = vmatpush1.bf16.msra.mxu0 %v2017
      %2747 = vmatprep.subr.bf16.mxu0 0
      %2748 = vmatpush1.bf16.msra.mxu0 %v2018
      %2749 = vmatprep.subr.bf16.mxu0 0
      %2750 = vmatpush1.bf16.msra.mxu0 %v2019
      %2751 = vmatprep.subr.bf16.mxu0 0
      %2752 = vmatpush1.bf16.msra.mxu0 %v2020
      %2753 = vmatprep.subr.bf16.mxu0 0
      %2754 = vmatpush1.bf16.msra.mxu0 0
      %2755 = vmatprep.subr.bf16.mxu0 0
      %2756 = vmatpush1.bf16.msra.mxu0 0
      %2757 = vmatprep.subr.bf16.mxu0 0
      %2758 = vmatpush1.bf16.msra.mxu0 0
      %2759 = vmatprep.subr.bf16.mxu0 0
      %2760 = vmatpush1.bf16.msra.mxu0 0
      %2761 = vmatprep.subr.bf16.mxu0 0
      %2762 = vmatpush1.bf16.msra.mxu0 0
      %2763 = vmatprep.subr.bf16.mxu0 0
      %2764 = vmatpush1.bf16.msra.mxu0 0
      %2765 = vmatprep.subr.bf16.mxu0 0
      %2766 = vmatpush1.bf16.msra.mxu0 0
      %2767 = vmatprep.subr.bf16.mxu0 0
      %2768 = vmatpush1.bf16.msra.mxu0 0
      %2769 = vmatprep.mubr.bf16.mxu0 0
      %2770 = vmatmul.mubr.bf16.gmra.mrb[0].mxu0 %v1381
      %v2771 = vpop.f32.mrb[0].mxu0
      %v2772 = vadd.f32 %v2611, %v2771
      %v2773 = vpop.f32.mrb[0].mxu0
      %v2774 = vpop.f32.mrb[0].mxu0
      %v2775 = vadd.f32 %v2614, %v2774
      %v2776 = vpop.f32.mrb[0].mxu0
      %2777 = vmatprep.mubr.bf16.mxu0 0
      %2778 = vmatmul.mubr.bf16.gmra.mrb[0].mxu0 %v1390
      %v2779 = vpop.f32.mrb[0].mxu0
      %v2780 = vadd.f32 %v2619, %v2779
      %v2781 = vpop.f32.mrb[0].mxu0
      %v2782 = vpop.f32.mrb[0].mxu0
      %v2783 = vadd.f32 %v2622, %v2782
      %v2784 = vpop.f32.mrb[0].mxu0
      %2785 = vmatprep.mubr.bf16.mxu0 0
      %2786 = vmatmul.mubr.bf16.gmra.mrb[0].mxu0 %v1399
      %v2787 = vpop.f32.mrb[0].mxu0
      %v2788 = vadd.f32 %v2627, %v2787
      %v2789 = vpop.f32.mrb[0].mxu0
      %v2790 = vpop.f32.mrb[0].mxu0
      %v2791 = vadd.f32 %v2630, %v2790
      %v2792 = vpop.f32.mrb[0].mxu0
      %2793 = vmatprep.mubr.bf16.mxu0 0
      %2794 = vmatmul.mubr.bf16.gmra.mrb[0].mxu0 %v1408
      %v2795 = vpop.f32.mrb[0].mxu0
      %v2796 = vadd.f32 %v2635, %v2795
      %v2797 = vpop.f32.mrb[0].mxu0
      %v2798 = vpop.f32.mrb[0].mxu0
      %v2799 = vadd.f32 %v2638, %v2798
      %v2800 = vpop.f32.mrb[0].mxu0
      %2801 = vmatprep.mubr.bf16.mxu0 0
      %2802 = vmatmul.mubr.bf16.gmra.mrb[0].mxu0 %v1417
      %v2803 = vpop.f32.mrb[0].mxu0
      %v2804 = vadd.f32 %v2643, %v2803
      %v2805 = vpop.f32.mrb[0].mxu0
      %v2806 = vpop.f32.mrb[0].mxu0
      %v2807 = vadd.f32 %v2646, %v2806
      %v2808 = vpop.f32.mrb[0].mxu0
      %2809 = vmatprep.mubr.bf16.mxu0 0
      %2810 = vmatmul.mubr.bf16.gmra.mrb[0].mxu0 %v1426
      %v2811 = vpop.f32.mrb[0].mxu0
      %v2812 = vadd.f32 %v2651, %v2811
      %v2813 = vpop.f32.mrb[0].mxu0
      %v2814 = vpop.f32.mrb[0].mxu0
      %v2815 = vadd.f32 %v2654, %v2814
      %v2816 = vpop.f32.mrb[0].mxu0
      %2817 = vmatprep.mubr.bf16.mxu0 0
      %2818 = vmatmul.mubr.bf16.gmra.mrb[0].mxu0 %v1435
      %v2819 = vpop.f32.mrb[0].mxu0
      %v2820 = vadd.f32 %v2659, %v2819
      %v2821 = vpop.f32.mrb[0].mxu0
      %v2822 = vpop.f32.mrb[0].mxu0
      %v2823 = vadd.f32 %v2662, %v2822
      %v2824 = vpop.f32.mrb[0].mxu0
      %2825 = vmatprep.mubr.bf16.mxu0 0
      %2826 = vmatmul.mubr.bf16.gmra.mrb[0].mxu0 %v1444
      %v2827 = vpop.f32.mrb[0].mxu0
      %v2828 = vadd.f32 %v2667, %v2827
      %v2829 = vpop.f32.mrb[0].mxu0
      %v2830 = vpop.f32.mrb[0].mxu0
      %v2831 = vadd.f32 %v2670, %v2830
      %v2832 = vpop.f32.mrb[0].mxu0
      %2833 = vmatprep.mubr.bf16.mxu0 0
      %2834 = vmatmul.mubr.bf16.gmra.mrb[0].mxu0 %v1453
      %v2835 = vpop.f32.mrb[0].mxu0
      %v2836 = vadd.f32 %v2675, %v2835
      %v2837 = vpop.f32.mrb[0].mxu0
      %v2838 = vpop.f32.mrb[0].mxu0
      %v2839 = vadd.f32 %v2678, %v2838
      %v2840 = vpop.f32.mrb[0].mxu0
      %2841 = vmatprep.mubr.bf16.mxu0 0
      %2842 = vmatmul.mubr.bf16.gmra.mrb[0].mxu0 %v1462
      %v2843 = vpop.f32.mrb[0].mxu0
      %v2844 = vadd.f32 %v2683, %v2843
      %v2845 = vpop.f32.mrb[0].mxu0
      %v2846 = vpop.f32.mrb[0].mxu0
      %v2847 = vadd.f32 %v2686, %v2846
      %v2848 = vpop.f32.mrb[0].mxu0
      %2849 = vmatprep.mubr.bf16.mxu0 0
      %2850 = vmatmul.mubr.bf16.gmra.mrb[0].mxu0 %v1471
      %v2851 = vpop.f32.mrb[0].mxu0
      %v2852 = vadd.f32 %v2691, %v2851
      %v2853 = vpop.f32.mrb[0].mxu0
      %v2854 = vpop.f32.mrb[0].mxu0
      %v2855 = vadd.f32 %v2694, %v2854
      %v2856 = vpop.f32.mrb[0].mxu0
      %2857 = vmatprep.mubr.bf16.mxu0 0
      %2858 = vmatmul.mubr.bf16.gmra.mrb[0].mxu0 %v1480
      %v2859 = vpop.f32.mrb[0].mxu0
      %v2860 = vadd.f32 %v2699, %v2859
      %v2861 = vpop.f32.mrb[0].mxu0
      %v2862 = vpop.f32.mrb[0].mxu0
      %v2863 = vadd.f32 %v2702, %v2862
      %v2864 = vpop.f32.mrb[0].mxu0
      %2865 = vmatprep.mubr.bf16.mxu0 0
      %2866 = vmatmul.mubr.bf16.gmra.mrb[0].mxu0 %v1489
      %v2867 = vpop.f32.mrb[0].mxu0
      %v2868 = vadd.f32 %v2707, %v2867
      %v2869 = vpop.f32.mrb[0].mxu0
      %v2870 = vpop.f32.mrb[0].mxu0
      %v2871 = vadd.f32 %v2710, %v2870
      %v2872 = vpop.f32.mrb[0].mxu0
      %2873 = vmatprep.mubr.bf16.mxu0 0
      %2874 = vmatmul.mubr.bf16.gmra.mrb[0].mxu0 %v1498
      %v2875 = vpop.f32.mrb[0].mxu0
      %v2876 = vadd.f32 %v2715, %v2875
      %v2877 = vpop.f32.mrb[0].mxu0
      %v2878 = vpop.f32.mrb[0].mxu0
      %v2879 = vadd.f32 %v2718, %v2878
      %v2880 = vpop.f32.mrb[0].mxu0
      %2881 = vmatprep.mubr.bf16.mxu0 0
      %2882 = vmatmul.mubr.bf16.gmra.mrb[0].mxu0 %v1507
      %v2883 = vpop.f32.mrb[0].mxu0
      %v2884 = vadd.f32 %v2723, %v2883
      %v2885 = vpop.f32.mrb[0].mxu0
      %v2886 = vpop.f32.mrb[0].mxu0
      %v2887 = vadd.f32 %v2726, %v2886
      %v2888 = vpop.f32.mrb[0].mxu0
      %2889 = vmatprep.mubr.bf16.mxu0 0
      %2890 = vmatmul.mubr.bf16.gmra.mrb[0].mxu0 %v1516
      %v2891 = vpop.f32.mrb[0].mxu0
      %v2892 = vadd.f32 %v2731, %v2891
      %v2893 = vpop.f32.mrb[0].mxu0
      %v2894 = vpop.f32.mrb[0].mxu0
      %v2895 = vadd.f32 %v2734, %v2894
      %v2896 = vpop.f32.mrb[0].mxu0
      %2897 = vdwg.mxu0
      %v2898 = vpack.c.bf16 %v2775, %v2772
      %v2899 = vpack.c.bf16 %v2783, %v2780
      %v2900 = vpack.c.bf16 %v2791, %v2788
      %v2901 = vpack.c.bf16 %v2799, %v2796
      %v2902 = vpack.c.bf16 %v2807, %v2804
      %v2903 = vpack.c.bf16 %v2815, %v2812
      %v2904 = vpack.c.bf16 %v2823, %v2820
      %v2905 = vpack.c.bf16 %v2831, %v2828
      %v2906 = vpack.c.bf16 %v2839, %v2836
      %v2907 = vpack.c.bf16 %v2847, %v2844
      %v2908 = vpack.c.bf16 %v2855, %v2852
      %v2909 = vpack.c.bf16 %v2863, %v2860
      %v2910 = vpack.c.bf16 %v2871, %v2868
      %v2911 = vpack.c.bf16 %v2879, %v2876
      %v2912 = vpack.c.bf16 %v2887, %v2884
      %v2913 = vpack.c.bf16 %v2895, %v2892
      %v2930 = vunpack.c.l.b16 %v2898
      %v2931 = vunpack.c.h.b16 %v2898
      %v2932 = vunpack.c.l.b16 %v2899
      %v2933 = vunpack.c.h.b16 %v2899
      %v2934 = vunpack.c.l.b16 %v2900
      %v2935 = vunpack.c.h.b16 %v2900
      %v2936 = vunpack.c.l.b16 %v2901
      %v2937 = vunpack.c.h.b16 %v2901
      %v2938 = vunpack.c.l.b16 %v2902
      %v2939 = vunpack.c.h.b16 %v2902
      %v2940 = vunpack.c.l.b16 %v2903
      %v2941 = vunpack.c.h.b16 %v2903
      %v2942 = vunpack.c.l.b16 %v2904
      %v2943 = vunpack.c.h.b16 %v2904
      %v2944 = vunpack.c.l.b16 %v2905
      %v2945 = vunpack.c.h.b16 %v2905
      %v2946 = vunpack.c.l.b16 %v2906
      %v2947 = vunpack.c.h.b16 %v2906
      %v2948 = vunpack.c.l.b16 %v2907
      %v2949 = vunpack.c.h.b16 %v2907
      %v2950 = vunpack.c.l.b16 %v2908
      %v2951 = vunpack.c.h.b16 %v2908
      %v2952 = vunpack.c.l.b16 %v2909
      %v2953 = vunpack.c.h.b16 %v2909
      %v2954 = vunpack.c.l.b16 %v2910
      %v2955 = vunpack.c.h.b16 %v2910
      %v2956 = vunpack.c.l.b16 %v2911
      %v2957 = vunpack.c.h.b16 %v2911
      %v2958 = vunpack.c.l.b16 %v2912
      %v2959 = vunpack.c.h.b16 %v2912
      %v2960 = vunpack.c.l.b16 %v2913
      %v2961 = vunpack.c.h.b16 %v2913
      %v2962 = vpack.c.b16 %v2930, %v2930
      %v2963 = vpack.c.b16 %v2931, %v2931
      %v2964 = vpack.c.b16 %v2932, %v2932
      %v2965 = vpack.c.b16 %v2933, %v2933
      %v2966 = vpack.c.b16 %v2934, %v2934
      %v2967 = vpack.c.b16 %v2935, %v2935
      %v2968 = vpack.c.b16 %v2936, %v2936
      %v2969 = vpack.c.b16 %v2937, %v2937
      %v2970 = vpack.c.b16 %v2938, %v2938
      %v2971 = vpack.c.b16 %v2939, %v2939
      %v2972 = vpack.c.b16 %v2940, %v2940
      %v2973 = vpack.c.b16 %v2941, %v2941
      %v2974 = vpack.c.b16 %v2942, %v2942
      %v2975 = vpack.c.b16 %v2943, %v2943
      %v2976 = vpack.c.b16 %v2944, %v2944
      %v2977 = vpack.c.b16 %v2945, %v2945
      %v2978 = vpack.c.b16 %v2946, %v2946
      %v2979 = vpack.c.b16 %v2947, %v2947
      %v2980 = vpack.c.b16 %v2948, %v2948
      %v2981 = vpack.c.b16 %v2949, %v2949
      %v2982 = vpack.c.b16 %v2950, %v2950
      %v2983 = vpack.c.b16 %v2951, %v2951
      %v2984 = vpack.c.b16 %v2952, %v2952
      %v2985 = vpack.c.b16 %v2953, %v2953
      %v2986 = vpack.c.b16 %v2954, %v2954
      %v2987 = vpack.c.b16 %v2955, %v2955
      %v2988 = vpack.c.b16 %v2956, %v2956
      %v2989 = vpack.c.b16 %v2957, %v2957
      %v2990 = vpack.c.b16 %v2958, %v2958
      %v2991 = vpack.c.b16 %v2959, %v2959
      %v2992 = vpack.c.b16 %v2960, %v2960
      %v2993 = vpack.c.b16 %v2961, %v2961
      %3026 = vst [vmem:[%s493] sm:$0xf] %v2962
      %3027 = vst [vmem:[%s493 + $0x4] sm:$0xf] %v2963
      %3028 = vst [vmem:[%s493 + $0x8] sm:$0xf] %v2964
      %3029 = vst [vmem:[%s493 + $0xc] sm:$0xf] %v2965
      %3030 = vst [vmem:[%s493 + $0x10] sm:$0xf] %v2966
      %3031 = vst [vmem:[%s493 + $0x14] sm:$0xf] %v2967
      %3032 = vst [vmem:[%s493 + $0x18] sm:$0xf] %v2968
      %3033 = vst [vmem:[%s493 + $0x1c] sm:$0xf] %v2969
      %3034 = vst [vmem:[%s493 + $0x20] sm:$0xf] %v2970
      %3035 = vst [vmem:[%s493 + $0x24] sm:$0xf] %v2971
      %3036 = vst [vmem:[%s493 + $0x28] sm:$0xf] %v2972
      %3037 = vst [vmem:[%s493 + $0x2c] sm:$0xf] %v2973
      %3038 = vst [vmem:[%s493 + $0x30] sm:$0xf] %v2974
      %3039 = vst [vmem:[%s493 + $0x34] sm:$0xf] %v2975
      %3040 = vst [vmem:[%s493 + $0x38] sm:$0xf] %v2976
      %3041 = vst [vmem:[%s493 + $0x3c] sm:$0xf] %v2977
      %3042 = vst [vmem:[%s493 + $0x40] sm:$0xf] %v2978
      %3043 = vst [vmem:[%s493 + $0x44] sm:$0xf] %v2979
      %3044 = vst [vmem:[%s493 + $0x48] sm:$0xf] %v2980
      %3045 = vst [vmem:[%s493 + $0x4c] sm:$0xf] %v2981
      %3046 = vst [vmem:[%s493 + $0x50] sm:$0xf] %v2982
      %3047 = vst [vmem:[%s493 + $0x54] sm:$0xf] %v2983
      %3048 = vst [vmem:[%s493 + $0x58] sm:$0xf] %v2984
      %3049 = vst [vmem:[%s493 + $0x5c] sm:$0xf] %v2985
      %3050 = vst [vmem:[%s493 + $0x60] sm:$0xf] %v2986
      %3051 = vst [vmem:[%s493 + $0x64] sm:$0xf] %v2987
      %3052 = vst [vmem:[%s493 + $0x68] sm:$0xf] %v2988
      %3053 = vst [vmem:[%s493 + $0x6c] sm:$0xf] %v2989
      %3054 = vst [vmem:[%s493 + $0x70] sm:$0xf] %v2990
      %3055 = vst [vmem:[%s493 + $0x74] sm:$0xf] %v2991
      %3056 = vst [vmem:[%s493 + $0x78] sm:$0xf] %v2992
      %3057 = vst [vmem:[%s493 + $0x7c] sm:$0xf] %v2993
      %v3058 = vadd.f32 %v2772, %v2775
      %v3059 = vadd.f32 %v3058, %v2780
      %v3060 = vadd.f32 %v3059, %v2783
      %v3061 = vadd.f32 %v3060, %v2788
      %v3062 = vadd.f32 %v3061, %v2791
      %v3063 = vadd.f32 %v3062, %v2796
      %v3064 = vadd.f32 %v3063, %v2799
      %v3065 = vadd.f32 %v3064, %v2804
      %v3066 = vadd.f32 %v3065, %v2807
      %v3067 = vadd.f32 %v3066, %v2812
      %v3068 = vadd.f32 %v3067, %v2815
      %v3069 = vadd.f32 %v3068, %v2820
      %v3070 = vadd.f32 %v3069, %v2823
      %v3071 = vadd.f32 %v3070, %v2828
      %v3072 = vadd.f32 %v3071, %v2831
      %v3073 = vadd.f32 %v3072, %v2836
      %v3074 = vadd.f32 %v3073, %v2839
      %v3075 = vadd.f32 %v3074, %v2844
      %v3076 = vadd.f32 %v3075, %v2847
      %v3077 = vadd.f32 %v3076, %v2852
      %v3078 = vadd.f32 %v3077, %v2855
      %v3079 = vadd.f32 %v3078, %v2860
      %v3080 = vadd.f32 %v3079, %v2863
      %v3081 = vadd.f32 %v3080, %v2868
      %v3082 = vadd.f32 %v3081, %v2871
      %v3083 = vadd.f32 %v3082, %v2876
      %v3084 = vadd.f32 %v3083, %v2879
      %v3085 = vadd.f32 %v3084, %v2884
      %v3086 = vadd.f32 %v3085, %v2887
      %v3087 = vadd.f32 %v3086, %v2892
      %v3088 = vadd.f32 %v3087, %v2895
      %v3089 = vrot.slane %v3088, 4
      %v3090 = vadd.f32 %v3088, %v3089
      %v3091 = vrot.slane %v3090, 2
      %v3092 = vadd.f32 %v3090, %v3091
      %v3093 = vrot.slane %v3092, 1
      %v3094 = vadd.f32 %v3092, %v3093
      %3095 = vst [vmem:[%s500] sm:$0x1] %v3094
      %v3096 = vmul.f32 %v2772, %v2772
      %v3097 = vmul.f32 %v2775, %v2775
      %v3098 = vmul.f32 %v2780, %v2780
      %v3099 = vmul.f32 %v2783, %v2783
      %v3100 = vmul.f32 %v2788, %v2788
      %v3101 = vmul.f32 %v2791, %v2791
      %v3102 = vmul.f32 %v2796, %v2796
      %v3103 = vmul.f32 %v2799, %v2799
      %v3104 = vmul.f32 %v2804, %v2804
      %v3105 = vmul.f32 %v2807, %v2807
      %v3106 = vmul.f32 %v2812, %v2812
      %v3107 = vmul.f32 %v2815, %v2815
      %v3108 = vmul.f32 %v2820, %v2820
      %v3109 = vmul.f32 %v2823, %v2823
      %v3110 = vmul.f32 %v2828, %v2828
      %v3111 = vmul.f32 %v2831, %v2831
      %v3112 = vmul.f32 %v2836, %v2836
      %v3113 = vmul.f32 %v2839, %v2839
      %v3114 = vmul.f32 %v2844, %v2844
      %v3115 = vmul.f32 %v2847, %v2847
      %v3116 = vmul.f32 %v2852, %v2852
      %v3117 = vmul.f32 %v2855, %v2855
      %v3118 = vmul.f32 %v2860, %v2860
      %v3119 = vmul.f32 %v2863, %v2863
      %v3120 = vmul.f32 %v2868, %v2868
      %v3121 = vmul.f32 %v2871, %v2871
      %v3122 = vmul.f32 %v2876, %v2876
      %v3123 = vmul.f32 %v2879, %v2879
      %v3124 = vmul.f32 %v2884, %v2884
      %v3125 = vmul.f32 %v2887, %v2887
      %v3126 = vmul.f32 %v2892, %v2892
      %v3127 = vmul.f32 %v2895, %v2895
      %v3128 = vadd.f32 %v3096, %v3097
      %v3129 = vadd.f32 %v3128, %v3098
      %v3130 = vadd.f32 %v3129, %v3099
      %v3131 = vadd.f32 %v3130, %v3100
      %v3132 = vadd.f32 %v3131, %v3101
      %v3133 = vadd.f32 %v3132, %v3102
      %v3134 = vadd.f32 %v3133, %v3103
      %v3135 = vadd.f32 %v3134, %v3104
      %v3136 = vadd.f32 %v3135, %v3105
      %v3137 = vadd.f32 %v3136, %v3106
      %v3138 = vadd.f32 %v3137, %v3107
      %v3139 = vadd.f32 %v3138, %v3108
      %v3140 = vadd.f32 %v3139, %v3109
      %v3141 = vadd.f32 %v3140, %v3110
      %v3142 = vadd.f32 %v3141, %v3111
      %v3143 = vadd.f32 %v3142, %v3112
      %v3144 = vadd.f32 %v3143, %v3113
      %v3145 = vadd.f32 %v3144, %v3114
      %v3146 = vadd.f32 %v3145, %v3115
      %v3147 = vadd.f32 %v3146, %v3116
      %v3148 = vadd.f32 %v3147, %v3117
      %v3149 = vadd.f32 %v3148, %v3118
      %v3150 = vadd.f32 %v3149, %v3119
      %v3151 = vadd.f32 %v3150, %v3120
      %v3152 = vadd.f32 %v3151, %v3121
      %v3153 = vadd.f32 %v3152, %v3122
      %v3154 = vadd.f32 %v3153, %v3123
      %v3155 = vadd.f32 %v3154, %v3124
      %v3156 = vadd.f32 %v3155, %v3125
      %v3157 = vadd.f32 %v3156, %v3126
      %v3158 = vadd.f32 %v3157, %v3127
      %v3159 = vrot.slane %v3158, 4
      %v3160 = vadd.f32 %v3158, %v3159
      %v3161 = vrot.slane %v3160, 2
      %v3162 = vadd.f32 %v3160, %v3161
      %v3163 = vrot.slane %v3162, 1
      %v3164 = vadd.f32 %v3162, %v3163
      %3165 = vst [vmem:[%s506] sm:$0x1] %v3164
      %s3166 = smul.u32 16, %s25
      %p3167 = scmp.lt.s32.totalorder %s24, 1
      %s3168 = scalar_select %p3167, %s24, 1
      %p3169 = scmp.lt.s32.totalorder %s3166, 15
      %s3170 = scalar_select %p3169, %s3166, 15
      %s3171 = smul.addr %s3170, 2
      %s3172 = smul.addr %s3168, 32
      %s3173 = sadd.s32 %s3171, %s3172
      %s3174 = smul.addr %s3173, 4
      %s3175 = scalar_lea.vmem %s6, %s3174
      %p3176 = scmp.lt.s32.totalorder %s24, 1
      %s3177 = scalar_select %p3176, %s24, 1
      %p3178 = scmp.lt.s32.totalorder %s25, 0
      %s3179 = scalar_select %p3178, %s25, 0
      %s3180 = sadd.s32 %s3179, %s3177
      %s3181 = scalar_lea.vmem %s7, %s3180
      %p3182 = scmp.lt.s32.totalorder %s24, 1
      %s3183 = scalar_select %p3182, %s24, 1
      %p3184 = scmp.lt.s32.totalorder %s25, 0
      %s3185 = scalar_select %p3184, %s25, 0
      %s3186 = sadd.s32 %s3185, %s3183
      %s3187 = scalar_lea.vmem %s8, %s3186
      // Predicated region
      $region61: #{double_conv_forward.4} parent=43 // pred_check
        %p3188 = pneg %p215
      $region62: #{double_conv_forward.4} parent=43 // pred_check_branch
        %3190 = sbr.rel (%p3188) target = $region64
      $region63: #{double_conv_forward.4} parent=43 // pred_region
        %s3191 = smul.u32 16, %s25
      $region64: #{double_conv_forward.4} parent=43 // pred_fallthru
        _
      // Predicated region
      $region65: #{double_conv_forward.4} parent=43 // pred_check
        %p3192 = pneg %p243
      $region66: #{double_conv_forward.4} parent=43 // pred_check_branch
        %3194 = sbr.rel (%p3192) target = $region68
      $region67: #{double_conv_forward.4} parent=43 // pred_region
        _
      $region68: #{double_conv_forward.4} parent=43 // pred_fallthru
        _
      // Predicated region
      $region69: #{double_conv_forward.4} parent=43 // pred_check
        %p3195 = pneg %p271
      $region70: #{double_conv_forward.4} parent=43 // pred_check_branch
        %3197 = sbr.rel (%p3195) target = $region72
      $region71: #{double_conv_forward.4} parent=43 // pred_region
        _
      $region72: #{double_conv_forward.4} parent=43 // pred_fallthru
        _
    $region44: #{double_conv_forward.4} parent=5 // pred_fallthru
      _
    %p3198 = scmp.le.s32.totalorder 2, %s15
    // Predicated region
    $region73: #{double_conv_forward.4} parent=5 // pred_check
      %p3199 = pneg %p3198
    $region74: #{double_conv_forward.4} parent=5 // pred_check_branch
      %3201 = sbr.rel (%p3199) target = $region76
    $region75: #{double_conv_forward.4} parent=5 // pred_region
      %s3202 = ssub.s32 %s15, 2
      // Predicated region
      $region77: #{double_conv_forward.4} parent=75 // pred_check
        %p3203 = pneg %p221
      $region78: #{double_conv_forward.4} parent=75 // pred_check_branch
        %3205 = sbr.rel (%p3203) target = $region80
      $region79: #{double_conv_forward.4} parent=75 // pred_region
        %s3206 = smul.u32 16, %s27
        %p3207 = scmp.lt.s32.totalorder %s26, 1
        %s3208 = scalar_select %p3207, %s26, 1
        %p3209 = scmp.lt.s32.totalorder %s3206, 15
        %s3210 = scalar_select %p3209, %s3206, 15
        %s3211 = smul.addr %s3210, 2
        %s3212 = smul.addr %s3208, 32
        %s3213 = sadd.s32 %s3211, %s3212
        %s3214 = smul.addr %s3213, 4
        %s3215 = scalar_lea.vmem %s6, %s3214
      $region80: #{double_conv_forward.4} parent=75 // pred_fallthru
        _
      // Predicated region
      $region81: #{double_conv_forward.4} parent=75 // pred_check
        %p3216 = pneg %p249
      $region82: #{double_conv_forward.4} parent=75 // pred_check_branch
        %3218 = sbr.rel (%p3216) target = $region84
      $region83: #{double_conv_forward.4} parent=75 // pred_region
        %p3219 = scmp.lt.s32.totalorder %s26, 1
        %s3220 = scalar_select %p3219, %s26, 1
        %p3221 = scmp.lt.s32.totalorder %s27, 0
        %s3222 = scalar_select %p3221, %s27, 0
        %s3223 = sadd.s32 %s3222, %s3220
        %s3224 = scalar_lea.vmem %s7, %s3223
      $region84: #{double_conv_forward.4} parent=75 // pred_fallthru
        _
      // Predicated region
      $region85: #{double_conv_forward.4} parent=75 // pred_check
        %p3225 = pneg %p277
      $region86: #{double_conv_forward.4} parent=75 // pred_check_branch
        %3227 = sbr.rel (%p3225) target = $region88
      $region87: #{double_conv_forward.4} parent=75 // pred_region
        %p3228 = scmp.lt.s32.totalorder %s26, 1
        %s3229 = scalar_select %p3228, %s26, 1
        %p3230 = scmp.lt.s32.totalorder %s27, 0
        %s3231 = scalar_select %p3230, %s27, 0
        %s3232 = sadd.s32 %s3231, %s3229
        %s3233 = scalar_lea.vmem %s8, %s3232
      $region88: #{double_conv_forward.4} parent=75 // pred_fallthru
        _
    $region76: #{double_conv_forward.4} parent=5 // pred_fallthru
      _
  $region6: #{double_conv_forward.4} parent=0 // loop_footer
    %s19 = sadd.s32 1, %s15
  $region7: #{double_conv_forward.4} parent=0 // loop_footer_branch
    %14 = sbr.rel target = $region3
  $region8: #{double_conv_forward.4} parent=0 // loop_exit
    _

</llo_original>
